<compile_context>
chip_gen: v6e
topology: v6e:2x2x1
jax: 0.10.0
libtpu: 0.0.40
codegen_flags: <defaults>
</compile_context>

<pallas_src>
import functools
import math

import jax
import jax.numpy as jnp
from jax.experimental import pallas as pl
from jax.experimental.pallas import tpu as pltpu


# ----------------------------------------------------------------------------
# Helpers
# ----------------------------------------------------------------------------

def _full_spec(shape):
    nd = len(shape)
    return pl.BlockSpec(shape, lambda i, _nd=nd: (0,) * _nd)


# ----------------------------------------------------------------------------
# Pallas kernel 1: fused conv block
#   conv + bias + ReLU + MaxPool2d(2) + Dropout(id) + BN(eval), one MXU matmul.
#   p_ref: (4*m, K) bf16 parity-grouped im2col patches; rows [g*m:(g+1)*m] are the
#   conv inputs for pooled positions whose offset inside the 2x2 window is g.
# ----------------------------------------------------------------------------

def _conv_block_kernel(p_ref, w_ref, b_ref, s_ref, t_ref, o_ref, *, m):
    y = jnp.dot(p_ref[...], w_ref[...], preferred_element_type=jnp.float32)  # (4m, N)
    # 2x2 max pool == elementwise max of the 4 parity row-groups.
    z = jnp.maximum(jnp.maximum(y[0:m, :], y[m:2 * m, :]),
                    jnp.maximum(y[2 * m:3 * m, :], y[3 * m:4 * m, :]))
    # bias + ReLU commute with the max (same per-channel bias, relu monotone).
    z = jnp.maximum(z + b_ref[...], 0.0)
    # eval-mode BatchNorm folded to per-channel affine.
    o_ref[...] = (z * s_ref[...] + t_ref[...]).astype(o_ref.dtype)


def conv_block(x, w_flat, b, bn_scale, bn_shift):
    """x: (B,H,W,Cin) bf16 -> (B,Hp,Wp,Cout) bf16.  Conv2d(k=4,s=1,p=2)+ReLU+MaxPool(2)+BN."""
    B, H, W, Cin = x.shape
    Hp, Wp = (H + 1) // 2, (W + 1) // 2          # conv out = H+1, floor pool /2
    Cout = w_flat.shape[1]
    K = 16 * Cin

    # im2col over the 2Hp x 2Wp conv outputs that survive the floor pool (XLA glue,
    # tiny tensors).  Column order is (di, dj, ci) -- matches the flattened weight.
    xp = jnp.pad(x, ((0, 0), (2, 2), (2, 2), (0, 0)))
    taps = [xp[:, di:di + 2 * Hp, dj:dj + 2 * Wp, :]
            for di in range(4) for dj in range(4)]
    allp = jnp.concatenate(taps, axis=-1)        # (B, 2Hp, 2Wp, K)

    M = B * Hp * Wp
    Mp = max(8, ((M + 7) // 8) * 8)              # sublane-align row groups (only hits layer 5)
    groups = []
    for px in (0, 1):
        for py in (0, 1):
            g = allp[:, px::2, py::2, :].reshape(M, K)
            if Mp != M:
                g = jnp.pad(g, ((0, Mp - M), (0, 0)))
            groups.append(g)
    patches = jnp.concatenate(groups, axis=0)    # (4*Mp, K) bf16

    out = pl.pallas_call(
        functools.partial(_conv_block_kernel, m=Mp),
        out_shape=jax.ShapeDtypeStruct((Mp, Cout), jnp.bfloat16),
        grid=(1,),
        in_specs=[
            _full_spec((4 * Mp, K)),
            _full_spec((K, Cout)),
            _full_spec((1, Cout)),
            _full_spec((1, Cout)),
            _full_spec((1, Cout)),
        ],
        out_specs=_full_spec((Mp, Cout)),
    )(patches, w_flat, b, bn_scale, bn_shift)

    if Mp != M:
        out = out[:M]
    return out.reshape(B, Hp, Wp, Cout)


# ----------------------------------------------------------------------------
# Pallas kernel 2: fused decoder (whole teacher-forcing time loop in one call)
#   grid=(T,) "arbitrary"; weights resident (constant index_map); h in VMEM scratch.
# ----------------------------------------------------------------------------

def _decoder_step_kernel(op_ref, xf_ref, w_op_ref, b_op_ref, w_ih_ref, w_hh_ref,
                         b_ih_ref, b_hh_ref, w_fc1_ref, b_fc1_ref, w_out_ref,
                         b_out_ref, out_ref, h_ref, *, hd, in_sz):
    t = pl.program_id(0)

    @pl.when(t == 0)
    def _():
        h_ref[...] = jnp.zeros_like(h_ref)

    # dense_input_op + ReLU
    op = op_ref[...]                                                  # (B, num_draws+1)
    op_rnn = jnp.maximum(
        jnp.dot(op, w_op_ref[...], preferred_element_type=jnp.float32) + b_op_ref[...],
        0.0)                                                          # (B, input_op_sz)

    # GRU step on concat([x_f, op_rnn]) done as two matmuls against split weight rows.
    xf = xf_ref[...]
    h = h_ref[...]
    gi = (jnp.dot(xf, w_ih_ref[0:in_sz, :], preferred_element_type=jnp.float32)
          + jnp.dot(op_rnn, w_ih_ref[in_sz:, :], preferred_element_type=jnp.float32)
          + b_ih_ref[...])
    gh = jnp.dot(h, w_hh_ref[...], preferred_element_type=jnp.float32) + b_hh_ref[...]
    r = jax.nn.sigmoid(gi[:, 0:hd] + gh[:, 0:hd])
    z = jax.nn.sigmoid(gi[:, hd:2 * hd] + gh[:, hd:2 * hd])
    n = jnp.tanh(gi[:, 2 * hd:3 * hd] + r * gh[:, 2 * hd:3 * hd])
    h_new = (1.0 - z) * n + z * h
    h_ref[...] = h_new

    # dense_fc_1 + ReLU, dense_output, log_softmax -- all fused in the same step.
    hdv = jnp.maximum(
        jnp.dot(h_new, w_fc1_ref[...], preferred_element_type=jnp.float32) + b_fc1_ref[...],
        0.0)
    logits = (jnp.dot(hdv, w_out_ref[...], preferred_element_type=jnp.float32)
              + b_out_ref[...])
    m = jnp.max(logits, axis=-1, keepdims=True)
    e = jnp.exp(logits - m)
    s = jnp.sum(e, axis=-1, keepdims=True)
    out_ref[...] = logits - m - jnp.log(s)


def decoder_forward(params, x_f, input_op):
    B = x_f.shape[0]
    in_sz = x_f.shape[1]
    op_sz = params["w_in_op"].shape[1]
    nd1 = params["w_in_op"].shape[0]          # num_draws + 1
    hd = params["w_hh"].shape[0]
    num_draws = params["w_out"].shape[1]

    op_seq = jnp.transpose(input_op, (1, 0, 2))        # (T, B, num_draws+1)
    T = op_seq.shape[0]

    def const(shape):
        nd = len(shape)
        return pl.BlockSpec(shape, lambda t, _nd=nd: (0,) * _nd)

    out = pl.pallas_call(
        functools.partial(_decoder_step_kernel, hd=hd, in_sz=in_sz),
        out_shape=jax.ShapeDtypeStruct((T, B, num_draws), jnp.float32),
        grid=(T,),
        in_specs=[
            pl.BlockSpec((None, B, nd1), lambda t: (t, 0, 0)),     # per-step op one-hot
            const((B, in_sz)),                                     # x_f (resident)
            const((nd1, op_sz)),                                   # dense_input_op W
            const((1, op_sz)),
            const((in_sz + op_sz, 3 * hd)),                        # GRU W_ih
            const((hd, 3 * hd)),                                   # GRU W_hh
            const((1, 3 * hd)),
            const((1, 3 * hd)),
            const((hd, hd)),                                       # dense_fc_1
            const((1, hd)),
            const((hd, num_draws)),                                # dense_output
            const((1, num_draws)),
        ],
        out_specs=pl.BlockSpec((None, B, num_draws), lambda t: (t, 0, 0)),
        scratch_shapes=[pltpu.VMEM((B, hd), jnp.float32)],         # hidden state carry
        compiler_params=pltpu.CompilerParams(dimension_semantics=("arbitrary",)),
    )(op_seq, x_f, params["w_in_op"], params["b_in_op"], params["w_ih"],
      params["w_hh"], params["b_ih"], params["b_hh"], params["w_fc1"],
      params["b_fc1"], params["w_out"], params["b_out"])
    return out                                                     # (T, B, num_draws)


# ----------------------------------------------------------------------------
# Parameter init (deterministic, PyTorch-style uniform fan-in scaling)
# ----------------------------------------------------------------------------

def _linear_init(key, fan_in, fan_out):
    k1, k2 = jax.random.split(key)
    bound = 1.0 / math.sqrt(fan_in)
    w = jax.random.uniform(k1, (fan_in, fan_out), jnp.float32, -bound, bound)
    b = jax.random.uniform(k2, (fan_out,), jnp.float32, -bound, bound)
    return w, b


def _bn_init(key, c, eps=1e-5):
    k1, k2, k3, k4 = jax.random.split(key, 4)
    gamma = jax.random.uniform(k1, (c,), jnp.float32, 0.5, 1.5)
    beta = jax.random.uniform(k2, (c,), jnp.float32, -0.1, 0.1)
    running_mean = jax.random.uniform(k3, (c,), jnp.float32, -0.1, 0.1)
    running_var = jax.random.uniform(k4, (c,), jnp.float32, 0.5, 1.5)
    scale = gamma / jnp.sqrt(running_var + eps)
    shift = beta - running_mean * scale
    return scale, shift


def init_params(key, num_draws, in_sz, hd_sz, input_op_sz):
    keys = jax.random.split(key, 16)
    enc_chans = [1, 32, 64, 128, 128, 128]
    encoder = []
    for i in range(5):
        cin, cout = enc_chans[i], enc_chans[i + 1]
        # Flattened conv weight, row order (kh, kw, cin) to match the im2col columns.
        w, b = _linear_init(keys[i], 4 * 4 * cin, cout)
        scale, shift = _bn_init(keys[5 + i], cout)
        encoder.append((w.astype(jnp.bfloat16),        # bf16 MXU operand
                        b.reshape(1, cout),
                        scale.reshape(1, cout),
                        shift.reshape(1, cout)))

    w_in_op, b_in_op = _linear_init(keys[10], num_draws + 1, input_op_sz)

    rnn_in = in_sz + input_op_sz
    gbound = 1.0 / math.sqrt(hd_sz)
    g = jax.random.split(keys[11], 4)
    w_ih = jax.random.uniform(g[0], (rnn_in, 3 * hd_sz), jnp.float32, -gbound, gbound)
    w_hh = jax.random.uniform(g[1], (hd_sz, 3 * hd_sz), jnp.float32, -gbound, gbound)
    b_ih = jax.random.uniform(g[2], (3 * hd_sz,), jnp.float32, -gbound, gbound)
    b_hh = jax.random.uniform(g[3], (3 * hd_sz,), jnp.float32, -gbound, gbound)

    w_fc1, b_fc1 = _linear_init(keys[12], hd_sz, hd_sz)
    w_out, b_out = _linear_init(keys[13], hd_sz, num_draws)

    return dict(encoder=encoder,
                w_in_op=w_in_op, b_in_op=b_in_op.reshape(1, -1),
                w_ih=w_ih, w_hh=w_hh,
                b_ih=b_ih.reshape(1, -1), b_hh=b_hh.reshape(1, -1),
                w_fc1=w_fc1, b_fc1=b_fc1.reshape(1, -1),
                w_out=w_out, b_out=b_out.reshape(1, -1))


# ----------------------------------------------------------------------------
# M_CsgNet forward (mode=1, teacher forcing)
# ----------------------------------------------------------------------------

def encoder_forward(params, x_img):
    # x_img: (B, H, W, 1) f32 -> (B, in_sz) f32
    x = x_img.astype(jnp.bfloat16)
    for (w, b, s, t) in params["encoder"]:
        x = conv_block(x, w, b, s, t)          # 5 fused conv+relu+pool+BN kernels
    B = x.shape[0]
    return x.reshape(B, -1).astype(jnp.float32)


@functools.partial(jax.jit, static_argnames=("program_len",))
def m_csgnet_forward(params, data, input_op, *, program_len):
    # data: (B, T, C, H, W); input_op: (B, program_len+1, num_draws+1)
    # data.permute(1,0,2,3,4)[-1, :, 0:1]  ==  data[:, -1, 0:1]
    x0 = data[:, -1, 0:1, :, :]                       # (B, 1, H, W)
    x = jnp.transpose(x0, (0, 2, 3, 1))               # -> NHWC (B, H, W, 1)
    x_f = encoder_forward(params, x)                  # (B, in_sz)
    ops = input_op[:, :program_len + 1, :]
    return decoder_forward(params, x_f, ops)          # (program_len+1, B, num_draws)


# ----------------------------------------------------------------------------
# Main
# ----------------------------------------------------------------------------

if __name__ == "__main__":
    B, T, H, W = 2, 3, 32, 32
    num_draws, in_sz, hd_sz, input_op_sz = 64, 128, 128, 128
    program_len = 3

    root = jax.random.PRNGKey(0)
    k_params, k_data, k_op = jax.random.split(root, 3)

    params = init_params(k_params, num_draws, in_sz, hd_sz, input_op_sz)

    data = jax.random.normal(k_data, (B, T, 1, H, W), jnp.float32)
    op_idx = jax.random.randint(k_op, (B, program_len + 1), 0, num_draws + 1)
    input_op = jax.nn.one_hot(op_idx, num_draws + 1, dtype=jnp.float32)

    outs = m_csgnet_forward(params, data, input_op, program_len=program_len)
    outs = jax.block_until_ready(outs)                 # (program_len+1, B, num_draws)
    assert outs.shape == (program_len + 1, B, num_draws)
    assert bool(jnp.all(jnp.isfinite(outs)))
    print("KERNEL_OK")
</pallas_src>

<mosaic_0001>
module attributes {stable_mosaic.version = 11 : i64} {
  func.func @_conv_block_kernel(%arg0: i32, %arg1: memref<2048x16xbf16, #tpu.memory_space<vmem>>, %arg2: memref<16x32xbf16, #tpu.memory_space<vmem>>, %arg3: memref<1x32xf32, #tpu.memory_space<vmem>>, %arg4: memref<1x32xf32, #tpu.memory_space<vmem>>, %arg5: memref<1x32xf32, #tpu.memory_space<vmem>>, %arg6: memref<512x32xbf16, #tpu.memory_space<vmem>>) attributes {dimension_semantics = [#tpu.dimension_semantics<arbitrary>], iteration_bounds = array<i64: 1>, scalar_prefetch = 0 : i64, scratch_operands = 0 : i64, tpu.core_type = #tpu.core_type<tc>, window_params = [{pipeline_mode = #tpu.pipeline_mode<synchronous>, transform_indices = @transform_0, window_bounds = array<i64: 2048, 16>}, {pipeline_mode = #tpu.pipeline_mode<synchronous>, transform_indices = @transform_1, window_bounds = array<i64: 16, 32>}, {pipeline_mode = #tpu.pipeline_mode<synchronous>, transform_indices = @transform_2, window_bounds = array<i64: 1, 32>}, {pipeline_mode = #tpu.pipeline_mode<synchronous>, transform_indices = @transform_3, window_bounds = array<i64: 1, 32>}, {pipeline_mode = #tpu.pipeline_mode<synchronous>, transform_indices = @transform_4, window_bounds = array<i64: 1, 32>}, {pipeline_mode = #tpu.pipeline_mode<synchronous>, transform_indices = @transform_5, window_bounds = array<i64: 512, 32>}]} {
    %c0 = arith.constant 0 : index
    %c0_0 = arith.constant 0 : index
    %0 = vector.load %arg1[%c0, %c0_0] : memref<2048x16xbf16, #tpu.memory_space<vmem>>, vector<2048x16xbf16>
    %c0_1 = arith.constant 0 : index
    %c0_2 = arith.constant 0 : index
    %1 = vector.load %arg2[%c0_1, %c0_2] : memref<16x32xbf16, #tpu.memory_space<vmem>>, vector<16x32xbf16>
    %cst = arith.constant dense<0.000000e+00> : vector<2048x32xf32>
    %2 = tpu.matmul %0, %1, %cst {dimension_numbers = #tpu.dot_dimension_numbers<[1], [0], [0], [1], [0, 0, 1, 1], [], []>} : vector<2048x16xbf16>, vector<16x32xbf16>, vector<2048x32xf32> -> vector<2048x32xf32>
    %3 = vector.extract_strided_slice %2 {offsets = [0, 0], sizes = [512, 32], strides = [1, 1]} : vector<2048x32xf32> to vector<512x32xf32>
    %4 = vector.extract_strided_slice %2 {offsets = [512, 0], sizes = [512, 32], strides = [1, 1]} : vector<2048x32xf32> to vector<512x32xf32>
    %5 = arith.maximumf %3, %4 : vector<512x32xf32>
    %6 = vector.extract_strided_slice %2 {offsets = [1024, 0], sizes = [512, 32], strides = [1, 1]} : vector<2048x32xf32> to vector<512x32xf32>
    %7 = vector.extract_strided_slice %2 {offsets = [1536, 0], sizes = [512, 32], strides = [1, 1]} : vector<2048x32xf32> to vector<512x32xf32>
    %8 = arith.maximumf %6, %7 : vector<512x32xf32>
    %9 = arith.maximumf %5, %8 : vector<512x32xf32>
    %c0_3 = arith.constant 0 : index
    %c0_4 = arith.constant 0 : index
    %10 = vector.load %arg3[%c0_3, %c0_4] : memref<1x32xf32, #tpu.memory_space<vmem>>, vector<1x32xf32>
    %11 = vector.broadcast %10 : vector<1x32xf32> to vector<512x32xf32>
    %12 = arith.addf %9, %11 : vector<512x32xf32>
    %cst_5 = arith.constant 0.000000e+00 : f32
    %13 = vector.broadcast %cst_5 : f32 to vector<512x32xf32>
    %14 = arith.maximumf %12, %13 : vector<512x32xf32>
    %c0_6 = arith.constant 0 : index
    %c0_7 = arith.constant 0 : index
    %15 = vector.load %arg4[%c0_6, %c0_7] : memref<1x32xf32, #tpu.memory_space<vmem>>, vector<1x32xf32>
    %16 = vector.broadcast %15 : vector<1x32xf32> to vector<512x32xf32>
    %17 = arith.mulf %14, %16 : vector<512x32xf32>
    %c0_8 = arith.constant 0 : index
    %c0_9 = arith.constant 0 : index
    %18 = vector.load %arg5[%c0_8, %c0_9] : memref<1x32xf32, #tpu.memory_space<vmem>>, vector<1x32xf32>
    %19 = vector.broadcast %18 : vector<1x32xf32> to vector<512x32xf32>
    %20 = arith.addf %17, %19 : vector<512x32xf32>
    %21 = arith.truncf %20 : vector<512x32xf32> to vector<512x32xbf16>
    %c0_10 = arith.constant 0 : index
    %c0_11 = arith.constant 0 : index
    %22 = vector.load %arg6[%c0_10, %c0_11] : memref<512x32xbf16, #tpu.memory_space<vmem>>, vector<512x32xbf16>
    tpu.vector_store %arg6[%c0_10, %c0_11], %21 {strides = array<i32>} : memref<512x32xbf16, #tpu.memory_space<vmem>>, vector<512x32xbf16>,
    return
  }
  func.func @transform_0(%arg0: i32) -> (i32, i32) {
    %c0_i32 = arith.constant 0 : i32
    %c0_i32_0 = arith.constant 0 : i32
    %c0_i32_1 = arith.constant 0 : i32
    return %c0_i32, %c0_i32_0 : i32, i32
  }
  func.func @transform_1(%arg0: i32) -> (i32, i32) {
    %c0_i32 = arith.constant 0 : i32
    %c0_i32_0 = arith.constant 0 : i32
    %c0_i32_1 = arith.constant 0 : i32
    return %c0_i32, %c0_i32_0 : i32, i32
  }
  func.func @transform_2(%arg0: i32) -> (i32, i32) {
    %c0_i32 = arith.constant 0 : i32
    %c0_i32_0 = arith.constant 0 : i32
    %c0_i32_1 = arith.constant 0 : i32
    return %c0_i32, %c0_i32_0 : i32, i32
  }
  func.func @transform_3(%arg0: i32) -> (i32, i32) {
    %c0_i32 = arith.constant 0 : i32
    %c0_i32_0 = arith.constant 0 : i32
    %c0_i32_1 = arith.constant 0 : i32
    return %c0_i32, %c0_i32_0 : i32, i32
  }
  func.func @transform_4(%arg0: i32) -> (i32, i32) {
    %c0_i32 = arith.constant 0 : i32
    %c0_i32_0 = arith.constant 0 : i32
    %c0_i32_1 = arith.constant 0 : i32
    return %c0_i32, %c0_i32_0 : i32, i32
  }
  func.func @transform_5(%arg0: i32) -> (i32, i32) {
    %c0_i32 = arith.constant 0 : i32
    %c0_i32_0 = arith.constant 0 : i32
    %c0_i32_1 = arith.constant 0 : i32
    return %c0_i32, %c0_i32_0 : i32, i32
  }
}

module attributes {stable_mosaic.version = 11 : i64} {
  func.func @_conv_block_kernel(%arg0: i32, %arg1: memref<512x512xbf16, #tpu.memory_space<vmem>>, %arg2: memref<512x64xbf16, #tpu.memory_space<vmem>>, %arg3: memref<1x64xf32, #tpu.memory_space<vmem>>, %arg4: memref<1x64xf32, #tpu.memory_space<vmem>>, %arg5: memref<1x64xf32, #tpu.memory_space<vmem>>, %arg6: memref<128x64xbf16, #tpu.memory_space<vmem>>) attributes {dimension_semantics = [#tpu.dimension_semantics<arbitrary>], iteration_bounds = array<i64: 1>, scalar_prefetch = 0 : i64, scratch_operands = 0 : i64, tpu.core_type = #tpu.core_type<tc>, window_params = [{pipeline_mode = #tpu.pipeline_mode<synchronous>, transform_indices = @transform_0, window_bounds = array<i64: 512, 512>}, {pipeline_mode = #tpu.pipeline_mode<synchronous>, transform_indices = @transform_1, window_bounds = array<i64: 512, 64>}, {pipeline_mode = #tpu.pipeline_mode<synchronous>, transform_indices = @transform_2, window_bounds = array<i64: 1, 64>}, {pipeline_mode = #tpu.pipeline_mode<synchronous>, transform_indices = @transform_3, window_bounds = array<i64: 1, 64>}, {pipeline_mode = #tpu.pipeline_mode<synchronous>, transform_indices = @transform_4, window_bounds = array<i64: 1, 64>}, {pipeline_mode = #tpu.pipeline_mode<synchronous>, transform_indices = @transform_5, window_bounds = array<i64: 128, 64>}]} {
    %c0 = arith.constant 0 : index
    %c0_0 = arith.constant 0 : index
    %0 = vector.load %arg1[%c0, %c0_0] : memref<512x512xbf16, #tpu.memory_space<vmem>>, vector<512x512xbf16>
    %c0_1 = arith.constant 0 : index
    %c0_2 = arith.constant 0 : index
    %1 = vector.load %arg2[%c0_1, %c0_2] : memref<512x64xbf16, #tpu.memory_space<vmem>>, vector<512x64xbf16>
    %cst = arith.constant dense<0.000000e+00> : vector<512x64xf32>
    %2 = tpu.matmul %0, %1, %cst {dimension_numbers = #tpu.dot_dimension_numbers<[1], [0], [0], [1], [0, 0, 1, 1], [], []>} : vector<512x512xbf16>, vector<512x64xbf16>, vector<512x64xf32> -> vector<512x64xf32>
    %3 = vector.extract_strided_slice %2 {offsets = [0, 0], sizes = [128, 64], strides = [1, 1]} : vector<512x64xf32> to vector<128x64xf32>
    %4 = vector.extract_strided_slice %2 {offsets = [128, 0], sizes = [128, 64], strides = [1, 1]} : vector<512x64xf32> to vector<128x64xf32>
    %5 = arith.maximumf %3, %4 : vector<128x64xf32>
    %6 = vector.extract_strided_slice %2 {offsets = [256, 0], sizes = [128, 64], strides = [1, 1]} : vector<512x64xf32> to vector<128x64xf32>
    %7 = vector.extract_strided_slice %2 {offsets = [384, 0], sizes = [128, 64], strides = [1, 1]} : vector<512x64xf32> to vector<128x64xf32>
    %8 = arith.maximumf %6, %7 : vector<128x64xf32>
    %9 = arith.maximumf %5, %8 : vector<128x64xf32>
    %c0_3 = arith.constant 0 : index
    %c0_4 = arith.constant 0 : index
    %10 = vector.load %arg3[%c0_3, %c0_4] : memref<1x64xf32, #tpu.memory_space<vmem>>, vector<1x64xf32>
    %11 = vector.broadcast %10 : vector<1x64xf32> to vector<128x64xf32>
    %12 = arith.addf %9, %11 : vector<128x64xf32>
    %cst_5 = arith.constant 0.000000e+00 : f32
    %13 = vector.broadcast %cst_5 : f32 to vector<128x64xf32>
    %14 = arith.maximumf %12, %13 : vector<128x64xf32>
    %c0_6 = arith.constant 0 : index
    %c0_7 = arith.constant 0 : index
    %15 = vector.load %arg4[%c0_6, %c0_7] : memref<1x64xf32, #tpu.memory_space<vmem>>, vector<1x64xf32>
    %16 = vector.broadcast %15 : vector<1x64xf32> to vector<128x64xf32>
    %17 = arith.mulf %14, %16 : vector<128x64xf32>
    %c0_8 = arith.constant 0 : index
    %c0_9 = arith.constant 0 : index
    %18 = vector.load %arg5[%c0_8, %c0_9] : memref<1x64xf32, #tpu.memory_space<vmem>>, vector<1x64xf32>
    %19 = vector.broadcast %18 : vector<1x64xf32> to vector<128x64xf32>
    %20 = arith.addf %17, %19 : vector<128x64xf32>
    %21 = arith.truncf %20 : vector<128x64xf32> to vector<128x64xbf16>
    %c0_10 = arith.constant 0 : index
    %c0_11 = arith.constant 0 : index
    %22 = vector.load %arg6[%c0_10, %c0_11] : memref<128x64xbf16, #tpu.memory_space<vmem>>, vector<128x64xbf16>
    tpu.vector_store %arg6[%c0_10, %c0_11], %21 {strides = array<i32>} : memref<128x64xbf16, #tpu.memory_space<vmem>>, vector<128x64xbf16>,
    return
  }
  func.func @transform_0(%arg0: i32) -> (i32, i32) {
    %c0_i32 = arith.constant 0 : i32
    %c0_i32_0 = arith.constant 0 : i32
    %c0_i32_1 = arith.constant 0 : i32
    return %c0_i32, %c0_i32_0 : i32, i32
  }
  func.func @transform_1(%arg0: i32) -> (i32, i32) {
    %c0_i32 = arith.constant 0 : i32
    %c0_i32_0 = arith.constant 0 : i32
    %c0_i32_1 = arith.constant 0 : i32
    return %c0_i32, %c0_i32_0 : i32, i32
  }
  func.func @transform_2(%arg0: i32) -> (i32, i32) {
    %c0_i32 = arith.constant 0 : i32
    %c0_i32_0 = arith.constant 0 : i32
    %c0_i32_1 = arith.constant 0 : i32
    return %c0_i32, %c0_i32_0 : i32, i32
  }
  func.func @transform_3(%arg0: i32) -> (i32, i32) {
    %c0_i32 = arith.constant 0 : i32
    %c0_i32_0 = arith.constant 0 : i32
    %c0_i32_1 = arith.constant 0 : i32
    return %c0_i32, %c0_i32_0 : i32, i32
  }
  func.func @transform_4(%arg0: i32) -> (i32, i32) {
    %c0_i32 = arith.constant 0 : i32
    %c0_i32_0 = arith.constant 0 : i32
    %c0_i32_1 = arith.constant 0 : i32
    return %c0_i32, %c0_i32_0 : i32, i32
  }
  func.func @transform_5(%arg0: i32) -> (i32, i32) {
    %c0_i32 = arith.constant 0 : i32
    %c0_i32_0 = arith.constant 0 : i32
    %c0_i32_1 = arith.constant 0 : i32
    return %c0_i32, %c0_i32_0 : i32, i32
  }
}

module attributes {stable_mosaic.version = 11 : i64} {
  func.func @_conv_block_kernel(%arg0: i32, %arg1: memref<128x1024xbf16, #tpu.memory_space<vmem>>, %arg2: memref<1024x128xbf16, #tpu.memory_space<vmem>>, %arg3: memref<1x128xf32, #tpu.memory_space<vmem>>, %arg4: memref<1x128xf32, #tpu.memory_space<vmem>>, %arg5: memref<1x128xf32, #tpu.memory_space<vmem>>, %arg6: memref<32x128xbf16, #tpu.memory_space<vmem>>) attributes {dimension_semantics = [#tpu.dimension_semantics<arbitrary>], iteration_bounds = array<i64: 1>, scalar_prefetch = 0 : i64, scratch_operands = 0 : i64, tpu.core_type = #tpu.core_type<tc>, window_params = [{pipeline_mode = #tpu.pipeline_mode<synchronous>, transform_indices = @transform_0, window_bounds = array<i64: 128, 1024>}, {pipeline_mode = #tpu.pipeline_mode<synchronous>, transform_indices = @transform_1, window_bounds = array<i64: 1024, 128>}, {pipeline_mode = #tpu.pipeline_mode<synchronous>, transform_indices = @transform_2, window_bounds = array<i64: 1, 128>}, {pipeline_mode = #tpu.pipeline_mode<synchronous>, transform_indices = @transform_3, window_bounds = array<i64: 1, 128>}, {pipeline_mode = #tpu.pipeline_mode<synchronous>, transform_indices = @transform_4, window_bounds = array<i64: 1, 128>}, {pipeline_mode = #tpu.pipeline_mode<synchronous>, transform_indices = @transform_5, window_bounds = array<i64: 32, 128>}]} {
    %c0 = arith.constant 0 : index
    %c0_0 = arith.constant 0 : index
    %0 = vector.load %arg1[%c0, %c0_0] : memref<128x1024xbf16, #tpu.memory_space<vmem>>, vector<128x1024xbf16>
    %c0_1 = arith.constant 0 : index
    %c0_2 = arith.constant 0 : index
    %1 = vector.load %arg2[%c0_1, %c0_2] : memref<1024x128xbf16, #tpu.memory_space<vmem>>, vector<1024x128xbf16>
    %cst = arith.constant dense<0.000000e+00> : vector<128x128xf32>
    %2 = tpu.matmul %0, %1, %cst {dimension_numbers = #tpu.dot_dimension_numbers<[1], [0], [0], [1], [0, 0, 1, 1], [], []>} : vector<128x1024xbf16>, vector<1024x128xbf16>, vector<128x128xf32> -> vector<128x128xf32>
    %3 = vector.extract_strided_slice %2 {offsets = [0, 0], sizes = [32, 128], strides = [1, 1]} : vector<128x128xf32> to vector<32x128xf32>
    %4 = vector.extract_strided_slice %2 {offsets = [32, 0], sizes = [32, 128], strides = [1, 1]} : vector<128x128xf32> to vector<32x128xf32>
    %5 = arith.maximumf %3, %4 : vector<32x128xf32>
    %6 = vector.extract_strided_slice %2 {offsets = [64, 0], sizes = [32, 128], strides = [1, 1]} : vector<128x128xf32> to vector<32x128xf32>
    %7 = vector.extract_strided_slice %2 {offsets = [96, 0], sizes = [32, 128], strides = [1, 1]} : vector<128x128xf32> to vector<32x128xf32>
    %8 = arith.maximumf %6, %7 : vector<32x128xf32>
    %9 = arith.maximumf %5, %8 : vector<32x128xf32>
    %c0_3 = arith.constant 0 : index
    %c0_4 = arith.constant 0 : index
    %10 = vector.load %arg3[%c0_3, %c0_4] : memref<1x128xf32, #tpu.memory_space<vmem>>, vector<1x128xf32>
    %11 = vector.broadcast %10 : vector<1x128xf32> to vector<32x128xf32>
    %12 = arith.addf %9, %11 : vector<32x128xf32>
    %cst_5 = arith.constant 0.000000e+00 : f32
    %13 = vector.broadcast %cst_5 : f32 to vector<32x128xf32>
    %14 = arith.maximumf %12, %13 : vector<32x128xf32>
    %c0_6 = arith.constant 0 : index
    %c0_7 = arith.constant 0 : index
    %15 = vector.load %arg4[%c0_6, %c0_7] : memref<1x128xf32, #tpu.memory_space<vmem>>, vector<1x128xf32>
    %16 = vector.broadcast %15 : vector<1x128xf32> to vector<32x128xf32>
    %17 = arith.mulf %14, %16 : vector<32x128xf32>
    %c0_8 = arith.constant 0 : index
    %c0_9 = arith.constant 0 : index
    %18 = vector.load %arg5[%c0_8, %c0_9] : memref<1x128xf32, #tpu.memory_space<vmem>>, vector<1x128xf32>
    %19 = vector.broadcast %18 : vector<1x128xf32> to vector<32x128xf32>
    %20 = arith.addf %17, %19 : vector<32x128xf32>
    %21 = arith.truncf %20 : vector<32x128xf32> to vector<32x128xbf16>
    %c0_10 = arith.constant 0 : index
    %c0_11 = arith.constant 0 : index
    %22 = vector.load %arg6[%c0_10, %c0_11] : memref<32x128xbf16, #tpu.memory_space<vmem>>, vector<32x128xbf16>
    tpu.vector_store %arg6[%c0_10, %c0_11], %21 {strides = array<i32>} : memref<32x128xbf16, #tpu.memory_space<vmem>>, vector<32x128xbf16>,
    return
  }
  func.func @transform_0(%arg0: i32) -> (i32, i32) {
    %c0_i32 = arith.constant 0 : i32
    %c0_i32_0 = arith.constant 0 : i32
    %c0_i32_1 = arith.constant 0 : i32
    return %c0_i32, %c0_i32_0 : i32, i32
  }
  func.func @transform_1(%arg0: i32) -> (i32, i32) {
    %c0_i32 = arith.constant 0 : i32
    %c0_i32_0 = arith.constant 0 : i32
    %c0_i32_1 = arith.constant 0 : i32
    return %c0_i32, %c0_i32_0 : i32, i32
  }
  func.func @transform_2(%arg0: i32) -> (i32, i32) {
    %c0_i32 = arith.constant 0 : i32
    %c0_i32_0 = arith.constant 0 : i32
    %c0_i32_1 = arith.constant 0 : i32
    return %c0_i32, %c0_i32_0 : i32, i32
  }
  func.func @transform_3(%arg0: i32) -> (i32, i32) {
    %c0_i32 = arith.constant 0 : i32
    %c0_i32_0 = arith.constant 0 : i32
    %c0_i32_1 = arith.constant 0 : i32
    return %c0_i32, %c0_i32_0 : i32, i32
  }
  func.func @transform_4(%arg0: i32) -> (i32, i32) {
    %c0_i32 = arith.constant 0 : i32
    %c0_i32_0 = arith.constant 0 : i32
    %c0_i32_1 = arith.constant 0 : i32
    return %c0_i32, %c0_i32_0 : i32, i32
  }
  func.func @transform_5(%arg0: i32) -> (i32, i32) {
    %c0_i32 = arith.constant 0 : i32
    %c0_i32_0 = arith.constant 0 : i32
    %c0_i32_1 = arith.constant 0 : i32
    return %c0_i32, %c0_i32_0 : i32, i32
  }
}

module attributes {stable_mosaic.version = 11 : i64} {
  func.func @_conv_block_kernel(%arg0: i32, %arg1: memref<32x2048xbf16, #tpu.memory_space<vmem>>, %arg2: memref<2048x128xbf16, #tpu.memory_space<vmem>>, %arg3: memref<1x128xf32, #tpu.memory_space<vmem>>, %arg4: memref<1x128xf32, #tpu.memory_space<vmem>>, %arg5: memref<1x128xf32, #tpu.memory_space<vmem>>, %arg6: memref<8x128xbf16, #tpu.memory_space<vmem>>) attributes {dimension_semantics = [#tpu.dimension_semantics<arbitrary>], iteration_bounds = array<i64: 1>, scalar_prefetch = 0 : i64, scratch_operands = 0 : i64, tpu.core_type = #tpu.core_type<tc>, window_params = [{pipeline_mode = #tpu.pipeline_mode<synchronous>, transform_indices = @transform_0, window_bounds = array<i64: 32, 2048>}, {pipeline_mode = #tpu.pipeline_mode<synchronous>, transform_indices = @transform_1, window_bounds = array<i64: 2048, 128>}, {pipeline_mode = #tpu.pipeline_mode<synchronous>, transform_indices = @transform_2, window_bounds = array<i64: 1, 128>}, {pipeline_mode = #tpu.pipeline_mode<synchronous>, transform_indices = @transform_3, window_bounds = array<i64: 1, 128>}, {pipeline_mode = #tpu.pipeline_mode<synchronous>, transform_indices = @transform_4, window_bounds = array<i64: 1, 128>}, {pipeline_mode = #tpu.pipeline_mode<synchronous>, transform_indices = @transform_5, window_bounds = array<i64: 8, 128>}]} {
    %c0 = arith.constant 0 : index
    %c0_0 = arith.constant 0 : index
    %0 = vector.load %arg1[%c0, %c0_0] : memref<32x2048xbf16, #tpu.memory_space<vmem>>, vector<32x2048xbf16>
    %c0_1 = arith.constant 0 : index
    %c0_2 = arith.constant 0 : index
    %1 = vector.load %arg2[%c0_1, %c0_2] : memref<2048x128xbf16, #tpu.memory_space<vmem>>, vector<2048x128xbf16>
    %cst = arith.constant dense<0.000000e+00> : vector<32x128xf32>
    %2 = tpu.matmul %0, %1, %cst {dimension_numbers = #tpu.dot_dimension_numbers<[1], [0], [0], [1], [0, 0, 1, 1], [], []>} : vector<32x2048xbf16>, vector<2048x128xbf16>, vector<32x128xf32> -> vector<32x128xf32>
    %3 = vector.extract_strided_slice %2 {offsets = [0, 0], sizes = [8, 128], strides = [1, 1]} : vector<32x128xf32> to vector<8x128xf32>
    %4 = vector.extract_strided_slice %2 {offsets = [8, 0], sizes = [8, 128], strides = [1, 1]} : vector<32x128xf32> to vector<8x128xf32>
    %5 = arith.maximumf %3, %4 : vector<8x128xf32>
    %6 = vector.extract_strided_slice %2 {offsets = [16, 0], sizes = [8, 128], strides = [1, 1]} : vector<32x128xf32> to vector<8x128xf32>
    %7 = vector.extract_strided_slice %2 {offsets = [24, 0], sizes = [8, 128], strides = [1, 1]} : vector<32x128xf32> to vector<8x128xf32>
    %8 = arith.maximumf %6, %7 : vector<8x128xf32>
    %9 = arith.maximumf %5, %8 : vector<8x128xf32>
    %c0_3 = arith.constant 0 : index
    %c0_4 = arith.constant 0 : index
    %10 = vector.load %arg3[%c0_3, %c0_4] : memref<1x128xf32, #tpu.memory_space<vmem>>, vector<1x128xf32>
    %11 = vector.broadcast %10 : vector<1x128xf32> to vector<8x128xf32>
    %12 = arith.addf %9, %11 : vector<8x128xf32>
    %cst_5 = arith.constant 0.000000e+00 : f32
    %13 = vector.broadcast %cst_5 : f32 to vector<8x128xf32>
    %14 = arith.maximumf %12, %13 : vector<8x128xf32>
    %c0_6 = arith.constant 0 : index
    %c0_7 = arith.constant 0 : index
    %15 = vector.load %arg4[%c0_6, %c0_7] : memref<1x128xf32, #tpu.memory_space<vmem>>, vector<1x128xf32>
    %16 = vector.broadcast %15 : vector<1x128xf32> to vector<8x128xf32>
    %17 = arith.mulf %14, %16 : vector<8x128xf32>
    %c0_8 = arith.constant 0 : index
    %c0_9 = arith.constant 0 : index
    %18 = vector.load %arg5[%c0_8, %c0_9] : memref<1x128xf32, #tpu.memory_space<vmem>>, vector<1x128xf32>
    %19 = vector.broadcast %18 : vector<1x128xf32> to vector<8x128xf32>
    %20 = arith.addf %17, %19 : vector<8x128xf32>
    %21 = arith.truncf %20 : vector<8x128xf32> to vector<8x128xbf16>
    %c0_10 = arith.constant 0 : index
    %c0_11 = arith.constant 0 : index
    %22 = vector.load %arg6[%c0_10, %c0_11] : memref<8x128xbf16, #tpu.memory_space<vmem>>, vector<8x128xbf16>
    tpu.vector_store %arg6[%c0_10, %c0_11], %21 {strides = array<i32>} : memref<8x128xbf16, #tpu.memory_space<vmem>>, vector<8x128xbf16>,
    return
  }
  func.func @transform_0(%arg0: i32) -> (i32, i32) {
    %c0_i32 = arith.constant 0 : i32
    %c0_i32_0 = arith.constant 0 : i32
    %c0_i32_1 = arith.constant 0 : i32
    return %c0_i32, %c0_i32_0 : i32, i32
  }
  func.func @transform_1(%arg0: i32) -> (i32, i32) {
    %c0_i32 = arith.constant 0 : i32
    %c0_i32_0 = arith.constant 0 : i32
    %c0_i32_1 = arith.constant 0 : i32
    return %c0_i32, %c0_i32_0 : i32, i32
  }
  func.func @transform_2(%arg0: i32) -> (i32, i32) {
    %c0_i32 = arith.constant 0 : i32
    %c0_i32_0 = arith.constant 0 : i32
    %c0_i32_1 = arith.constant 0 : i32
    return %c0_i32, %c0_i32_0 : i32, i32
  }
  func.func @transform_3(%arg0: i32) -> (i32, i32) {
    %c0_i32 = arith.constant 0 : i32
    %c0_i32_0 = arith.constant 0 : i32
    %c0_i32_1 = arith.constant 0 : i32
    return %c0_i32, %c0_i32_0 : i32, i32
  }
  func.func @transform_4(%arg0: i32) -> (i32, i32) {
    %c0_i32 = arith.constant 0 : i32
    %c0_i32_0 = arith.constant 0 : i32
    %c0_i32_1 = arith.constant 0 : i32
    return %c0_i32, %c0_i32_0 : i32, i32
  }
  func.func @transform_5(%arg0: i32) -> (i32, i32) {
    %c0_i32 = arith.constant 0 : i32
    %c0_i32_0 = arith.constant 0 : i32
    %c0_i32_1 = arith.constant 0 : i32
    return %c0_i32, %c0_i32_0 : i32, i32
  }
}

module attributes {stable_mosaic.version = 11 : i64} {
  func.func @_decoder_step_kernel(%arg0: i32, %arg1: memref<1x2x65xf32, #tpu.memory_space<vmem>>, %arg2: memref<2x128xf32, #tpu.memory_space<vmem>>, %arg3: memref<65x128xf32, #tpu.memory_space<vmem>>, %arg4: memref<1x128xf32, #tpu.memory_space<vmem>>, %arg5: memref<256x384xf32, #tpu.memory_space<vmem>>, %arg6: memref<128x384xf32, #tpu.memory_space<vmem>>, %arg7: memref<1x384xf32, #tpu.memory_space<vmem>>, %arg8: memref<1x384xf32, #tpu.memory_space<vmem>>, %arg9: memref<128x128xf32, #tpu.memory_space<vmem>>, %arg10: memref<1x128xf32, #tpu.memory_space<vmem>>, %arg11: memref<128x64xf32, #tpu.memory_space<vmem>>, %arg12: memref<1x64xf32, #tpu.memory_space<vmem>>, %arg13: memref<1x2x64xf32, #tpu.memory_space<vmem>>, %arg14: memref<2x128xf32, #tpu.memory_space<vmem>>) attributes {dimension_semantics = [#tpu.dimension_semantics<arbitrary>], iteration_bounds = array<i64: 4>, scalar_prefetch = 0 : i64, scratch_operands = 1 : i64, tpu.core_type = #tpu.core_type<tc>, window_params = [{transform_indices = @transform_0, window_bounds = array<i64: 1, 2, 65>}, {pipeline_mode = #tpu.pipeline_mode<synchronous>, transform_indices = @transform_1, window_bounds = array<i64: 2, 128>}, {pipeline_mode = #tpu.pipeline_mode<synchronous>, transform_indices = @transform_2, window_bounds = array<i64: 65, 128>}, {pipeline_mode = #tpu.pipeline_mode<synchronous>, transform_indices = @transform_3, window_bounds = array<i64: 1, 128>}, {pipeline_mode = #tpu.pipeline_mode<synchronous>, transform_indices = @transform_4, window_bounds = array<i64: 256, 384>}, {pipeline_mode = #tpu.pipeline_mode<synchronous>, transform_indices = @transform_5, window_bounds = array<i64: 128, 384>}, {pipeline_mode = #tpu.pipeline_mode<synchronous>, transform_indices = @transform_6, window_bounds = array<i64: 1, 384>}, {pipeline_mode = #tpu.pipeline_mode<synchronous>, transform_indices = @transform_7, window_bounds = array<i64: 1, 384>}, {pipeline_mode = #tpu.pipeline_mode<synchronous>, transform_indices = @transform_8, window_bounds = array<i64: 128, 128>}, {pipeline_mode = #tpu.pipeline_mode<synchronous>, transform_indices = @transform_9, window_bounds = array<i64: 1, 128>}, {pipeline_mode = #tpu.pipeline_mode<synchronous>, transform_indices = @transform_10, window_bounds = array<i64: 128, 64>}, {pipeline_mode = #tpu.pipeline_mode<synchronous>, transform_indices = @transform_11, window_bounds = array<i64: 1, 64>}, {transform_indices = @transform_12, window_bounds = array<i64: 1, 2, 64>}]} {
    %c0_i32 = arith.constant 0 : i32
    %0 = arith.cmpi eq, %arg0, %c0_i32 : i32
    %1 = arith.extui %0 : i1 to i32
    %c0_i32_0 = arith.constant 0 : i32
    %2 = arith.cmpi ne, %1, %c0_i32_0 : i32
    scf.if %2 {
      %cst_45 = arith.constant 0.000000e+00 : f32
      %81 = vector.broadcast %cst_45 : f32 to vector<2x128xf32>
      %c0_46 = arith.constant 0 : index
      %c0_47 = arith.constant 0 : index
      %82 = vector.load %arg14[%c0_46, %c0_47] : memref<2x128xf32, #tpu.memory_space<vmem>>, vector<2x128xf32>
      tpu.vector_store %arg14[%c0_46, %c0_47], %81 {strides = array<i32>} : memref<2x128xf32, #tpu.memory_space<vmem>>, vector<2x128xf32>,
    } else {
    }
    %c0 = arith.constant 0 : index
    %c0_1 = arith.constant 0 : index
    %c0_2 = arith.constant 0 : index
    %3 = vector.load %arg1[%c0, %c0_1, %c0_2] : memref<1x2x65xf32, #tpu.memory_space<vmem>>, vector<1x2x65xf32>
    %4 = vector.shape_cast %3 : vector<1x2x65xf32> to vector<2x65xf32>
    %c0_3 = arith.constant 0 : index
    %c0_4 = arith.constant 0 : index
    %5 = vector.load %arg3[%c0_3, %c0_4] : memref<65x128xf32, #tpu.memory_space<vmem>>, vector<65x128xf32>
    %cst = arith.constant dense<0.000000e+00> : vector<2x128xf32>
    %6 = tpu.matmul %4, %5, %cst {dimension_numbers = #tpu.dot_dimension_numbers<[1], [0], [0], [1], [0, 0, 1, 1], [], []>} : vector<2x65xf32>, vector<65x128xf32>, vector<2x128xf32> -> vector<2x128xf32>
    %c0_5 = arith.constant 0 : index
    %c0_6 = arith.constant 0 : index
    %7 = vector.load %arg4[%c0_5, %c0_6] : memref<1x128xf32, #tpu.memory_space<vmem>>, vector<1x128xf32>
    %8 = vector.broadcast %7 : vector<1x128xf32> to vector<2x128xf32>
    %9 = arith.addf %6, %8 : vector<2x128xf32>
    %cst_7 = arith.constant 0.000000e+00 : f32
    %10 = vector.broadcast %cst_7 : f32 to vector<2x128xf32>
    %11 = arith.maximumf %9, %10 : vector<2x128xf32>
    %c0_8 = arith.constant 0 : index
    %c0_9 = arith.constant 0 : index
    %12 = vector.load %arg2[%c0_8, %c0_9] : memref<2x128xf32, #tpu.memory_space<vmem>>, vector<2x128xf32>
    %c0_10 = arith.constant 0 : index
    %c0_11 = arith.constant 0 : index
    %13 = vector.load %arg14[%c0_10, %c0_11] : memref<2x128xf32, #tpu.memory_space<vmem>>, vector<2x128xf32>
    %c0_12 = arith.constant 0 : index
    %c0_13 = arith.constant 0 : index
    %14 = vector.load %arg5[%c0_12, %c0_13] : memref<256x384xf32, #tpu.memory_space<vmem>>, vector<128x384xf32>
    %cst_14 = arith.constant dense<0.000000e+00> : vector<2x384xf32>
    %15 = tpu.matmul %12, %14, %cst_14 {dimension_numbers = #tpu.dot_dimension_numbers<[1], [0], [0], [1], [0, 0, 1, 1], [], []>} : vector<2x128xf32>, vector<128x384xf32>, vector<2x384xf32> -> vector<2x384xf32>
    %c128 = arith.constant 128 : index
    %c0_15 = arith.constant 0 : index
    %16 = vector.load %arg5[%c128, %c0_15] : memref<256x384xf32, #tpu.memory_space<vmem>>, vector<128x384xf32>
    %cst_16 = arith.constant dense<0.000000e+00> : vector<2x384xf32>
    %17 = tpu.matmul %11, %16, %cst_16 {dimension_numbers = #tpu.dot_dimension_numbers<[1], [0], [0], [1], [0, 0, 1, 1], [], []>} : vector<2x128xf32>, vector<128x384xf32>, vector<2x384xf32> -> vector<2x384xf32>
    %18 = arith.addf %15, %17 : vector<2x384xf32>
    %c0_17 = arith.constant 0 : index
    %c0_18 = arith.constant 0 : index
    %19 = vector.load %arg7[%c0_17, %c0_18] : memref<1x384xf32, #tpu.memory_space<vmem>>, vector<1x384xf32>
    %20 = vector.broadcast %19 : vector<1x384xf32> to vector<2x384xf32>
    %21 = arith.addf %18, %20 : vector<2x384xf32>
    %c0_19 = arith.constant 0 : index
    %c0_20 = arith.constant 0 : index
    %22 = vector.load %arg6[%c0_19, %c0_20] : memref<128x384xf32, #tpu.memory_space<vmem>>, vector<128x384xf32>
    %cst_21 = arith.constant dense<0.000000e+00> : vector<2x384xf32>
    %23 = tpu.matmul %13, %22, %cst_21 {dimension_numbers = #tpu.dot_dimension_numbers<[1], [0], [0], [1], [0, 0, 1, 1], [], []>} : vector<2x128xf32>, vector<128x384xf32>, vector<2x384xf32> -> vector<2x384xf32>
    %c0_22 = arith.constant 0 : index
    %c0_23 = arith.constant 0 : index
    %24 = vector.load %arg8[%c0_22, %c0_23] : memref<1x384xf32, #tpu.memory_space<vmem>>, vector<1x384xf32>
    %25 = vector.broadcast %24 : vector<1x384xf32> to vector<2x384xf32>
    %26 = arith.addf %23, %25 : vector<2x384xf32>
    %27 = vector.extract_strided_slice %21 {offsets = [0, 0], sizes = [2, 128], strides = [1, 1]} : vector<2x384xf32> to vector<2x128xf32>
    %28 = vector.extract_strided_slice %26 {offsets = [0, 0], sizes = [2, 128], strides = [1, 1]} : vector<2x384xf32> to vector<2x128xf32>
    %29 = arith.addf %27, %28 : vector<2x128xf32>
    %30 = arith.negf %29 : vector<2x128xf32>
    %31 = math.exp %30 : vector<2x128xf32>
    %cst_24 = arith.constant 1.000000e+00 : f32
    %32 = vector.broadcast %cst_24 : f32 to vector<2x128xf32>
    %33 = arith.addf %32, %31 : vector<2x128xf32>
    %34 = arith.divf %32, %33 : vector<2x128xf32>
    %35 = vector.extract_strided_slice %21 {offsets = [0, 128], sizes = [2, 128], strides = [1, 1]} : vector<2x384xf32> to vector<2x128xf32>
    %36 = vector.extract_strided_slice %26 {offsets = [0, 128], sizes = [2, 128], strides = [1, 1]} : vector<2x384xf32> to vector<2x128xf32>
    %37 = arith.addf %35, %36 : vector<2x128xf32>
    %38 = arith.negf %37 : vector<2x128xf32>
    %39 = math.exp %38 : vector<2x128xf32>
    %cst_25 = arith.constant 1.000000e+00 : f32
    %40 = vector.broadcast %cst_25 : f32 to vector<2x128xf32>
    %41 = arith.addf %40, %39 : vector<2x128xf32>
    %42 = arith.divf %40, %41 : vector<2x128xf32>
    %43 = vector.extract_strided_slice %21 {offsets = [0, 256], sizes = [2, 128], strides = [1, 1]} : vector<2x384xf32> to vector<2x128xf32>
    %44 = vector.extract_strided_slice %26 {offsets = [0, 256], sizes = [2, 128], strides = [1, 1]} : vector<2x384xf32> to vector<2x128xf32>
    %45 = arith.mulf %34, %44 : vector<2x128xf32>
    %46 = arith.addf %43, %45 : vector<2x128xf32>
    %47 = math.tanh %46 : vector<2x128xf32>
    %cst_26 = arith.constant 1.000000e+00 : f32
    %48 = vector.broadcast %cst_26 : f32 to vector<2x128xf32>
    %49 = arith.subf %48, %42 : vector<2x128xf32>
    %50 = arith.mulf %49, %47 : vector<2x128xf32>
    %51 = arith.mulf %42, %13 : vector<2x128xf32>
    %52 = arith.addf %50, %51 : vector<2x128xf32>
    %c0_27 = arith.constant 0 : index
    %c0_28 = arith.constant 0 : index
    %53 = vector.load %arg14[%c0_27, %c0_28] : memref<2x128xf32, #tpu.memory_space<vmem>>, vector<2x128xf32>
    tpu.vector_store %arg14[%c0_27, %c0_28], %52 {strides = array<i32>} : memref<2x128xf32, #tpu.memory_space<vmem>>, vector<2x128xf32>,
    %c0_29 = arith.constant 0 : index
    %c0_30 = arith.constant 0 : index
    %54 = vector.load %arg9[%c0_29, %c0_30] : memref<128x128xf32, #tpu.memory_space<vmem>>, vector<128x128xf32>
    %cst_31 = arith.constant dense<0.000000e+00> : vector<2x128xf32>
    %55 = tpu.matmul %52, %54, %cst_31 {dimension_numbers = #tpu.dot_dimension_numbers<[1], [0], [0], [1], [0, 0, 1, 1], [], []>} : vector<2x128xf32>, vector<128x128xf32>, vector<2x128xf32> -> vector<2x128xf32>
    %c0_32 = arith.constant 0 : index
    %c0_33 = arith.constant 0 : index
    %56 = vector.load %arg10[%c0_32, %c0_33] : memref<1x128xf32, #tpu.memory_space<vmem>>, vector<1x128xf32>
    %57 = vector.broadcast %56 : vector<1x128xf32> to vector<2x128xf32>
    %58 = arith.addf %55, %57 : vector<2x128xf32>
    %cst_34 = arith.constant 0.000000e+00 : f32
    %59 = vector.broadcast %cst_34 : f32 to vector<2x128xf32>
    %60 = arith.maximumf %58, %59 : vector<2x128xf32>
    %c0_35 = arith.constant 0 : index
    %c0_36 = arith.constant 0 : index
    %61 = vector.load %arg11[%c0_35, %c0_36] : memref<128x64xf32, #tpu.memory_space<vmem>>, vector<128x64xf32>
    %cst_37 = arith.constant dense<0.000000e+00> : vector<2x64xf32>
    %62 = tpu.matmul %60, %61, %cst_37 {dimension_numbers = #tpu.dot_dimension_numbers<[1], [0], [0], [1], [0, 0, 1, 1], [], []>} : vector<2x128xf32>, vector<128x64xf32>, vector<2x64xf32> -> vector<2x64xf32>
    %c0_38 = arith.constant 0 : index
    %c0_39 = arith.constant 0 : index
    %63 = vector.load %arg12[%c0_38, %c0_39] : memref<1x64xf32, #tpu.memory_space<vmem>>, vector<1x64xf32>
    %64 = vector.broadcast %63 : vector<1x64xf32> to vector<2x64xf32>
    %65 = arith.addf %62, %64 : vector<2x64xf32>
    %cst_40 = arith.constant dense<0xFF800000> : vector<2xf32>
    %66 = vector.multi_reduction <maximumf>, %65, %cst_40 [1] : vector<2x64xf32> to vector<2xf32>
    %67 = vector.shape_cast %66 : vector<2xf32> to vector<2x1xf32>
    %68 = vector.broadcast %67 : vector<2x1xf32> to vector<2x64xf32>
    %69 = arith.subf %65, %68 : vector<2x64xf32>
    %70 = math.exp %69 : vector<2x64xf32>
    %cst_41 = arith.constant dense<0.000000e+00> : vector<2xf32>
    %71 = vector.multi_reduction <add>, %70, %cst_41 [1] : vector<2x64xf32> to vector<2xf32>
    %72 = vector.shape_cast %71 : vector<2xf32> to vector<2x1xf32>
    %73 = vector.broadcast %67 : vector<2x1xf32> to vector<2x64xf32>
    %74 = arith.subf %65, %73 : vector<2x64xf32>
    %75 = math.log %72 : vector<2x1xf32>
    %76 = vector.broadcast %75 : vector<2x1xf32> to vector<2x64xf32>
    %77 = arith.subf %74, %76 : vector<2x64xf32>
    %c0_42 = arith.constant 0 : index
    %c0_43 = arith.constant 0 : index
    %c0_44 = arith.constant 0 : index
    %78 = vector.load %arg13[%c0_42, %c0_43, %c0_44] : memref<1x2x64xf32, #tpu.memory_space<vmem>>, vector<1x2x64xf32>
    %79 = vector.shape_cast %78 : vector<1x2x64xf32> to vector<2x64xf32>
    %80 = vector.shape_cast %77 : vector<2x64xf32> to vector<1x2x64xf32>
    tpu.vector_store %arg13[%c0_42, %c0_43, %c0_44], %80 {strides = array<i32>} : memref<1x2x64xf32, #tpu.memory_space<vmem>>, vector<1x2x64xf32>,
    return
  }
  func.func @transform_0(%arg0: i32) -> (i32, i32, i32) {
    %c0_i32 = arith.constant 0 : i32
    %c0_i32_0 = arith.constant 0 : i32
    %c0_i32_1 = arith.constant 0 : i32
    return %arg0, %c0_i32, %c0_i32_0 : i32, i32, i32
  }
  func.func @transform_1(%arg0: i32) -> (i32, i32) {
    %c0_i32 = arith.constant 0 : i32
    %c0_i32_0 = arith.constant 0 : i32
    %c0_i32_1 = arith.constant 0 : i32
    return %c0_i32, %c0_i32_0 : i32, i32
  }
  func.func @transform_2(%arg0: i32) -> (i32, i32) {
    %c0_i32 = arith.constant 0 : i32
    %c0_i32_0 = arith.constant 0 : i32
    %c0_i32_1 = arith.constant 0 : i32
    return %c0_i32, %c0_i32_0 : i32, i32
  }
  func.func @transform_3(%arg0: i32) -> (i32, i32) {
    %c0_i32 = arith.constant 0 : i32
    %c0_i32_0 = arith.constant 0 : i32
    %c0_i32_1 = arith.constant 0 : i32
    return %c0_i32, %c0_i32_0 : i32, i32
  }
  func.func @transform_4(%arg0: i32) -> (i32, i32) {
    %c0_i32 = arith.constant 0 : i32
    %c0_i32_0 = arith.constant 0 : i32
    %c0_i32_1 = arith.constant 0 : i32
    return %c0_i32, %c0_i32_0 : i32, i32
  }
  func.func @transform_5(%arg0: i32) -> (i32, i32) {
    %c0_i32 = arith.constant 0 : i32
    %c0_i32_0 = arith.constant 0 : i32
    %c0_i32_1 = arith.constant 0 : i32
    return %c0_i32, %c0_i32_0 : i32, i32
  }
  func.func @transform_6(%arg0: i32) -> (i32, i32) {
    %c0_i32 = arith.constant 0 : i32
    %c0_i32_0 = arith.constant 0 : i32
    %c0_i32_1 = arith.constant 0 : i32
    return %c0_i32, %c0_i32_0 : i32, i32
  }
  func.func @transform_7(%arg0: i32) -> (i32, i32) {
    %c0_i32 = arith.constant 0 : i32
    %c0_i32_0 = arith.constant 0 : i32
    %c0_i32_1 = arith.constant 0 : i32
    return %c0_i32, %c0_i32_0 : i32, i32
  }
  func.func @transform_8(%arg0: i32) -> (i32, i32) {
    %c0_i32 = arith.constant 0 : i32
    %c0_i32_0 = arith.constant 0 : i32
    %c0_i32_1 = arith.constant 0 : i32
    return %c0_i32, %c0_i32_0 : i32, i32
  }
  func.func @transform_9(%arg0: i32) -> (i32, i32) {
    %c0_i32 = arith.constant 0 : i32
    %c0_i32_0 = arith.constant 0 : i32
    %c0_i32_1 = arith.constant 0 : i32
    return %c0_i32, %c0_i32_0 : i32, i32
  }
  func.func @transform_10(%arg0: i32) -> (i32, i32) {
    %c0_i32 = arith.constant 0 : i32
    %c0_i32_0 = arith.constant 0 : i32
    %c0_i32_1 = arith.constant 0 : i32
    return %c0_i32, %c0_i32_0 : i32, i32
  }
  func.func @transform_11(%arg0: i32) -> (i32, i32) {
    %c0_i32 = arith.constant 0 : i32
    %c0_i32_0 = arith.constant 0 : i32
    %c0_i32_1 = arith.constant 0 : i32
    return %c0_i32, %c0_i32_0 : i32, i32
  }
  func.func @transform_12(%arg0: i32) -> (i32, i32, i32) {
    %c0_i32 = arith.constant 0 : i32
    %c0_i32_0 = arith.constant 0 : i32
    %c0_i32_1 = arith.constant 0 : i32
    return %arg0, %c0_i32, %c0_i32_0 : i32, i32, i32
  }
}

</mosaic_0001>

<llo_original>
// kernel: m_csgnet_forward.6
$region0: #{m_csgnet_forward.6}
  #allocation0 [shape = 'u32[]', space=smem, size = 0x4, offset = 0x4, fixed_abs, tag = 'smem constant byte address 0x4 - core index']
  #allocation1 [shape = 'u32[144,128]{1,0:T(1,128)}', space=vmem, size = 0x12000, scoped, tag = 'internal scratch']
  %s0 = inlined_call_operand.vmem [shape: bf16[2048,16], index: 0, kind: input, shape index: {}]
  %s1 = inlined_call_operand.vmem [shape: bf16[16,32], index: 1, kind: input, shape index: {}]
  %s2 = inlined_call_operand.vmem [shape: f32[1,32], index: 2, kind: input, shape index: {}]
  %s3 = inlined_call_operand.vmem [shape: f32[1,32], index: 3, kind: input, shape index: {}]
  %s4 = inlined_call_operand.vmem [shape: f32[1,32], index: 4, kind: input, shape index: {}]
  %s5 = inlined_call_operand.vmem [shape: bf16[512,32], index: 5, kind: output, shape index: {}]
  %s6 = sld [smem:[#allocation0]]
  $region30: #{m_csgnet_forward.6} parent=0
    _
  %s8 = ssub.s32 1, %s6
  %s9 = scalar_select 0, %s8, %s6
  // Predicated region
  $region2: #{m_csgnet_forward.6} parent=0 // pred_check
    _
  $region3: #{m_csgnet_forward.6} parent=0 // pred_check_branch
    %11 = sbr.rel (0) target = $region5
  $region4: #{m_csgnet_forward.6} parent=0 // pred_region
    _
  $region5: #{m_csgnet_forward.6} parent=0 // pred_fallthru
    _
  // Predicated region
  $region6: #{m_csgnet_forward.6} parent=0 // pred_check
    _
  $region7: #{m_csgnet_forward.6} parent=0 // pred_check_branch
    %13 = sbr.rel (0) target = $region9
  $region8: #{m_csgnet_forward.6} parent=0 // pred_region
    _
  $region9: #{m_csgnet_forward.6} parent=0 // pred_fallthru
    _
  // Predicated region
  $region10: #{m_csgnet_forward.6} parent=0 // pred_check
    _
  $region11: #{m_csgnet_forward.6} parent=0 // pred_check_branch
    %15 = sbr.rel (0) target = $region13
  $region12: #{m_csgnet_forward.6} parent=0 // pred_region
    _
  $region13: #{m_csgnet_forward.6} parent=0 // pred_fallthru
    _
  // Predicated region
  $region14: #{m_csgnet_forward.6} parent=0 // pred_check
    _
  $region15: #{m_csgnet_forward.6} parent=0 // pred_check_branch
    %17 = sbr.rel (0) target = $region17
  $region16: #{m_csgnet_forward.6} parent=0 // pred_region
    _
  $region17: #{m_csgnet_forward.6} parent=0 // pred_fallthru
    _
  // Predicated region
  $region18: #{m_csgnet_forward.6} parent=0 // pred_check
    _
  $region19: #{m_csgnet_forward.6} parent=0 // pred_check_branch
    %19 = sbr.rel (0) target = $region21
  $region20: #{m_csgnet_forward.6} parent=0 // pred_region
    _
  $region21: #{m_csgnet_forward.6} parent=0 // pred_fallthru
    _
  %v21 = vld [vmem:[%s0] sm:$0xf]
  %v22 = vld [vmem:[%s0 + $0x4] sm:$0xf]
  %v23 = vld [vmem:[%s0 + $0x8] sm:$0xf]
  %v24 = vld [vmem:[%s0 + $0xc] sm:$0xf]
  %v25 = vld [vmem:[%s0 + $0x10] sm:$0xf]
  %v26 = vld [vmem:[%s0 + $0x14] sm:$0xf]
  %v27 = vld [vmem:[%s0 + $0x18] sm:$0xf]
  %v28 = vld [vmem:[%s0 + $0x1c] sm:$0xf]
  %v29 = vld [vmem:[%s0 + $0x20] sm:$0xf]
  %v30 = vld [vmem:[%s0 + $0x24] sm:$0xf]
  %v31 = vld [vmem:[%s0 + $0x28] sm:$0xf]
  %v32 = vld [vmem:[%s0 + $0x2c] sm:$0xf]
  %v33 = vld [vmem:[%s0 + $0x30] sm:$0xf]
  %v34 = vld [vmem:[%s0 + $0x34] sm:$0xf]
  %v35 = vld [vmem:[%s0 + $0x38] sm:$0xf]
  %v36 = vld [vmem:[%s0 + $0x3c] sm:$0xf]
  %v37 = vld [vmem:[%s0 + $0x40] sm:$0xf]
  %v38 = vld [vmem:[%s0 + $0x44] sm:$0xf]
  %v39 = vld [vmem:[%s0 + $0x48] sm:$0xf]
  %v40 = vld [vmem:[%s0 + $0x4c] sm:$0xf]
  %v41 = vld [vmem:[%s0 + $0x50] sm:$0xf]
  %v42 = vld [vmem:[%s0 + $0x54] sm:$0xf]
  %v43 = vld [vmem:[%s0 + $0x58] sm:$0xf]
  %v44 = vld [vmem:[%s0 + $0x5c] sm:$0xf]
  %v45 = vld [vmem:[%s0 + $0x60] sm:$0xf]
  %v46 = vld [vmem:[%s0 + $0x64] sm:$0xf]
  %v47 = vld [vmem:[%s0 + $0x68] sm:$0xf]
  %v48 = vld [vmem:[%s0 + $0x6c] sm:$0xf]
  %v49 = vld [vmem:[%s0 + $0x70] sm:$0xf]
  %v50 = vld [vmem:[%s0 + $0x74] sm:$0xf]
  %v51 = vld [vmem:[%s0 + $0x78] sm:$0xf]
  %v52 = vld [vmem:[%s0 + $0x7c] sm:$0xf]
  %v53 = vld [vmem:[%s0 + $0x80] sm:$0xf]
  %v54 = vld [vmem:[%s0 + $0x84] sm:$0xf]
  %v55 = vld [vmem:[%s0 + $0x88] sm:$0xf]
  %v56 = vld [vmem:[%s0 + $0x8c] sm:$0xf]
  %v57 = vld [vmem:[%s0 + $0x90] sm:$0xf]
  %v58 = vld [vmem:[%s0 + $0x94] sm:$0xf]
  %v59 = vld [vmem:[%s0 + $0x98] sm:$0xf]
  %v60 = vld [vmem:[%s0 + $0x9c] sm:$0xf]
  %v61 = vld [vmem:[%s0 + $0xa0] sm:$0xf]
  %v62 = vld [vmem:[%s0 + $0xa4] sm:$0xf]
  %v63 = vld [vmem:[%s0 + $0xa8] sm:$0xf]
  %v64 = vld [vmem:[%s0 + $0xac] sm:$0xf]
  %v65 = vld [vmem:[%s0 + $0xb0] sm:$0xf]
  %v66 = vld [vmem:[%s0 + $0xb4] sm:$0xf]
  %v67 = vld [vmem:[%s0 + $0xb8] sm:$0xf]
  %v68 = vld [vmem:[%s0 + $0xbc] sm:$0xf]
  %v69 = vld [vmem:[%s0 + $0xc0] sm:$0xf]
  %v70 = vld [vmem:[%s0 + $0xc4] sm:$0xf]
  %v71 = vld [vmem:[%s0 + $0xc8] sm:$0xf]
  %v72 = vld [vmem:[%s0 + $0xcc] sm:$0xf]
  %v73 = vld [vmem:[%s0 + $0xd0] sm:$0xf]
  %v74 = vld [vmem:[%s0 + $0xd4] sm:$0xf]
  %v75 = vld [vmem:[%s0 + $0xd8] sm:$0xf]
  %v76 = vld [vmem:[%s0 + $0xdc] sm:$0xf]
  %v77 = vld [vmem:[%s0 + $0xe0] sm:$0xf]
  %v78 = vld [vmem:[%s0 + $0xe4] sm:$0xf]
  %v79 = vld [vmem:[%s0 + $0xe8] sm:$0xf]
  %v80 = vld [vmem:[%s0 + $0xec] sm:$0xf]
  %v81 = vld [vmem:[%s0 + $0xf0] sm:$0xf]
  %v82 = vld [vmem:[%s0 + $0xf4] sm:$0xf]
  %v83 = vld [vmem:[%s0 + $0xf8] sm:$0xf]
  %v84 = vld [vmem:[%s0 + $0xfc] sm:$0xf]
  %v85 = vld [vmem:[%s0 + $0x100] sm:$0xf]
  %v86 = vld [vmem:[%s0 + $0x104] sm:$0xf]
  %v87 = vld [vmem:[%s0 + $0x108] sm:$0xf]
  %v88 = vld [vmem:[%s0 + $0x10c] sm:$0xf]
  %v89 = vld [vmem:[%s0 + $0x110] sm:$0xf]
  %v90 = vld [vmem:[%s0 + $0x114] sm:$0xf]
  %v91 = vld [vmem:[%s0 + $0x118] sm:$0xf]
  %v92 = vld [vmem:[%s0 + $0x11c] sm:$0xf]
  %v93 = vld [vmem:[%s0 + $0x120] sm:$0xf]
  %v94 = vld [vmem:[%s0 + $0x124] sm:$0xf]
  %v95 = vld [vmem:[%s0 + $0x128] sm:$0xf]
  %v96 = vld [vmem:[%s0 + $0x12c] sm:$0xf]
  %v97 = vld [vmem:[%s0 + $0x130] sm:$0xf]
  %v98 = vld [vmem:[%s0 + $0x134] sm:$0xf]
  %v99 = vld [vmem:[%s0 + $0x138] sm:$0xf]
  %v100 = vld [vmem:[%s0 + $0x13c] sm:$0xf]
  %v101 = vld [vmem:[%s0 + $0x140] sm:$0xf]
  %v102 = vld [vmem:[%s0 + $0x144] sm:$0xf]
  %v103 = vld [vmem:[%s0 + $0x148] sm:$0xf]
  %v104 = vld [vmem:[%s0 + $0x14c] sm:$0xf]
  %v105 = vld [vmem:[%s0 + $0x150] sm:$0xf]
  %v106 = vld [vmem:[%s0 + $0x154] sm:$0xf]
  %v107 = vld [vmem:[%s0 + $0x158] sm:$0xf]
  %v108 = vld [vmem:[%s0 + $0x15c] sm:$0xf]
  %v109 = vld [vmem:[%s0 + $0x160] sm:$0xf]
  %v110 = vld [vmem:[%s0 + $0x164] sm:$0xf]
  %v111 = vld [vmem:[%s0 + $0x168] sm:$0xf]
  %v112 = vld [vmem:[%s0 + $0x16c] sm:$0xf]
  %v113 = vld [vmem:[%s0 + $0x170] sm:$0xf]
  %v114 = vld [vmem:[%s0 + $0x174] sm:$0xf]
  %v115 = vld [vmem:[%s0 + $0x178] sm:$0xf]
  %v116 = vld [vmem:[%s0 + $0x17c] sm:$0xf]
  %v117 = vld [vmem:[%s0 + $0x180] sm:$0xf]
  %v118 = vld [vmem:[%s0 + $0x184] sm:$0xf]
  %v119 = vld [vmem:[%s0 + $0x188] sm:$0xf]
  %v120 = vld [vmem:[%s0 + $0x18c] sm:$0xf]
  %v121 = vld [vmem:[%s0 + $0x190] sm:$0xf]
  %v122 = vld [vmem:[%s0 + $0x194] sm:$0xf]
  %v123 = vld [vmem:[%s0 + $0x198] sm:$0xf]
  %v124 = vld [vmem:[%s0 + $0x19c] sm:$0xf]
  %v125 = vld [vmem:[%s0 + $0x1a0] sm:$0xf]
  %v126 = vld [vmem:[%s0 + $0x1a4] sm:$0xf]
  %v127 = vld [vmem:[%s0 + $0x1a8] sm:$0xf]
  %v128 = vld [vmem:[%s0 + $0x1ac] sm:$0xf]
  %v129 = vld [vmem:[%s0 + $0x1b0] sm:$0xf]
  %v130 = vld [vmem:[%s0 + $0x1b4] sm:$0xf]
  %v131 = vld [vmem:[%s0 + $0x1b8] sm:$0xf]
  %v132 = vld [vmem:[%s0 + $0x1bc] sm:$0xf]
  %v133 = vld [vmem:[%s0 + $0x1c0] sm:$0xf]
  %v134 = vld [vmem:[%s0 + $0x1c4] sm:$0xf]
  %v135 = vld [vmem:[%s0 + $0x1c8] sm:$0xf]
  %v136 = vld [vmem:[%s0 + $0x1cc] sm:$0xf]
  %v137 = vld [vmem:[%s0 + $0x1d0] sm:$0xf]
  %v138 = vld [vmem:[%s0 + $0x1d4] sm:$0xf]
  %v139 = vld [vmem:[%s0 + $0x1d8] sm:$0xf]
  %v140 = vld [vmem:[%s0 + $0x1dc] sm:$0xf]
  %v141 = vld [vmem:[%s0 + $0x1e0] sm:$0xf]
  %v142 = vld [vmem:[%s0 + $0x1e4] sm:$0xf]
  %v143 = vld [vmem:[%s0 + $0x1e8] sm:$0xf]
  %v144 = vld [vmem:[%s0 + $0x1ec] sm:$0xf]
  %v145 = vld [vmem:[%s0 + $0x1f0] sm:$0xf]
  %v146 = vld [vmem:[%s0 + $0x1f4] sm:$0xf]
  %v147 = vld [vmem:[%s0 + $0x1f8] sm:$0xf]
  %v148 = vld [vmem:[%s0 + $0x1fc] sm:$0xf]
  %v149 = vld [vmem:[%s0 + $0x200] sm:$0xf]
  %v150 = vld [vmem:[%s0 + $0x204] sm:$0xf]
  %v151 = vld [vmem:[%s0 + $0x208] sm:$0xf]
  %v152 = vld [vmem:[%s0 + $0x20c] sm:$0xf]
  %v153 = vld [vmem:[%s0 + $0x210] sm:$0xf]
  %v154 = vld [vmem:[%s0 + $0x214] sm:$0xf]
  %v155 = vld [vmem:[%s0 + $0x218] sm:$0xf]
  %v156 = vld [vmem:[%s0 + $0x21c] sm:$0xf]
  %v157 = vld [vmem:[%s0 + $0x220] sm:$0xf]
  %v158 = vld [vmem:[%s0 + $0x224] sm:$0xf]
  %v159 = vld [vmem:[%s0 + $0x228] sm:$0xf]
  %v160 = vld [vmem:[%s0 + $0x22c] sm:$0xf]
  %v161 = vld [vmem:[%s0 + $0x230] sm:$0xf]
  %v162 = vld [vmem:[%s0 + $0x234] sm:$0xf]
  %v163 = vld [vmem:[%s0 + $0x238] sm:$0xf]
  %v164 = vld [vmem:[%s0 + $0x23c] sm:$0xf]
  %v165 = vld [vmem:[%s0 + $0x240] sm:$0xf]
  %v166 = vld [vmem:[%s0 + $0x244] sm:$0xf]
  %v167 = vld [vmem:[%s0 + $0x248] sm:$0xf]
  %v168 = vld [vmem:[%s0 + $0x24c] sm:$0xf]
  %v169 = vld [vmem:[%s0 + $0x250] sm:$0xf]
  %v170 = vld [vmem:[%s0 + $0x254] sm:$0xf]
  %v171 = vld [vmem:[%s0 + $0x258] sm:$0xf]
  %v172 = vld [vmem:[%s0 + $0x25c] sm:$0xf]
  %v173 = vld [vmem:[%s0 + $0x260] sm:$0xf]
  %v174 = vld [vmem:[%s0 + $0x264] sm:$0xf]
  %v175 = vld [vmem:[%s0 + $0x268] sm:$0xf]
  %v176 = vld [vmem:[%s0 + $0x26c] sm:$0xf]
  %v177 = vld [vmem:[%s0 + $0x270] sm:$0xf]
  %v178 = vld [vmem:[%s0 + $0x274] sm:$0xf]
  %v179 = vld [vmem:[%s0 + $0x278] sm:$0xf]
  %v180 = vld [vmem:[%s0 + $0x27c] sm:$0xf]
  %v181 = vld [vmem:[%s0 + $0x280] sm:$0xf]
  %v182 = vld [vmem:[%s0 + $0x284] sm:$0xf]
  %v183 = vld [vmem:[%s0 + $0x288] sm:$0xf]
  %v184 = vld [vmem:[%s0 + $0x28c] sm:$0xf]
  %v185 = vld [vmem:[%s0 + $0x290] sm:$0xf]
  %v186 = vld [vmem:[%s0 + $0x294] sm:$0xf]
  %v187 = vld [vmem:[%s0 + $0x298] sm:$0xf]
  %v188 = vld [vmem:[%s0 + $0x29c] sm:$0xf]
  %v189 = vld [vmem:[%s0 + $0x2a0] sm:$0xf]
  %v190 = vld [vmem:[%s0 + $0x2a4] sm:$0xf]
  %v191 = vld [vmem:[%s0 + $0x2a8] sm:$0xf]
  %v192 = vld [vmem:[%s0 + $0x2ac] sm:$0xf]
  %v193 = vld [vmem:[%s0 + $0x2b0] sm:$0xf]
  %v194 = vld [vmem:[%s0 + $0x2b4] sm:$0xf]
  %v195 = vld [vmem:[%s0 + $0x2b8] sm:$0xf]
  %v196 = vld [vmem:[%s0 + $0x2bc] sm:$0xf]
  %v197 = vld [vmem:[%s0 + $0x2c0] sm:$0xf]
  %v198 = vld [vmem:[%s0 + $0x2c4] sm:$0xf]
  %v199 = vld [vmem:[%s0 + $0x2c8] sm:$0xf]
  %v200 = vld [vmem:[%s0 + $0x2cc] sm:$0xf]
  %v201 = vld [vmem:[%s0 + $0x2d0] sm:$0xf]
  %v202 = vld [vmem:[%s0 + $0x2d4] sm:$0xf]
  %v203 = vld [vmem:[%s0 + $0x2d8] sm:$0xf]
  %v204 = vld [vmem:[%s0 + $0x2dc] sm:$0xf]
  %v205 = vld [vmem:[%s0 + $0x2e0] sm:$0xf]
  %v206 = vld [vmem:[%s0 + $0x2e4] sm:$0xf]
  %v207 = vld [vmem:[%s0 + $0x2e8] sm:$0xf]
  %v208 = vld [vmem:[%s0 + $0x2ec] sm:$0xf]
  %v209 = vld [vmem:[%s0 + $0x2f0] sm:$0xf]
  %v210 = vld [vmem:[%s0 + $0x2f4] sm:$0xf]
  %v211 = vld [vmem:[%s0 + $0x2f8] sm:$0xf]
  %v212 = vld [vmem:[%s0 + $0x2fc] sm:$0xf]
  %v213 = vld [vmem:[%s0 + $0x300] sm:$0xf]
  %v214 = vld [vmem:[%s0 + $0x304] sm:$0xf]
  %v215 = vld [vmem:[%s0 + $0x308] sm:$0xf]
  %v216 = vld [vmem:[%s0 + $0x30c] sm:$0xf]
  %v217 = vld [vmem:[%s0 + $0x310] sm:$0xf]
  %v218 = vld [vmem:[%s0 + $0x314] sm:$0xf]
  %v219 = vld [vmem:[%s0 + $0x318] sm:$0xf]
  %v220 = vld [vmem:[%s0 + $0x31c] sm:$0xf]
  %v221 = vld [vmem:[%s0 + $0x320] sm:$0xf]
  %v222 = vld [vmem:[%s0 + $0x324] sm:$0xf]
  %v223 = vld [vmem:[%s0 + $0x328] sm:$0xf]
  %v224 = vld [vmem:[%s0 + $0x32c] sm:$0xf]
  %v225 = vld [vmem:[%s0 + $0x330] sm:$0xf]
  %v226 = vld [vmem:[%s0 + $0x334] sm:$0xf]
  %v227 = vld [vmem:[%s0 + $0x338] sm:$0xf]
  %v228 = vld [vmem:[%s0 + $0x33c] sm:$0xf]
  %v229 = vld [vmem:[%s0 + $0x340] sm:$0xf]
  %v230 = vld [vmem:[%s0 + $0x344] sm:$0xf]
  %v231 = vld [vmem:[%s0 + $0x348] sm:$0xf]
  %v232 = vld [vmem:[%s0 + $0x34c] sm:$0xf]
  %v233 = vld [vmem:[%s0 + $0x350] sm:$0xf]
  %v234 = vld [vmem:[%s0 + $0x354] sm:$0xf]
  %v235 = vld [vmem:[%s0 + $0x358] sm:$0xf]
  %v236 = vld [vmem:[%s0 + $0x35c] sm:$0xf]
  %v237 = vld [vmem:[%s0 + $0x360] sm:$0xf]
  %v238 = vld [vmem:[%s0 + $0x364] sm:$0xf]
  %v239 = vld [vmem:[%s0 + $0x368] sm:$0xf]
  %v240 = vld [vmem:[%s0 + $0x36c] sm:$0xf]
  %v241 = vld [vmem:[%s0 + $0x370] sm:$0xf]
  %v242 = vld [vmem:[%s0 + $0x374] sm:$0xf]
  %v243 = vld [vmem:[%s0 + $0x378] sm:$0xf]
  %v244 = vld [vmem:[%s0 + $0x37c] sm:$0xf]
  %v245 = vld [vmem:[%s0 + $0x380] sm:$0xf]
  %v246 = vld [vmem:[%s0 + $0x384] sm:$0xf]
  %v247 = vld [vmem:[%s0 + $0x388] sm:$0xf]
  %v248 = vld [vmem:[%s0 + $0x38c] sm:$0xf]
  %v249 = vld [vmem:[%s0 + $0x390] sm:$0xf]
  %v250 = vld [vmem:[%s0 + $0x394] sm:$0xf]
  %v251 = vld [vmem:[%s0 + $0x398] sm:$0xf]
  %v252 = vld [vmem:[%s0 + $0x39c] sm:$0xf]
  %v253 = vld [vmem:[%s0 + $0x3a0] sm:$0xf]
  %v254 = vld [vmem:[%s0 + $0x3a4] sm:$0xf]
  %v255 = vld [vmem:[%s0 + $0x3a8] sm:$0xf]
  %v256 = vld [vmem:[%s0 + $0x3ac] sm:$0xf]
  %v257 = vld [vmem:[%s0 + $0x3b0] sm:$0xf]
  %v258 = vld [vmem:[%s0 + $0x3b4] sm:$0xf]
  %v259 = vld [vmem:[%s0 + $0x3b8] sm:$0xf]
  %v260 = vld [vmem:[%s0 + $0x3bc] sm:$0xf]
  %v261 = vld [vmem:[%s0 + $0x3c0] sm:$0xf]
  %v262 = vld [vmem:[%s0 + $0x3c4] sm:$0xf]
  %v263 = vld [vmem:[%s0 + $0x3c8] sm:$0xf]
  %v264 = vld [vmem:[%s0 + $0x3cc] sm:$0xf]
  %v265 = vld [vmem:[%s0 + $0x3d0] sm:$0xf]
  %v266 = vld [vmem:[%s0 + $0x3d4] sm:$0xf]
  %v267 = vld [vmem:[%s0 + $0x3d8] sm:$0xf]
  %v268 = vld [vmem:[%s0 + $0x3dc] sm:$0xf]
  %v269 = vld [vmem:[%s0 + $0x3e0] sm:$0xf]
  %v270 = vld [vmem:[%s0 + $0x3e4] sm:$0xf]
  %v271 = vld [vmem:[%s0 + $0x3e8] sm:$0xf]
  %v272 = vld [vmem:[%s0 + $0x3ec] sm:$0xf]
  %v273 = vld [vmem:[%s0 + $0x3f0] sm:$0xf]
  %v274 = vld [vmem:[%s0 + $0x3f4] sm:$0xf]
  %v275 = vld [vmem:[%s0 + $0x3f8] sm:$0xf]
  %v276 = vld [vmem:[%s0 + $0x3fc] sm:$0xf]
  %v277 = vld [vmem:[%s1] sm:$0xf]
  %v278 = vld [vmem:[%s1 + $0x4] sm:$0xf]
  %v535 = vunpack.c.l.b16 %v21
  %v536 = vunpack.c.l.b16 %v22
  %v537 = vunpack.c.l.b16 %v23
  %v538 = vunpack.c.l.b16 %v24
  %v539 = vunpack.c.l.b16 %v25
  %v540 = vunpack.c.l.b16 %v26
  %v541 = vunpack.c.l.b16 %v27
  %v542 = vunpack.c.l.b16 %v28
  %v543 = vunpack.c.l.b16 %v29
  %v544 = vunpack.c.l.b16 %v30
  %v545 = vunpack.c.l.b16 %v31
  %v546 = vunpack.c.l.b16 %v32
  %v547 = vunpack.c.l.b16 %v33
  %v548 = vunpack.c.l.b16 %v34
  %v549 = vunpack.c.l.b16 %v35
  %v550 = vunpack.c.l.b16 %v36
  %v551 = vunpack.c.l.b16 %v37
  %v552 = vunpack.c.l.b16 %v38
  %v553 = vunpack.c.l.b16 %v39
  %v554 = vunpack.c.l.b16 %v40
  %v555 = vunpack.c.l.b16 %v41
  %v556 = vunpack.c.l.b16 %v42
  %v557 = vunpack.c.l.b16 %v43
  %v558 = vunpack.c.l.b16 %v44
  %v559 = vunpack.c.l.b16 %v45
  %v560 = vunpack.c.l.b16 %v46
  %v561 = vunpack.c.l.b16 %v47
  %v562 = vunpack.c.l.b16 %v48
  %v563 = vunpack.c.l.b16 %v49
  %v564 = vunpack.c.l.b16 %v50
  %v565 = vunpack.c.l.b16 %v51
  %v566 = vunpack.c.l.b16 %v52
  %v567 = vunpack.c.l.b16 %v53
  %v568 = vunpack.c.l.b16 %v54
  %v569 = vunpack.c.l.b16 %v55
  %v570 = vunpack.c.l.b16 %v56
  %v571 = vunpack.c.l.b16 %v57
  %v572 = vunpack.c.l.b16 %v58
  %v573 = vunpack.c.l.b16 %v59
  %v574 = vunpack.c.l.b16 %v60
  %v575 = vunpack.c.l.b16 %v61
  %v576 = vunpack.c.l.b16 %v62
  %v577 = vunpack.c.l.b16 %v63
  %v578 = vunpack.c.l.b16 %v64
  %v579 = vunpack.c.l.b16 %v65
  %v580 = vunpack.c.l.b16 %v66
  %v581 = vunpack.c.l.b16 %v67
  %v582 = vunpack.c.l.b16 %v68
  %v583 = vunpack.c.l.b16 %v69
  %v584 = vunpack.c.l.b16 %v70
  %v585 = vunpack.c.l.b16 %v71
  %v586 = vunpack.c.l.b16 %v72
  %v587 = vunpack.c.l.b16 %v73
  %v588 = vunpack.c.l.b16 %v74
  %v589 = vunpack.c.l.b16 %v75
  %v590 = vunpack.c.l.b16 %v76
  %v591 = vunpack.c.l.b16 %v77
  %v592 = vunpack.c.l.b16 %v78
  %v593 = vunpack.c.l.b16 %v79
  %v594 = vunpack.c.l.b16 %v80
  %v595 = vunpack.c.l.b16 %v81
  %v596 = vunpack.c.l.b16 %v82
  %v597 = vunpack.c.l.b16 %v83
  %v598 = vunpack.c.l.b16 %v84
  %v599 = vunpack.c.l.b16 %v85
  %v600 = vunpack.c.l.b16 %v86
  %v601 = vunpack.c.l.b16 %v87
  %v602 = vunpack.c.l.b16 %v88
  %v603 = vunpack.c.l.b16 %v89
  %v604 = vunpack.c.l.b16 %v90
  %v605 = vunpack.c.l.b16 %v91
  %v606 = vunpack.c.l.b16 %v92
  %v607 = vunpack.c.l.b16 %v93
  %v608 = vunpack.c.l.b16 %v94
  %v609 = vunpack.c.l.b16 %v95
  %v610 = vunpack.c.l.b16 %v96
  %v611 = vunpack.c.l.b16 %v97
  %v612 = vunpack.c.l.b16 %v98
  %v613 = vunpack.c.l.b16 %v99
  %v614 = vunpack.c.l.b16 %v100
  %v615 = vunpack.c.l.b16 %v101
  %v616 = vunpack.c.l.b16 %v102
  %v617 = vunpack.c.l.b16 %v103
  %v618 = vunpack.c.l.b16 %v104
  %v619 = vunpack.c.l.b16 %v105
  %v620 = vunpack.c.l.b16 %v106
  %v621 = vunpack.c.l.b16 %v107
  %v622 = vunpack.c.l.b16 %v108
  %v623 = vunpack.c.l.b16 %v109
  %v624 = vunpack.c.l.b16 %v110
  %v625 = vunpack.c.l.b16 %v111
  %v626 = vunpack.c.l.b16 %v112
  %v627 = vunpack.c.l.b16 %v113
  %v628 = vunpack.c.l.b16 %v114
  %v629 = vunpack.c.l.b16 %v115
  %v630 = vunpack.c.l.b16 %v116
  %v631 = vunpack.c.l.b16 %v117
  %v632 = vunpack.c.l.b16 %v118
  %v633 = vunpack.c.l.b16 %v119
  %v634 = vunpack.c.l.b16 %v120
  %v635 = vunpack.c.l.b16 %v121
  %v636 = vunpack.c.l.b16 %v122
  %v637 = vunpack.c.l.b16 %v123
  %v638 = vunpack.c.l.b16 %v124
  %v639 = vunpack.c.l.b16 %v125
  %v640 = vunpack.c.l.b16 %v126
  %v641 = vunpack.c.l.b16 %v127
  %v642 = vunpack.c.l.b16 %v128
  %v643 = vunpack.c.l.b16 %v129
  %v644 = vunpack.c.l.b16 %v130
  %v645 = vunpack.c.l.b16 %v131
  %v646 = vunpack.c.l.b16 %v132
  %v647 = vunpack.c.l.b16 %v133
  %v648 = vunpack.c.l.b16 %v134
  %v649 = vunpack.c.l.b16 %v135
  %v650 = vunpack.c.l.b16 %v136
  %v651 = vunpack.c.l.b16 %v137
  %v652 = vunpack.c.l.b16 %v138
  %v653 = vunpack.c.l.b16 %v139
  %v654 = vunpack.c.l.b16 %v140
  %v655 = vunpack.c.l.b16 %v141
  %v656 = vunpack.c.l.b16 %v142
  %v657 = vunpack.c.l.b16 %v143
  %v658 = vunpack.c.l.b16 %v144
  %v659 = vunpack.c.l.b16 %v145
  %v660 = vunpack.c.l.b16 %v146
  %v661 = vunpack.c.l.b16 %v147
  %v662 = vunpack.c.l.b16 %v148
  %v663 = vunpack.c.l.b16 %v149
  %v664 = vunpack.c.l.b16 %v150
  %v665 = vunpack.c.l.b16 %v151
  %v666 = vunpack.c.l.b16 %v152
  %v667 = vunpack.c.l.b16 %v153
  %v668 = vunpack.c.l.b16 %v154
  %v669 = vunpack.c.l.b16 %v155
  %v670 = vunpack.c.l.b16 %v156
  %v671 = vunpack.c.l.b16 %v157
  %v672 = vunpack.c.l.b16 %v158
  %v673 = vunpack.c.l.b16 %v159
  %v674 = vunpack.c.l.b16 %v160
  %v675 = vunpack.c.l.b16 %v161
  %v676 = vunpack.c.l.b16 %v162
  %v677 = vunpack.c.l.b16 %v163
  %v678 = vunpack.c.l.b16 %v164
  %v679 = vunpack.c.l.b16 %v165
  %v680 = vunpack.c.l.b16 %v166
  %v681 = vunpack.c.l.b16 %v167
  %v682 = vunpack.c.l.b16 %v168
  %v683 = vunpack.c.l.b16 %v169
  %v684 = vunpack.c.l.b16 %v170
  %v685 = vunpack.c.l.b16 %v171
  %v686 = vunpack.c.l.b16 %v172
  %v687 = vunpack.c.l.b16 %v173
  %v688 = vunpack.c.l.b16 %v174
  %v689 = vunpack.c.l.b16 %v175
  %v690 = vunpack.c.l.b16 %v176
  %v691 = vunpack.c.l.b16 %v177
  %v692 = vunpack.c.l.b16 %v178
  %v693 = vunpack.c.l.b16 %v179
  %v694 = vunpack.c.l.b16 %v180
  %v695 = vunpack.c.l.b16 %v181
  %v696 = vunpack.c.l.b16 %v182
  %v697 = vunpack.c.l.b16 %v183
  %v698 = vunpack.c.l.b16 %v184
  %v699 = vunpack.c.l.b16 %v185
  %v700 = vunpack.c.l.b16 %v186
  %v701 = vunpack.c.l.b16 %v187
  %v702 = vunpack.c.l.b16 %v188
  %v703 = vunpack.c.l.b16 %v189
  %v704 = vunpack.c.l.b16 %v190
  %v705 = vunpack.c.l.b16 %v191
  %v706 = vunpack.c.l.b16 %v192
  %v707 = vunpack.c.l.b16 %v193
  %v708 = vunpack.c.l.b16 %v194
  %v709 = vunpack.c.l.b16 %v195
  %v710 = vunpack.c.l.b16 %v196
  %v711 = vunpack.c.l.b16 %v197
  %v712 = vunpack.c.l.b16 %v198
  %v713 = vunpack.c.l.b16 %v199
  %v714 = vunpack.c.l.b16 %v200
  %v715 = vunpack.c.l.b16 %v201
  %v716 = vunpack.c.l.b16 %v202
  %v717 = vunpack.c.l.b16 %v203
  %v718 = vunpack.c.l.b16 %v204
  %v719 = vunpack.c.l.b16 %v205
  %v720 = vunpack.c.l.b16 %v206
  %v721 = vunpack.c.l.b16 %v207
  %v722 = vunpack.c.l.b16 %v208
  %v723 = vunpack.c.l.b16 %v209
  %v724 = vunpack.c.l.b16 %v210
  %v725 = vunpack.c.l.b16 %v211
  %v726 = vunpack.c.l.b16 %v212
  %v727 = vunpack.c.l.b16 %v213
  %v728 = vunpack.c.l.b16 %v214
  %v729 = vunpack.c.l.b16 %v215
  %v730 = vunpack.c.l.b16 %v216
  %v731 = vunpack.c.l.b16 %v217
  %v732 = vunpack.c.l.b16 %v218
  %v733 = vunpack.c.l.b16 %v219
  %v734 = vunpack.c.l.b16 %v220
  %v735 = vunpack.c.l.b16 %v221
  %v736 = vunpack.c.l.b16 %v222
  %v737 = vunpack.c.l.b16 %v223
  %v738 = vunpack.c.l.b16 %v224
  %v739 = vunpack.c.l.b16 %v225
  %v740 = vunpack.c.l.b16 %v226
  %v741 = vunpack.c.l.b16 %v227
  %v742 = vunpack.c.l.b16 %v228
  %v743 = vunpack.c.l.b16 %v229
  %v744 = vunpack.c.l.b16 %v230
  %v745 = vunpack.c.l.b16 %v231
  %v746 = vunpack.c.l.b16 %v232
  %v747 = vunpack.c.l.b16 %v233
  %v748 = vunpack.c.l.b16 %v234
  %v749 = vunpack.c.l.b16 %v235
  %v750 = vunpack.c.l.b16 %v236
  %v751 = vunpack.c.l.b16 %v237
  %v752 = vunpack.c.l.b16 %v238
  %v753 = vunpack.c.l.b16 %v239
  %v754 = vunpack.c.l.b16 %v240
  %v755 = vunpack.c.l.b16 %v241
  %v756 = vunpack.c.l.b16 %v242
  %v757 = vunpack.c.l.b16 %v243
  %v758 = vunpack.c.l.b16 %v244
  %v759 = vunpack.c.l.b16 %v245
  %v760 = vunpack.c.l.b16 %v246
  %v761 = vunpack.c.l.b16 %v247
  %v762 = vunpack.c.l.b16 %v248
  %v763 = vunpack.c.l.b16 %v249
  %v764 = vunpack.c.l.b16 %v250
  %v765 = vunpack.c.l.b16 %v251
  %v766 = vunpack.c.l.b16 %v252
  %v767 = vunpack.c.l.b16 %v253
  %v768 = vunpack.c.l.b16 %v254
  %v769 = vunpack.c.l.b16 %v255
  %v770 = vunpack.c.l.b16 %v256
  %v771 = vunpack.c.l.b16 %v257
  %v772 = vunpack.c.l.b16 %v258
  %v773 = vunpack.c.l.b16 %v259
  %v774 = vunpack.c.l.b16 %v260
  %v775 = vunpack.c.l.b16 %v261
  %v776 = vunpack.c.l.b16 %v262
  %v777 = vunpack.c.l.b16 %v263
  %v778 = vunpack.c.l.b16 %v264
  %v779 = vunpack.c.l.b16 %v265
  %v780 = vunpack.c.l.b16 %v266
  %v781 = vunpack.c.l.b16 %v267
  %v782 = vunpack.c.l.b16 %v268
  %v783 = vunpack.c.l.b16 %v269
  %v784 = vunpack.c.l.b16 %v270
  %v785 = vunpack.c.l.b16 %v271
  %v786 = vunpack.c.l.b16 %v272
  %v787 = vunpack.c.l.b16 %v273
  %v788 = vunpack.c.l.b16 %v274
  %v789 = vunpack.c.l.b16 %v275
  %v790 = vunpack.c.l.b16 %v276
  %v791 = vpack.c.b16 %v536, %v535
  %v792 = vpack.c.b16 %v538, %v537
  %v793 = vpack.c.b16 %v540, %v539
  %v794 = vpack.c.b16 %v542, %v541
  %v795 = vpack.c.b16 %v544, %v543
  %v796 = vpack.c.b16 %v546, %v545
  %v797 = vpack.c.b16 %v548, %v547
  %v798 = vpack.c.b16 %v550, %v549
  %v799 = vpack.c.b16 %v552, %v551
  %v800 = vpack.c.b16 %v554, %v553
  %v801 = vpack.c.b16 %v556, %v555
  %v802 = vpack.c.b16 %v558, %v557
  %v803 = vpack.c.b16 %v560, %v559
  %v804 = vpack.c.b16 %v562, %v561
  %v805 = vpack.c.b16 %v564, %v563
  %v806 = vpack.c.b16 %v566, %v565
  %v807 = vpack.c.b16 %v568, %v567
  %v808 = vpack.c.b16 %v570, %v569
  %v809 = vpack.c.b16 %v572, %v571
  %v810 = vpack.c.b16 %v574, %v573
  %v811 = vpack.c.b16 %v576, %v575
  %v812 = vpack.c.b16 %v578, %v577
  %v813 = vpack.c.b16 %v580, %v579
  %v814 = vpack.c.b16 %v582, %v581
  %v815 = vpack.c.b16 %v584, %v583
  %v816 = vpack.c.b16 %v586, %v585
  %v817 = vpack.c.b16 %v588, %v587
  %v818 = vpack.c.b16 %v590, %v589
  %v819 = vpack.c.b16 %v592, %v591
  %v820 = vpack.c.b16 %v594, %v593
  %v821 = vpack.c.b16 %v596, %v595
  %v822 = vpack.c.b16 %v598, %v597
  %v823 = vpack.c.b16 %v600, %v599
  %v824 = vpack.c.b16 %v602, %v601
  %v825 = vpack.c.b16 %v604, %v603
  %v826 = vpack.c.b16 %v606, %v605
  %v827 = vpack.c.b16 %v608, %v607
  %v828 = vpack.c.b16 %v610, %v609
  %v829 = vpack.c.b16 %v612, %v611
  %v830 = vpack.c.b16 %v614, %v613
  %v831 = vpack.c.b16 %v616, %v615
  %v832 = vpack.c.b16 %v618, %v617
  %v833 = vpack.c.b16 %v620, %v619
  %v834 = vpack.c.b16 %v622, %v621
  %v835 = vpack.c.b16 %v624, %v623
  %v836 = vpack.c.b16 %v626, %v625
  %v837 = vpack.c.b16 %v628, %v627
  %v838 = vpack.c.b16 %v630, %v629
  %v839 = vpack.c.b16 %v632, %v631
  %v840 = vpack.c.b16 %v634, %v633
  %v841 = vpack.c.b16 %v636, %v635
  %v842 = vpack.c.b16 %v638, %v637
  %v843 = vpack.c.b16 %v640, %v639
  %v844 = vpack.c.b16 %v642, %v641
  %v845 = vpack.c.b16 %v644, %v643
  %v846 = vpack.c.b16 %v646, %v645
  %v847 = vpack.c.b16 %v648, %v647
  %v848 = vpack.c.b16 %v650, %v649
  %v849 = vpack.c.b16 %v652, %v651
  %v850 = vpack.c.b16 %v654, %v653
  %v851 = vpack.c.b16 %v656, %v655
  %v852 = vpack.c.b16 %v658, %v657
  %v853 = vpack.c.b16 %v660, %v659
  %v854 = vpack.c.b16 %v662, %v661
  %v855 = vpack.c.b16 %v664, %v663
  %v856 = vpack.c.b16 %v666, %v665
  %v857 = vpack.c.b16 %v668, %v667
  %v858 = vpack.c.b16 %v670, %v669
  %v859 = vpack.c.b16 %v672, %v671
  %v860 = vpack.c.b16 %v674, %v673
  %v861 = vpack.c.b16 %v676, %v675
  %v862 = vpack.c.b16 %v678, %v677
  %v863 = vpack.c.b16 %v680, %v679
  %v864 = vpack.c.b16 %v682, %v681
  %v865 = vpack.c.b16 %v684, %v683
  %v866 = vpack.c.b16 %v686, %v685
  %v867 = vpack.c.b16 %v688, %v687
  %v868 = vpack.c.b16 %v690, %v689
  %v869 = vpack.c.b16 %v692, %v691
  %v870 = vpack.c.b16 %v694, %v693
  %v871 = vpack.c.b16 %v696, %v695
  %v872 = vpack.c.b16 %v698, %v697
  %v873 = vpack.c.b16 %v700, %v699
  %v874 = vpack.c.b16 %v702, %v701
  %v875 = vpack.c.b16 %v704, %v703
  %v876 = vpack.c.b16 %v706, %v705
  %v877 = vpack.c.b16 %v708, %v707
  %v878 = vpack.c.b16 %v710, %v709
  %v879 = vpack.c.b16 %v712, %v711
  %v880 = vpack.c.b16 %v714, %v713
  %v881 = vpack.c.b16 %v716, %v715
  %v882 = vpack.c.b16 %v718, %v717
  %v883 = vpack.c.b16 %v720, %v719
  %v884 = vpack.c.b16 %v722, %v721
  %v885 = vpack.c.b16 %v724, %v723
  %v886 = vpack.c.b16 %v726, %v725
  %v887 = vpack.c.b16 %v728, %v727
  %v888 = vpack.c.b16 %v730, %v729
  %v889 = vpack.c.b16 %v732, %v731
  %v890 = vpack.c.b16 %v734, %v733
  %v891 = vpack.c.b16 %v736, %v735
  %v892 = vpack.c.b16 %v738, %v737
  %v893 = vpack.c.b16 %v740, %v739
  %v894 = vpack.c.b16 %v742, %v741
  %v895 = vpack.c.b16 %v744, %v743
  %v896 = vpack.c.b16 %v746, %v745
  %v897 = vpack.c.b16 %v748, %v747
  %v898 = vpack.c.b16 %v750, %v749
  %v899 = vpack.c.b16 %v752, %v751
  %v900 = vpack.c.b16 %v754, %v753
  %v901 = vpack.c.b16 %v756, %v755
  %v902 = vpack.c.b16 %v758, %v757
  %v903 = vpack.c.b16 %v760, %v759
  %v904 = vpack.c.b16 %v762, %v761
  %v905 = vpack.c.b16 %v764, %v763
  %v906 = vpack.c.b16 %v766, %v765
  %v907 = vpack.c.b16 %v768, %v767
  %v908 = vpack.c.b16 %v770, %v769
  %v909 = vpack.c.b16 %v772, %v771
  %v910 = vpack.c.b16 %v774, %v773
  %v911 = vpack.c.b16 %v776, %v775
  %v912 = vpack.c.b16 %v778, %v777
  %v913 = vpack.c.b16 %v780, %v779
  %v914 = vpack.c.b16 %v782, %v781
  %v915 = vpack.c.b16 %v784, %v783
  %v916 = vpack.c.b16 %v786, %v785
  %v917 = vpack.c.b16 %v788, %v787
  %v918 = vpack.c.b16 %v790, %v789
  %v921 = vunpack.c.l.b16 %v277
  %v922 = vunpack.c.l.b16 %v278
  %v923 = vpack.c.b16 %v922, %v921
  %vm925 = vcmask 130048
  %v927 = vsel %vm925, %v791, 0
  %v930 = vsel %vm925, %v792, 0
  %v933 = vsel %vm925, %v793, 0
  %v936 = vsel %vm925, %v794, 0
  %v939 = vsel %vm925, %v795, 0
  %v942 = vsel %vm925, %v796, 0
  %v945 = vsel %vm925, %v797, 0
  %v948 = vsel %vm925, %v798, 0
  %v951 = vsel %vm925, %v799, 0
  %v954 = vsel %vm925, %v800, 0
  %v957 = vsel %vm925, %v801, 0
  %v960 = vsel %vm925, %v802, 0
  %v963 = vsel %vm925, %v803, 0
  %v966 = vsel %vm925, %v804, 0
  %v969 = vsel %vm925, %v805, 0
  %v972 = vsel %vm925, %v806, 0
  %v975 = vsel %vm925, %v807, 0
  %v978 = vsel %vm925, %v808, 0
  %v981 = vsel %vm925, %v809, 0
  %v984 = vsel %vm925, %v810, 0
  %v987 = vsel %vm925, %v811, 0
  %v990 = vsel %vm925, %v812, 0
  %v993 = vsel %vm925, %v813, 0
  %v996 = vsel %vm925, %v814, 0
  %v999 = vsel %vm925, %v815, 0
  %v1002 = vsel %vm925, %v816, 0
  %v1005 = vsel %vm925, %v817, 0
  %v1008 = vsel %vm925, %v818, 0
  %v1011 = vsel %vm925, %v819, 0
  %v1014 = vsel %vm925, %v820, 0
  %v1017 = vsel %vm925, %v821, 0
  %v1020 = vsel %vm925, %v822, 0
  %v1023 = vsel %vm925, %v823, 0
  %v1026 = vsel %vm925, %v824, 0
  %v1029 = vsel %vm925, %v825, 0
  %v1032 = vsel %vm925, %v826, 0
  %v1035 = vsel %vm925, %v827, 0
  %v1038 = vsel %vm925, %v828, 0
  %v1041 = vsel %vm925, %v829, 0
  %v1044 = vsel %vm925, %v830, 0
  %v1047 = vsel %vm925, %v831, 0
  %v1050 = vsel %vm925, %v832, 0
  %v1053 = vsel %vm925, %v833, 0
  %v1056 = vsel %vm925, %v834, 0
  %v1059 = vsel %vm925, %v835, 0
  %v1062 = vsel %vm925, %v836, 0
  %v1065 = vsel %vm925, %v837, 0
  %v1068 = vsel %vm925, %v838, 0
  %v1071 = vsel %vm925, %v839, 0
  %v1074 = vsel %vm925, %v840, 0
  %v1077 = vsel %vm925, %v841, 0
  %v1080 = vsel %vm925, %v842, 0
  %v1083 = vsel %vm925, %v843, 0
  %v1086 = vsel %vm925, %v844, 0
  %v1089 = vsel %vm925, %v845, 0
  %v1092 = vsel %vm925, %v846, 0
  %v1095 = vsel %vm925, %v847, 0
  %v1098 = vsel %vm925, %v848, 0
  %v1101 = vsel %vm925, %v849, 0
  %v1104 = vsel %vm925, %v850, 0
  %v1107 = vsel %vm925, %v851, 0
  %v1110 = vsel %vm925, %v852, 0
  %v1113 = vsel %vm925, %v853, 0
  %v1116 = vsel %vm925, %v854, 0
  %v1119 = vsel %vm925, %v855, 0
  %v1122 = vsel %vm925, %v856, 0
  %v1125 = vsel %vm925, %v857, 0
  %v1128 = vsel %vm925, %v858, 0
  %v1131 = vsel %vm925, %v859, 0
  %v1134 = vsel %vm925, %v860, 0
  %v1137 = vsel %vm925, %v861, 0
  %v1140 = vsel %vm925, %v862, 0
  %v1143 = vsel %vm925, %v863, 0
  %v1146 = vsel %vm925, %v864, 0
  %v1149 = vsel %vm925, %v865, 0
  %v1152 = vsel %vm925, %v866, 0
  %v1155 = vsel %vm925, %v867, 0
  %v1158 = vsel %vm925, %v868, 0
  %v1161 = vsel %vm925, %v869, 0
  %v1164 = vsel %vm925, %v870, 0
  %v1167 = vsel %vm925, %v871, 0
  %v1170 = vsel %vm925, %v872, 0
  %v1173 = vsel %vm925, %v873, 0
  %v1176 = vsel %vm925, %v874, 0
  %v1179 = vsel %vm925, %v875, 0
  %v1182 = vsel %vm925, %v876, 0
  %v1185 = vsel %vm925, %v877, 0
  %v1188 = vsel %vm925, %v878, 0
  %v1191 = vsel %vm925, %v879, 0
  %v1194 = vsel %vm925, %v880, 0
  %v1197 = vsel %vm925, %v881, 0
  %v1200 = vsel %vm925, %v882, 0
  %v1203 = vsel %vm925, %v883, 0
  %v1206 = vsel %vm925, %v884, 0
  %v1209 = vsel %vm925, %v885, 0
  %v1212 = vsel %vm925, %v886, 0
  %v1215 = vsel %vm925, %v887, 0
  %v1218 = vsel %vm925, %v888, 0
  %v1221 = vsel %vm925, %v889, 0
  %v1224 = vsel %vm925, %v890, 0
  %v1227 = vsel %vm925, %v891, 0
  %v1230 = vsel %vm925, %v892, 0
  %v1233 = vsel %vm925, %v893, 0
  %v1236 = vsel %vm925, %v894, 0
  %v1239 = vsel %vm925, %v895, 0
  %v1242 = vsel %vm925, %v896, 0
  %v1245 = vsel %vm925, %v897, 0
  %v1248 = vsel %vm925, %v898, 0
  %v1251 = vsel %vm925, %v899, 0
  %v1254 = vsel %vm925, %v900, 0
  %v1257 = vsel %vm925, %v901, 0
  %v1260 = vsel %vm925, %v902, 0
  %v1263 = vsel %vm925, %v903, 0
  %v1266 = vsel %vm925, %v904, 0
  %v1269 = vsel %vm925, %v905, 0
  %v1272 = vsel %vm925, %v906, 0
  %v1275 = vsel %vm925, %v907, 0
  %v1278 = vsel %vm925, %v908, 0
  %v1281 = vsel %vm925, %v909, 0
  %v1284 = vsel %vm925, %v910, 0
  %v1287 = vsel %vm925, %v911, 0
  %v1290 = vsel %vm925, %v912, 0
  %v1293 = vsel %vm925, %v913, 0
  %v1296 = vsel %vm925, %v914, 0
  %v1299 = vsel %vm925, %v915, 0
  %v1302 = vsel %vm925, %v916, 0
  %v1305 = vsel %vm925, %v917, 0
  %v1308 = vsel %vm925, %v918, 0
  %1310 = vmatprep.subr.bf16.mxu0 0
  %1311 = vmatpush1.bf16.msra.mxu0 0
  %1312 = vmatprep.subr.bf16.mxu0 0
  %1313 = vmatpush1.bf16.msra.mxu0 0
  %1314 = vmatprep.subr.bf16.mxu0 0
  %1315 = vmatpush1.bf16.msra.mxu0 0
  %1316 = vmatprep.subr.bf16.mxu0 0
  %1317 = vmatpush1.bf16.msra.mxu0 0
  %1318 = vmatprep.subr.bf16.mxu0 0
  %1319 = vmatpush1.bf16.msra.mxu0 0
  %1320 = vmatprep.subr.bf16.mxu0 0
  %1321 = vmatpush1.bf16.msra.mxu0 0
  %1322 = vmatprep.subr.bf16.mxu0 0
  %1323 = vmatpush1.bf16.msra.mxu0 0
  %1324 = vmatprep.subr.bf16.mxu0 0
  %1325 = vmatpush1.bf16.msra.mxu0 %v923
  %1326 = vmatprep.subr.bf16.mxu0 0
  %1327 = vmatpush2.bf16.msra.mxu0 0
  %1328 = vmatprep.subr.bf16.mxu0 0
  %1329 = vmatpush2.bf16.msra.mxu0 0
  %1330 = vmatprep.subr.bf16.mxu0 0
  %1331 = vmatpush2.bf16.msra.mxu0 0
  %1332 = vmatprep.subr.bf16.mxu0 0
  %1333 = vmatpush2.bf16.msra.mxu0 0
  %1334 = vmatprep.subr.bf16.mxu0 0
  %1335 = vmatpush2.bf16.msra.mxu0 0
  %1336 = vmatprep.subr.bf16.mxu0 0
  %1337 = vmatpush2.bf16.msra.mxu0 0
  %1338 = vmatprep.subr.bf16.mxu0 0
  %1339 = vmatpush2.bf16.msra.mxu0 0
  %1340 = vmatprep.subr.bf16.mxu0 0
  %1341 = vmatpush2.bf16.msra.mxu0 0
  %1342 = vmatprep.mubr.bf16.mxu0 0
  %1343 = vmatmul.mubr.bf16.gmra.mxu0 %v927
  %v1344 = vpop.f32.mrf.mxu0
  %v1345 = vadd.f32 0.0, %v1344
  %v1346 = vpop.f32.mrf.mxu0
  %v1347 = vpop.f32.mrf.mxu0
  %v1348 = vadd.f32 0.0, %v1347
  %v1349 = vpop.f32.mrf.mxu0
  %1350 = vmatprep.mubr.bf16.mxu0 0
  %1351 = vmatmul.mubr.bf16.gmra.mxu0 %v930
  %v1352 = vpop.f32.mrf.mxu0
  %v1353 = vadd.f32 0.0, %v1352
  %v1354 = vpop.f32.mrf.mxu0
  %v1355 = vpop.f32.mrf.mxu0
  %v1356 = vadd.f32 0.0, %v1355
  %v1357 = vpop.f32.mrf.mxu0
  %1358 = vmatprep.mubr.bf16.mxu0 0
  %1359 = vmatmul.mubr.bf16.gmra.mxu0 %v933
  %v1360 = vpop.f32.mrf.mxu0
  %v1361 = vadd.f32 0.0, %v1360
  %v1362 = vpop.f32.mrf.mxu0
  %v1363 = vpop.f32.mrf.mxu0
  %v1364 = vadd.f32 0.0, %v1363
  %v1365 = vpop.f32.mrf.mxu0
  %1366 = vmatprep.mubr.bf16.mxu0 0
  %1367 = vmatmul.mubr.bf16.gmra.mxu0 %v936
  %v1368 = vpop.f32.mrf.mxu0
  %v1369 = vadd.f32 0.0, %v1368
  %v1370 = vpop.f32.mrf.mxu0
  %v1371 = vpop.f32.mrf.mxu0
  %v1372 = vadd.f32 0.0, %v1371
  %v1373 = vpop.f32.mrf.mxu0
  %1374 = vmatprep.mubr.bf16.mxu0 0
  %1375 = vmatmul.mubr.bf16.gmra.mxu0 %v939
  %v1376 = vpop.f32.mrf.mxu0
  %v1377 = vadd.f32 0.0, %v1376
  %v1378 = vpop.f32.mrf.mxu0
  %v1379 = vpop.f32.mrf.mxu0
  %v1380 = vadd.f32 0.0, %v1379
  %v1381 = vpop.f32.mrf.mxu0
  %1382 = vmatprep.mubr.bf16.mxu0 0
  %1383 = vmatmul.mubr.bf16.gmra.mxu0 %v942
  %v1384 = vpop.f32.mrf.mxu0
  %v1385 = vadd.f32 0.0, %v1384
  %v1386 = vpop.f32.mrf.mxu0
  %v1387 = vpop.f32.mrf.mxu0
  %v1388 = vadd.f32 0.0, %v1387
  %v1389 = vpop.f32.mrf.mxu0
  %1390 = vmatprep.mubr.bf16.mxu0 0
  %1391 = vmatmul.mubr.bf16.gmra.mxu0 %v945
  %v1392 = vpop.f32.mrf.mxu0
  %v1393 = vadd.f32 0.0, %v1392
  %v1394 = vpop.f32.mrf.mxu0
  %v1395 = vpop.f32.mrf.mxu0
  %v1396 = vadd.f32 0.0, %v1395
  %v1397 = vpop.f32.mrf.mxu0
  %1398 = vmatprep.mubr.bf16.mxu0 0
  %1399 = vmatmul.mubr.bf16.gmra.mxu0 %v948
  %v1400 = vpop.f32.mrf.mxu0
  %v1401 = vadd.f32 0.0, %v1400
  %v1402 = vpop.f32.mrf.mxu0
  %v1403 = vpop.f32.mrf.mxu0
  %v1404 = vadd.f32 0.0, %v1403
  %v1405 = vpop.f32.mrf.mxu0
  %1406 = vmatprep.mubr.bf16.mxu0 0
  %1407 = vmatmul.mubr.bf16.gmra.mxu0 %v951
  %v1408 = vpop.f32.mrf.mxu0
  %v1409 = vadd.f32 0.0, %v1408
  %v1410 = vpop.f32.mrf.mxu0
  %v1411 = vpop.f32.mrf.mxu0
  %v1412 = vadd.f32 0.0, %v1411
  %v1413 = vpop.f32.mrf.mxu0
  %1414 = vmatprep.mubr.bf16.mxu0 0
  %1415 = vmatmul.mubr.bf16.gmra.mxu0 %v954
  %v1416 = vpop.f32.mrf.mxu0
  %v1417 = vadd.f32 0.0, %v1416
  %v1418 = vpop.f32.mrf.mxu0
  %v1419 = vpop.f32.mrf.mxu0
  %v1420 = vadd.f32 0.0, %v1419
  %v1421 = vpop.f32.mrf.mxu0
  %1422 = vmatprep.mubr.bf16.mxu0 0
  %1423 = vmatmul.mubr.bf16.gmra.mxu0 %v957
  %v1424 = vpop.f32.mrf.mxu0
  %v1425 = vadd.f32 0.0, %v1424
  %v1426 = vpop.f32.mrf.mxu0
  %v1427 = vpop.f32.mrf.mxu0
  %v1428 = vadd.f32 0.0, %v1427
  %v1429 = vpop.f32.mrf.mxu0
  %1430 = vmatprep.mubr.bf16.mxu0 0
  %1431 = vmatmul.mubr.bf16.gmra.mxu0 %v960
  %v1432 = vpop.f32.mrf.mxu0
  %v1433 = vadd.f32 0.0, %v1432
  %v1434 = vpop.f32.mrf.mxu0
  %v1435 = vpop.f32.mrf.mxu0
  %v1436 = vadd.f32 0.0, %v1435
  %v1437 = vpop.f32.mrf.mxu0
  %1438 = vmatprep.mubr.bf16.mxu0 0
  %1439 = vmatmul.mubr.bf16.gmra.mxu0 %v963
  %v1440 = vpop.f32.mrf.mxu0
  %v1441 = vadd.f32 0.0, %v1440
  %v1442 = vpop.f32.mrf.mxu0
  %v1443 = vpop.f32.mrf.mxu0
  %v1444 = vadd.f32 0.0, %v1443
  %v1445 = vpop.f32.mrf.mxu0
  %1446 = vmatprep.mubr.bf16.mxu0 0
  %1447 = vmatmul.mubr.bf16.gmra.mxu0 %v966
  %v1448 = vpop.f32.mrf.mxu0
  %v1449 = vadd.f32 0.0, %v1448
  %v1450 = vpop.f32.mrf.mxu0
  %v1451 = vpop.f32.mrf.mxu0
  %v1452 = vadd.f32 0.0, %v1451
  %v1453 = vpop.f32.mrf.mxu0
  %1454 = vmatprep.mubr.bf16.mxu0 0
  %1455 = vmatmul.mubr.bf16.gmra.mxu0 %v969
  %v1456 = vpop.f32.mrf.mxu0
  %v1457 = vadd.f32 0.0, %v1456
  %v1458 = vpop.f32.mrf.mxu0
  %v1459 = vpop.f32.mrf.mxu0
  %v1460 = vadd.f32 0.0, %v1459
  %v1461 = vpop.f32.mrf.mxu0
  %1462 = vmatprep.mubr.bf16.mxu0 0
  %1463 = vmatmul.mubr.bf16.gmra.mxu0 %v972
  %v1464 = vpop.f32.mrf.mxu0
  %v1465 = vadd.f32 0.0, %v1464
  %v1466 = vpop.f32.mrf.mxu0
  %v1467 = vpop.f32.mrf.mxu0
  %v1468 = vadd.f32 0.0, %v1467
  %v1469 = vpop.f32.mrf.mxu0
  %1470 = vmatprep.mubr.bf16.mxu0 0
  %1471 = vmatmul.mubr.bf16.gmra.mxu0 %v975
  %v1472 = vpop.f32.mrf.mxu0
  %v1473 = vadd.f32 0.0, %v1472
  %v1474 = vpop.f32.mrf.mxu0
  %v1475 = vpop.f32.mrf.mxu0
  %v1476 = vadd.f32 0.0, %v1475
  %v1477 = vpop.f32.mrf.mxu0
  %1478 = vmatprep.mubr.bf16.mxu0 0
  %1479 = vmatmul.mubr.bf16.gmra.mxu0 %v978
  %v1480 = vpop.f32.mrf.mxu0
  %v1481 = vadd.f32 0.0, %v1480
  %v1482 = vpop.f32.mrf.mxu0
  %v1483 = vpop.f32.mrf.mxu0
  %v1484 = vadd.f32 0.0, %v1483
  %v1485 = vpop.f32.mrf.mxu0
  %1486 = vmatprep.mubr.bf16.mxu0 0
  %1487 = vmatmul.mubr.bf16.gmra.mxu0 %v981
  %v1488 = vpop.f32.mrf.mxu0
  %v1489 = vadd.f32 0.0, %v1488
  %v1490 = vpop.f32.mrf.mxu0
  %v1491 = vpop.f32.mrf.mxu0
  %v1492 = vadd.f32 0.0, %v1491
  %v1493 = vpop.f32.mrf.mxu0
  %1494 = vmatprep.mubr.bf16.mxu0 0
  %1495 = vmatmul.mubr.bf16.gmra.mxu0 %v984
  %v1496 = vpop.f32.mrf.mxu0
  %v1497 = vadd.f32 0.0, %v1496
  %v1498 = vpop.f32.mrf.mxu0
  %v1499 = vpop.f32.mrf.mxu0
  %v1500 = vadd.f32 0.0, %v1499
  %v1501 = vpop.f32.mrf.mxu0
  %1502 = vmatprep.mubr.bf16.mxu0 0
  %1503 = vmatmul.mubr.bf16.gmra.mxu0 %v987
  %v1504 = vpop.f32.mrf.mxu0
  %v1505 = vadd.f32 0.0, %v1504
  %v1506 = vpop.f32.mrf.mxu0
  %v1507 = vpop.f32.mrf.mxu0
  %v1508 = vadd.f32 0.0, %v1507
  %v1509 = vpop.f32.mrf.mxu0
  %1510 = vmatprep.mubr.bf16.mxu0 0
  %1511 = vmatmul.mubr.bf16.gmra.mxu0 %v990
  %v1512 = vpop.f32.mrf.mxu0
  %v1513 = vadd.f32 0.0, %v1512
  %v1514 = vpop.f32.mrf.mxu0
  %v1515 = vpop.f32.mrf.mxu0
  %v1516 = vadd.f32 0.0, %v1515
  %v1517 = vpop.f32.mrf.mxu0
  %1518 = vmatprep.mubr.bf16.mxu0 0
  %1519 = vmatmul.mubr.bf16.gmra.mxu0 %v993
  %v1520 = vpop.f32.mrf.mxu0
  %v1521 = vadd.f32 0.0, %v1520
  %v1522 = vpop.f32.mrf.mxu0
  %v1523 = vpop.f32.mrf.mxu0
  %v1524 = vadd.f32 0.0, %v1523
  %v1525 = vpop.f32.mrf.mxu0
  %1526 = vmatprep.mubr.bf16.mxu0 0
  %1527 = vmatmul.mubr.bf16.gmra.mxu0 %v996
  %v1528 = vpop.f32.mrf.mxu0
  %v1529 = vadd.f32 0.0, %v1528
  %v1530 = vpop.f32.mrf.mxu0
  %v1531 = vpop.f32.mrf.mxu0
  %v1532 = vadd.f32 0.0, %v1531
  %v1533 = vpop.f32.mrf.mxu0
  %1534 = vmatprep.mubr.bf16.mxu0 0
  %1535 = vmatmul.mubr.bf16.gmra.mxu0 %v999
  %v1536 = vpop.f32.mrf.mxu0
  %v1537 = vadd.f32 0.0, %v1536
  %v1538 = vpop.f32.mrf.mxu0
  %v1539 = vpop.f32.mrf.mxu0
  %v1540 = vadd.f32 0.0, %v1539
  %v1541 = vpop.f32.mrf.mxu0
  %1542 = vmatprep.mubr.bf16.mxu0 0
  %1543 = vmatmul.mubr.bf16.gmra.mxu0 %v1002
  %v1544 = vpop.f32.mrf.mxu0
  %v1545 = vadd.f32 0.0, %v1544
  %v1546 = vpop.f32.mrf.mxu0
  %v1547 = vpop.f32.mrf.mxu0
  %v1548 = vadd.f32 0.0, %v1547
  %v1549 = vpop.f32.mrf.mxu0
  %1550 = vmatprep.mubr.bf16.mxu0 0
  %1551 = vmatmul.mubr.bf16.gmra.mxu0 %v1005
  %v1552 = vpop.f32.mrf.mxu0
  %v1553 = vadd.f32 0.0, %v1552
  %v1554 = vpop.f32.mrf.mxu0
  %v1555 = vpop.f32.mrf.mxu0
  %v1556 = vadd.f32 0.0, %v1555
  %v1557 = vpop.f32.mrf.mxu0
  %1558 = vmatprep.mubr.bf16.mxu0 0
  %1559 = vmatmul.mubr.bf16.gmra.mxu0 %v1008
  %v1560 = vpop.f32.mrf.mxu0
  %v1561 = vadd.f32 0.0, %v1560
  %v1562 = vpop.f32.mrf.mxu0
  %v1563 = vpop.f32.mrf.mxu0
  %v1564 = vadd.f32 0.0, %v1563
  %v1565 = vpop.f32.mrf.mxu0
  %1566 = vmatprep.mubr.bf16.mxu0 0
  %1567 = vmatmul.mubr.bf16.gmra.mxu0 %v1011
  %v1568 = vpop.f32.mrf.mxu0
  %v1569 = vadd.f32 0.0, %v1568
  %v1570 = vpop.f32.mrf.mxu0
  %v1571 = vpop.f32.mrf.mxu0
  %v1572 = vadd.f32 0.0, %v1571
  %v1573 = vpop.f32.mrf.mxu0
  %1574 = vmatprep.mubr.bf16.mxu0 0
  %1575 = vmatmul.mubr.bf16.gmra.mxu0 %v1014
  %v1576 = vpop.f32.mrf.mxu0
  %v1577 = vadd.f32 0.0, %v1576
  %v1578 = vpop.f32.mrf.mxu0
  %v1579 = vpop.f32.mrf.mxu0
  %v1580 = vadd.f32 0.0, %v1579
  %v1581 = vpop.f32.mrf.mxu0
  %1582 = vmatprep.mubr.bf16.mxu0 0
  %1583 = vmatmul.mubr.bf16.gmra.mxu0 %v1017
  %v1584 = vpop.f32.mrf.mxu0
  %v1585 = vadd.f32 0.0, %v1584
  %v1586 = vpop.f32.mrf.mxu0
  %v1587 = vpop.f32.mrf.mxu0
  %v1588 = vadd.f32 0.0, %v1587
  %v1589 = vpop.f32.mrf.mxu0
  %1590 = vmatprep.mubr.bf16.mxu0 0
  %1591 = vmatmul.mubr.bf16.gmra.mxu0 %v1020
  %v1592 = vpop.f32.mrf.mxu0
  %v1593 = vadd.f32 0.0, %v1592
  %v1594 = vpop.f32.mrf.mxu0
  %v1595 = vpop.f32.mrf.mxu0
  %v1596 = vadd.f32 0.0, %v1595
  %v1597 = vpop.f32.mrf.mxu0
  %1598 = vmatprep.mubr.bf16.mxu0 0
  %1599 = vmatmul.mubr.bf16.gmra.mxu0 %v1023
  %v1600 = vpop.f32.mrf.mxu0
  %v1601 = vadd.f32 0.0, %v1600
  %v1602 = vpop.f32.mrf.mxu0
  %v1603 = vpop.f32.mrf.mxu0
  %v1604 = vadd.f32 0.0, %v1603
  %v1605 = vpop.f32.mrf.mxu0
  %1606 = vmatprep.mubr.bf16.mxu0 0
  %1607 = vmatmul.mubr.bf16.gmra.mxu0 %v1026
  %v1608 = vpop.f32.mrf.mxu0
  %v1609 = vadd.f32 0.0, %v1608
  %v1610 = vpop.f32.mrf.mxu0
  %v1611 = vpop.f32.mrf.mxu0
  %v1612 = vadd.f32 0.0, %v1611
  %v1613 = vpop.f32.mrf.mxu0
  %1614 = vmatprep.mubr.bf16.mxu0 0
  %1615 = vmatmul.mubr.bf16.gmra.mxu0 %v1029
  %v1616 = vpop.f32.mrf.mxu0
  %v1617 = vadd.f32 0.0, %v1616
  %v1618 = vpop.f32.mrf.mxu0
  %v1619 = vpop.f32.mrf.mxu0
  %v1620 = vadd.f32 0.0, %v1619
  %v1621 = vpop.f32.mrf.mxu0
  %1622 = vmatprep.mubr.bf16.mxu0 0
  %1623 = vmatmul.mubr.bf16.gmra.mxu0 %v1032
  %v1624 = vpop.f32.mrf.mxu0
  %v1625 = vadd.f32 0.0, %v1624
  %v1626 = vpop.f32.mrf.mxu0
  %v1627 = vpop.f32.mrf.mxu0
  %v1628 = vadd.f32 0.0, %v1627
  %v1629 = vpop.f32.mrf.mxu0
  %1630 = vmatprep.mubr.bf16.mxu0 0
  %1631 = vmatmul.mubr.bf16.gmra.mxu0 %v1035
  %v1632 = vpop.f32.mrf.mxu0
  %v1633 = vadd.f32 0.0, %v1632
  %v1634 = vpop.f32.mrf.mxu0
  %v1635 = vpop.f32.mrf.mxu0
  %v1636 = vadd.f32 0.0, %v1635
  %v1637 = vpop.f32.mrf.mxu0
  %1638 = vmatprep.mubr.bf16.mxu0 0
  %1639 = vmatmul.mubr.bf16.gmra.mxu0 %v1038
  %v1640 = vpop.f32.mrf.mxu0
  %v1641 = vadd.f32 0.0, %v1640
  %v1642 = vpop.f32.mrf.mxu0
  %v1643 = vpop.f32.mrf.mxu0
  %v1644 = vadd.f32 0.0, %v1643
  %v1645 = vpop.f32.mrf.mxu0
  %1646 = vmatprep.mubr.bf16.mxu0 0
  %1647 = vmatmul.mubr.bf16.gmra.mxu0 %v1041
  %v1648 = vpop.f32.mrf.mxu0
  %v1649 = vadd.f32 0.0, %v1648
  %v1650 = vpop.f32.mrf.mxu0
  %v1651 = vpop.f32.mrf.mxu0
  %v1652 = vadd.f32 0.0, %v1651
  %v1653 = vpop.f32.mrf.mxu0
  %1654 = vmatprep.mubr.bf16.mxu0 0
  %1655 = vmatmul.mubr.bf16.gmra.mxu0 %v1044
  %v1656 = vpop.f32.mrf.mxu0
  %v1657 = vadd.f32 0.0, %v1656
  %v1658 = vpop.f32.mrf.mxu0
  %v1659 = vpop.f32.mrf.mxu0
  %v1660 = vadd.f32 0.0, %v1659
  %v1661 = vpop.f32.mrf.mxu0
  %1662 = vmatprep.mubr.bf16.mxu0 0
  %1663 = vmatmul.mubr.bf16.gmra.mxu0 %v1047
  %v1664 = vpop.f32.mrf.mxu0
  %v1665 = vadd.f32 0.0, %v1664
  %v1666 = vpop.f32.mrf.mxu0
  %v1667 = vpop.f32.mrf.mxu0
  %v1668 = vadd.f32 0.0, %v1667
  %v1669 = vpop.f32.mrf.mxu0
  %1670 = vmatprep.mubr.bf16.mxu0 0
  %1671 = vmatmul.mubr.bf16.gmra.mxu0 %v1050
  %v1672 = vpop.f32.mrf.mxu0
  %v1673 = vadd.f32 0.0, %v1672
  %v1674 = vpop.f32.mrf.mxu0
  %v1675 = vpop.f32.mrf.mxu0
  %v1676 = vadd.f32 0.0, %v1675
  %v1677 = vpop.f32.mrf.mxu0
  %1678 = vmatprep.mubr.bf16.mxu0 0
  %1679 = vmatmul.mubr.bf16.gmra.mxu0 %v1053
  %v1680 = vpop.f32.mrf.mxu0
  %v1681 = vadd.f32 0.0, %v1680
  %v1682 = vpop.f32.mrf.mxu0
  %v1683 = vpop.f32.mrf.mxu0
  %v1684 = vadd.f32 0.0, %v1683
  %v1685 = vpop.f32.mrf.mxu0
  %1686 = vmatprep.mubr.bf16.mxu0 0
  %1687 = vmatmul.mubr.bf16.gmra.mxu0 %v1056
  %v1688 = vpop.f32.mrf.mxu0
  %v1689 = vadd.f32 0.0, %v1688
  %v1690 = vpop.f32.mrf.mxu0
  %v1691 = vpop.f32.mrf.mxu0
  %v1692 = vadd.f32 0.0, %v1691
  %v1693 = vpop.f32.mrf.mxu0
  %1694 = vmatprep.mubr.bf16.mxu0 0
  %1695 = vmatmul.mubr.bf16.gmra.mxu0 %v1059
  %v1696 = vpop.f32.mrf.mxu0
  %v1697 = vadd.f32 0.0, %v1696
  %v1698 = vpop.f32.mrf.mxu0
  %v1699 = vpop.f32.mrf.mxu0
  %v1700 = vadd.f32 0.0, %v1699
  %v1701 = vpop.f32.mrf.mxu0
  %1702 = vmatprep.mubr.bf16.mxu0 0
  %1703 = vmatmul.mubr.bf16.gmra.mxu0 %v1062
  %v1704 = vpop.f32.mrf.mxu0
  %v1705 = vadd.f32 0.0, %v1704
  %v1706 = vpop.f32.mrf.mxu0
  %v1707 = vpop.f32.mrf.mxu0
  %v1708 = vadd.f32 0.0, %v1707
  %v1709 = vpop.f32.mrf.mxu0
  %1710 = vmatprep.mubr.bf16.mxu0 0
  %1711 = vmatmul.mubr.bf16.gmra.mxu0 %v1065
  %v1712 = vpop.f32.mrf.mxu0
  %v1713 = vadd.f32 0.0, %v1712
  %v1714 = vpop.f32.mrf.mxu0
  %v1715 = vpop.f32.mrf.mxu0
  %v1716 = vadd.f32 0.0, %v1715
  %v1717 = vpop.f32.mrf.mxu0
  %1718 = vmatprep.mubr.bf16.mxu0 0
  %1719 = vmatmul.mubr.bf16.gmra.mxu0 %v1068
  %v1720 = vpop.f32.mrf.mxu0
  %v1721 = vadd.f32 0.0, %v1720
  %v1722 = vpop.f32.mrf.mxu0
  %v1723 = vpop.f32.mrf.mxu0
  %v1724 = vadd.f32 0.0, %v1723
  %v1725 = vpop.f32.mrf.mxu0
  %1726 = vmatprep.mubr.bf16.mxu0 0
  %1727 = vmatmul.mubr.bf16.gmra.mxu0 %v1071
  %v1728 = vpop.f32.mrf.mxu0
  %v1729 = vadd.f32 0.0, %v1728
  %v1730 = vpop.f32.mrf.mxu0
  %v1731 = vpop.f32.mrf.mxu0
  %v1732 = vadd.f32 0.0, %v1731
  %v1733 = vpop.f32.mrf.mxu0
  %1734 = vmatprep.mubr.bf16.mxu0 0
  %1735 = vmatmul.mubr.bf16.gmra.mxu0 %v1074
  %v1736 = vpop.f32.mrf.mxu0
  %v1737 = vadd.f32 0.0, %v1736
  %v1738 = vpop.f32.mrf.mxu0
  %v1739 = vpop.f32.mrf.mxu0
  %v1740 = vadd.f32 0.0, %v1739
  %v1741 = vpop.f32.mrf.mxu0
  %1742 = vmatprep.mubr.bf16.mxu0 0
  %1743 = vmatmul.mubr.bf16.gmra.mxu0 %v1077
  %v1744 = vpop.f32.mrf.mxu0
  %v1745 = vadd.f32 0.0, %v1744
  %v1746 = vpop.f32.mrf.mxu0
  %v1747 = vpop.f32.mrf.mxu0
  %v1748 = vadd.f32 0.0, %v1747
  %v1749 = vpop.f32.mrf.mxu0
  %1750 = vmatprep.mubr.bf16.mxu0 0
  %1751 = vmatmul.mubr.bf16.gmra.mxu0 %v1080
  %v1752 = vpop.f32.mrf.mxu0
  %v1753 = vadd.f32 0.0, %v1752
  %v1754 = vpop.f32.mrf.mxu0
  %v1755 = vpop.f32.mrf.mxu0
  %v1756 = vadd.f32 0.0, %v1755
  %v1757 = vpop.f32.mrf.mxu0
  %1758 = vmatprep.mubr.bf16.mxu0 0
  %1759 = vmatmul.mubr.bf16.gmra.mxu0 %v1083
  %v1760 = vpop.f32.mrf.mxu0
  %v1761 = vadd.f32 0.0, %v1760
  %v1762 = vpop.f32.mrf.mxu0
  %v1763 = vpop.f32.mrf.mxu0
  %v1764 = vadd.f32 0.0, %v1763
  %v1765 = vpop.f32.mrf.mxu0
  %1766 = vmatprep.mubr.bf16.mxu0 0
  %1767 = vmatmul.mubr.bf16.gmra.mxu0 %v1086
  %v1768 = vpop.f32.mrf.mxu0
  %v1769 = vadd.f32 0.0, %v1768
  %v1770 = vpop.f32.mrf.mxu0
  %v1771 = vpop.f32.mrf.mxu0
  %v1772 = vadd.f32 0.0, %v1771
  %v1773 = vpop.f32.mrf.mxu0
  %1774 = vmatprep.mubr.bf16.mxu0 0
  %1775 = vmatmul.mubr.bf16.gmra.mxu0 %v1089
  %v1776 = vpop.f32.mrf.mxu0
  %v1777 = vadd.f32 0.0, %v1776
  %v1778 = vpop.f32.mrf.mxu0
  %v1779 = vpop.f32.mrf.mxu0
  %v1780 = vadd.f32 0.0, %v1779
  %v1781 = vpop.f32.mrf.mxu0
  %1782 = vmatprep.mubr.bf16.mxu0 0
  %1783 = vmatmul.mubr.bf16.gmra.mxu0 %v1092
  %v1784 = vpop.f32.mrf.mxu0
  %v1785 = vadd.f32 0.0, %v1784
  %v1786 = vpop.f32.mrf.mxu0
  %v1787 = vpop.f32.mrf.mxu0
  %v1788 = vadd.f32 0.0, %v1787
  %v1789 = vpop.f32.mrf.mxu0
  %1790 = vmatprep.mubr.bf16.mxu0 0
  %1791 = vmatmul.mubr.bf16.gmra.mxu0 %v1095
  %v1792 = vpop.f32.mrf.mxu0
  %v1793 = vadd.f32 0.0, %v1792
  %v1794 = vpop.f32.mrf.mxu0
  %v1795 = vpop.f32.mrf.mxu0
  %v1796 = vadd.f32 0.0, %v1795
  %v1797 = vpop.f32.mrf.mxu0
  %1798 = vmatprep.mubr.bf16.mxu0 0
  %1799 = vmatmul.mubr.bf16.gmra.mxu0 %v1098
  %v1800 = vpop.f32.mrf.mxu0
  %v1801 = vadd.f32 0.0, %v1800
  %v1802 = vpop.f32.mrf.mxu0
  %v1803 = vpop.f32.mrf.mxu0
  %v1804 = vadd.f32 0.0, %v1803
  %v1805 = vpop.f32.mrf.mxu0
  %1806 = vmatprep.mubr.bf16.mxu0 0
  %1807 = vmatmul.mubr.bf16.gmra.mxu0 %v1101
  %v1808 = vpop.f32.mrf.mxu0
  %v1809 = vadd.f32 0.0, %v1808
  %v1810 = vpop.f32.mrf.mxu0
  %v1811 = vpop.f32.mrf.mxu0
  %v1812 = vadd.f32 0.0, %v1811
  %v1813 = vpop.f32.mrf.mxu0
  %1814 = vmatprep.mubr.bf16.mxu0 0
  %1815 = vmatmul.mubr.bf16.gmra.mxu0 %v1104
  %v1816 = vpop.f32.mrf.mxu0
  %v1817 = vadd.f32 0.0, %v1816
  %v1818 = vpop.f32.mrf.mxu0
  %v1819 = vpop.f32.mrf.mxu0
  %v1820 = vadd.f32 0.0, %v1819
  %v1821 = vpop.f32.mrf.mxu0
  %1822 = vmatprep.mubr.bf16.mxu0 0
  %1823 = vmatmul.mubr.bf16.gmra.mxu0 %v1107
  %v1824 = vpop.f32.mrf.mxu0
  %v1825 = vadd.f32 0.0, %v1824
  %v1826 = vpop.f32.mrf.mxu0
  %v1827 = vpop.f32.mrf.mxu0
  %v1828 = vadd.f32 0.0, %v1827
  %v1829 = vpop.f32.mrf.mxu0
  %1830 = vmatprep.mubr.bf16.mxu0 0
  %1831 = vmatmul.mubr.bf16.gmra.mxu0 %v1110
  %v1832 = vpop.f32.mrf.mxu0
  %v1833 = vadd.f32 0.0, %v1832
  %v1834 = vpop.f32.mrf.mxu0
  %v1835 = vpop.f32.mrf.mxu0
  %v1836 = vadd.f32 0.0, %v1835
  %v1837 = vpop.f32.mrf.mxu0
  %1838 = vmatprep.mubr.bf16.mxu0 0
  %1839 = vmatmul.mubr.bf16.gmra.mxu0 %v1113
  %v1840 = vpop.f32.mrf.mxu0
  %v1841 = vadd.f32 0.0, %v1840
  %v1842 = vpop.f32.mrf.mxu0
  %v1843 = vpop.f32.mrf.mxu0
  %v1844 = vadd.f32 0.0, %v1843
  %v1845 = vpop.f32.mrf.mxu0
  %1846 = vmatprep.mubr.bf16.mxu0 0
  %1847 = vmatmul.mubr.bf16.gmra.mxu0 %v1116
  %v1848 = vpop.f32.mrf.mxu0
  %v1849 = vadd.f32 0.0, %v1848
  %v1850 = vpop.f32.mrf.mxu0
  %v1851 = vpop.f32.mrf.mxu0
  %v1852 = vadd.f32 0.0, %v1851
  %v1853 = vpop.f32.mrf.mxu0
  %1854 = vmatprep.mubr.bf16.mxu0 0
  %1855 = vmatmul.mubr.bf16.gmra.mxu0 %v1119
  %v1856 = vpop.f32.mrf.mxu0
  %v1857 = vadd.f32 0.0, %v1856
  %v1858 = vpop.f32.mrf.mxu0
  %v1859 = vpop.f32.mrf.mxu0
  %v1860 = vadd.f32 0.0, %v1859
  %v1861 = vpop.f32.mrf.mxu0
  %1862 = vmatprep.mubr.bf16.mxu0 0
  %1863 = vmatmul.mubr.bf16.gmra.mxu0 %v1122
  %v1864 = vpop.f32.mrf.mxu0
  %v1865 = vadd.f32 0.0, %v1864
  %v1866 = vpop.f32.mrf.mxu0
  %v1867 = vpop.f32.mrf.mxu0
  %v1868 = vadd.f32 0.0, %v1867
  %v1869 = vpop.f32.mrf.mxu0
  %1870 = vmatprep.mubr.bf16.mxu0 0
  %1871 = vmatmul.mubr.bf16.gmra.mxu0 %v1125
  %v1872 = vpop.f32.mrf.mxu0
  %v1873 = vadd.f32 0.0, %v1872
  %v1874 = vpop.f32.mrf.mxu0
  %v1875 = vpop.f32.mrf.mxu0
  %v1876 = vadd.f32 0.0, %v1875
  %v1877 = vpop.f32.mrf.mxu0
  %1878 = vmatprep.mubr.bf16.mxu0 0
  %1879 = vmatmul.mubr.bf16.gmra.mxu0 %v1128
  %v1880 = vpop.f32.mrf.mxu0
  %v1881 = vadd.f32 0.0, %v1880
  %v1882 = vpop.f32.mrf.mxu0
  %v1883 = vpop.f32.mrf.mxu0
  %v1884 = vadd.f32 0.0, %v1883
  %v1885 = vpop.f32.mrf.mxu0
  %1886 = vmatprep.mubr.bf16.mxu0 0
  %1887 = vmatmul.mubr.bf16.gmra.mxu0 %v1131
  %v1888 = vpop.f32.mrf.mxu0
  %v1889 = vadd.f32 0.0, %v1888
  %v1890 = vpop.f32.mrf.mxu0
  %v1891 = vpop.f32.mrf.mxu0
  %v1892 = vadd.f32 0.0, %v1891
  %v1893 = vpop.f32.mrf.mxu0
  %1894 = vmatprep.mubr.bf16.mxu0 0
  %1895 = vmatmul.mubr.bf16.gmra.mxu0 %v1134
  %v1896 = vpop.f32.mrf.mxu0
  %v1897 = vadd.f32 0.0, %v1896
  %v1898 = vpop.f32.mrf.mxu0
  %v1899 = vpop.f32.mrf.mxu0
  %v1900 = vadd.f32 0.0, %v1899
  %v1901 = vpop.f32.mrf.mxu0
  %1902 = vmatprep.mubr.bf16.mxu0 0
  %1903 = vmatmul.mubr.bf16.gmra.mxu0 %v1137
  %v1904 = vpop.f32.mrf.mxu0
  %v1905 = vadd.f32 0.0, %v1904
  %v1906 = vpop.f32.mrf.mxu0
  %v1907 = vpop.f32.mrf.mxu0
  %v1908 = vadd.f32 0.0, %v1907
  %v1909 = vpop.f32.mrf.mxu0
  %1910 = vmatprep.mubr.bf16.mxu0 0
  %1911 = vmatmul.mubr.bf16.gmra.mxu0 %v1140
  %v1912 = vpop.f32.mrf.mxu0
  %v1913 = vadd.f32 0.0, %v1912
  %v1914 = vpop.f32.mrf.mxu0
  %v1915 = vpop.f32.mrf.mxu0
  %v1916 = vadd.f32 0.0, %v1915
  %v1917 = vpop.f32.mrf.mxu0
  %1918 = vmatprep.mubr.bf16.mxu0 0
  %1919 = vmatmul.mubr.bf16.gmra.mxu0 %v1143
  %v1920 = vpop.f32.mrf.mxu0
  %v1921 = vadd.f32 0.0, %v1920
  %v1922 = vpop.f32.mrf.mxu0
  %v1923 = vpop.f32.mrf.mxu0
  %v1924 = vadd.f32 0.0, %v1923
  %v1925 = vpop.f32.mrf.mxu0
  %1926 = vmatprep.mubr.bf16.mxu0 0
  %1927 = vmatmul.mubr.bf16.gmra.mxu0 %v1146
  %v1928 = vpop.f32.mrf.mxu0
  %v1929 = vadd.f32 0.0, %v1928
  %v1930 = vpop.f32.mrf.mxu0
  %v1931 = vpop.f32.mrf.mxu0
  %v1932 = vadd.f32 0.0, %v1931
  %v1933 = vpop.f32.mrf.mxu0
  %1934 = vmatprep.mubr.bf16.mxu0 0
  %1935 = vmatmul.mubr.bf16.gmra.mxu0 %v1149
  %v1936 = vpop.f32.mrf.mxu0
  %v1937 = vadd.f32 0.0, %v1936
  %v1938 = vpop.f32.mrf.mxu0
  %v1939 = vpop.f32.mrf.mxu0
  %v1940 = vadd.f32 0.0, %v1939
  %v1941 = vpop.f32.mrf.mxu0
  %1942 = vmatprep.mubr.bf16.mxu0 0
  %1943 = vmatmul.mubr.bf16.gmra.mxu0 %v1152
  %v1944 = vpop.f32.mrf.mxu0
  %v1945 = vadd.f32 0.0, %v1944
  %v1946 = vpop.f32.mrf.mxu0
  %v1947 = vpop.f32.mrf.mxu0
  %v1948 = vadd.f32 0.0, %v1947
  %v1949 = vpop.f32.mrf.mxu0
  %1950 = vmatprep.mubr.bf16.mxu0 0
  %1951 = vmatmul.mubr.bf16.gmra.mxu0 %v1155
  %v1952 = vpop.f32.mrf.mxu0
  %v1953 = vadd.f32 0.0, %v1952
  %v1954 = vpop.f32.mrf.mxu0
  %v1955 = vpop.f32.mrf.mxu0
  %v1956 = vadd.f32 0.0, %v1955
  %v1957 = vpop.f32.mrf.mxu0
  %1958 = vmatprep.mubr.bf16.mxu0 0
  %1959 = vmatmul.mubr.bf16.gmra.mxu0 %v1158
  %v1960 = vpop.f32.mrf.mxu0
  %v1961 = vadd.f32 0.0, %v1960
  %v1962 = vpop.f32.mrf.mxu0
  %v1963 = vpop.f32.mrf.mxu0
  %v1964 = vadd.f32 0.0, %v1963
  %v1965 = vpop.f32.mrf.mxu0
  %1966 = vmatprep.mubr.bf16.mxu0 0
  %1967 = vmatmul.mubr.bf16.gmra.mxu0 %v1161
  %v1968 = vpop.f32.mrf.mxu0
  %v1969 = vadd.f32 0.0, %v1968
  %v1970 = vpop.f32.mrf.mxu0
  %v1971 = vpop.f32.mrf.mxu0
  %v1972 = vadd.f32 0.0, %v1971
  %v1973 = vpop.f32.mrf.mxu0
  %1974 = vmatprep.mubr.bf16.mxu0 0
  %1975 = vmatmul.mubr.bf16.gmra.mxu0 %v1164
  %v1976 = vpop.f32.mrf.mxu0
  %v1977 = vadd.f32 0.0, %v1976
  %v1978 = vpop.f32.mrf.mxu0
  %v1979 = vpop.f32.mrf.mxu0
  %v1980 = vadd.f32 0.0, %v1979
  %v1981 = vpop.f32.mrf.mxu0
  %1982 = vmatprep.mubr.bf16.mxu0 0
  %1983 = vmatmul.mubr.bf16.gmra.mxu0 %v1167
  %v1984 = vpop.f32.mrf.mxu0
  %v1985 = vadd.f32 0.0, %v1984
  %v1986 = vpop.f32.mrf.mxu0
  %v1987 = vpop.f32.mrf.mxu0
  %v1988 = vadd.f32 0.0, %v1987
  %v1989 = vpop.f32.mrf.mxu0
  %1990 = vmatprep.mubr.bf16.mxu0 0
  %1991 = vmatmul.mubr.bf16.gmra.mxu0 %v1170
  %v1992 = vpop.f32.mrf.mxu0
  %v1993 = vadd.f32 0.0, %v1992
  %v1994 = vpop.f32.mrf.mxu0
  %v1995 = vpop.f32.mrf.mxu0
  %v1996 = vadd.f32 0.0, %v1995
  %v1997 = vpop.f32.mrf.mxu0
  %1998 = vmatprep.mubr.bf16.mxu0 0
  %1999 = vmatmul.mubr.bf16.gmra.mxu0 %v1173
  %v2000 = vpop.f32.mrf.mxu0
  %v2001 = vadd.f32 0.0, %v2000
  %v2002 = vpop.f32.mrf.mxu0
  %v2003 = vpop.f32.mrf.mxu0
  %v2004 = vadd.f32 0.0, %v2003
  %v2005 = vpop.f32.mrf.mxu0
  %2006 = vmatprep.mubr.bf16.mxu0 0
  %2007 = vmatmul.mubr.bf16.gmra.mxu0 %v1176
  %v2008 = vpop.f32.mrf.mxu0
  %v2009 = vadd.f32 0.0, %v2008
  %v2010 = vpop.f32.mrf.mxu0
  %v2011 = vpop.f32.mrf.mxu0
  %v2012 = vadd.f32 0.0, %v2011
  %v2013 = vpop.f32.mrf.mxu0
  %2014 = vmatprep.mubr.bf16.mxu0 0
  %2015 = vmatmul.mubr.bf16.gmra.mxu0 %v1179
  %v2016 = vpop.f32.mrf.mxu0
  %v2017 = vadd.f32 0.0, %v2016
  %v2018 = vpop.f32.mrf.mxu0
  %v2019 = vpop.f32.mrf.mxu0
  %v2020 = vadd.f32 0.0, %v2019
  %v2021 = vpop.f32.mrf.mxu0
  %2022 = vmatprep.mubr.bf16.mxu0 0
  %2023 = vmatmul.mubr.bf16.gmra.mxu0 %v1182
  %v2024 = vpop.f32.mrf.mxu0
  %v2025 = vadd.f32 0.0, %v2024
  %v2026 = vpop.f32.mrf.mxu0
  %v2027 = vpop.f32.mrf.mxu0
  %v2028 = vadd.f32 0.0, %v2027
  %v2029 = vpop.f32.mrf.mxu0
  %2030 = vmatprep.mubr.bf16.mxu0 0
  %2031 = vmatmul.mubr.bf16.gmra.mxu0 %v1185
  %v2032 = vpop.f32.mrf.mxu0
  %v2033 = vadd.f32 0.0, %v2032
  %v2034 = vpop.f32.mrf.mxu0
  %v2035 = vpop.f32.mrf.mxu0
  %v2036 = vadd.f32 0.0, %v2035
  %v2037 = vpop.f32.mrf.mxu0
  %2038 = vmatprep.mubr.bf16.mxu0 0
  %2039 = vmatmul.mubr.bf16.gmra.mxu0 %v1188
  %v2040 = vpop.f32.mrf.mxu0
  %v2041 = vadd.f32 0.0, %v2040
  %v2042 = vpop.f32.mrf.mxu0
  %v2043 = vpop.f32.mrf.mxu0
  %v2044 = vadd.f32 0.0, %v2043
  %v2045 = vpop.f32.mrf.mxu0
  %2046 = vmatprep.mubr.bf16.mxu0 0
  %2047 = vmatmul.mubr.bf16.gmra.mxu0 %v1191
  %v2048 = vpop.f32.mrf.mxu0
  %v2049 = vadd.f32 0.0, %v2048
  %v2050 = vpop.f32.mrf.mxu0
  %v2051 = vpop.f32.mrf.mxu0
  %v2052 = vadd.f32 0.0, %v2051
  %v2053 = vpop.f32.mrf.mxu0
  %2054 = vmatprep.mubr.bf16.mxu0 0
  %2055 = vmatmul.mubr.bf16.gmra.mxu0 %v1194
  %v2056 = vpop.f32.mrf.mxu0
  %v2057 = vadd.f32 0.0, %v2056
  %v2058 = vpop.f32.mrf.mxu0
  %v2059 = vpop.f32.mrf.mxu0
  %v2060 = vadd.f32 0.0, %v2059
  %v2061 = vpop.f32.mrf.mxu0
  %2062 = vmatprep.mubr.bf16.mxu0 0
  %2063 = vmatmul.mubr.bf16.gmra.mxu0 %v1197
  %v2064 = vpop.f32.mrf.mxu0
  %v2065 = vadd.f32 0.0, %v2064
  %v2066 = vpop.f32.mrf.mxu0
  %v2067 = vpop.f32.mrf.mxu0
  %v2068 = vadd.f32 0.0, %v2067
  %v2069 = vpop.f32.mrf.mxu0
  %2070 = vmatprep.mubr.bf16.mxu0 0
  %2071 = vmatmul.mubr.bf16.gmra.mxu0 %v1200
  %v2072 = vpop.f32.mrf.mxu0
  %v2073 = vadd.f32 0.0, %v2072
  %v2074 = vpop.f32.mrf.mxu0
  %v2075 = vpop.f32.mrf.mxu0
  %v2076 = vadd.f32 0.0, %v2075
  %v2077 = vpop.f32.mrf.mxu0
  %2078 = vmatprep.mubr.bf16.mxu0 0
  %2079 = vmatmul.mubr.bf16.gmra.mxu0 %v1203
  %v2080 = vpop.f32.mrf.mxu0
  %v2081 = vadd.f32 0.0, %v2080
  %v2082 = vpop.f32.mrf.mxu0
  %v2083 = vpop.f32.mrf.mxu0
  %v2084 = vadd.f32 0.0, %v2083
  %v2085 = vpop.f32.mrf.mxu0
  %2086 = vmatprep.mubr.bf16.mxu0 0
  %2087 = vmatmul.mubr.bf16.gmra.mxu0 %v1206
  %v2088 = vpop.f32.mrf.mxu0
  %v2089 = vadd.f32 0.0, %v2088
  %v2090 = vpop.f32.mrf.mxu0
  %v2091 = vpop.f32.mrf.mxu0
  %v2092 = vadd.f32 0.0, %v2091
  %v2093 = vpop.f32.mrf.mxu0
  %2094 = vmatprep.mubr.bf16.mxu0 0
  %2095 = vmatmul.mubr.bf16.gmra.mxu0 %v1209
  %v2096 = vpop.f32.mrf.mxu0
  %v2097 = vadd.f32 0.0, %v2096
  %v2098 = vpop.f32.mrf.mxu0
  %v2099 = vpop.f32.mrf.mxu0
  %v2100 = vadd.f32 0.0, %v2099
  %v2101 = vpop.f32.mrf.mxu0
  %2102 = vmatprep.mubr.bf16.mxu0 0
  %2103 = vmatmul.mubr.bf16.gmra.mxu0 %v1212
  %v2104 = vpop.f32.mrf.mxu0
  %v2105 = vadd.f32 0.0, %v2104
  %v2106 = vpop.f32.mrf.mxu0
  %v2107 = vpop.f32.mrf.mxu0
  %v2108 = vadd.f32 0.0, %v2107
  %v2109 = vpop.f32.mrf.mxu0
  %2110 = vmatprep.mubr.bf16.mxu0 0
  %2111 = vmatmul.mubr.bf16.gmra.mxu0 %v1215
  %v2112 = vpop.f32.mrf.mxu0
  %v2113 = vadd.f32 0.0, %v2112
  %v2114 = vpop.f32.mrf.mxu0
  %v2115 = vpop.f32.mrf.mxu0
  %v2116 = vadd.f32 0.0, %v2115
  %v2117 = vpop.f32.mrf.mxu0
  %2118 = vmatprep.mubr.bf16.mxu0 0
  %2119 = vmatmul.mubr.bf16.gmra.mxu0 %v1218
  %v2120 = vpop.f32.mrf.mxu0
  %v2121 = vadd.f32 0.0, %v2120
  %v2122 = vpop.f32.mrf.mxu0
  %v2123 = vpop.f32.mrf.mxu0
  %v2124 = vadd.f32 0.0, %v2123
  %v2125 = vpop.f32.mrf.mxu0
  %2126 = vmatprep.mubr.bf16.mxu0 0
  %2127 = vmatmul.mubr.bf16.gmra.mxu0 %v1221
  %v2128 = vpop.f32.mrf.mxu0
  %v2129 = vadd.f32 0.0, %v2128
  %v2130 = vpop.f32.mrf.mxu0
  %v2131 = vpop.f32.mrf.mxu0
  %v2132 = vadd.f32 0.0, %v2131
  %v2133 = vpop.f32.mrf.mxu0
  %2134 = vmatprep.mubr.bf16.mxu0 0
  %2135 = vmatmul.mubr.bf16.gmra.mxu0 %v1224
  %v2136 = vpop.f32.mrf.mxu0
  %v2137 = vadd.f32 0.0, %v2136
  %v2138 = vpop.f32.mrf.mxu0
  %v2139 = vpop.f32.mrf.mxu0
  %v2140 = vadd.f32 0.0, %v2139
  %v2141 = vpop.f32.mrf.mxu0
  %2142 = vmatprep.mubr.bf16.mxu0 0
  %2143 = vmatmul.mubr.bf16.gmra.mxu0 %v1227
  %v2144 = vpop.f32.mrf.mxu0
  %v2145 = vadd.f32 0.0, %v2144
  %v2146 = vpop.f32.mrf.mxu0
  %v2147 = vpop.f32.mrf.mxu0
  %v2148 = vadd.f32 0.0, %v2147
  %v2149 = vpop.f32.mrf.mxu0
  %2150 = vmatprep.mubr.bf16.mxu0 0
  %2151 = vmatmul.mubr.bf16.gmra.mxu0 %v1230
  %v2152 = vpop.f32.mrf.mxu0
  %v2153 = vadd.f32 0.0, %v2152
  %v2154 = vpop.f32.mrf.mxu0
  %v2155 = vpop.f32.mrf.mxu0
  %v2156 = vadd.f32 0.0, %v2155
  %v2157 = vpop.f32.mrf.mxu0
  %2158 = vmatprep.mubr.bf16.mxu0 0
  %2159 = vmatmul.mubr.bf16.gmra.mxu0 %v1233
  %v2160 = vpop.f32.mrf.mxu0
  %v2161 = vadd.f32 0.0, %v2160
  %v2162 = vpop.f32.mrf.mxu0
  %v2163 = vpop.f32.mrf.mxu0
  %v2164 = vadd.f32 0.0, %v2163
  %v2165 = vpop.f32.mrf.mxu0
  %2166 = vmatprep.mubr.bf16.mxu0 0
  %2167 = vmatmul.mubr.bf16.gmra.mxu0 %v1236
  %v2168 = vpop.f32.mrf.mxu0
  %v2169 = vadd.f32 0.0, %v2168
  %v2170 = vpop.f32.mrf.mxu0
  %v2171 = vpop.f32.mrf.mxu0
  %v2172 = vadd.f32 0.0, %v2171
  %v2173 = vpop.f32.mrf.mxu0
  %2174 = vmatprep.mubr.bf16.mxu0 0
  %2175 = vmatmul.mubr.bf16.gmra.mxu0 %v1239
  %v2176 = vpop.f32.mrf.mxu0
  %v2177 = vadd.f32 0.0, %v2176
  %v2178 = vpop.f32.mrf.mxu0
  %v2179 = vpop.f32.mrf.mxu0
  %v2180 = vadd.f32 0.0, %v2179
  %v2181 = vpop.f32.mrf.mxu0
  %2182 = vmatprep.mubr.bf16.mxu0 0
  %2183 = vmatmul.mubr.bf16.gmra.mxu0 %v1242
  %v2184 = vpop.f32.mrf.mxu0
  %v2185 = vadd.f32 0.0, %v2184
  %v2186 = vpop.f32.mrf.mxu0
  %v2187 = vpop.f32.mrf.mxu0
  %v2188 = vadd.f32 0.0, %v2187
  %v2189 = vpop.f32.mrf.mxu0
  %2190 = vmatprep.mubr.bf16.mxu0 0
  %2191 = vmatmul.mubr.bf16.gmra.mxu0 %v1245
  %v2192 = vpop.f32.mrf.mxu0
  %v2193 = vadd.f32 0.0, %v2192
  %v2194 = vpop.f32.mrf.mxu0
  %v2195 = vpop.f32.mrf.mxu0
  %v2196 = vadd.f32 0.0, %v2195
  %v2197 = vpop.f32.mrf.mxu0
  %2198 = vmatprep.mubr.bf16.mxu0 0
  %2199 = vmatmul.mubr.bf16.gmra.mxu0 %v1248
  %v2200 = vpop.f32.mrf.mxu0
  %v2201 = vadd.f32 0.0, %v2200
  %v2202 = vpop.f32.mrf.mxu0
  %v2203 = vpop.f32.mrf.mxu0
  %v2204 = vadd.f32 0.0, %v2203
  %v2205 = vpop.f32.mrf.mxu0
  %2206 = vmatprep.mubr.bf16.mxu0 0
  %2207 = vmatmul.mubr.bf16.gmra.mxu0 %v1251
  %v2208 = vpop.f32.mrf.mxu0
  %v2209 = vadd.f32 0.0, %v2208
  %v2210 = vpop.f32.mrf.mxu0
  %v2211 = vpop.f32.mrf.mxu0
  %v2212 = vadd.f32 0.0, %v2211
  %v2213 = vpop.f32.mrf.mxu0
  %2214 = vmatprep.mubr.bf16.mxu0 0
  %2215 = vmatmul.mubr.bf16.gmra.mxu0 %v1254
  %v2216 = vpop.f32.mrf.mxu0
  %v2217 = vadd.f32 0.0, %v2216
  %v2218 = vpop.f32.mrf.mxu0
  %v2219 = vpop.f32.mrf.mxu0
  %v2220 = vadd.f32 0.0, %v2219
  %v2221 = vpop.f32.mrf.mxu0
  %2222 = vmatprep.mubr.bf16.mxu0 0
  %2223 = vmatmul.mubr.bf16.gmra.mxu0 %v1257
  %v2224 = vpop.f32.mrf.mxu0
  %v2225 = vadd.f32 0.0, %v2224
  %v2226 = vpop.f32.mrf.mxu0
  %v2227 = vpop.f32.mrf.mxu0
  %v2228 = vadd.f32 0.0, %v2227
  %v2229 = vpop.f32.mrf.mxu0
  %2230 = vmatprep.mubr.bf16.mxu0 0
  %2231 = vmatmul.mubr.bf16.gmra.mxu0 %v1260
  %v2232 = vpop.f32.mrf.mxu0
  %v2233 = vadd.f32 0.0, %v2232
  %v2234 = vpop.f32.mrf.mxu0
  %v2235 = vpop.f32.mrf.mxu0
  %v2236 = vadd.f32 0.0, %v2235
  %v2237 = vpop.f32.mrf.mxu0
  %2238 = vmatprep.mubr.bf16.mxu0 0
  %2239 = vmatmul.mubr.bf16.gmra.mxu0 %v1263
  %v2240 = vpop.f32.mrf.mxu0
  %v2241 = vadd.f32 0.0, %v2240
  %v2242 = vpop.f32.mrf.mxu0
  %v2243 = vpop.f32.mrf.mxu0
  %v2244 = vadd.f32 0.0, %v2243
  %v2245 = vpop.f32.mrf.mxu0
  %2246 = vmatprep.mubr.bf16.mxu0 0
  %2247 = vmatmul.mubr.bf16.gmra.mxu0 %v1266
  %v2248 = vpop.f32.mrf.mxu0
  %v2249 = vadd.f32 0.0, %v2248
  %v2250 = vpop.f32.mrf.mxu0
  %v2251 = vpop.f32.mrf.mxu0
  %v2252 = vadd.f32 0.0, %v2251
  %v2253 = vpop.f32.mrf.mxu0
  %2254 = vmatprep.mubr.bf16.mxu0 0
  %2255 = vmatmul.mubr.bf16.gmra.mxu0 %v1269
  %v2256 = vpop.f32.mrf.mxu0
  %v2257 = vadd.f32 0.0, %v2256
  %v2258 = vpop.f32.mrf.mxu0
  %v2259 = vpop.f32.mrf.mxu0
  %v2260 = vadd.f32 0.0, %v2259
  %v2261 = vpop.f32.mrf.mxu0
  %2262 = vmatprep.mubr.bf16.mxu0 0
  %2263 = vmatmul.mubr.bf16.gmra.mxu0 %v1272
  %v2264 = vpop.f32.mrf.mxu0
  %v2265 = vadd.f32 0.0, %v2264
  %v2266 = vpop.f32.mrf.mxu0
  %v2267 = vpop.f32.mrf.mxu0
  %v2268 = vadd.f32 0.0, %v2267
  %v2269 = vpop.f32.mrf.mxu0
  %2270 = vmatprep.mubr.bf16.mxu0 0
  %2271 = vmatmul.mubr.bf16.gmra.mxu0 %v1275
  %v2272 = vpop.f32.mrf.mxu0
  %v2273 = vadd.f32 0.0, %v2272
  %v2274 = vpop.f32.mrf.mxu0
  %v2275 = vpop.f32.mrf.mxu0
  %v2276 = vadd.f32 0.0, %v2275
  %v2277 = vpop.f32.mrf.mxu0
  %2278 = vmatprep.mubr.bf16.mxu0 0
  %2279 = vmatmul.mubr.bf16.gmra.mxu0 %v1278
  %v2280 = vpop.f32.mrf.mxu0
  %v2281 = vadd.f32 0.0, %v2280
  %v2282 = vpop.f32.mrf.mxu0
  %v2283 = vpop.f32.mrf.mxu0
  %v2284 = vadd.f32 0.0, %v2283
  %v2285 = vpop.f32.mrf.mxu0
  %2286 = vmatprep.mubr.bf16.mxu0 0
  %2287 = vmatmul.mubr.bf16.gmra.mxu0 %v1281
  %v2288 = vpop.f32.mrf.mxu0
  %v2289 = vadd.f32 0.0, %v2288
  %v2290 = vpop.f32.mrf.mxu0
  %v2291 = vpop.f32.mrf.mxu0
  %v2292 = vadd.f32 0.0, %v2291
  %v2293 = vpop.f32.mrf.mxu0
  %2294 = vmatprep.mubr.bf16.mxu0 0
  %2295 = vmatmul.mubr.bf16.gmra.mxu0 %v1284
  %v2296 = vpop.f32.mrf.mxu0
  %v2297 = vadd.f32 0.0, %v2296
  %v2298 = vpop.f32.mrf.mxu0
  %v2299 = vpop.f32.mrf.mxu0
  %v2300 = vadd.f32 0.0, %v2299
  %v2301 = vpop.f32.mrf.mxu0
  %2302 = vmatprep.mubr.bf16.mxu0 0
  %2303 = vmatmul.mubr.bf16.gmra.mxu0 %v1287
  %v2304 = vpop.f32.mrf.mxu0
  %v2305 = vadd.f32 0.0, %v2304
  %v2306 = vpop.f32.mrf.mxu0
  %v2307 = vpop.f32.mrf.mxu0
  %v2308 = vadd.f32 0.0, %v2307
  %v2309 = vpop.f32.mrf.mxu0
  %2310 = vmatprep.mubr.bf16.mxu0 0
  %2311 = vmatmul.mubr.bf16.gmra.mxu0 %v1290
  %v2312 = vpop.f32.mrf.mxu0
  %v2313 = vadd.f32 0.0, %v2312
  %v2314 = vpop.f32.mrf.mxu0
  %v2315 = vpop.f32.mrf.mxu0
  %v2316 = vadd.f32 0.0, %v2315
  %v2317 = vpop.f32.mrf.mxu0
  %2318 = vmatprep.mubr.bf16.mxu0 0
  %2319 = vmatmul.mubr.bf16.gmra.mxu0 %v1293
  %v2320 = vpop.f32.mrf.mxu0
  %v2321 = vadd.f32 0.0, %v2320
  %v2322 = vpop.f32.mrf.mxu0
  %v2323 = vpop.f32.mrf.mxu0
  %v2324 = vadd.f32 0.0, %v2323
  %v2325 = vpop.f32.mrf.mxu0
  %2326 = vmatprep.mubr.bf16.mxu0 0
  %2327 = vmatmul.mubr.bf16.gmra.mxu0 %v1296
  %v2328 = vpop.f32.mrf.mxu0
  %v2329 = vadd.f32 0.0, %v2328
  %v2330 = vpop.f32.mrf.mxu0
  %v2331 = vpop.f32.mrf.mxu0
  %v2332 = vadd.f32 0.0, %v2331
  %v2333 = vpop.f32.mrf.mxu0
  %2334 = vmatprep.mubr.bf16.mxu0 0
  %2335 = vmatmul.mubr.bf16.gmra.mxu0 %v1299
  %v2336 = vpop.f32.mrf.mxu0
  %v2337 = vadd.f32 0.0, %v2336
  %v2338 = vpop.f32.mrf.mxu0
  %v2339 = vpop.f32.mrf.mxu0
  %v2340 = vadd.f32 0.0, %v2339
  %v2341 = vpop.f32.mrf.mxu0
  %2342 = vmatprep.mubr.bf16.mxu0 0
  %2343 = vmatmul.mubr.bf16.gmra.mxu0 %v1302
  %v2344 = vpop.f32.mrf.mxu0
  %v2345 = vadd.f32 0.0, %v2344
  %v2346 = vpop.f32.mrf.mxu0
  %v2347 = vpop.f32.mrf.mxu0
  %v2348 = vadd.f32 0.0, %v2347
  %v2349 = vpop.f32.mrf.mxu0
  %2350 = vmatprep.mubr.bf16.mxu0 0
  %2351 = vmatmul.mubr.bf16.gmra.mxu0 %v1305
  %v2352 = vpop.f32.mrf.mxu0
  %v2353 = vadd.f32 0.0, %v2352
  %v2354 = vpop.f32.mrf.mxu0
  %v2355 = vpop.f32.mrf.mxu0
  %v2356 = vadd.f32 0.0, %v2355
  %v2357 = vpop.f32.mrf.mxu0
  %2358 = vmatprep.mubr.bf16.mxu0 0
  %2359 = vmatmul.mubr.bf16.gmra.mxu0 %v1308
  %v2360 = vpop.f32.mrf.mxu0
  %v2361 = vadd.f32 0.0, %v2360
  %v2362 = vpop.f32.mrf.mxu0
  %v2363 = vpop.f32.mrf.mxu0
  %v2364 = vadd.f32 0.0, %v2363
  %v2365 = vpop.f32.mrf.mxu0
  %2366 = vdwg.mxu0
  %v2367 = vmax.f32 %v1345, %v1601
  %v2368 = vmax.f32 %v1348, %v1604
  %v2369 = vmax.f32 %v1353, %v1609
  %v2370 = vmax.f32 %v1356, %v1612
  %v2371 = vmax.f32 %v1361, %v1617
  %v2372 = vmax.f32 %v1364, %v1620
  %v2373 = vmax.f32 %v1369, %v1625
  %v2374 = vmax.f32 %v1372, %v1628
  %v2375 = vmax.f32 %v1377, %v1633
  %v2376 = vmax.f32 %v1380, %v1636
  %v2377 = vmax.f32 %v1385, %v1641
  %v2378 = vmax.f32 %v1388, %v1644
  %v2379 = vmax.f32 %v1393, %v1649
  %v2380 = vmax.f32 %v1396, %v1652
  %v2381 = vmax.f32 %v1401, %v1657
  %v2382 = vmax.f32 %v1404, %v1660
  %v2383 = vmax.f32 %v1409, %v1665
  %v2384 = vmax.f32 %v1412, %v1668
  %v2385 = vmax.f32 %v1417, %v1673
  %v2386 = vmax.f32 %v1420, %v1676
  %v2387 = vmax.f32 %v1425, %v1681
  %v2388 = vmax.f32 %v1428, %v1684
  %v2389 = vmax.f32 %v1433, %v1689
  %v2390 = vmax.f32 %v1436, %v1692
  %v2391 = vmax.f32 %v1441, %v1697
  %v2392 = vmax.f32 %v1444, %v1700
  %v2393 = vmax.f32 %v1449, %v1705
  %v2394 = vmax.f32 %v1452, %v1708
  %v2395 = vmax.f32 %v1457, %v1713
  %v2396 = vmax.f32 %v1460, %v1716
  %v2397 = vmax.f32 %v1465, %v1721
  %v2398 = vmax.f32 %v1468, %v1724
  %v2399 = vmax.f32 %v1473, %v1729
  %v2400 = vmax.f32 %v1476, %v1732
  %v2401 = vmax.f32 %v1481, %v1737
  %v2402 = vmax.f32 %v1484, %v1740
  %v2403 = vmax.f32 %v1489, %v1745
  %v2404 = vmax.f32 %v1492, %v1748
  %v2405 = vmax.f32 %v1497, %v1753
  %v2406 = vmax.f32 %v1500, %v1756
  %v2407 = vmax.f32 %v1505, %v1761
  %v2408 = vmax.f32 %v1508, %v1764
  %v2409 = vmax.f32 %v1513, %v1769
  %v2410 = vmax.f32 %v1516, %v1772
  %v2411 = vmax.f32 %v1521, %v1777
  %v2412 = vmax.f32 %v1524, %v1780
  %v2413 = vmax.f32 %v1529, %v1785
  %v2414 = vmax.f32 %v1532, %v1788
  %v2415 = vmax.f32 %v1537, %v1793
  %v2416 = vmax.f32 %v1540, %v1796
  %v2417 = vmax.f32 %v1545, %v1801
  %v2418 = vmax.f32 %v1548, %v1804
  %v2419 = vmax.f32 %v1553, %v1809
  %v2420 = vmax.f32 %v1556, %v1812
  %v2421 = vmax.f32 %v1561, %v1817
  %v2422 = vmax.f32 %v1564, %v1820
  %v2423 = vmax.f32 %v1569, %v1825
  %v2424 = vmax.f32 %v1572, %v1828
  %v2425 = vmax.f32 %v1577, %v1833
  %v2426 = vmax.f32 %v1580, %v1836
  %v2427 = vmax.f32 %v1585, %v1841
  %v2428 = vmax.f32 %v1588, %v1844
  %v2429 = vmax.f32 %v1593, %v1849
  %v2430 = vmax.f32 %v1596, %v1852
  %v2431 = vmax.f32 %v1857, %v2113
  %v2432 = vmax.f32 %v1860, %v2116
  %v2433 = vmax.f32 %v1865, %v2121
  %v2434 = vmax.f32 %v1868, %v2124
  %v2435 = vmax.f32 %v1873, %v2129
  %v2436 = vmax.f32 %v1876, %v2132
  %v2437 = vmax.f32 %v1881, %v2137
  %v2438 = vmax.f32 %v1884, %v2140
  %v2439 = vmax.f32 %v1889, %v2145
  %v2440 = vmax.f32 %v1892, %v2148
  %v2441 = vmax.f32 %v1897, %v2153
  %v2442 = vmax.f32 %v1900, %v2156
  %v2443 = vmax.f32 %v1905, %v2161
  %v2444 = vmax.f32 %v1908, %v2164
  %v2445 = vmax.f32 %v1913, %v2169
  %v2446 = vmax.f32 %v1916, %v2172
  %v2447 = vmax.f32 %v1921, %v2177
  %v2448 = vmax.f32 %v1924, %v2180
  %v2449 = vmax.f32 %v1929, %v2185
  %v2450 = vmax.f32 %v1932, %v2188
  %v2451 = vmax.f32 %v1937, %v2193
  %v2452 = vmax.f32 %v1940, %v2196
  %v2453 = vmax.f32 %v1945, %v2201
  %v2454 = vmax.f32 %v1948, %v2204
  %v2455 = vmax.f32 %v1953, %v2209
  %v2456 = vmax.f32 %v1956, %v2212
  %v2457 = vmax.f32 %v1961, %v2217
  %v2458 = vmax.f32 %v1964, %v2220
  %v2459 = vmax.f32 %v1969, %v2225
  %v2460 = vmax.f32 %v1972, %v2228
  %v2461 = vmax.f32 %v1977, %v2233
  %v2462 = vmax.f32 %v1980, %v2236
  %v2463 = vmax.f32 %v1985, %v2241
  %v2464 = vmax.f32 %v1988, %v2244
  %v2465 = vmax.f32 %v1993, %v2249
  %v2466 = vmax.f32 %v1996, %v2252
  %v2467 = vmax.f32 %v2001, %v2257
  %v2468 = vmax.f32 %v2004, %v2260
  %v2469 = vmax.f32 %v2009, %v2265
  %v2470 = vmax.f32 %v2012, %v2268
  %v2471 = vmax.f32 %v2017, %v2273
  %v2472 = vmax.f32 %v2020, %v2276
  %v2473 = vmax.f32 %v2025, %v2281
  %v2474 = vmax.f32 %v2028, %v2284
  %v2475 = vmax.f32 %v2033, %v2289
  %v2476 = vmax.f32 %v2036, %v2292
  %v2477 = vmax.f32 %v2041, %v2297
  %v2478 = vmax.f32 %v2044, %v2300
  %v2479 = vmax.f32 %v2049, %v2305
  %v2480 = vmax.f32 %v2052, %v2308
  %v2481 = vmax.f32 %v2057, %v2313
  %v2482 = vmax.f32 %v2060, %v2316
  %v2483 = vmax.f32 %v2065, %v2321
  %v2484 = vmax.f32 %v2068, %v2324
  %v2485 = vmax.f32 %v2073, %v2329
  %v2486 = vmax.f32 %v2076, %v2332
  %v2487 = vmax.f32 %v2081, %v2337
  %v2488 = vmax.f32 %v2084, %v2340
  %v2489 = vmax.f32 %v2089, %v2345
  %v2490 = vmax.f32 %v2092, %v2348
  %v2491 = vmax.f32 %v2097, %v2353
  %v2492 = vmax.f32 %v2100, %v2356
  %v2493 = vmax.f32 %v2105, %v2361
  %v2494 = vmax.f32 %v2108, %v2364
  %v2495 = vmax.f32 %v2367, %v2431
  %v2496 = vmax.f32 %v2368, %v2432
  %v2497 = vmax.f32 %v2369, %v2433
  %v2498 = vmax.f32 %v2370, %v2434
  %v2499 = vmax.f32 %v2371, %v2435
  %v2500 = vmax.f32 %v2372, %v2436
  %v2501 = vmax.f32 %v2373, %v2437
  %v2502 = vmax.f32 %v2374, %v2438
  %v2503 = vmax.f32 %v2375, %v2439
  %v2504 = vmax.f32 %v2376, %v2440
  %v2505 = vmax.f32 %v2377, %v2441
  %v2506 = vmax.f32 %v2378, %v2442
  %v2507 = vmax.f32 %v2379, %v2443
  %v2508 = vmax.f32 %v2380, %v2444
  %v2509 = vmax.f32 %v2381, %v2445
  %v2510 = vmax.f32 %v2382, %v2446
  %v2511 = vmax.f32 %v2383, %v2447
  %v2512 = vmax.f32 %v2384, %v2448
  %v2513 = vmax.f32 %v2385, %v2449
  %v2514 = vmax.f32 %v2386, %v2450
  %v2515 = vmax.f32 %v2387, %v2451
  %v2516 = vmax.f32 %v2388, %v2452
  %v2517 = vmax.f32 %v2389, %v2453
  %v2518 = vmax.f32 %v2390, %v2454
  %v2519 = vmax.f32 %v2391, %v2455
  %v2520 = vmax.f32 %v2392, %v2456
  %v2521 = vmax.f32 %v2393, %v2457
  %v2522 = vmax.f32 %v2394, %v2458
  %v2523 = vmax.f32 %v2395, %v2459
  %v2524 = vmax.f32 %v2396, %v2460
  %v2525 = vmax.f32 %v2397, %v2461
  %v2526 = vmax.f32 %v2398, %v2462
  %v2527 = vmax.f32 %v2399, %v2463
  %v2528 = vmax.f32 %v2400, %v2464
  %v2529 = vmax.f32 %v2401, %v2465
  %v2530 = vmax.f32 %v2402, %v2466
  %v2531 = vmax.f32 %v2403, %v2467
  %v2532 = vmax.f32 %v2404, %v2468
  %v2533 = vmax.f32 %v2405, %v2469
  %v2534 = vmax.f32 %v2406, %v2470
  %v2535 = vmax.f32 %v2407, %v2471
  %v2536 = vmax.f32 %v2408, %v2472
  %v2537 = vmax.f32 %v2409, %v2473
  %v2538 = vmax.f32 %v2410, %v2474
  %v2539 = vmax.f32 %v2411, %v2475
  %v2540 = vmax.f32 %v2412, %v2476
  %v2541 = vmax.f32 %v2413, %v2477
  %v2542 = vmax.f32 %v2414, %v2478
  %v2543 = vmax.f32 %v2415, %v2479
  %v2544 = vmax.f32 %v2416, %v2480
  %v2545 = vmax.f32 %v2417, %v2481
  %v2546 = vmax.f32 %v2418, %v2482
  %v2547 = vmax.f32 %v2419, %v2483
  %v2548 = vmax.f32 %v2420, %v2484
  %v2549 = vmax.f32 %v2421, %v2485
  %v2550 = vmax.f32 %v2422, %v2486
  %v2551 = vmax.f32 %v2423, %v2487
  %v2552 = vmax.f32 %v2424, %v2488
  %v2553 = vmax.f32 %v2425, %v2489
  %v2554 = vmax.f32 %v2426, %v2490
  %v2555 = vmax.f32 %v2427, %v2491
  %v2556 = vmax.f32 %v2428, %v2492
  %v2557 = vmax.f32 %v2429, %v2493
  %v2558 = vmax.f32 %v2430, %v2494
  %v2559 = vld [vmem:[%s2] sm:$0x1]
  %v2561 = vlaneseq
  %v2562 = vshrl.u32 %v2561, 7
  %v2563 = vsub.s32 0, %v2562
  %v2564 = vrot.slane %v2559, %v2563
  %v2566 = vadd.f32 %v2495, %v2564
  %v2567 = vadd.f32 %v2496, %v2564
  %v2568 = vadd.f32 %v2497, %v2564
  %v2569 = vadd.f32 %v2498, %v2564
  %v2570 = vadd.f32 %v2499, %v2564
  %v2571 = vadd.f32 %v2500, %v2564
  %v2572 = vadd.f32 %v2501, %v2564
  %v2573 = vadd.f32 %v2502, %v2564
  %v2574 = vadd.f32 %v2503, %v2564
  %v2575 = vadd.f32 %v2504, %v2564
  %v2576 = vadd.f32 %v2505, %v2564
  %v2577 = vadd.f32 %v2506, %v2564
  %v2578 = vadd.f32 %v2507, %v2564
  %v2579 = vadd.f32 %v2508, %v2564
  %v2580 = vadd.f32 %v2509, %v2564
  %v2581 = vadd.f32 %v2510, %v2564
  %v2582 = vadd.f32 %v2511, %v2564
  %v2583 = vadd.f32 %v2512, %v2564
  %v2584 = vadd.f32 %v2513, %v2564
  %v2585 = vadd.f32 %v2514, %v2564
  %v2586 = vadd.f32 %v2515, %v2564
  %v2587 = vadd.f32 %v2516, %v2564
  %v2588 = vadd.f32 %v2517, %v2564
  %v2589 = vadd.f32 %v2518, %v2564
  %v2590 = vadd.f32 %v2519, %v2564
  %v2591 = vadd.f32 %v2520, %v2564
  %v2592 = vadd.f32 %v2521, %v2564
  %v2593 = vadd.f32 %v2522, %v2564
  %v2594 = vadd.f32 %v2523, %v2564
  %v2595 = vadd.f32 %v2524, %v2564
  %v2596 = vadd.f32 %v2525, %v2564
  %v2597 = vadd.f32 %v2526, %v2564
  %v2598 = vadd.f32 %v2527, %v2564
  %v2599 = vadd.f32 %v2528, %v2564
  %v2600 = vadd.f32 %v2529, %v2564
  %v2601 = vadd.f32 %v2530, %v2564
  %v2602 = vadd.f32 %v2531, %v2564
  %v2603 = vadd.f32 %v2532, %v2564
  %v2604 = vadd.f32 %v2533, %v2564
  %v2605 = vadd.f32 %v2534, %v2564
  %v2606 = vadd.f32 %v2535, %v2564
  %v2607 = vadd.f32 %v2536, %v2564
  %v2608 = vadd.f32 %v2537, %v2564
  %v2609 = vadd.f32 %v2538, %v2564
  %v2610 = vadd.f32 %v2539, %v2564
  %v2611 = vadd.f32 %v2540, %v2564
  %v2612 = vadd.f32 %v2541, %v2564
  %v2613 = vadd.f32 %v2542, %v2564
  %v2614 = vadd.f32 %v2543, %v2564
  %v2615 = vadd.f32 %v2544, %v2564
  %v2616 = vadd.f32 %v2545, %v2564
  %v2617 = vadd.f32 %v2546, %v2564
  %v2618 = vadd.f32 %v2547, %v2564
  %v2619 = vadd.f32 %v2548, %v2564
  %v2620 = vadd.f32 %v2549, %v2564
  %v2621 = vadd.f32 %v2550, %v2564
  %v2622 = vadd.f32 %v2551, %v2564
  %v2623 = vadd.f32 %v2552, %v2564
  %v2624 = vadd.f32 %v2553, %v2564
  %v2625 = vadd.f32 %v2554, %v2564
  %v2626 = vadd.f32 %v2555, %v2564
  %v2627 = vadd.f32 %v2556, %v2564
  %v2628 = vadd.f32 %v2557, %v2564
  %v2629 = vadd.f32 %v2558, %v2564
  %v2630 = vmax.f32 %v2566, 0.0
  %v2631 = vmax.f32 %v2567, 0.0
  %v2632 = vmax.f32 %v2568, 0.0
  %v2633 = vmax.f32 %v2569, 0.0
  %v2634 = vmax.f32 %v2570, 0.0
  %v2635 = vmax.f32 %v2571, 0.0
  %v2636 = vmax.f32 %v2572, 0.0
  %v2637 = vmax.f32 %v2573, 0.0
  %v2638 = vmax.f32 %v2574, 0.0
  %v2639 = vmax.f32 %v2575, 0.0
  %v2640 = vmax.f32 %v2576, 0.0
  %v2641 = vmax.f32 %v2577, 0.0
  %v2642 = vmax.f32 %v2578, 0.0
  %v2643 = vmax.f32 %v2579, 0.0
  %v2644 = vmax.f32 %v2580, 0.0
  %v2645 = vmax.f32 %v2581, 0.0
  %v2646 = vmax.f32 %v2582, 0.0
  %v2647 = vmax.f32 %v2583, 0.0
  %v2648 = vmax.f32 %v2584, 0.0
  %v2649 = vmax.f32 %v2585, 0.0
  %v2650 = vmax.f32 %v2586, 0.0
  %v2651 = vmax.f32 %v2587, 0.0
  %v2652 = vmax.f32 %v2588, 0.0
  %v2653 = vmax.f32 %v2589, 0.0
  %v2654 = vmax.f32 %v2590, 0.0
  %v2655 = vmax.f32 %v2591, 0.0
  %v2656 = vmax.f32 %v2592, 0.0
  %v2657 = vmax.f32 %v2593, 0.0
  %v2658 = vmax.f32 %v2594, 0.0
  %v2659 = vmax.f32 %v2595, 0.0
  %v2660 = vmax.f32 %v2596, 0.0
  %v2661 = vmax.f32 %v2597, 0.0
  %v2662 = vmax.f32 %v2598, 0.0
  %v2663 = vmax.f32 %v2599, 0.0
  %v2664 = vmax.f32 %v2600, 0.0
  %v2665 = vmax.f32 %v2601, 0.0
  %v2666 = vmax.f32 %v2602, 0.0
  %v2667 = vmax.f32 %v2603, 0.0
  %v2668 = vmax.f32 %v2604, 0.0
  %v2669 = vmax.f32 %v2605, 0.0
  %v2670 = vmax.f32 %v2606, 0.0
  %v2671 = vmax.f32 %v2607, 0.0
  %v2672 = vmax.f32 %v2608, 0.0
  %v2673 = vmax.f32 %v2609, 0.0
  %v2674 = vmax.f32 %v2610, 0.0
  %v2675 = vmax.f32 %v2611, 0.0
  %v2676 = vmax.f32 %v2612, 0.0
  %v2677 = vmax.f32 %v2613, 0.0
  %v2678 = vmax.f32 %v2614, 0.0
  %v2679 = vmax.f32 %v2615, 0.0
  %v2680 = vmax.f32 %v2616, 0.0
  %v2681 = vmax.f32 %v2617, 0.0
  %v2682 = vmax.f32 %v2618, 0.0
  %v2683 = vmax.f32 %v2619, 0.0
  %v2684 = vmax.f32 %v2620, 0.0
  %v2685 = vmax.f32 %v2621, 0.0
  %v2686 = vmax.f32 %v2622, 0.0
  %v2687 = vmax.f32 %v2623, 0.0
  %v2688 = vmax.f32 %v2624, 0.0
  %v2689 = vmax.f32 %v2625, 0.0
  %v2690 = vmax.f32 %v2626, 0.0
  %v2691 = vmax.f32 %v2627, 0.0
  %v2692 = vmax.f32 %v2628, 0.0
  %v2693 = vmax.f32 %v2629, 0.0
  %v2694 = vld [vmem:[%s3] sm:$0x1]
  %v2696 = vlaneseq
  %v2697 = vshrl.u32 %v2696, 7
  %v2698 = vsub.s32 0, %v2697
  %v2699 = vrot.slane %v2694, %v2698
  %v2701 = vmul.f32 %v2630, %v2699
  %v2702 = vmul.f32 %v2631, %v2699
  %v2703 = vmul.f32 %v2632, %v2699
  %v2704 = vmul.f32 %v2633, %v2699
  %v2705 = vmul.f32 %v2634, %v2699
  %v2706 = vmul.f32 %v2635, %v2699
  %v2707 = vmul.f32 %v2636, %v2699
  %v2708 = vmul.f32 %v2637, %v2699
  %v2709 = vmul.f32 %v2638, %v2699
  %v2710 = vmul.f32 %v2639, %v2699
  %v2711 = vmul.f32 %v2640, %v2699
  %v2712 = vmul.f32 %v2641, %v2699
  %v2713 = vmul.f32 %v2642, %v2699
  %v2714 = vmul.f32 %v2643, %v2699
  %v2715 = vmul.f32 %v2644, %v2699
  %v2716 = vmul.f32 %v2645, %v2699
  %v2717 = vmul.f32 %v2646, %v2699
  %v2718 = vmul.f32 %v2647, %v2699
  %v2719 = vmul.f32 %v2648, %v2699
  %v2720 = vmul.f32 %v2649, %v2699
  %v2721 = vmul.f32 %v2650, %v2699
  %v2722 = vmul.f32 %v2651, %v2699
  %v2723 = vmul.f32 %v2652, %v2699
  %v2724 = vmul.f32 %v2653, %v2699
  %v2725 = vmul.f32 %v2654, %v2699
  %v2726 = vmul.f32 %v2655, %v2699
  %v2727 = vmul.f32 %v2656, %v2699
  %v2728 = vmul.f32 %v2657, %v2699
  %v2729 = vmul.f32 %v2658, %v2699
  %v2730 = vmul.f32 %v2659, %v2699
  %v2731 = vmul.f32 %v2660, %v2699
  %v2732 = vmul.f32 %v2661, %v2699
  %v2733 = vmul.f32 %v2662, %v2699
  %v2734 = vmul.f32 %v2663, %v2699
  %v2735 = vmul.f32 %v2664, %v2699
  %v2736 = vmul.f32 %v2665, %v2699
  %v2737 = vmul.f32 %v2666, %v2699
  %v2738 = vmul.f32 %v2667, %v2699
  %v2739 = vmul.f32 %v2668, %v2699
  %v2740 = vmul.f32 %v2669, %v2699
  %v2741 = vmul.f32 %v2670, %v2699
  %v2742 = vmul.f32 %v2671, %v2699
  %v2743 = vmul.f32 %v2672, %v2699
  %v2744 = vmul.f32 %v2673, %v2699
  %v2745 = vmul.f32 %v2674, %v2699
  %v2746 = vmul.f32 %v2675, %v2699
  %v2747 = vmul.f32 %v2676, %v2699
  %v2748 = vmul.f32 %v2677, %v2699
  %v2749 = vmul.f32 %v2678, %v2699
  %v2750 = vmul.f32 %v2679, %v2699
  %v2751 = vmul.f32 %v2680, %v2699
  %v2752 = vmul.f32 %v2681, %v2699
  %v2753 = vmul.f32 %v2682, %v2699
  %v2754 = vmul.f32 %v2683, %v2699
  %v2755 = vmul.f32 %v2684, %v2699
  %v2756 = vmul.f32 %v2685, %v2699
  %v2757 = vmul.f32 %v2686, %v2699
  %v2758 = vmul.f32 %v2687, %v2699
  %v2759 = vmul.f32 %v2688, %v2699
  %v2760 = vmul.f32 %v2689, %v2699
  %v2761 = vmul.f32 %v2690, %v2699
  %v2762 = vmul.f32 %v2691, %v2699
  %v2763 = vmul.f32 %v2692, %v2699
  %v2764 = vmul.f32 %v2693, %v2699
  %v2765 = vld [vmem:[%s4] sm:$0x1]
  %v2767 = vlaneseq
  %v2768 = vshrl.u32 %v2767, 7
  %v2769 = vsub.s32 0, %v2768
  %v2770 = vrot.slane %v2765, %v2769
  %v2772 = vadd.f32 %v2701, %v2770
  %v2773 = vadd.f32 %v2702, %v2770
  %v2774 = vadd.f32 %v2703, %v2770
  %v2775 = vadd.f32 %v2704, %v2770
  %v2776 = vadd.f32 %v2705, %v2770
  %v2777 = vadd.f32 %v2706, %v2770
  %v2778 = vadd.f32 %v2707, %v2770
  %v2779 = vadd.f32 %v2708, %v2770
  %v2780 = vadd.f32 %v2709, %v2770
  %v2781 = vadd.f32 %v2710, %v2770
  %v2782 = vadd.f32 %v2711, %v2770
  %v2783 = vadd.f32 %v2712, %v2770
  %v2784 = vadd.f32 %v2713, %v2770
  %v2785 = vadd.f32 %v2714, %v2770
  %v2786 = vadd.f32 %v2715, %v2770
  %v2787 = vadd.f32 %v2716, %v2770
  %v2788 = vadd.f32 %v2717, %v2770
  %v2789 = vadd.f32 %v2718, %v2770
  %v2790 = vadd.f32 %v2719, %v2770
  %v2791 = vadd.f32 %v2720, %v2770
  %v2792 = vadd.f32 %v2721, %v2770
  %v2793 = vadd.f32 %v2722, %v2770
  %v2794 = vadd.f32 %v2723, %v2770
  %v2795 = vadd.f32 %v2724, %v2770
  %v2796 = vadd.f32 %v2725, %v2770
  %v2797 = vadd.f32 %v2726, %v2770
  %v2798 = vadd.f32 %v2727, %v2770
  %v2799 = vadd.f32 %v2728, %v2770
  %v2800 = vadd.f32 %v2729, %v2770
  %v2801 = vadd.f32 %v2730, %v2770
  %v2802 = vadd.f32 %v2731, %v2770
  %v2803 = vadd.f32 %v2732, %v2770
  %v2804 = vadd.f32 %v2733, %v2770
  %v2805 = vadd.f32 %v2734, %v2770
  %v2806 = vadd.f32 %v2735, %v2770
  %v2807 = vadd.f32 %v2736, %v2770
  %v2808 = vadd.f32 %v2737, %v2770
  %v2809 = vadd.f32 %v2738, %v2770
  %v2810 = vadd.f32 %v2739, %v2770
  %v2811 = vadd.f32 %v2740, %v2770
  %v2812 = vadd.f32 %v2741, %v2770
  %v2813 = vadd.f32 %v2742, %v2770
  %v2814 = vadd.f32 %v2743, %v2770
  %v2815 = vadd.f32 %v2744, %v2770
  %v2816 = vadd.f32 %v2745, %v2770
  %v2817 = vadd.f32 %v2746, %v2770
  %v2818 = vadd.f32 %v2747, %v2770
  %v2819 = vadd.f32 %v2748, %v2770
  %v2820 = vadd.f32 %v2749, %v2770
  %v2821 = vadd.f32 %v2750, %v2770
  %v2822 = vadd.f32 %v2751, %v2770
  %v2823 = vadd.f32 %v2752, %v2770
  %v2824 = vadd.f32 %v2753, %v2770
  %v2825 = vadd.f32 %v2754, %v2770
  %v2826 = vadd.f32 %v2755, %v2770
  %v2827 = vadd.f32 %v2756, %v2770
  %v2828 = vadd.f32 %v2757, %v2770
  %v2829 = vadd.f32 %v2758, %v2770
  %v2830 = vadd.f32 %v2759, %v2770
  %v2831 = vadd.f32 %v2760, %v2770
  %v2832 = vadd.f32 %v2761, %v2770
  %v2833 = vadd.f32 %v2762, %v2770
  %v2834 = vadd.f32 %v2763, %v2770
  %v2835 = vadd.f32 %v2764, %v2770
  %v2836 = vpack.c.bf16 %v2773, %v2772
  %v2837 = vpack.c.bf16 %v2775, %v2774
  %v2838 = vpack.c.bf16 %v2777, %v2776
  %v2839 = vpack.c.bf16 %v2779, %v2778
  %v2840 = vpack.c.bf16 %v2781, %v2780
  %v2841 = vpack.c.bf16 %v2783, %v2782
  %v2842 = vpack.c.bf16 %v2785, %v2784
  %v2843 = vpack.c.bf16 %v2787, %v2786
  %v2844 = vpack.c.bf16 %v2789, %v2788
  %v2845 = vpack.c.bf16 %v2791, %v2790
  %v2846 = vpack.c.bf16 %v2793, %v2792
  %v2847 = vpack.c.bf16 %v2795, %v2794
  %v2848 = vpack.c.bf16 %v2797, %v2796
  %v2849 = vpack.c.bf16 %v2799, %v2798
  %v2850 = vpack.c.bf16 %v2801, %v2800
  %v2851 = vpack.c.bf16 %v2803, %v2802
  %v2852 = vpack.c.bf16 %v2805, %v2804
  %v2853 = vpack.c.bf16 %v2807, %v2806
  %v2854 = vpack.c.bf16 %v2809, %v2808
  %v2855 = vpack.c.bf16 %v2811, %v2810
  %v2856 = vpack.c.bf16 %v2813, %v2812
  %v2857 = vpack.c.bf16 %v2815, %v2814
  %v2858 = vpack.c.bf16 %v2817, %v2816
  %v2859 = vpack.c.bf16 %v2819, %v2818
  %v2860 = vpack.c.bf16 %v2821, %v2820
  %v2861 = vpack.c.bf16 %v2823, %v2822
  %v2862 = vpack.c.bf16 %v2825, %v2824
  %v2863 = vpack.c.bf16 %v2827, %v2826
  %v2864 = vpack.c.bf16 %v2829, %v2828
  %v2865 = vpack.c.bf16 %v2831, %v2830
  %v2866 = vpack.c.bf16 %v2833, %v2832
  %v2867 = vpack.c.bf16 %v2835, %v2834
  %v2900 = vunpack.c.l.b16 %v2836
  %v2901 = vunpack.c.h.b16 %v2836
  %v2902 = vunpack.c.l.b16 %v2837
  %v2903 = vunpack.c.h.b16 %v2837
  %v2904 = vunpack.c.l.b16 %v2838
  %v2905 = vunpack.c.h.b16 %v2838
  %v2906 = vunpack.c.l.b16 %v2839
  %v2907 = vunpack.c.h.b16 %v2839
  %v2908 = vunpack.c.l.b16 %v2840
  %v2909 = vunpack.c.h.b16 %v2840
  %v2910 = vunpack.c.l.b16 %v2841
  %v2911 = vunpack.c.h.b16 %v2841
  %v2912 = vunpack.c.l.b16 %v2842
  %v2913 = vunpack.c.h.b16 %v2842
  %v2914 = vunpack.c.l.b16 %v2843
  %v2915 = vunpack.c.h.b16 %v2843
  %v2916 = vunpack.c.l.b16 %v2844
  %v2917 = vunpack.c.h.b16 %v2844
  %v2918 = vunpack.c.l.b16 %v2845
  %v2919 = vunpack.c.h.b16 %v2845
  %v2920 = vunpack.c.l.b16 %v2846
  %v2921 = vunpack.c.h.b16 %v2846
  %v2922 = vunpack.c.l.b16 %v2847
  %v2923 = vunpack.c.h.b16 %v2847
  %v2924 = vunpack.c.l.b16 %v2848
  %v2925 = vunpack.c.h.b16 %v2848
  %v2926 = vunpack.c.l.b16 %v2849
  %v2927 = vunpack.c.h.b16 %v2849
  %v2928 = vunpack.c.l.b16 %v2850
  %v2929 = vunpack.c.h.b16 %v2850
  %v2930 = vunpack.c.l.b16 %v2851
  %v2931 = vunpack.c.h.b16 %v2851
  %v2932 = vunpack.c.l.b16 %v2852
  %v2933 = vunpack.c.h.b16 %v2852
  %v2934 = vunpack.c.l.b16 %v2853
  %v2935 = vunpack.c.h.b16 %v2853
  %v2936 = vunpack.c.l.b16 %v2854
  %v2937 = vunpack.c.h.b16 %v2854
  %v2938 = vunpack.c.l.b16 %v2855
  %v2939 = vunpack.c.h.b16 %v2855
  %v2940 = vunpack.c.l.b16 %v2856
  %v2941 = vunpack.c.h.b16 %v2856
  %v2942 = vunpack.c.l.b16 %v2857
  %v2943 = vunpack.c.h.b16 %v2857
  %v2944 = vunpack.c.l.b16 %v2858
  %v2945 = vunpack.c.h.b16 %v2858
  %v2946 = vunpack.c.l.b16 %v2859
  %v2947 = vunpack.c.h.b16 %v2859
  %v2948 = vunpack.c.l.b16 %v2860
  %v2949 = vunpack.c.h.b16 %v2860
  %v2950 = vunpack.c.l.b16 %v2861
  %v2951 = vunpack.c.h.b16 %v2861
  %v2952 = vunpack.c.l.b16 %v2862
  %v2953 = vunpack.c.h.b16 %v2862
  %v2954 = vunpack.c.l.b16 %v2863
  %v2955 = vunpack.c.h.b16 %v2863
  %v2956 = vunpack.c.l.b16 %v2864
  %v2957 = vunpack.c.h.b16 %v2864
  %v2958 = vunpack.c.l.b16 %v2865
  %v2959 = vunpack.c.h.b16 %v2865
  %v2960 = vunpack.c.l.b16 %v2866
  %v2961 = vunpack.c.h.b16 %v2866
  %v2962 = vunpack.c.l.b16 %v2867
  %v2963 = vunpack.c.h.b16 %v2867
  %v2964 = vpack.c.b16 %v2900, %v2900
  %v2965 = vpack.c.b16 %v2901, %v2901
  %v2966 = vpack.c.b16 %v2902, %v2902
  %v2967 = vpack.c.b16 %v2903, %v2903
  %v2968 = vpack.c.b16 %v2904, %v2904
  %v2969 = vpack.c.b16 %v2905, %v2905
  %v2970 = vpack.c.b16 %v2906, %v2906
  %v2971 = vpack.c.b16 %v2907, %v2907
  %v2972 = vpack.c.b16 %v2908, %v2908
  %v2973 = vpack.c.b16 %v2909, %v2909
  %v2974 = vpack.c.b16 %v2910, %v2910
  %v2975 = vpack.c.b16 %v2911, %v2911
  %v2976 = vpack.c.b16 %v2912, %v2912
  %v2977 = vpack.c.b16 %v2913, %v2913
  %v2978 = vpack.c.b16 %v2914, %v2914
  %v2979 = vpack.c.b16 %v2915, %v2915
  %v2980 = vpack.c.b16 %v2916, %v2916
  %v2981 = vpack.c.b16 %v2917, %v2917
  %v2982 = vpack.c.b16 %v2918, %v2918
  %v2983 = vpack.c.b16 %v2919, %v2919
  %v2984 = vpack.c.b16 %v2920, %v2920
  %v2985 = vpack.c.b16 %v2921, %v2921
  %v2986 = vpack.c.b16 %v2922, %v2922
  %v2987 = vpack.c.b16 %v2923, %v2923
  %v2988 = vpack.c.b16 %v2924, %v2924
  %v2989 = vpack.c.b16 %v2925, %v2925
  %v2990 = vpack.c.b16 %v2926, %v2926
  %v2991 = vpack.c.b16 %v2927, %v2927
  %v2992 = vpack.c.b16 %v2928, %v2928
  %v2993 = vpack.c.b16 %v2929, %v2929
  %v2994 = vpack.c.b16 %v2930, %v2930
  %v2995 = vpack.c.b16 %v2931, %v2931
  %v2996 = vpack.c.b16 %v2932, %v2932
  %v2997 = vpack.c.b16 %v2933, %v2933
  %v2998 = vpack.c.b16 %v2934, %v2934
  %v2999 = vpack.c.b16 %v2935, %v2935
  %v3000 = vpack.c.b16 %v2936, %v2936
  %v3001 = vpack.c.b16 %v2937, %v2937
  %v3002 = vpack.c.b16 %v2938, %v2938
  %v3003 = vpack.c.b16 %v2939, %v2939
  %v3004 = vpack.c.b16 %v2940, %v2940
  %v3005 = vpack.c.b16 %v2941, %v2941
  %v3006 = vpack.c.b16 %v2942, %v2942
  %v3007 = vpack.c.b16 %v2943, %v2943
  %v3008 = vpack.c.b16 %v2944, %v2944
  %v3009 = vpack.c.b16 %v2945, %v2945
  %v3010 = vpack.c.b16 %v2946, %v2946
  %v3011 = vpack.c.b16 %v2947, %v2947
  %v3012 = vpack.c.b16 %v2948, %v2948
  %v3013 = vpack.c.b16 %v2949, %v2949
  %v3014 = vpack.c.b16 %v2950, %v2950
  %v3015 = vpack.c.b16 %v2951, %v2951
  %v3016 = vpack.c.b16 %v2952, %v2952
  %v3017 = vpack.c.b16 %v2953, %v2953
  %v3018 = vpack.c.b16 %v2954, %v2954
  %v3019 = vpack.c.b16 %v2955, %v2955
  %v3020 = vpack.c.b16 %v2956, %v2956
  %v3021 = vpack.c.b16 %v2957, %v2957
  %v3022 = vpack.c.b16 %v2958, %v2958
  %v3023 = vpack.c.b16 %v2959, %v2959
  %v3024 = vpack.c.b16 %v2960, %v2960
  %v3025 = vpack.c.b16 %v2961, %v2961
  %v3026 = vpack.c.b16 %v2962, %v2962
  %v3027 = vpack.c.b16 %v2963, %v2963
  %vm3092 = vcmask 257024
  %3093 = vst.msk [vmem:[%s5] sm:$0xf] %vm3092, %v2964
  %3094 = vst.msk [vmem:[%s5 + $0x4] sm:$0xf] %vm3092, %v2965
  %3095 = vst.msk [vmem:[%s5 + $0x8] sm:$0xf] %vm3092, %v2966
  %3096 = vst.msk [vmem:[%s5 + $0xc] sm:$0xf] %vm3092, %v2967
  %3097 = vst.msk [vmem:[%s5 + $0x10] sm:$0xf] %vm3092, %v2968
  %3098 = vst.msk [vmem:[%s5 + $0x14] sm:$0xf] %vm3092, %v2969
  %3099 = vst.msk [vmem:[%s5 + $0x18] sm:$0xf] %vm3092, %v2970
  %3100 = vst.msk [vmem:[%s5 + $0x1c] sm:$0xf] %vm3092, %v2971
  %3101 = vst.msk [vmem:[%s5 + $0x20] sm:$0xf] %vm3092, %v2972
  %3102 = vst.msk [vmem:[%s5 + $0x24] sm:$0xf] %vm3092, %v2973
  %3103 = vst.msk [vmem:[%s5 + $0x28] sm:$0xf] %vm3092, %v2974
  %3104 = vst.msk [vmem:[%s5 + $0x2c] sm:$0xf] %vm3092, %v2975
  %3105 = vst.msk [vmem:[%s5 + $0x30] sm:$0xf] %vm3092, %v2976
  %3106 = vst.msk [vmem:[%s5 + $0x34] sm:$0xf] %vm3092, %v2977
  %3107 = vst.msk [vmem:[%s5 + $0x38] sm:$0xf] %vm3092, %v2978
  %3108 = vst.msk [vmem:[%s5 + $0x3c] sm:$0xf] %vm3092, %v2979
  %3109 = vst.msk [vmem:[%s5 + $0x40] sm:$0xf] %vm3092, %v2980
  %3110 = vst.msk [vmem:[%s5 + $0x44] sm:$0xf] %vm3092, %v2981
  %3111 = vst.msk [vmem:[%s5 + $0x48] sm:$0xf] %vm3092, %v2982
  %3112 = vst.msk [vmem:[%s5 + $0x4c] sm:$0xf] %vm3092, %v2983
  %3113 = vst.msk [vmem:[%s5 + $0x50] sm:$0xf] %vm3092, %v2984
  %3114 = vst.msk [vmem:[%s5 + $0x54] sm:$0xf] %vm3092, %v2985
  %3115 = vst.msk [vmem:[%s5 + $0x58] sm:$0xf] %vm3092, %v2986
  %3116 = vst.msk [vmem:[%s5 + $0x5c] sm:$0xf] %vm3092, %v2987
  %3117 = vst.msk [vmem:[%s5 + $0x60] sm:$0xf] %vm3092, %v2988
  %3118 = vst.msk [vmem:[%s5 + $0x64] sm:$0xf] %vm3092, %v2989
  %3119 = vst.msk [vmem:[%s5 + $0x68] sm:$0xf] %vm3092, %v2990
  %3120 = vst.msk [vmem:[%s5 + $0x6c] sm:$0xf] %vm3092, %v2991
  %3121 = vst.msk [vmem:[%s5 + $0x70] sm:$0xf] %vm3092, %v2992
  %3122 = vst.msk [vmem:[%s5 + $0x74] sm:$0xf] %vm3092, %v2993
  %3123 = vst.msk [vmem:[%s5 + $0x78] sm:$0xf] %vm3092, %v2994
  %3124 = vst.msk [vmem:[%s5 + $0x7c] sm:$0xf] %vm3092, %v2995
  %3125 = vst.msk [vmem:[%s5 + $0x80] sm:$0xf] %vm3092, %v2996
  %3126 = vst.msk [vmem:[%s5 + $0x84] sm:$0xf] %vm3092, %v2997
  %3127 = vst.msk [vmem:[%s5 + $0x88] sm:$0xf] %vm3092, %v2998
  %3128 = vst.msk [vmem:[%s5 + $0x8c] sm:$0xf] %vm3092, %v2999
  %3129 = vst.msk [vmem:[%s5 + $0x90] sm:$0xf] %vm3092, %v3000
  %3130 = vst.msk [vmem:[%s5 + $0x94] sm:$0xf] %vm3092, %v3001
  %3131 = vst.msk [vmem:[%s5 + $0x98] sm:$0xf] %vm3092, %v3002
  %3132 = vst.msk [vmem:[%s5 + $0x9c] sm:$0xf] %vm3092, %v3003
  %3133 = vst.msk [vmem:[%s5 + $0xa0] sm:$0xf] %vm3092, %v3004
  %3134 = vst.msk [vmem:[%s5 + $0xa4] sm:$0xf] %vm3092, %v3005
  %3135 = vst.msk [vmem:[%s5 + $0xa8] sm:$0xf] %vm3092, %v3006
  %3136 = vst.msk [vmem:[%s5 + $0xac] sm:$0xf] %vm3092, %v3007
  %3137 = vst.msk [vmem:[%s5 + $0xb0] sm:$0xf] %vm3092, %v3008
  %3138 = vst.msk [vmem:[%s5 + $0xb4] sm:$0xf] %vm3092, %v3009
  %3139 = vst.msk [vmem:[%s5 + $0xb8] sm:$0xf] %vm3092, %v3010
  %3140 = vst.msk [vmem:[%s5 + $0xbc] sm:$0xf] %vm3092, %v3011
  %3141 = vst.msk [vmem:[%s5 + $0xc0] sm:$0xf] %vm3092, %v3012
  %3142 = vst.msk [vmem:[%s5 + $0xc4] sm:$0xf] %vm3092, %v3013
  %3143 = vst.msk [vmem:[%s5 + $0xc8] sm:$0xf] %vm3092, %v3014
  %3144 = vst.msk [vmem:[%s5 + $0xcc] sm:$0xf] %vm3092, %v3015
  %3145 = vst.msk [vmem:[%s5 + $0xd0] sm:$0xf] %vm3092, %v3016
  %3146 = vst.msk [vmem:[%s5 + $0xd4] sm:$0xf] %vm3092, %v3017
  %3147 = vst.msk [vmem:[%s5 + $0xd8] sm:$0xf] %vm3092, %v3018
  %3148 = vst.msk [vmem:[%s5 + $0xdc] sm:$0xf] %vm3092, %v3019
  %3149 = vst.msk [vmem:[%s5 + $0xe0] sm:$0xf] %vm3092, %v3020
  %3150 = vst.msk [vmem:[%s5 + $0xe4] sm:$0xf] %vm3092, %v3021
  %3151 = vst.msk [vmem:[%s5 + $0xe8] sm:$0xf] %vm3092, %v3022
  %3152 = vst.msk [vmem:[%s5 + $0xec] sm:$0xf] %vm3092, %v3023
  %3153 = vst.msk [vmem:[%s5 + $0xf0] sm:$0xf] %vm3092, %v3024
  %3154 = vst.msk [vmem:[%s5 + $0xf4] sm:$0xf] %vm3092, %v3025
  %3155 = vst.msk [vmem:[%s5 + $0xf8] sm:$0xf] %vm3092, %v3026
  %3156 = vst.msk [vmem:[%s5 + $0xfc] sm:$0xf] %vm3092, %v3027
  // Predicated region
  $region22: #{m_csgnet_forward.6} parent=0 // pred_check
    _
  $region23: #{m_csgnet_forward.6} parent=0 // pred_check_branch
    %3158 = sbr.rel (0) target = $region25
  $region24: #{m_csgnet_forward.6} parent=0 // pred_region
    _
  $region25: #{m_csgnet_forward.6} parent=0 // pred_fallthru
    _
  // Predicated region
  $region26: #{m_csgnet_forward.6} parent=0 // pred_check
    _
  $region27: #{m_csgnet_forward.6} parent=0 // pred_check_branch
    %3160 = sbr.rel (0) target = $region29
  $region28: #{m_csgnet_forward.6} parent=0 // pred_region
    _
  $region29: #{m_csgnet_forward.6} parent=0 // pred_fallthru
    _

// kernel: m_csgnet_forward.7
$region0: #{m_csgnet_forward.7}
  #allocation0 [shape = 'u32[]', space=smem, size = 0x4, offset = 0x4, fixed_abs, tag = 'smem constant byte address 0x4 - core index']
  #allocation1 [shape = 'u32[144,128]{1,0:T(1,128)}', space=vmem, size = 0x12000, scoped, tag = 'internal scratch']
  %s0 = inlined_call_operand.vmem [shape: bf16[512,512], index: 0, kind: input, shape index: {}]
  %s1 = inlined_call_operand.vmem [shape: bf16[512,64], index: 1, kind: input, shape index: {}]
  %s2 = inlined_call_operand.vmem [shape: f32[1,64], index: 2, kind: input, shape index: {}]
  %s3 = inlined_call_operand.vmem [shape: f32[1,64], index: 3, kind: input, shape index: {}]
  %s4 = inlined_call_operand.vmem [shape: f32[1,64], index: 4, kind: input, shape index: {}]
  %s5 = inlined_call_operand.vmem [shape: bf16[128,64], index: 5, kind: output, shape index: {}]
  %s6 = sld [smem:[#allocation0]]
  $region30: #{m_csgnet_forward.7} parent=0
    _
  %s8 = ssub.s32 1, %s6
  %s9 = scalar_select 0, %s8, %s6
  // Predicated region
  $region2: #{m_csgnet_forward.7} parent=0 // pred_check
    _
  $region3: #{m_csgnet_forward.7} parent=0 // pred_check_branch
    %11 = sbr.rel (0) target = $region5
  $region4: #{m_csgnet_forward.7} parent=0 // pred_region
    _
  $region5: #{m_csgnet_forward.7} parent=0 // pred_fallthru
    _
  // Predicated region
  $region6: #{m_csgnet_forward.7} parent=0 // pred_check
    _
  $region7: #{m_csgnet_forward.7} parent=0 // pred_check_branch
    %13 = sbr.rel (0) target = $region9
  $region8: #{m_csgnet_forward.7} parent=0 // pred_region
    _
  $region9: #{m_csgnet_forward.7} parent=0 // pred_fallthru
    _
  // Predicated region
  $region10: #{m_csgnet_forward.7} parent=0 // pred_check
    _
  $region11: #{m_csgnet_forward.7} parent=0 // pred_check_branch
    %15 = sbr.rel (0) target = $region13
  $region12: #{m_csgnet_forward.7} parent=0 // pred_region
    _
  $region13: #{m_csgnet_forward.7} parent=0 // pred_fallthru
    _
  // Predicated region
  $region14: #{m_csgnet_forward.7} parent=0 // pred_check
    _
  $region15: #{m_csgnet_forward.7} parent=0 // pred_check_branch
    %17 = sbr.rel (0) target = $region17
  $region16: #{m_csgnet_forward.7} parent=0 // pred_region
    _
  $region17: #{m_csgnet_forward.7} parent=0 // pred_fallthru
    _
  // Predicated region
  $region18: #{m_csgnet_forward.7} parent=0 // pred_check
    _
  $region19: #{m_csgnet_forward.7} parent=0 // pred_check_branch
    %19 = sbr.rel (0) target = $region21
  $region20: #{m_csgnet_forward.7} parent=0 // pred_region
    _
  $region21: #{m_csgnet_forward.7} parent=0 // pred_fallthru
    _
  %v21 = vld [vmem:[%s0] sm:$0xff]
  %v22 = vld [vmem:[%s0 + $0x8] sm:$0xff]
  %v23 = vld [vmem:[%s0 + $0x10] sm:$0xff]
  %v24 = vld [vmem:[%s0 + $0x18] sm:$0xff]
  %v25 = vld [vmem:[%s0 + $0x20] sm:$0xff]
  %v26 = vld [vmem:[%s0 + $0x28] sm:$0xff]
  %v27 = vld [vmem:[%s0 + $0x30] sm:$0xff]
  %v28 = vld [vmem:[%s0 + $0x38] sm:$0xff]
  %v29 = vld [vmem:[%s0 + $0x40] sm:$0xff]
  %v30 = vld [vmem:[%s0 + $0x48] sm:$0xff]
  %v31 = vld [vmem:[%s0 + $0x50] sm:$0xff]
  %v32 = vld [vmem:[%s0 + $0x58] sm:$0xff]
  %v33 = vld [vmem:[%s0 + $0x60] sm:$0xff]
  %v34 = vld [vmem:[%s0 + $0x68] sm:$0xff]
  %v35 = vld [vmem:[%s0 + $0x70] sm:$0xff]
  %v36 = vld [vmem:[%s0 + $0x78] sm:$0xff]
  %v37 = vld [vmem:[%s0 + $0x80] sm:$0xff]
  %v38 = vld [vmem:[%s0 + $0x88] sm:$0xff]
  %v39 = vld [vmem:[%s0 + $0x90] sm:$0xff]
  %v40 = vld [vmem:[%s0 + $0x98] sm:$0xff]
  %v41 = vld [vmem:[%s0 + $0xa0] sm:$0xff]
  %v42 = vld [vmem:[%s0 + $0xa8] sm:$0xff]
  %v43 = vld [vmem:[%s0 + $0xb0] sm:$0xff]
  %v44 = vld [vmem:[%s0 + $0xb8] sm:$0xff]
  %v45 = vld [vmem:[%s0 + $0xc0] sm:$0xff]
  %v46 = vld [vmem:[%s0 + $0xc8] sm:$0xff]
  %v47 = vld [vmem:[%s0 + $0xd0] sm:$0xff]
  %v48 = vld [vmem:[%s0 + $0xd8] sm:$0xff]
  %v49 = vld [vmem:[%s0 + $0xe0] sm:$0xff]
  %v50 = vld [vmem:[%s0 + $0xe8] sm:$0xff]
  %v51 = vld [vmem:[%s0 + $0xf0] sm:$0xff]
  %v52 = vld [vmem:[%s0 + $0xf8] sm:$0xff]
  %v53 = vld [vmem:[%s0 + $0x100] sm:$0xff]
  %v54 = vld [vmem:[%s0 + $0x108] sm:$0xff]
  %v55 = vld [vmem:[%s0 + $0x110] sm:$0xff]
  %v56 = vld [vmem:[%s0 + $0x118] sm:$0xff]
  %v57 = vld [vmem:[%s0 + $0x120] sm:$0xff]
  %v58 = vld [vmem:[%s0 + $0x128] sm:$0xff]
  %v59 = vld [vmem:[%s0 + $0x130] sm:$0xff]
  %v60 = vld [vmem:[%s0 + $0x138] sm:$0xff]
  %v61 = vld [vmem:[%s0 + $0x140] sm:$0xff]
  %v62 = vld [vmem:[%s0 + $0x148] sm:$0xff]
  %v63 = vld [vmem:[%s0 + $0x150] sm:$0xff]
  %v64 = vld [vmem:[%s0 + $0x158] sm:$0xff]
  %v65 = vld [vmem:[%s0 + $0x160] sm:$0xff]
  %v66 = vld [vmem:[%s0 + $0x168] sm:$0xff]
  %v67 = vld [vmem:[%s0 + $0x170] sm:$0xff]
  %v68 = vld [vmem:[%s0 + $0x178] sm:$0xff]
  %v69 = vld [vmem:[%s0 + $0x180] sm:$0xff]
  %v70 = vld [vmem:[%s0 + $0x188] sm:$0xff]
  %v71 = vld [vmem:[%s0 + $0x190] sm:$0xff]
  %v72 = vld [vmem:[%s0 + $0x198] sm:$0xff]
  %v73 = vld [vmem:[%s0 + $0x1a0] sm:$0xff]
  %v74 = vld [vmem:[%s0 + $0x1a8] sm:$0xff]
  %v75 = vld [vmem:[%s0 + $0x1b0] sm:$0xff]
  %v76 = vld [vmem:[%s0 + $0x1b8] sm:$0xff]
  %v77 = vld [vmem:[%s0 + $0x1c0] sm:$0xff]
  %v78 = vld [vmem:[%s0 + $0x1c8] sm:$0xff]
  %v79 = vld [vmem:[%s0 + $0x1d0] sm:$0xff]
  %v80 = vld [vmem:[%s0 + $0x1d8] sm:$0xff]
  %v81 = vld [vmem:[%s0 + $0x1e0] sm:$0xff]
  %v82 = vld [vmem:[%s0 + $0x1e8] sm:$0xff]
  %v83 = vld [vmem:[%s0 + $0x1f0] sm:$0xff]
  %v84 = vld [vmem:[%s0 + $0x1f8] sm:$0xff]
  %v85 = vld [vmem:[%s0 + $0x200] sm:$0xff]
  %v86 = vld [vmem:[%s0 + $0x208] sm:$0xff]
  %v87 = vld [vmem:[%s0 + $0x210] sm:$0xff]
  %v88 = vld [vmem:[%s0 + $0x218] sm:$0xff]
  %v89 = vld [vmem:[%s0 + $0x220] sm:$0xff]
  %v90 = vld [vmem:[%s0 + $0x228] sm:$0xff]
  %v91 = vld [vmem:[%s0 + $0x230] sm:$0xff]
  %v92 = vld [vmem:[%s0 + $0x238] sm:$0xff]
  %v93 = vld [vmem:[%s0 + $0x240] sm:$0xff]
  %v94 = vld [vmem:[%s0 + $0x248] sm:$0xff]
  %v95 = vld [vmem:[%s0 + $0x250] sm:$0xff]
  %v96 = vld [vmem:[%s0 + $0x258] sm:$0xff]
  %v97 = vld [vmem:[%s0 + $0x260] sm:$0xff]
  %v98 = vld [vmem:[%s0 + $0x268] sm:$0xff]
  %v99 = vld [vmem:[%s0 + $0x270] sm:$0xff]
  %v100 = vld [vmem:[%s0 + $0x278] sm:$0xff]
  %v101 = vld [vmem:[%s0 + $0x280] sm:$0xff]
  %v102 = vld [vmem:[%s0 + $0x288] sm:$0xff]
  %v103 = vld [vmem:[%s0 + $0x290] sm:$0xff]
  %v104 = vld [vmem:[%s0 + $0x298] sm:$0xff]
  %v105 = vld [vmem:[%s0 + $0x2a0] sm:$0xff]
  %v106 = vld [vmem:[%s0 + $0x2a8] sm:$0xff]
  %v107 = vld [vmem:[%s0 + $0x2b0] sm:$0xff]
  %v108 = vld [vmem:[%s0 + $0x2b8] sm:$0xff]
  %v109 = vld [vmem:[%s0 + $0x2c0] sm:$0xff]
  %v110 = vld [vmem:[%s0 + $0x2c8] sm:$0xff]
  %v111 = vld [vmem:[%s0 + $0x2d0] sm:$0xff]
  %v112 = vld [vmem:[%s0 + $0x2d8] sm:$0xff]
  %v113 = vld [vmem:[%s0 + $0x2e0] sm:$0xff]
  %v114 = vld [vmem:[%s0 + $0x2e8] sm:$0xff]
  %v115 = vld [vmem:[%s0 + $0x2f0] sm:$0xff]
  %v116 = vld [vmem:[%s0 + $0x2f8] sm:$0xff]
  %v117 = vld [vmem:[%s0 + $0x300] sm:$0xff]
  %v118 = vld [vmem:[%s0 + $0x308] sm:$0xff]
  %v119 = vld [vmem:[%s0 + $0x310] sm:$0xff]
  %v120 = vld [vmem:[%s0 + $0x318] sm:$0xff]
  %v121 = vld [vmem:[%s0 + $0x320] sm:$0xff]
  %v122 = vld [vmem:[%s0 + $0x328] sm:$0xff]
  %v123 = vld [vmem:[%s0 + $0x330] sm:$0xff]
  %v124 = vld [vmem:[%s0 + $0x338] sm:$0xff]
  %v125 = vld [vmem:[%s0 + $0x340] sm:$0xff]
  %v126 = vld [vmem:[%s0 + $0x348] sm:$0xff]
  %v127 = vld [vmem:[%s0 + $0x350] sm:$0xff]
  %v128 = vld [vmem:[%s0 + $0x358] sm:$0xff]
  %v129 = vld [vmem:[%s0 + $0x360] sm:$0xff]
  %v130 = vld [vmem:[%s0 + $0x368] sm:$0xff]
  %v131 = vld [vmem:[%s0 + $0x370] sm:$0xff]
  %v132 = vld [vmem:[%s0 + $0x378] sm:$0xff]
  %v133 = vld [vmem:[%s0 + $0x380] sm:$0xff]
  %v134 = vld [vmem:[%s0 + $0x388] sm:$0xff]
  %v135 = vld [vmem:[%s0 + $0x390] sm:$0xff]
  %v136 = vld [vmem:[%s0 + $0x398] sm:$0xff]
  %v137 = vld [vmem:[%s0 + $0x3a0] sm:$0xff]
  %v138 = vld [vmem:[%s0 + $0x3a8] sm:$0xff]
  %v139 = vld [vmem:[%s0 + $0x3b0] sm:$0xff]
  %v140 = vld [vmem:[%s0 + $0x3b8] sm:$0xff]
  %v141 = vld [vmem:[%s0 + $0x3c0] sm:$0xff]
  %v142 = vld [vmem:[%s0 + $0x3c8] sm:$0xff]
  %v143 = vld [vmem:[%s0 + $0x3d0] sm:$0xff]
  %v144 = vld [vmem:[%s0 + $0x3d8] sm:$0xff]
  %v145 = vld [vmem:[%s0 + $0x3e0] sm:$0xff]
  %v146 = vld [vmem:[%s0 + $0x3e8] sm:$0xff]
  %v147 = vld [vmem:[%s0 + $0x3f0] sm:$0xff]
  %v148 = vld [vmem:[%s0 + $0x3f8] sm:$0xff]
  %v149 = vld [vmem:[%s1] sm:$0xf]
  %v150 = vld [vmem:[%s1 + $0x4] sm:$0xf]
  %v151 = vld [vmem:[%s1 + $0x8] sm:$0xf]
  %v152 = vld [vmem:[%s1 + $0xc] sm:$0xf]
  %v153 = vld [vmem:[%s1 + $0x10] sm:$0xf]
  %v154 = vld [vmem:[%s1 + $0x14] sm:$0xf]
  %v155 = vld [vmem:[%s1 + $0x18] sm:$0xf]
  %v156 = vld [vmem:[%s1 + $0x1c] sm:$0xf]
  %v157 = vld [vmem:[%s1 + $0x20] sm:$0xf]
  %v158 = vld [vmem:[%s1 + $0x24] sm:$0xf]
  %v159 = vld [vmem:[%s1 + $0x28] sm:$0xf]
  %v160 = vld [vmem:[%s1 + $0x2c] sm:$0xf]
  %v161 = vld [vmem:[%s1 + $0x30] sm:$0xf]
  %v162 = vld [vmem:[%s1 + $0x34] sm:$0xf]
  %v163 = vld [vmem:[%s1 + $0x38] sm:$0xf]
  %v164 = vld [vmem:[%s1 + $0x3c] sm:$0xf]
  %v165 = vld [vmem:[%s1 + $0x40] sm:$0xf]
  %v166 = vld [vmem:[%s1 + $0x44] sm:$0xf]
  %v167 = vld [vmem:[%s1 + $0x48] sm:$0xf]
  %v168 = vld [vmem:[%s1 + $0x4c] sm:$0xf]
  %v169 = vld [vmem:[%s1 + $0x50] sm:$0xf]
  %v170 = vld [vmem:[%s1 + $0x54] sm:$0xf]
  %v171 = vld [vmem:[%s1 + $0x58] sm:$0xf]
  %v172 = vld [vmem:[%s1 + $0x5c] sm:$0xf]
  %v173 = vld [vmem:[%s1 + $0x60] sm:$0xf]
  %v174 = vld [vmem:[%s1 + $0x64] sm:$0xf]
  %v175 = vld [vmem:[%s1 + $0x68] sm:$0xf]
  %v176 = vld [vmem:[%s1 + $0x6c] sm:$0xf]
  %v177 = vld [vmem:[%s1 + $0x70] sm:$0xf]
  %v178 = vld [vmem:[%s1 + $0x74] sm:$0xf]
  %v179 = vld [vmem:[%s1 + $0x78] sm:$0xf]
  %v180 = vld [vmem:[%s1 + $0x7c] sm:$0xf]
  %v181 = vld [vmem:[%s1 + $0x80] sm:$0xf]
  %v182 = vld [vmem:[%s1 + $0x84] sm:$0xf]
  %v183 = vld [vmem:[%s1 + $0x88] sm:$0xf]
  %v184 = vld [vmem:[%s1 + $0x8c] sm:$0xf]
  %v185 = vld [vmem:[%s1 + $0x90] sm:$0xf]
  %v186 = vld [vmem:[%s1 + $0x94] sm:$0xf]
  %v187 = vld [vmem:[%s1 + $0x98] sm:$0xf]
  %v188 = vld [vmem:[%s1 + $0x9c] sm:$0xf]
  %v189 = vld [vmem:[%s1 + $0xa0] sm:$0xf]
  %v190 = vld [vmem:[%s1 + $0xa4] sm:$0xf]
  %v191 = vld [vmem:[%s1 + $0xa8] sm:$0xf]
  %v192 = vld [vmem:[%s1 + $0xac] sm:$0xf]
  %v193 = vld [vmem:[%s1 + $0xb0] sm:$0xf]
  %v194 = vld [vmem:[%s1 + $0xb4] sm:$0xf]
  %v195 = vld [vmem:[%s1 + $0xb8] sm:$0xf]
  %v196 = vld [vmem:[%s1 + $0xbc] sm:$0xf]
  %v197 = vld [vmem:[%s1 + $0xc0] sm:$0xf]
  %v198 = vld [vmem:[%s1 + $0xc4] sm:$0xf]
  %v199 = vld [vmem:[%s1 + $0xc8] sm:$0xf]
  %v200 = vld [vmem:[%s1 + $0xcc] sm:$0xf]
  %v201 = vld [vmem:[%s1 + $0xd0] sm:$0xf]
  %v202 = vld [vmem:[%s1 + $0xd4] sm:$0xf]
  %v203 = vld [vmem:[%s1 + $0xd8] sm:$0xf]
  %v204 = vld [vmem:[%s1 + $0xdc] sm:$0xf]
  %v205 = vld [vmem:[%s1 + $0xe0] sm:$0xf]
  %v206 = vld [vmem:[%s1 + $0xe4] sm:$0xf]
  %v207 = vld [vmem:[%s1 + $0xe8] sm:$0xf]
  %v208 = vld [vmem:[%s1 + $0xec] sm:$0xf]
  %v209 = vld [vmem:[%s1 + $0xf0] sm:$0xf]
  %v210 = vld [vmem:[%s1 + $0xf4] sm:$0xf]
  %v211 = vld [vmem:[%s1 + $0xf8] sm:$0xf]
  %v212 = vld [vmem:[%s1 + $0xfc] sm:$0xf]
  %v341 = vunpack.c.l.b16 %v21
  %v342 = vunpack.c.h.b16 %v21
  %v343 = vunpack.c.l.b16 %v22
  %v344 = vunpack.c.h.b16 %v22
  %v345 = vunpack.c.l.b16 %v23
  %v346 = vunpack.c.h.b16 %v23
  %v347 = vunpack.c.l.b16 %v24
  %v348 = vunpack.c.h.b16 %v24
  %v349 = vunpack.c.l.b16 %v25
  %v350 = vunpack.c.h.b16 %v25
  %v351 = vunpack.c.l.b16 %v26
  %v352 = vunpack.c.h.b16 %v26
  %v353 = vunpack.c.l.b16 %v27
  %v354 = vunpack.c.h.b16 %v27
  %v355 = vunpack.c.l.b16 %v28
  %v356 = vunpack.c.h.b16 %v28
  %v357 = vunpack.c.l.b16 %v29
  %v358 = vunpack.c.h.b16 %v29
  %v359 = vunpack.c.l.b16 %v30
  %v360 = vunpack.c.h.b16 %v30
  %v361 = vunpack.c.l.b16 %v31
  %v362 = vunpack.c.h.b16 %v31
  %v363 = vunpack.c.l.b16 %v32
  %v364 = vunpack.c.h.b16 %v32
  %v365 = vunpack.c.l.b16 %v33
  %v366 = vunpack.c.h.b16 %v33
  %v367 = vunpack.c.l.b16 %v34
  %v368 = vunpack.c.h.b16 %v34
  %v369 = vunpack.c.l.b16 %v35
  %v370 = vunpack.c.h.b16 %v35
  %v371 = vunpack.c.l.b16 %v36
  %v372 = vunpack.c.h.b16 %v36
  %v373 = vunpack.c.l.b16 %v37
  %v374 = vunpack.c.h.b16 %v37
  %v375 = vunpack.c.l.b16 %v38
  %v376 = vunpack.c.h.b16 %v38
  %v377 = vunpack.c.l.b16 %v39
  %v378 = vunpack.c.h.b16 %v39
  %v379 = vunpack.c.l.b16 %v40
  %v380 = vunpack.c.h.b16 %v40
  %v381 = vunpack.c.l.b16 %v41
  %v382 = vunpack.c.h.b16 %v41
  %v383 = vunpack.c.l.b16 %v42
  %v384 = vunpack.c.h.b16 %v42
  %v385 = vunpack.c.l.b16 %v43
  %v386 = vunpack.c.h.b16 %v43
  %v387 = vunpack.c.l.b16 %v44
  %v388 = vunpack.c.h.b16 %v44
  %v389 = vunpack.c.l.b16 %v45
  %v390 = vunpack.c.h.b16 %v45
  %v391 = vunpack.c.l.b16 %v46
  %v392 = vunpack.c.h.b16 %v46
  %v393 = vunpack.c.l.b16 %v47
  %v394 = vunpack.c.h.b16 %v47
  %v395 = vunpack.c.l.b16 %v48
  %v396 = vunpack.c.h.b16 %v48
  %v397 = vunpack.c.l.b16 %v49
  %v398 = vunpack.c.h.b16 %v49
  %v399 = vunpack.c.l.b16 %v50
  %v400 = vunpack.c.h.b16 %v50
  %v401 = vunpack.c.l.b16 %v51
  %v402 = vunpack.c.h.b16 %v51
  %v403 = vunpack.c.l.b16 %v52
  %v404 = vunpack.c.h.b16 %v52
  %v405 = vunpack.c.l.b16 %v53
  %v406 = vunpack.c.h.b16 %v53
  %v407 = vunpack.c.l.b16 %v54
  %v408 = vunpack.c.h.b16 %v54
  %v409 = vunpack.c.l.b16 %v55
  %v410 = vunpack.c.h.b16 %v55
  %v411 = vunpack.c.l.b16 %v56
  %v412 = vunpack.c.h.b16 %v56
  %v413 = vunpack.c.l.b16 %v57
  %v414 = vunpack.c.h.b16 %v57
  %v415 = vunpack.c.l.b16 %v58
  %v416 = vunpack.c.h.b16 %v58
  %v417 = vunpack.c.l.b16 %v59
  %v418 = vunpack.c.h.b16 %v59
  %v419 = vunpack.c.l.b16 %v60
  %v420 = vunpack.c.h.b16 %v60
  %v421 = vunpack.c.l.b16 %v61
  %v422 = vunpack.c.h.b16 %v61
  %v423 = vunpack.c.l.b16 %v62
  %v424 = vunpack.c.h.b16 %v62
  %v425 = vunpack.c.l.b16 %v63
  %v426 = vunpack.c.h.b16 %v63
  %v427 = vunpack.c.l.b16 %v64
  %v428 = vunpack.c.h.b16 %v64
  %v429 = vunpack.c.l.b16 %v65
  %v430 = vunpack.c.h.b16 %v65
  %v431 = vunpack.c.l.b16 %v66
  %v432 = vunpack.c.h.b16 %v66
  %v433 = vunpack.c.l.b16 %v67
  %v434 = vunpack.c.h.b16 %v67
  %v435 = vunpack.c.l.b16 %v68
  %v436 = vunpack.c.h.b16 %v68
  %v437 = vunpack.c.l.b16 %v69
  %v438 = vunpack.c.h.b16 %v69
  %v439 = vunpack.c.l.b16 %v70
  %v440 = vunpack.c.h.b16 %v70
  %v441 = vunpack.c.l.b16 %v71
  %v442 = vunpack.c.h.b16 %v71
  %v443 = vunpack.c.l.b16 %v72
  %v444 = vunpack.c.h.b16 %v72
  %v445 = vunpack.c.l.b16 %v73
  %v446 = vunpack.c.h.b16 %v73
  %v447 = vunpack.c.l.b16 %v74
  %v448 = vunpack.c.h.b16 %v74
  %v449 = vunpack.c.l.b16 %v75
  %v450 = vunpack.c.h.b16 %v75
  %v451 = vunpack.c.l.b16 %v76
  %v452 = vunpack.c.h.b16 %v76
  %v453 = vunpack.c.l.b16 %v77
  %v454 = vunpack.c.h.b16 %v77
  %v455 = vunpack.c.l.b16 %v78
  %v456 = vunpack.c.h.b16 %v78
  %v457 = vunpack.c.l.b16 %v79
  %v458 = vunpack.c.h.b16 %v79
  %v459 = vunpack.c.l.b16 %v80
  %v460 = vunpack.c.h.b16 %v80
  %v461 = vunpack.c.l.b16 %v81
  %v462 = vunpack.c.h.b16 %v81
  %v463 = vunpack.c.l.b16 %v82
  %v464 = vunpack.c.h.b16 %v82
  %v465 = vunpack.c.l.b16 %v83
  %v466 = vunpack.c.h.b16 %v83
  %v467 = vunpack.c.l.b16 %v84
  %v468 = vunpack.c.h.b16 %v84
  %v469 = vunpack.c.l.b16 %v85
  %v470 = vunpack.c.h.b16 %v85
  %v471 = vunpack.c.l.b16 %v86
  %v472 = vunpack.c.h.b16 %v86
  %v473 = vunpack.c.l.b16 %v87
  %v474 = vunpack.c.h.b16 %v87
  %v475 = vunpack.c.l.b16 %v88
  %v476 = vunpack.c.h.b16 %v88
  %v477 = vunpack.c.l.b16 %v89
  %v478 = vunpack.c.h.b16 %v89
  %v479 = vunpack.c.l.b16 %v90
  %v480 = vunpack.c.h.b16 %v90
  %v481 = vunpack.c.l.b16 %v91
  %v482 = vunpack.c.h.b16 %v91
  %v483 = vunpack.c.l.b16 %v92
  %v484 = vunpack.c.h.b16 %v92
  %v485 = vunpack.c.l.b16 %v93
  %v486 = vunpack.c.h.b16 %v93
  %v487 = vunpack.c.l.b16 %v94
  %v488 = vunpack.c.h.b16 %v94
  %v489 = vunpack.c.l.b16 %v95
  %v490 = vunpack.c.h.b16 %v95
  %v491 = vunpack.c.l.b16 %v96
  %v492 = vunpack.c.h.b16 %v96
  %v493 = vunpack.c.l.b16 %v97
  %v494 = vunpack.c.h.b16 %v97
  %v495 = vunpack.c.l.b16 %v98
  %v496 = vunpack.c.h.b16 %v98
  %v497 = vunpack.c.l.b16 %v99
  %v498 = vunpack.c.h.b16 %v99
  %v499 = vunpack.c.l.b16 %v100
  %v500 = vunpack.c.h.b16 %v100
  %v501 = vunpack.c.l.b16 %v101
  %v502 = vunpack.c.h.b16 %v101
  %v503 = vunpack.c.l.b16 %v102
  %v504 = vunpack.c.h.b16 %v102
  %v505 = vunpack.c.l.b16 %v103
  %v506 = vunpack.c.h.b16 %v103
  %v507 = vunpack.c.l.b16 %v104
  %v508 = vunpack.c.h.b16 %v104
  %v509 = vunpack.c.l.b16 %v105
  %v510 = vunpack.c.h.b16 %v105
  %v511 = vunpack.c.l.b16 %v106
  %v512 = vunpack.c.h.b16 %v106
  %v513 = vunpack.c.l.b16 %v107
  %v514 = vunpack.c.h.b16 %v107
  %v515 = vunpack.c.l.b16 %v108
  %v516 = vunpack.c.h.b16 %v108
  %v517 = vunpack.c.l.b16 %v109
  %v518 = vunpack.c.h.b16 %v109
  %v519 = vunpack.c.l.b16 %v110
  %v520 = vunpack.c.h.b16 %v110
  %v521 = vunpack.c.l.b16 %v111
  %v522 = vunpack.c.h.b16 %v111
  %v523 = vunpack.c.l.b16 %v112
  %v524 = vunpack.c.h.b16 %v112
  %v525 = vunpack.c.l.b16 %v113
  %v526 = vunpack.c.h.b16 %v113
  %v527 = vunpack.c.l.b16 %v114
  %v528 = vunpack.c.h.b16 %v114
  %v529 = vunpack.c.l.b16 %v115
  %v530 = vunpack.c.h.b16 %v115
  %v531 = vunpack.c.l.b16 %v116
  %v532 = vunpack.c.h.b16 %v116
  %v533 = vunpack.c.l.b16 %v117
  %v534 = vunpack.c.h.b16 %v117
  %v535 = vunpack.c.l.b16 %v118
  %v536 = vunpack.c.h.b16 %v118
  %v537 = vunpack.c.l.b16 %v119
  %v538 = vunpack.c.h.b16 %v119
  %v539 = vunpack.c.l.b16 %v120
  %v540 = vunpack.c.h.b16 %v120
  %v541 = vunpack.c.l.b16 %v121
  %v542 = vunpack.c.h.b16 %v121
  %v543 = vunpack.c.l.b16 %v122
  %v544 = vunpack.c.h.b16 %v122
  %v545 = vunpack.c.l.b16 %v123
  %v546 = vunpack.c.h.b16 %v123
  %v547 = vunpack.c.l.b16 %v124
  %v548 = vunpack.c.h.b16 %v124
  %v549 = vunpack.c.l.b16 %v125
  %v550 = vunpack.c.h.b16 %v125
  %v551 = vunpack.c.l.b16 %v126
  %v552 = vunpack.c.h.b16 %v126
  %v553 = vunpack.c.l.b16 %v127
  %v554 = vunpack.c.h.b16 %v127
  %v555 = vunpack.c.l.b16 %v128
  %v556 = vunpack.c.h.b16 %v128
  %v557 = vunpack.c.l.b16 %v129
  %v558 = vunpack.c.h.b16 %v129
  %v559 = vunpack.c.l.b16 %v130
  %v560 = vunpack.c.h.b16 %v130
  %v561 = vunpack.c.l.b16 %v131
  %v562 = vunpack.c.h.b16 %v131
  %v563 = vunpack.c.l.b16 %v132
  %v564 = vunpack.c.h.b16 %v132
  %v565 = vunpack.c.l.b16 %v133
  %v566 = vunpack.c.h.b16 %v133
  %v567 = vunpack.c.l.b16 %v134
  %v568 = vunpack.c.h.b16 %v134
  %v569 = vunpack.c.l.b16 %v135
  %v570 = vunpack.c.h.b16 %v135
  %v571 = vunpack.c.l.b16 %v136
  %v572 = vunpack.c.h.b16 %v136
  %v573 = vunpack.c.l.b16 %v137
  %v574 = vunpack.c.h.b16 %v137
  %v575 = vunpack.c.l.b16 %v138
  %v576 = vunpack.c.h.b16 %v138
  %v577 = vunpack.c.l.b16 %v139
  %v578 = vunpack.c.h.b16 %v139
  %v579 = vunpack.c.l.b16 %v140
  %v580 = vunpack.c.h.b16 %v140
  %v581 = vunpack.c.l.b16 %v141
  %v582 = vunpack.c.h.b16 %v141
  %v583 = vunpack.c.l.b16 %v142
  %v584 = vunpack.c.h.b16 %v142
  %v585 = vunpack.c.l.b16 %v143
  %v586 = vunpack.c.h.b16 %v143
  %v587 = vunpack.c.l.b16 %v144
  %v588 = vunpack.c.h.b16 %v144
  %v589 = vunpack.c.l.b16 %v145
  %v590 = vunpack.c.h.b16 %v145
  %v591 = vunpack.c.l.b16 %v146
  %v592 = vunpack.c.h.b16 %v146
  %v593 = vunpack.c.l.b16 %v147
  %v594 = vunpack.c.h.b16 %v147
  %v595 = vunpack.c.l.b16 %v148
  %v596 = vunpack.c.h.b16 %v148
  %v597 = vpack.c.b16 %v345, %v341
  %v598 = vpack.c.b16 %v346, %v342
  %v599 = vpack.c.b16 %v347, %v343
  %v600 = vpack.c.b16 %v348, %v344
  %v601 = vpack.c.b16 %v353, %v349
  %v602 = vpack.c.b16 %v354, %v350
  %v603 = vpack.c.b16 %v355, %v351
  %v604 = vpack.c.b16 %v356, %v352
  %v605 = vpack.c.b16 %v361, %v357
  %v606 = vpack.c.b16 %v362, %v358
  %v607 = vpack.c.b16 %v363, %v359
  %v608 = vpack.c.b16 %v364, %v360
  %v609 = vpack.c.b16 %v369, %v365
  %v610 = vpack.c.b16 %v370, %v366
  %v611 = vpack.c.b16 %v371, %v367
  %v612 = vpack.c.b16 %v372, %v368
  %v613 = vpack.c.b16 %v377, %v373
  %v614 = vpack.c.b16 %v378, %v374
  %v615 = vpack.c.b16 %v379, %v375
  %v616 = vpack.c.b16 %v380, %v376
  %v617 = vpack.c.b16 %v385, %v381
  %v618 = vpack.c.b16 %v386, %v382
  %v619 = vpack.c.b16 %v387, %v383
  %v620 = vpack.c.b16 %v388, %v384
  %v621 = vpack.c.b16 %v393, %v389
  %v622 = vpack.c.b16 %v394, %v390
  %v623 = vpack.c.b16 %v395, %v391
  %v624 = vpack.c.b16 %v396, %v392
  %v625 = vpack.c.b16 %v401, %v397
  %v626 = vpack.c.b16 %v402, %v398
  %v627 = vpack.c.b16 %v403, %v399
  %v628 = vpack.c.b16 %v404, %v400
  %v629 = vpack.c.b16 %v409, %v405
  %v630 = vpack.c.b16 %v410, %v406
  %v631 = vpack.c.b16 %v411, %v407
  %v632 = vpack.c.b16 %v412, %v408
  %v633 = vpack.c.b16 %v417, %v413
  %v634 = vpack.c.b16 %v418, %v414
  %v635 = vpack.c.b16 %v419, %v415
  %v636 = vpack.c.b16 %v420, %v416
  %v637 = vpack.c.b16 %v425, %v421
  %v638 = vpack.c.b16 %v426, %v422
  %v639 = vpack.c.b16 %v427, %v423
  %v640 = vpack.c.b16 %v428, %v424
  %v641 = vpack.c.b16 %v433, %v429
  %v642 = vpack.c.b16 %v434, %v430
  %v643 = vpack.c.b16 %v435, %v431
  %v644 = vpack.c.b16 %v436, %v432
  %v645 = vpack.c.b16 %v441, %v437
  %v646 = vpack.c.b16 %v442, %v438
  %v647 = vpack.c.b16 %v443, %v439
  %v648 = vpack.c.b16 %v444, %v440
  %v649 = vpack.c.b16 %v449, %v445
  %v650 = vpack.c.b16 %v450, %v446
  %v651 = vpack.c.b16 %v451, %v447
  %v652 = vpack.c.b16 %v452, %v448
  %v653 = vpack.c.b16 %v457, %v453
  %v654 = vpack.c.b16 %v458, %v454
  %v655 = vpack.c.b16 %v459, %v455
  %v656 = vpack.c.b16 %v460, %v456
  %v657 = vpack.c.b16 %v465, %v461
  %v658 = vpack.c.b16 %v466, %v462
  %v659 = vpack.c.b16 %v467, %v463
  %v660 = vpack.c.b16 %v468, %v464
  %v661 = vpack.c.b16 %v473, %v469
  %v662 = vpack.c.b16 %v474, %v470
  %v663 = vpack.c.b16 %v475, %v471
  %v664 = vpack.c.b16 %v476, %v472
  %v665 = vpack.c.b16 %v481, %v477
  %v666 = vpack.c.b16 %v482, %v478
  %v667 = vpack.c.b16 %v483, %v479
  %v668 = vpack.c.b16 %v484, %v480
  %v669 = vpack.c.b16 %v489, %v485
  %v670 = vpack.c.b16 %v490, %v486
  %v671 = vpack.c.b16 %v491, %v487
  %v672 = vpack.c.b16 %v492, %v488
  %v673 = vpack.c.b16 %v497, %v493
  %v674 = vpack.c.b16 %v498, %v494
  %v675 = vpack.c.b16 %v499, %v495
  %v676 = vpack.c.b16 %v500, %v496
  %v677 = vpack.c.b16 %v505, %v501
  %v678 = vpack.c.b16 %v506, %v502
  %v679 = vpack.c.b16 %v507, %v503
  %v680 = vpack.c.b16 %v508, %v504
  %v681 = vpack.c.b16 %v513, %v509
  %v682 = vpack.c.b16 %v514, %v510
  %v683 = vpack.c.b16 %v515, %v511
  %v684 = vpack.c.b16 %v516, %v512
  %v685 = vpack.c.b16 %v521, %v517
  %v686 = vpack.c.b16 %v522, %v518
  %v687 = vpack.c.b16 %v523, %v519
  %v688 = vpack.c.b16 %v524, %v520
  %v689 = vpack.c.b16 %v529, %v525
  %v690 = vpack.c.b16 %v530, %v526
  %v691 = vpack.c.b16 %v531, %v527
  %v692 = vpack.c.b16 %v532, %v528
  %v693 = vpack.c.b16 %v537, %v533
  %v694 = vpack.c.b16 %v538, %v534
  %v695 = vpack.c.b16 %v539, %v535
  %v696 = vpack.c.b16 %v540, %v536
  %v697 = vpack.c.b16 %v545, %v541
  %v698 = vpack.c.b16 %v546, %v542
  %v699 = vpack.c.b16 %v547, %v543
  %v700 = vpack.c.b16 %v548, %v544
  %v701 = vpack.c.b16 %v553, %v549
  %v702 = vpack.c.b16 %v554, %v550
  %v703 = vpack.c.b16 %v555, %v551
  %v704 = vpack.c.b16 %v556, %v552
  %v705 = vpack.c.b16 %v561, %v557
  %v706 = vpack.c.b16 %v562, %v558
  %v707 = vpack.c.b16 %v563, %v559
  %v708 = vpack.c.b16 %v564, %v560
  %v709 = vpack.c.b16 %v569, %v565
  %v710 = vpack.c.b16 %v570, %v566
  %v711 = vpack.c.b16 %v571, %v567
  %v712 = vpack.c.b16 %v572, %v568
  %v713 = vpack.c.b16 %v577, %v573
  %v714 = vpack.c.b16 %v578, %v574
  %v715 = vpack.c.b16 %v579, %v575
  %v716 = vpack.c.b16 %v580, %v576
  %v717 = vpack.c.b16 %v585, %v581
  %v718 = vpack.c.b16 %v586, %v582
  %v719 = vpack.c.b16 %v587, %v583
  %v720 = vpack.c.b16 %v588, %v584
  %v721 = vpack.c.b16 %v593, %v589
  %v722 = vpack.c.b16 %v594, %v590
  %v723 = vpack.c.b16 %v595, %v591
  %v724 = vpack.c.b16 %v596, %v592
  %v917 = vunpack.c.l.b16 %v149
  %v918 = vunpack.c.l.b16 %v150
  %v919 = vunpack.c.l.b16 %v151
  %v920 = vunpack.c.l.b16 %v152
  %v921 = vunpack.c.l.b16 %v153
  %v922 = vunpack.c.l.b16 %v154
  %v923 = vunpack.c.l.b16 %v155
  %v924 = vunpack.c.l.b16 %v156
  %v925 = vunpack.c.l.b16 %v157
  %v926 = vunpack.c.l.b16 %v158
  %v927 = vunpack.c.l.b16 %v159
  %v928 = vunpack.c.l.b16 %v160
  %v929 = vunpack.c.l.b16 %v161
  %v930 = vunpack.c.l.b16 %v162
  %v931 = vunpack.c.l.b16 %v163
  %v932 = vunpack.c.l.b16 %v164
  %v933 = vunpack.c.l.b16 %v165
  %v934 = vunpack.c.l.b16 %v166
  %v935 = vunpack.c.l.b16 %v167
  %v936 = vunpack.c.l.b16 %v168
  %v937 = vunpack.c.l.b16 %v169
  %v938 = vunpack.c.l.b16 %v170
  %v939 = vunpack.c.l.b16 %v171
  %v940 = vunpack.c.l.b16 %v172
  %v941 = vunpack.c.l.b16 %v173
  %v942 = vunpack.c.l.b16 %v174
  %v943 = vunpack.c.l.b16 %v175
  %v944 = vunpack.c.l.b16 %v176
  %v945 = vunpack.c.l.b16 %v177
  %v946 = vunpack.c.l.b16 %v178
  %v947 = vunpack.c.l.b16 %v179
  %v948 = vunpack.c.l.b16 %v180
  %v949 = vunpack.c.l.b16 %v181
  %v950 = vunpack.c.l.b16 %v182
  %v951 = vunpack.c.l.b16 %v183
  %v952 = vunpack.c.l.b16 %v184
  %v953 = vunpack.c.l.b16 %v185
  %v954 = vunpack.c.l.b16 %v186
  %v955 = vunpack.c.l.b16 %v187
  %v956 = vunpack.c.l.b16 %v188
  %v957 = vunpack.c.l.b16 %v189
  %v958 = vunpack.c.l.b16 %v190
  %v959 = vunpack.c.l.b16 %v191
  %v960 = vunpack.c.l.b16 %v192
  %v961 = vunpack.c.l.b16 %v193
  %v962 = vunpack.c.l.b16 %v194
  %v963 = vunpack.c.l.b16 %v195
  %v964 = vunpack.c.l.b16 %v196
  %v965 = vunpack.c.l.b16 %v197
  %v966 = vunpack.c.l.b16 %v198
  %v967 = vunpack.c.l.b16 %v199
  %v968 = vunpack.c.l.b16 %v200
  %v969 = vunpack.c.l.b16 %v201
  %v970 = vunpack.c.l.b16 %v202
  %v971 = vunpack.c.l.b16 %v203
  %v972 = vunpack.c.l.b16 %v204
  %v973 = vunpack.c.l.b16 %v205
  %v974 = vunpack.c.l.b16 %v206
  %v975 = vunpack.c.l.b16 %v207
  %v976 = vunpack.c.l.b16 %v208
  %v977 = vunpack.c.l.b16 %v209
  %v978 = vunpack.c.l.b16 %v210
  %v979 = vunpack.c.l.b16 %v211
  %v980 = vunpack.c.l.b16 %v212
  %v981 = vpack.c.b16 %v918, %v917
  %v982 = vpack.c.b16 %v920, %v919
  %v983 = vpack.c.b16 %v922, %v921
  %v984 = vpack.c.b16 %v924, %v923
  %v985 = vpack.c.b16 %v926, %v925
  %v986 = vpack.c.b16 %v928, %v927
  %v987 = vpack.c.b16 %v930, %v929
  %v988 = vpack.c.b16 %v932, %v931
  %v989 = vpack.c.b16 %v934, %v933
  %v990 = vpack.c.b16 %v936, %v935
  %v991 = vpack.c.b16 %v938, %v937
  %v992 = vpack.c.b16 %v940, %v939
  %v993 = vpack.c.b16 %v942, %v941
  %v994 = vpack.c.b16 %v944, %v943
  %v995 = vpack.c.b16 %v946, %v945
  %v996 = vpack.c.b16 %v948, %v947
  %v997 = vpack.c.b16 %v950, %v949
  %v998 = vpack.c.b16 %v952, %v951
  %v999 = vpack.c.b16 %v954, %v953
  %v1000 = vpack.c.b16 %v956, %v955
  %v1001 = vpack.c.b16 %v958, %v957
  %v1002 = vpack.c.b16 %v960, %v959
  %v1003 = vpack.c.b16 %v962, %v961
  %v1004 = vpack.c.b16 %v964, %v963
  %v1005 = vpack.c.b16 %v966, %v965
  %v1006 = vpack.c.b16 %v968, %v967
  %v1007 = vpack.c.b16 %v970, %v969
  %v1008 = vpack.c.b16 %v972, %v971
  %v1009 = vpack.c.b16 %v974, %v973
  %v1010 = vpack.c.b16 %v976, %v975
  %v1011 = vpack.c.b16 %v978, %v977
  %v1012 = vpack.c.b16 %v980, %v979
  %1045 = vmatprep.subr.bf16.mxu0 0
  %1046 = vmatpush1.bf16.msra.mxu0 %v988
  %1047 = vmatprep.subr.bf16.mxu0 0
  %1048 = vmatpush1.bf16.msra.mxu0 %v987
  %1049 = vmatprep.subr.bf16.mxu0 0
  %1050 = vmatpush1.bf16.msra.mxu0 %v986
  %1051 = vmatprep.subr.bf16.mxu0 0
  %1052 = vmatpush1.bf16.msra.mxu0 %v985
  %1053 = vmatprep.subr.bf16.mxu0 0
  %1054 = vmatpush1.bf16.msra.mxu0 %v984
  %1055 = vmatprep.subr.bf16.mxu0 0
  %1056 = vmatpush1.bf16.msra.mxu0 %v983
  %1057 = vmatprep.subr.bf16.mxu0 0
  %1058 = vmatpush1.bf16.msra.mxu0 %v982
  %1059 = vmatprep.subr.bf16.mxu0 0
  %1060 = vmatpush1.bf16.msra.mxu0 %v981
  %1061 = vmatprep.subr.bf16.mxu0 0
  %1062 = vmatpush2.bf16.msra.mxu0 %v996
  %1063 = vmatprep.subr.bf16.mxu0 0
  %1064 = vmatpush2.bf16.msra.mxu0 %v995
  %1065 = vmatprep.subr.bf16.mxu0 0
  %1066 = vmatpush2.bf16.msra.mxu0 %v994
  %1067 = vmatprep.subr.bf16.mxu0 0
  %1068 = vmatpush2.bf16.msra.mxu0 %v993
  %1069 = vmatprep.subr.bf16.mxu0 0
  %1070 = vmatpush2.bf16.msra.mxu0 %v992
  %1071 = vmatprep.subr.bf16.mxu0 0
  %1072 = vmatpush2.bf16.msra.mxu0 %v991
  %1073 = vmatprep.subr.bf16.mxu0 0
  %1074 = vmatpush2.bf16.msra.mxu0 %v990
  %1075 = vmatprep.subr.bf16.mxu0 0
  %1076 = vmatpush2.bf16.msra.mxu0 %v989
  %1077 = vmatprep.mubr.bf16.mxu0 %v598
  %1078 = vmatmul.mubr.bf16.gmra.mxu0 %v597
  %v1079 = vpop.f32.mrf.mxu0
  %v1080 = vadd.f32 0.0, %v1079
  %v1081 = vpop.f32.mrf.mxu0
  %v1082 = vpop.f32.mrf.mxu0
  %v1083 = vadd.f32 0.0, %v1082
  %v1084 = vpop.f32.mrf.mxu0
  %1085 = vmatprep.mubr.bf16.mxu0 %v602
  %1086 = vmatmul.mubr.bf16.gmra.mxu0 %v601
  %v1087 = vpop.f32.mrf.mxu0
  %v1088 = vadd.f32 0.0, %v1087
  %v1089 = vpop.f32.mrf.mxu0
  %v1090 = vpop.f32.mrf.mxu0
  %v1091 = vadd.f32 0.0, %v1090
  %v1092 = vpop.f32.mrf.mxu0
  %1093 = vmatprep.mubr.bf16.mxu0 %v606
  %1094 = vmatmul.mubr.bf16.gmra.mxu0 %v605
  %v1095 = vpop.f32.mrf.mxu0
  %v1096 = vadd.f32 0.0, %v1095
  %v1097 = vpop.f32.mrf.mxu0
  %v1098 = vpop.f32.mrf.mxu0
  %v1099 = vadd.f32 0.0, %v1098
  %v1100 = vpop.f32.mrf.mxu0
  %1101 = vmatprep.mubr.bf16.mxu0 %v610
  %1102 = vmatmul.mubr.bf16.gmra.mxu0 %v609
  %v1103 = vpop.f32.mrf.mxu0
  %v1104 = vadd.f32 0.0, %v1103
  %v1105 = vpop.f32.mrf.mxu0
  %v1106 = vpop.f32.mrf.mxu0
  %v1107 = vadd.f32 0.0, %v1106
  %v1108 = vpop.f32.mrf.mxu0
  %1109 = vmatprep.mubr.bf16.mxu0 %v614
  %1110 = vmatmul.mubr.bf16.gmra.mxu0 %v613
  %v1111 = vpop.f32.mrf.mxu0
  %v1112 = vadd.f32 0.0, %v1111
  %v1113 = vpop.f32.mrf.mxu0
  %v1114 = vpop.f32.mrf.mxu0
  %v1115 = vadd.f32 0.0, %v1114
  %v1116 = vpop.f32.mrf.mxu0
  %1117 = vmatprep.mubr.bf16.mxu0 %v618
  %1118 = vmatmul.mubr.bf16.gmra.mxu0 %v617
  %v1119 = vpop.f32.mrf.mxu0
  %v1120 = vadd.f32 0.0, %v1119
  %v1121 = vpop.f32.mrf.mxu0
  %v1122 = vpop.f32.mrf.mxu0
  %v1123 = vadd.f32 0.0, %v1122
  %v1124 = vpop.f32.mrf.mxu0
  %1125 = vmatprep.mubr.bf16.mxu0 %v622
  %1126 = vmatmul.mubr.bf16.gmra.mxu0 %v621
  %v1127 = vpop.f32.mrf.mxu0
  %v1128 = vadd.f32 0.0, %v1127
  %v1129 = vpop.f32.mrf.mxu0
  %v1130 = vpop.f32.mrf.mxu0
  %v1131 = vadd.f32 0.0, %v1130
  %v1132 = vpop.f32.mrf.mxu0
  %1133 = vmatprep.mubr.bf16.mxu0 %v626
  %1134 = vmatmul.mubr.bf16.gmra.mxu0 %v625
  %v1135 = vpop.f32.mrf.mxu0
  %v1136 = vadd.f32 0.0, %v1135
  %v1137 = vpop.f32.mrf.mxu0
  %v1138 = vpop.f32.mrf.mxu0
  %v1139 = vadd.f32 0.0, %v1138
  %v1140 = vpop.f32.mrf.mxu0
  %1141 = vmatprep.mubr.bf16.mxu0 %v630
  %1142 = vmatmul.mubr.bf16.gmra.mxu0 %v629
  %v1143 = vpop.f32.mrf.mxu0
  %v1144 = vadd.f32 0.0, %v1143
  %v1145 = vpop.f32.mrf.mxu0
  %v1146 = vpop.f32.mrf.mxu0
  %v1147 = vadd.f32 0.0, %v1146
  %v1148 = vpop.f32.mrf.mxu0
  %1149 = vmatprep.mubr.bf16.mxu0 %v634
  %1150 = vmatmul.mubr.bf16.gmra.mxu0 %v633
  %v1151 = vpop.f32.mrf.mxu0
  %v1152 = vadd.f32 0.0, %v1151
  %v1153 = vpop.f32.mrf.mxu0
  %v1154 = vpop.f32.mrf.mxu0
  %v1155 = vadd.f32 0.0, %v1154
  %v1156 = vpop.f32.mrf.mxu0
  %1157 = vmatprep.mubr.bf16.mxu0 %v638
  %1158 = vmatmul.mubr.bf16.gmra.mxu0 %v637
  %v1159 = vpop.f32.mrf.mxu0
  %v1160 = vadd.f32 0.0, %v1159
  %v1161 = vpop.f32.mrf.mxu0
  %v1162 = vpop.f32.mrf.mxu0
  %v1163 = vadd.f32 0.0, %v1162
  %v1164 = vpop.f32.mrf.mxu0
  %1165 = vmatprep.mubr.bf16.mxu0 %v642
  %1166 = vmatmul.mubr.bf16.gmra.mxu0 %v641
  %v1167 = vpop.f32.mrf.mxu0
  %v1168 = vadd.f32 0.0, %v1167
  %v1169 = vpop.f32.mrf.mxu0
  %v1170 = vpop.f32.mrf.mxu0
  %v1171 = vadd.f32 0.0, %v1170
  %v1172 = vpop.f32.mrf.mxu0
  %1173 = vmatprep.mubr.bf16.mxu0 %v646
  %1174 = vmatmul.mubr.bf16.gmra.mxu0 %v645
  %v1175 = vpop.f32.mrf.mxu0
  %v1176 = vadd.f32 0.0, %v1175
  %v1177 = vpop.f32.mrf.mxu0
  %v1178 = vpop.f32.mrf.mxu0
  %v1179 = vadd.f32 0.0, %v1178
  %v1180 = vpop.f32.mrf.mxu0
  %1181 = vmatprep.mubr.bf16.mxu0 %v650
  %1182 = vmatmul.mubr.bf16.gmra.mxu0 %v649
  %v1183 = vpop.f32.mrf.mxu0
  %v1184 = vadd.f32 0.0, %v1183
  %v1185 = vpop.f32.mrf.mxu0
  %v1186 = vpop.f32.mrf.mxu0
  %v1187 = vadd.f32 0.0, %v1186
  %v1188 = vpop.f32.mrf.mxu0
  %1189 = vmatprep.mubr.bf16.mxu0 %v654
  %1190 = vmatmul.mubr.bf16.gmra.mxu0 %v653
  %v1191 = vpop.f32.mrf.mxu0
  %v1192 = vadd.f32 0.0, %v1191
  %v1193 = vpop.f32.mrf.mxu0
  %v1194 = vpop.f32.mrf.mxu0
  %v1195 = vadd.f32 0.0, %v1194
  %v1196 = vpop.f32.mrf.mxu0
  %1197 = vmatprep.mubr.bf16.mxu0 %v658
  %1198 = vmatmul.mubr.bf16.gmra.mxu0 %v657
  %v1199 = vpop.f32.mrf.mxu0
  %v1200 = vadd.f32 0.0, %v1199
  %v1201 = vpop.f32.mrf.mxu0
  %v1202 = vpop.f32.mrf.mxu0
  %v1203 = vadd.f32 0.0, %v1202
  %v1204 = vpop.f32.mrf.mxu0
  %1205 = vmatprep.mubr.bf16.mxu0 %v662
  %1206 = vmatmul.mubr.bf16.gmra.mxu0 %v661
  %v1207 = vpop.f32.mrf.mxu0
  %v1208 = vadd.f32 0.0, %v1207
  %v1209 = vpop.f32.mrf.mxu0
  %v1210 = vpop.f32.mrf.mxu0
  %v1211 = vadd.f32 0.0, %v1210
  %v1212 = vpop.f32.mrf.mxu0
  %1213 = vmatprep.mubr.bf16.mxu0 %v666
  %1214 = vmatmul.mubr.bf16.gmra.mxu0 %v665
  %v1215 = vpop.f32.mrf.mxu0
  %v1216 = vadd.f32 0.0, %v1215
  %v1217 = vpop.f32.mrf.mxu0
  %v1218 = vpop.f32.mrf.mxu0
  %v1219 = vadd.f32 0.0, %v1218
  %v1220 = vpop.f32.mrf.mxu0
  %1221 = vmatprep.mubr.bf16.mxu0 %v670
  %1222 = vmatmul.mubr.bf16.gmra.mxu0 %v669
  %v1223 = vpop.f32.mrf.mxu0
  %v1224 = vadd.f32 0.0, %v1223
  %v1225 = vpop.f32.mrf.mxu0
  %v1226 = vpop.f32.mrf.mxu0
  %v1227 = vadd.f32 0.0, %v1226
  %v1228 = vpop.f32.mrf.mxu0
  %1229 = vmatprep.mubr.bf16.mxu0 %v674
  %1230 = vmatmul.mubr.bf16.gmra.mxu0 %v673
  %v1231 = vpop.f32.mrf.mxu0
  %v1232 = vadd.f32 0.0, %v1231
  %v1233 = vpop.f32.mrf.mxu0
  %v1234 = vpop.f32.mrf.mxu0
  %v1235 = vadd.f32 0.0, %v1234
  %v1236 = vpop.f32.mrf.mxu0
  %1237 = vmatprep.mubr.bf16.mxu0 %v678
  %1238 = vmatmul.mubr.bf16.gmra.mxu0 %v677
  %v1239 = vpop.f32.mrf.mxu0
  %v1240 = vadd.f32 0.0, %v1239
  %v1241 = vpop.f32.mrf.mxu0
  %v1242 = vpop.f32.mrf.mxu0
  %v1243 = vadd.f32 0.0, %v1242
  %v1244 = vpop.f32.mrf.mxu0
  %1245 = vmatprep.mubr.bf16.mxu0 %v682
  %1246 = vmatmul.mubr.bf16.gmra.mxu0 %v681
  %v1247 = vpop.f32.mrf.mxu0
  %v1248 = vadd.f32 0.0, %v1247
  %v1249 = vpop.f32.mrf.mxu0
  %v1250 = vpop.f32.mrf.mxu0
  %v1251 = vadd.f32 0.0, %v1250
  %v1252 = vpop.f32.mrf.mxu0
  %1253 = vmatprep.mubr.bf16.mxu0 %v686
  %1254 = vmatmul.mubr.bf16.gmra.mxu0 %v685
  %v1255 = vpop.f32.mrf.mxu0
  %v1256 = vadd.f32 0.0, %v1255
  %v1257 = vpop.f32.mrf.mxu0
  %v1258 = vpop.f32.mrf.mxu0
  %v1259 = vadd.f32 0.0, %v1258
  %v1260 = vpop.f32.mrf.mxu0
  %1261 = vmatprep.mubr.bf16.mxu0 %v690
  %1262 = vmatmul.mubr.bf16.gmra.mxu0 %v689
  %v1263 = vpop.f32.mrf.mxu0
  %v1264 = vadd.f32 0.0, %v1263
  %v1265 = vpop.f32.mrf.mxu0
  %v1266 = vpop.f32.mrf.mxu0
  %v1267 = vadd.f32 0.0, %v1266
  %v1268 = vpop.f32.mrf.mxu0
  %1269 = vmatprep.mubr.bf16.mxu0 %v694
  %1270 = vmatmul.mubr.bf16.gmra.mxu0 %v693
  %v1271 = vpop.f32.mrf.mxu0
  %v1272 = vadd.f32 0.0, %v1271
  %v1273 = vpop.f32.mrf.mxu0
  %v1274 = vpop.f32.mrf.mxu0
  %v1275 = vadd.f32 0.0, %v1274
  %v1276 = vpop.f32.mrf.mxu0
  %1277 = vmatprep.mubr.bf16.mxu0 %v698
  %1278 = vmatmul.mubr.bf16.gmra.mxu0 %v697
  %v1279 = vpop.f32.mrf.mxu0
  %v1280 = vadd.f32 0.0, %v1279
  %v1281 = vpop.f32.mrf.mxu0
  %v1282 = vpop.f32.mrf.mxu0
  %v1283 = vadd.f32 0.0, %v1282
  %v1284 = vpop.f32.mrf.mxu0
  %1285 = vmatprep.mubr.bf16.mxu0 %v702
  %1286 = vmatmul.mubr.bf16.gmra.mxu0 %v701
  %v1287 = vpop.f32.mrf.mxu0
  %v1288 = vadd.f32 0.0, %v1287
  %v1289 = vpop.f32.mrf.mxu0
  %v1290 = vpop.f32.mrf.mxu0
  %v1291 = vadd.f32 0.0, %v1290
  %v1292 = vpop.f32.mrf.mxu0
  %1293 = vmatprep.mubr.bf16.mxu0 %v706
  %1294 = vmatmul.mubr.bf16.gmra.mxu0 %v705
  %v1295 = vpop.f32.mrf.mxu0
  %v1296 = vadd.f32 0.0, %v1295
  %v1297 = vpop.f32.mrf.mxu0
  %v1298 = vpop.f32.mrf.mxu0
  %v1299 = vadd.f32 0.0, %v1298
  %v1300 = vpop.f32.mrf.mxu0
  %1301 = vmatprep.mubr.bf16.mxu0 %v710
  %1302 = vmatmul.mubr.bf16.gmra.mxu0 %v709
  %v1303 = vpop.f32.mrf.mxu0
  %v1304 = vadd.f32 0.0, %v1303
  %v1305 = vpop.f32.mrf.mxu0
  %v1306 = vpop.f32.mrf.mxu0
  %v1307 = vadd.f32 0.0, %v1306
  %v1308 = vpop.f32.mrf.mxu0
  %1309 = vmatprep.mubr.bf16.mxu0 %v714
  %1310 = vmatmul.mubr.bf16.gmra.mxu0 %v713
  %v1311 = vpop.f32.mrf.mxu0
  %v1312 = vadd.f32 0.0, %v1311
  %v1313 = vpop.f32.mrf.mxu0
  %v1314 = vpop.f32.mrf.mxu0
  %v1315 = vadd.f32 0.0, %v1314
  %v1316 = vpop.f32.mrf.mxu0
  %1317 = vmatprep.mubr.bf16.mxu0 %v718
  %1318 = vmatmul.mubr.bf16.gmra.mxu0 %v717
  %v1319 = vpop.f32.mrf.mxu0
  %v1320 = vadd.f32 0.0, %v1319
  %v1321 = vpop.f32.mrf.mxu0
  %v1322 = vpop.f32.mrf.mxu0
  %v1323 = vadd.f32 0.0, %v1322
  %v1324 = vpop.f32.mrf.mxu0
  %1325 = vmatprep.mubr.bf16.mxu0 %v722
  %1326 = vmatmul.mubr.bf16.gmra.mxu0 %v721
  %v1327 = vpop.f32.mrf.mxu0
  %v1328 = vadd.f32 0.0, %v1327
  %v1329 = vpop.f32.mrf.mxu0
  %v1330 = vpop.f32.mrf.mxu0
  %v1331 = vadd.f32 0.0, %v1330
  %v1332 = vpop.f32.mrf.mxu0
  %1333 = vdwg.mxu0
  %1334 = vmatprep.subr.bf16.mxu0 0
  %1335 = vmatpush1.bf16.msra.mxu0 %v1004
  %1336 = vmatprep.subr.bf16.mxu0 0
  %1337 = vmatpush1.bf16.msra.mxu0 %v1003
  %1338 = vmatprep.subr.bf16.mxu0 0
  %1339 = vmatpush1.bf16.msra.mxu0 %v1002
  %1340 = vmatprep.subr.bf16.mxu0 0
  %1341 = vmatpush1.bf16.msra.mxu0 %v1001
  %1342 = vmatprep.subr.bf16.mxu0 0
  %1343 = vmatpush1.bf16.msra.mxu0 %v1000
  %1344 = vmatprep.subr.bf16.mxu0 0
  %1345 = vmatpush1.bf16.msra.mxu0 %v999
  %1346 = vmatprep.subr.bf16.mxu0 0
  %1347 = vmatpush1.bf16.msra.mxu0 %v998
  %1348 = vmatprep.subr.bf16.mxu0 0
  %1349 = vmatpush1.bf16.msra.mxu0 %v997
  %1350 = vmatprep.subr.bf16.mxu0 0
  %1351 = vmatpush2.bf16.msra.mxu0 %v1012
  %1352 = vmatprep.subr.bf16.mxu0 0
  %1353 = vmatpush2.bf16.msra.mxu0 %v1011
  %1354 = vmatprep.subr.bf16.mxu0 0
  %1355 = vmatpush2.bf16.msra.mxu0 %v1010
  %1356 = vmatprep.subr.bf16.mxu0 0
  %1357 = vmatpush2.bf16.msra.mxu0 %v1009
  %1358 = vmatprep.subr.bf16.mxu0 0
  %1359 = vmatpush2.bf16.msra.mxu0 %v1008
  %1360 = vmatprep.subr.bf16.mxu0 0
  %1361 = vmatpush2.bf16.msra.mxu0 %v1007
  %1362 = vmatprep.subr.bf16.mxu0 0
  %1363 = vmatpush2.bf16.msra.mxu0 %v1006
  %1364 = vmatprep.subr.bf16.mxu0 0
  %1365 = vmatpush2.bf16.msra.mxu0 %v1005
  %1366 = vmatprep.mubr.bf16.mxu0 %v600
  %1367 = vmatmul.mubr.bf16.gmra.mxu0 %v599
  %v1368 = vpop.f32.mrf.mxu0
  %v1369 = vadd.f32 %v1080, %v1368
  %v1370 = vpop.f32.mrf.mxu0
  %v1371 = vpop.f32.mrf.mxu0
  %v1372 = vadd.f32 %v1083, %v1371
  %v1373 = vpop.f32.mrf.mxu0
  %1374 = vmatprep.mubr.bf16.mxu0 %v604
  %1375 = vmatmul.mubr.bf16.gmra.mxu0 %v603
  %v1376 = vpop.f32.mrf.mxu0
  %v1377 = vadd.f32 %v1088, %v1376
  %v1378 = vpop.f32.mrf.mxu0
  %v1379 = vpop.f32.mrf.mxu0
  %v1380 = vadd.f32 %v1091, %v1379
  %v1381 = vpop.f32.mrf.mxu0
  %1382 = vmatprep.mubr.bf16.mxu0 %v608
  %1383 = vmatmul.mubr.bf16.gmra.mxu0 %v607
  %v1384 = vpop.f32.mrf.mxu0
  %v1385 = vadd.f32 %v1096, %v1384
  %v1386 = vpop.f32.mrf.mxu0
  %v1387 = vpop.f32.mrf.mxu0
  %v1388 = vadd.f32 %v1099, %v1387
  %v1389 = vpop.f32.mrf.mxu0
  %1390 = vmatprep.mubr.bf16.mxu0 %v612
  %1391 = vmatmul.mubr.bf16.gmra.mxu0 %v611
  %v1392 = vpop.f32.mrf.mxu0
  %v1393 = vadd.f32 %v1104, %v1392
  %v1394 = vpop.f32.mrf.mxu0
  %v1395 = vpop.f32.mrf.mxu0
  %v1396 = vadd.f32 %v1107, %v1395
  %v1397 = vpop.f32.mrf.mxu0
  %1398 = vmatprep.mubr.bf16.mxu0 %v616
  %1399 = vmatmul.mubr.bf16.gmra.mxu0 %v615
  %v1400 = vpop.f32.mrf.mxu0
  %v1401 = vadd.f32 %v1112, %v1400
  %v1402 = vpop.f32.mrf.mxu0
  %v1403 = vpop.f32.mrf.mxu0
  %v1404 = vadd.f32 %v1115, %v1403
  %v1405 = vpop.f32.mrf.mxu0
  %1406 = vmatprep.mubr.bf16.mxu0 %v620
  %1407 = vmatmul.mubr.bf16.gmra.mxu0 %v619
  %v1408 = vpop.f32.mrf.mxu0
  %v1409 = vadd.f32 %v1120, %v1408
  %v1410 = vpop.f32.mrf.mxu0
  %v1411 = vpop.f32.mrf.mxu0
  %v1412 = vadd.f32 %v1123, %v1411
  %v1413 = vpop.f32.mrf.mxu0
  %1414 = vmatprep.mubr.bf16.mxu0 %v624
  %1415 = vmatmul.mubr.bf16.gmra.mxu0 %v623
  %v1416 = vpop.f32.mrf.mxu0
  %v1417 = vadd.f32 %v1128, %v1416
  %v1418 = vpop.f32.mrf.mxu0
  %v1419 = vpop.f32.mrf.mxu0
  %v1420 = vadd.f32 %v1131, %v1419
  %v1421 = vpop.f32.mrf.mxu0
  %1422 = vmatprep.mubr.bf16.mxu0 %v628
  %1423 = vmatmul.mubr.bf16.gmra.mxu0 %v627
  %v1424 = vpop.f32.mrf.mxu0
  %v1425 = vadd.f32 %v1136, %v1424
  %v1426 = vpop.f32.mrf.mxu0
  %v1427 = vpop.f32.mrf.mxu0
  %v1428 = vadd.f32 %v1139, %v1427
  %v1429 = vpop.f32.mrf.mxu0
  %1430 = vmatprep.mubr.bf16.mxu0 %v632
  %1431 = vmatmul.mubr.bf16.gmra.mxu0 %v631
  %v1432 = vpop.f32.mrf.mxu0
  %v1433 = vadd.f32 %v1144, %v1432
  %v1434 = vpop.f32.mrf.mxu0
  %v1435 = vpop.f32.mrf.mxu0
  %v1436 = vadd.f32 %v1147, %v1435
  %v1437 = vpop.f32.mrf.mxu0
  %1438 = vmatprep.mubr.bf16.mxu0 %v636
  %1439 = vmatmul.mubr.bf16.gmra.mxu0 %v635
  %v1440 = vpop.f32.mrf.mxu0
  %v1441 = vadd.f32 %v1152, %v1440
  %v1442 = vpop.f32.mrf.mxu0
  %v1443 = vpop.f32.mrf.mxu0
  %v1444 = vadd.f32 %v1155, %v1443
  %v1445 = vpop.f32.mrf.mxu0
  %1446 = vmatprep.mubr.bf16.mxu0 %v640
  %1447 = vmatmul.mubr.bf16.gmra.mxu0 %v639
  %v1448 = vpop.f32.mrf.mxu0
  %v1449 = vadd.f32 %v1160, %v1448
  %v1450 = vpop.f32.mrf.mxu0
  %v1451 = vpop.f32.mrf.mxu0
  %v1452 = vadd.f32 %v1163, %v1451
  %v1453 = vpop.f32.mrf.mxu0
  %1454 = vmatprep.mubr.bf16.mxu0 %v644
  %1455 = vmatmul.mubr.bf16.gmra.mxu0 %v643
  %v1456 = vpop.f32.mrf.mxu0
  %v1457 = vadd.f32 %v1168, %v1456
  %v1458 = vpop.f32.mrf.mxu0
  %v1459 = vpop.f32.mrf.mxu0
  %v1460 = vadd.f32 %v1171, %v1459
  %v1461 = vpop.f32.mrf.mxu0
  %1462 = vmatprep.mubr.bf16.mxu0 %v648
  %1463 = vmatmul.mubr.bf16.gmra.mxu0 %v647
  %v1464 = vpop.f32.mrf.mxu0
  %v1465 = vadd.f32 %v1176, %v1464
  %v1466 = vpop.f32.mrf.mxu0
  %v1467 = vpop.f32.mrf.mxu0
  %v1468 = vadd.f32 %v1179, %v1467
  %v1469 = vpop.f32.mrf.mxu0
  %1470 = vmatprep.mubr.bf16.mxu0 %v652
  %1471 = vmatmul.mubr.bf16.gmra.mxu0 %v651
  %v1472 = vpop.f32.mrf.mxu0
  %v1473 = vadd.f32 %v1184, %v1472
  %v1474 = vpop.f32.mrf.mxu0
  %v1475 = vpop.f32.mrf.mxu0
  %v1476 = vadd.f32 %v1187, %v1475
  %v1477 = vpop.f32.mrf.mxu0
  %1478 = vmatprep.mubr.bf16.mxu0 %v656
  %1479 = vmatmul.mubr.bf16.gmra.mxu0 %v655
  %v1480 = vpop.f32.mrf.mxu0
  %v1481 = vadd.f32 %v1192, %v1480
  %v1482 = vpop.f32.mrf.mxu0
  %v1483 = vpop.f32.mrf.mxu0
  %v1484 = vadd.f32 %v1195, %v1483
  %v1485 = vpop.f32.mrf.mxu0
  %1486 = vmatprep.mubr.bf16.mxu0 %v660
  %1487 = vmatmul.mubr.bf16.gmra.mxu0 %v659
  %v1488 = vpop.f32.mrf.mxu0
  %v1489 = vadd.f32 %v1200, %v1488
  %v1490 = vpop.f32.mrf.mxu0
  %v1491 = vpop.f32.mrf.mxu0
  %v1492 = vadd.f32 %v1203, %v1491
  %v1493 = vpop.f32.mrf.mxu0
  %1494 = vmatprep.mubr.bf16.mxu0 %v664
  %1495 = vmatmul.mubr.bf16.gmra.mxu0 %v663
  %v1496 = vpop.f32.mrf.mxu0
  %v1497 = vadd.f32 %v1208, %v1496
  %v1498 = vpop.f32.mrf.mxu0
  %v1499 = vpop.f32.mrf.mxu0
  %v1500 = vadd.f32 %v1211, %v1499
  %v1501 = vpop.f32.mrf.mxu0
  %1502 = vmatprep.mubr.bf16.mxu0 %v668
  %1503 = vmatmul.mubr.bf16.gmra.mxu0 %v667
  %v1504 = vpop.f32.mrf.mxu0
  %v1505 = vadd.f32 %v1216, %v1504
  %v1506 = vpop.f32.mrf.mxu0
  %v1507 = vpop.f32.mrf.mxu0
  %v1508 = vadd.f32 %v1219, %v1507
  %v1509 = vpop.f32.mrf.mxu0
  %1510 = vmatprep.mubr.bf16.mxu0 %v672
  %1511 = vmatmul.mubr.bf16.gmra.mxu0 %v671
  %v1512 = vpop.f32.mrf.mxu0
  %v1513 = vadd.f32 %v1224, %v1512
  %v1514 = vpop.f32.mrf.mxu0
  %v1515 = vpop.f32.mrf.mxu0
  %v1516 = vadd.f32 %v1227, %v1515
  %v1517 = vpop.f32.mrf.mxu0
  %1518 = vmatprep.mubr.bf16.mxu0 %v676
  %1519 = vmatmul.mubr.bf16.gmra.mxu0 %v675
  %v1520 = vpop.f32.mrf.mxu0
  %v1521 = vadd.f32 %v1232, %v1520
  %v1522 = vpop.f32.mrf.mxu0
  %v1523 = vpop.f32.mrf.mxu0
  %v1524 = vadd.f32 %v1235, %v1523
  %v1525 = vpop.f32.mrf.mxu0
  %1526 = vmatprep.mubr.bf16.mxu0 %v680
  %1527 = vmatmul.mubr.bf16.gmra.mxu0 %v679
  %v1528 = vpop.f32.mrf.mxu0
  %v1529 = vadd.f32 %v1240, %v1528
  %v1530 = vpop.f32.mrf.mxu0
  %v1531 = vpop.f32.mrf.mxu0
  %v1532 = vadd.f32 %v1243, %v1531
  %v1533 = vpop.f32.mrf.mxu0
  %1534 = vmatprep.mubr.bf16.mxu0 %v684
  %1535 = vmatmul.mubr.bf16.gmra.mxu0 %v683
  %v1536 = vpop.f32.mrf.mxu0
  %v1537 = vadd.f32 %v1248, %v1536
  %v1538 = vpop.f32.mrf.mxu0
  %v1539 = vpop.f32.mrf.mxu0
  %v1540 = vadd.f32 %v1251, %v1539
  %v1541 = vpop.f32.mrf.mxu0
  %1542 = vmatprep.mubr.bf16.mxu0 %v688
  %1543 = vmatmul.mubr.bf16.gmra.mxu0 %v687
  %v1544 = vpop.f32.mrf.mxu0
  %v1545 = vadd.f32 %v1256, %v1544
  %v1546 = vpop.f32.mrf.mxu0
  %v1547 = vpop.f32.mrf.mxu0
  %v1548 = vadd.f32 %v1259, %v1547
  %v1549 = vpop.f32.mrf.mxu0
  %1550 = vmatprep.mubr.bf16.mxu0 %v692
  %1551 = vmatmul.mubr.bf16.gmra.mxu0 %v691
  %v1552 = vpop.f32.mrf.mxu0
  %v1553 = vadd.f32 %v1264, %v1552
  %v1554 = vpop.f32.mrf.mxu0
  %v1555 = vpop.f32.mrf.mxu0
  %v1556 = vadd.f32 %v1267, %v1555
  %v1557 = vpop.f32.mrf.mxu0
  %1558 = vmatprep.mubr.bf16.mxu0 %v696
  %1559 = vmatmul.mubr.bf16.gmra.mxu0 %v695
  %v1560 = vpop.f32.mrf.mxu0
  %v1561 = vadd.f32 %v1272, %v1560
  %v1562 = vpop.f32.mrf.mxu0
  %v1563 = vpop.f32.mrf.mxu0
  %v1564 = vadd.f32 %v1275, %v1563
  %v1565 = vpop.f32.mrf.mxu0
  %1566 = vmatprep.mubr.bf16.mxu0 %v700
  %1567 = vmatmul.mubr.bf16.gmra.mxu0 %v699
  %v1568 = vpop.f32.mrf.mxu0
  %v1569 = vadd.f32 %v1280, %v1568
  %v1570 = vpop.f32.mrf.mxu0
  %v1571 = vpop.f32.mrf.mxu0
  %v1572 = vadd.f32 %v1283, %v1571
  %v1573 = vpop.f32.mrf.mxu0
  %1574 = vmatprep.mubr.bf16.mxu0 %v704
  %1575 = vmatmul.mubr.bf16.gmra.mxu0 %v703
  %v1576 = vpop.f32.mrf.mxu0
  %v1577 = vadd.f32 %v1288, %v1576
  %v1578 = vpop.f32.mrf.mxu0
  %v1579 = vpop.f32.mrf.mxu0
  %v1580 = vadd.f32 %v1291, %v1579
  %v1581 = vpop.f32.mrf.mxu0
  %1582 = vmatprep.mubr.bf16.mxu0 %v708
  %1583 = vmatmul.mubr.bf16.gmra.mxu0 %v707
  %v1584 = vpop.f32.mrf.mxu0
  %v1585 = vadd.f32 %v1296, %v1584
  %v1586 = vpop.f32.mrf.mxu0
  %v1587 = vpop.f32.mrf.mxu0
  %v1588 = vadd.f32 %v1299, %v1587
  %v1589 = vpop.f32.mrf.mxu0
  %1590 = vmatprep.mubr.bf16.mxu0 %v712
  %1591 = vmatmul.mubr.bf16.gmra.mxu0 %v711
  %v1592 = vpop.f32.mrf.mxu0
  %v1593 = vadd.f32 %v1304, %v1592
  %v1594 = vpop.f32.mrf.mxu0
  %v1595 = vpop.f32.mrf.mxu0
  %v1596 = vadd.f32 %v1307, %v1595
  %v1597 = vpop.f32.mrf.mxu0
  %1598 = vmatprep.mubr.bf16.mxu0 %v716
  %1599 = vmatmul.mubr.bf16.gmra.mxu0 %v715
  %v1600 = vpop.f32.mrf.mxu0
  %v1601 = vadd.f32 %v1312, %v1600
  %v1602 = vpop.f32.mrf.mxu0
  %v1603 = vpop.f32.mrf.mxu0
  %v1604 = vadd.f32 %v1315, %v1603
  %v1605 = vpop.f32.mrf.mxu0
  %1606 = vmatprep.mubr.bf16.mxu0 %v720
  %1607 = vmatmul.mubr.bf16.gmra.mxu0 %v719
  %v1608 = vpop.f32.mrf.mxu0
  %v1609 = vadd.f32 %v1320, %v1608
  %v1610 = vpop.f32.mrf.mxu0
  %v1611 = vpop.f32.mrf.mxu0
  %v1612 = vadd.f32 %v1323, %v1611
  %v1613 = vpop.f32.mrf.mxu0
  %1614 = vmatprep.mubr.bf16.mxu0 %v724
  %1615 = vmatmul.mubr.bf16.gmra.mxu0 %v723
  %v1616 = vpop.f32.mrf.mxu0
  %v1617 = vadd.f32 %v1328, %v1616
  %v1618 = vpop.f32.mrf.mxu0
  %v1619 = vpop.f32.mrf.mxu0
  %v1620 = vadd.f32 %v1331, %v1619
  %v1621 = vpop.f32.mrf.mxu0
  %1622 = vdwg.mxu0
  %v1623 = vmax.f32 %v1369, %v1433
  %v1624 = vmax.f32 %v1372, %v1436
  %v1625 = vmax.f32 %v1377, %v1441
  %v1626 = vmax.f32 %v1380, %v1444
  %v1627 = vmax.f32 %v1385, %v1449
  %v1628 = vmax.f32 %v1388, %v1452
  %v1629 = vmax.f32 %v1393, %v1457
  %v1630 = vmax.f32 %v1396, %v1460
  %v1631 = vmax.f32 %v1401, %v1465
  %v1632 = vmax.f32 %v1404, %v1468
  %v1633 = vmax.f32 %v1409, %v1473
  %v1634 = vmax.f32 %v1412, %v1476
  %v1635 = vmax.f32 %v1417, %v1481
  %v1636 = vmax.f32 %v1420, %v1484
  %v1637 = vmax.f32 %v1425, %v1489
  %v1638 = vmax.f32 %v1428, %v1492
  %v1639 = vmax.f32 %v1497, %v1561
  %v1640 = vmax.f32 %v1500, %v1564
  %v1641 = vmax.f32 %v1505, %v1569
  %v1642 = vmax.f32 %v1508, %v1572
  %v1643 = vmax.f32 %v1513, %v1577
  %v1644 = vmax.f32 %v1516, %v1580
  %v1645 = vmax.f32 %v1521, %v1585
  %v1646 = vmax.f32 %v1524, %v1588
  %v1647 = vmax.f32 %v1529, %v1593
  %v1648 = vmax.f32 %v1532, %v1596
  %v1649 = vmax.f32 %v1537, %v1601
  %v1650 = vmax.f32 %v1540, %v1604
  %v1651 = vmax.f32 %v1545, %v1609
  %v1652 = vmax.f32 %v1548, %v1612
  %v1653 = vmax.f32 %v1553, %v1617
  %v1654 = vmax.f32 %v1556, %v1620
  %v1655 = vmax.f32 %v1623, %v1639
  %v1656 = vmax.f32 %v1624, %v1640
  %v1657 = vmax.f32 %v1625, %v1641
  %v1658 = vmax.f32 %v1626, %v1642
  %v1659 = vmax.f32 %v1627, %v1643
  %v1660 = vmax.f32 %v1628, %v1644
  %v1661 = vmax.f32 %v1629, %v1645
  %v1662 = vmax.f32 %v1630, %v1646
  %v1663 = vmax.f32 %v1631, %v1647
  %v1664 = vmax.f32 %v1632, %v1648
  %v1665 = vmax.f32 %v1633, %v1649
  %v1666 = vmax.f32 %v1634, %v1650
  %v1667 = vmax.f32 %v1635, %v1651
  %v1668 = vmax.f32 %v1636, %v1652
  %v1669 = vmax.f32 %v1637, %v1653
  %v1670 = vmax.f32 %v1638, %v1654
  %v1671 = vld [vmem:[%s2] sm:$0x1]
  %v1673 = vlaneseq
  %v1674 = vshrl.u32 %v1673, 7
  %v1675 = vsub.s32 0, %v1674
  %v1676 = vrot.slane %v1671, %v1675
  %v1678 = vadd.f32 %v1655, %v1676
  %v1679 = vadd.f32 %v1656, %v1676
  %v1680 = vadd.f32 %v1657, %v1676
  %v1681 = vadd.f32 %v1658, %v1676
  %v1682 = vadd.f32 %v1659, %v1676
  %v1683 = vadd.f32 %v1660, %v1676
  %v1684 = vadd.f32 %v1661, %v1676
  %v1685 = vadd.f32 %v1662, %v1676
  %v1686 = vadd.f32 %v1663, %v1676
  %v1687 = vadd.f32 %v1664, %v1676
  %v1688 = vadd.f32 %v1665, %v1676
  %v1689 = vadd.f32 %v1666, %v1676
  %v1690 = vadd.f32 %v1667, %v1676
  %v1691 = vadd.f32 %v1668, %v1676
  %v1692 = vadd.f32 %v1669, %v1676
  %v1693 = vadd.f32 %v1670, %v1676
  %v1694 = vmax.f32 %v1678, 0.0
  %v1695 = vmax.f32 %v1679, 0.0
  %v1696 = vmax.f32 %v1680, 0.0
  %v1697 = vmax.f32 %v1681, 0.0
  %v1698 = vmax.f32 %v1682, 0.0
  %v1699 = vmax.f32 %v1683, 0.0
  %v1700 = vmax.f32 %v1684, 0.0
  %v1701 = vmax.f32 %v1685, 0.0
  %v1702 = vmax.f32 %v1686, 0.0
  %v1703 = vmax.f32 %v1687, 0.0
  %v1704 = vmax.f32 %v1688, 0.0
  %v1705 = vmax.f32 %v1689, 0.0
  %v1706 = vmax.f32 %v1690, 0.0
  %v1707 = vmax.f32 %v1691, 0.0
  %v1708 = vmax.f32 %v1692, 0.0
  %v1709 = vmax.f32 %v1693, 0.0
  %v1710 = vld [vmem:[%s3] sm:$0x1]
  %v1712 = vlaneseq
  %v1713 = vshrl.u32 %v1712, 7
  %v1714 = vsub.s32 0, %v1713
  %v1715 = vrot.slane %v1710, %v1714
  %v1717 = vmul.f32 %v1694, %v1715
  %v1718 = vmul.f32 %v1695, %v1715
  %v1719 = vmul.f32 %v1696, %v1715
  %v1720 = vmul.f32 %v1697, %v1715
  %v1721 = vmul.f32 %v1698, %v1715
  %v1722 = vmul.f32 %v1699, %v1715
  %v1723 = vmul.f32 %v1700, %v1715
  %v1724 = vmul.f32 %v1701, %v1715
  %v1725 = vmul.f32 %v1702, %v1715
  %v1726 = vmul.f32 %v1703, %v1715
  %v1727 = vmul.f32 %v1704, %v1715
  %v1728 = vmul.f32 %v1705, %v1715
  %v1729 = vmul.f32 %v1706, %v1715
  %v1730 = vmul.f32 %v1707, %v1715
  %v1731 = vmul.f32 %v1708, %v1715
  %v1732 = vmul.f32 %v1709, %v1715
  %v1733 = vld [vmem:[%s4] sm:$0x1]
  %v1735 = vlaneseq
  %v1736 = vshrl.u32 %v1735, 7
  %v1737 = vsub.s32 0, %v1736
  %v1738 = vrot.slane %v1733, %v1737
  %v1740 = vadd.f32 %v1717, %v1738
  %v1741 = vadd.f32 %v1718, %v1738
  %v1742 = vadd.f32 %v1719, %v1738
  %v1743 = vadd.f32 %v1720, %v1738
  %v1744 = vadd.f32 %v1721, %v1738
  %v1745 = vadd.f32 %v1722, %v1738
  %v1746 = vadd.f32 %v1723, %v1738
  %v1747 = vadd.f32 %v1724, %v1738
  %v1748 = vadd.f32 %v1725, %v1738
  %v1749 = vadd.f32 %v1726, %v1738
  %v1750 = vadd.f32 %v1727, %v1738
  %v1751 = vadd.f32 %v1728, %v1738
  %v1752 = vadd.f32 %v1729, %v1738
  %v1753 = vadd.f32 %v1730, %v1738
  %v1754 = vadd.f32 %v1731, %v1738
  %v1755 = vadd.f32 %v1732, %v1738
  %v1756 = vpack.c.bf16 %v1741, %v1740
  %v1757 = vpack.c.bf16 %v1743, %v1742
  %v1758 = vpack.c.bf16 %v1745, %v1744
  %v1759 = vpack.c.bf16 %v1747, %v1746
  %v1760 = vpack.c.bf16 %v1749, %v1748
  %v1761 = vpack.c.bf16 %v1751, %v1750
  %v1762 = vpack.c.bf16 %v1753, %v1752
  %v1763 = vpack.c.bf16 %v1755, %v1754
  %v1772 = vunpack.c.l.b16 %v1756
  %v1773 = vunpack.c.h.b16 %v1756
  %v1774 = vunpack.c.l.b16 %v1757
  %v1775 = vunpack.c.h.b16 %v1757
  %v1776 = vunpack.c.l.b16 %v1758
  %v1777 = vunpack.c.h.b16 %v1758
  %v1778 = vunpack.c.l.b16 %v1759
  %v1779 = vunpack.c.h.b16 %v1759
  %v1780 = vunpack.c.l.b16 %v1760
  %v1781 = vunpack.c.h.b16 %v1760
  %v1782 = vunpack.c.l.b16 %v1761
  %v1783 = vunpack.c.h.b16 %v1761
  %v1784 = vunpack.c.l.b16 %v1762
  %v1785 = vunpack.c.h.b16 %v1762
  %v1786 = vunpack.c.l.b16 %v1763
  %v1787 = vunpack.c.h.b16 %v1763
  %v1788 = vpack.c.b16 %v1772, %v1772
  %v1789 = vpack.c.b16 %v1773, %v1773
  %v1790 = vpack.c.b16 %v1774, %v1774
  %v1791 = vpack.c.b16 %v1775, %v1775
  %v1792 = vpack.c.b16 %v1776, %v1776
  %v1793 = vpack.c.b16 %v1777, %v1777
  %v1794 = vpack.c.b16 %v1778, %v1778
  %v1795 = vpack.c.b16 %v1779, %v1779
  %v1796 = vpack.c.b16 %v1780, %v1780
  %v1797 = vpack.c.b16 %v1781, %v1781
  %v1798 = vpack.c.b16 %v1782, %v1782
  %v1799 = vpack.c.b16 %v1783, %v1783
  %v1800 = vpack.c.b16 %v1784, %v1784
  %v1801 = vpack.c.b16 %v1785, %v1785
  %v1802 = vpack.c.b16 %v1786, %v1786
  %v1803 = vpack.c.b16 %v1787, %v1787
  %vm1820 = vcmask 519168
  %1821 = vst.msk [vmem:[%s5] sm:$0xf] %vm1820, %v1788
  %1822 = vst.msk [vmem:[%s5 + $0x4] sm:$0xf] %vm1820, %v1789
  %1823 = vst.msk [vmem:[%s5 + $0x8] sm:$0xf] %vm1820, %v1790
  %1824 = vst.msk [vmem:[%s5 + $0xc] sm:$0xf] %vm1820, %v1791
  %1825 = vst.msk [vmem:[%s5 + $0x10] sm:$0xf] %vm1820, %v1792
  %1826 = vst.msk [vmem:[%s5 + $0x14] sm:$0xf] %vm1820, %v1793
  %1827 = vst.msk [vmem:[%s5 + $0x18] sm:$0xf] %vm1820, %v1794
  %1828 = vst.msk [vmem:[%s5 + $0x1c] sm:$0xf] %vm1820, %v1795
  %1829 = vst.msk [vmem:[%s5 + $0x20] sm:$0xf] %vm1820, %v1796
  %1830 = vst.msk [vmem:[%s5 + $0x24] sm:$0xf] %vm1820, %v1797
  %1831 = vst.msk [vmem:[%s5 + $0x28] sm:$0xf] %vm1820, %v1798
  %1832 = vst.msk [vmem:[%s5 + $0x2c] sm:$0xf] %vm1820, %v1799
  %1833 = vst.msk [vmem:[%s5 + $0x30] sm:$0xf] %vm1820, %v1800
  %1834 = vst.msk [vmem:[%s5 + $0x34] sm:$0xf] %vm1820, %v1801
  %1835 = vst.msk [vmem:[%s5 + $0x38] sm:$0xf] %vm1820, %v1802
  %1836 = vst.msk [vmem:[%s5 + $0x3c] sm:$0xf] %vm1820, %v1803
  // Predicated region
  $region22: #{m_csgnet_forward.7} parent=0 // pred_check
    _
  $region23: #{m_csgnet_forward.7} parent=0 // pred_check_branch
    %1838 = sbr.rel (0) target = $region25
  $region24: #{m_csgnet_forward.7} parent=0 // pred_region
    _
  $region25: #{m_csgnet_forward.7} parent=0 // pred_fallthru
    _
  // Predicated region
  $region26: #{m_csgnet_forward.7} parent=0 // pred_check
    _
  $region27: #{m_csgnet_forward.7} parent=0 // pred_check_branch
    %1840 = sbr.rel (0) target = $region29
  $region28: #{m_csgnet_forward.7} parent=0 // pred_region
    _
  $region29: #{m_csgnet_forward.7} parent=0 // pred_fallthru
    _

// kernel: m_csgnet_forward.8
$region0: #{m_csgnet_forward.8}
  #allocation0 [shape = 'u32[]', space=smem, size = 0x4, offset = 0x4, fixed_abs, tag = 'smem constant byte address 0x4 - core index']
  #allocation1 [shape = 'u32[144,128]{1,0:T(1,128)}', space=vmem, size = 0x12000, scoped, tag = 'internal scratch']
  %s0 = inlined_call_operand.vmem [shape: bf16[128,1024], index: 0, kind: input, shape index: {}]
  %s1 = inlined_call_operand.vmem [shape: bf16[1024,128], index: 1, kind: input, shape index: {}]
  %s2 = inlined_call_operand.vmem [shape: f32[1,128], index: 2, kind: input, shape index: {}]
  %s3 = inlined_call_operand.vmem [shape: f32[1,128], index: 3, kind: input, shape index: {}]
  %s4 = inlined_call_operand.vmem [shape: f32[1,128], index: 4, kind: input, shape index: {}]
  %s5 = inlined_call_operand.vmem [shape: bf16[32,128], index: 5, kind: output, shape index: {}]
  %s6 = sld [smem:[#allocation0]]
  $region30: #{m_csgnet_forward.8} parent=0
    _
  %s8 = ssub.s32 1, %s6
  %s9 = scalar_select 0, %s8, %s6
  // Predicated region
  $region2: #{m_csgnet_forward.8} parent=0 // pred_check
    _
  $region3: #{m_csgnet_forward.8} parent=0 // pred_check_branch
    %11 = sbr.rel (0) target = $region5
  $region4: #{m_csgnet_forward.8} parent=0 // pred_region
    _
  $region5: #{m_csgnet_forward.8} parent=0 // pred_fallthru
    _
  // Predicated region
  $region6: #{m_csgnet_forward.8} parent=0 // pred_check
    _
  $region7: #{m_csgnet_forward.8} parent=0 // pred_check_branch
    %13 = sbr.rel (0) target = $region9
  $region8: #{m_csgnet_forward.8} parent=0 // pred_region
    _
  $region9: #{m_csgnet_forward.8} parent=0 // pred_fallthru
    _
  // Predicated region
  $region10: #{m_csgnet_forward.8} parent=0 // pred_check
    _
  $region11: #{m_csgnet_forward.8} parent=0 // pred_check_branch
    %15 = sbr.rel (0) target = $region13
  $region12: #{m_csgnet_forward.8} parent=0 // pred_region
    _
  $region13: #{m_csgnet_forward.8} parent=0 // pred_fallthru
    _
  // Predicated region
  $region14: #{m_csgnet_forward.8} parent=0 // pred_check
    _
  $region15: #{m_csgnet_forward.8} parent=0 // pred_check_branch
    %17 = sbr.rel (0) target = $region17
  $region16: #{m_csgnet_forward.8} parent=0 // pred_region
    _
  $region17: #{m_csgnet_forward.8} parent=0 // pred_fallthru
    _
  // Predicated region
  $region18: #{m_csgnet_forward.8} parent=0 // pred_check
    _
  $region19: #{m_csgnet_forward.8} parent=0 // pred_check_branch
    %19 = sbr.rel (0) target = $region21
  $region20: #{m_csgnet_forward.8} parent=0 // pred_region
    _
  $region21: #{m_csgnet_forward.8} parent=0 // pred_fallthru
    _
  %v21 = vld [vmem:[%s0] sm:$0xff]
  %v22 = vld [vmem:[%s0 + $0x8] sm:$0xff]
  %v23 = vld [vmem:[%s0 + $0x10] sm:$0xff]
  %v24 = vld [vmem:[%s0 + $0x18] sm:$0xff]
  %v25 = vld [vmem:[%s0 + $0x20] sm:$0xff]
  %v26 = vld [vmem:[%s0 + $0x28] sm:$0xff]
  %v27 = vld [vmem:[%s0 + $0x30] sm:$0xff]
  %v28 = vld [vmem:[%s0 + $0x38] sm:$0xff]
  %v29 = vld [vmem:[%s0 + $0x40] sm:$0xff]
  %v30 = vld [vmem:[%s0 + $0x48] sm:$0xff]
  %v31 = vld [vmem:[%s0 + $0x50] sm:$0xff]
  %v32 = vld [vmem:[%s0 + $0x58] sm:$0xff]
  %v33 = vld [vmem:[%s0 + $0x60] sm:$0xff]
  %v34 = vld [vmem:[%s0 + $0x68] sm:$0xff]
  %v35 = vld [vmem:[%s0 + $0x70] sm:$0xff]
  %v36 = vld [vmem:[%s0 + $0x78] sm:$0xff]
  %v37 = vld [vmem:[%s0 + $0x80] sm:$0xff]
  %v38 = vld [vmem:[%s0 + $0x88] sm:$0xff]
  %v39 = vld [vmem:[%s0 + $0x90] sm:$0xff]
  %v40 = vld [vmem:[%s0 + $0x98] sm:$0xff]
  %v41 = vld [vmem:[%s0 + $0xa0] sm:$0xff]
  %v42 = vld [vmem:[%s0 + $0xa8] sm:$0xff]
  %v43 = vld [vmem:[%s0 + $0xb0] sm:$0xff]
  %v44 = vld [vmem:[%s0 + $0xb8] sm:$0xff]
  %v45 = vld [vmem:[%s0 + $0xc0] sm:$0xff]
  %v46 = vld [vmem:[%s0 + $0xc8] sm:$0xff]
  %v47 = vld [vmem:[%s0 + $0xd0] sm:$0xff]
  %v48 = vld [vmem:[%s0 + $0xd8] sm:$0xff]
  %v49 = vld [vmem:[%s0 + $0xe0] sm:$0xff]
  %v50 = vld [vmem:[%s0 + $0xe8] sm:$0xff]
  %v51 = vld [vmem:[%s0 + $0xf0] sm:$0xff]
  %v52 = vld [vmem:[%s0 + $0xf8] sm:$0xff]
  %v53 = vld [vmem:[%s0 + $0x100] sm:$0xff]
  %v54 = vld [vmem:[%s0 + $0x108] sm:$0xff]
  %v55 = vld [vmem:[%s0 + $0x110] sm:$0xff]
  %v56 = vld [vmem:[%s0 + $0x118] sm:$0xff]
  %v57 = vld [vmem:[%s0 + $0x120] sm:$0xff]
  %v58 = vld [vmem:[%s0 + $0x128] sm:$0xff]
  %v59 = vld [vmem:[%s0 + $0x130] sm:$0xff]
  %v60 = vld [vmem:[%s0 + $0x138] sm:$0xff]
  %v61 = vld [vmem:[%s0 + $0x140] sm:$0xff]
  %v62 = vld [vmem:[%s0 + $0x148] sm:$0xff]
  %v63 = vld [vmem:[%s0 + $0x150] sm:$0xff]
  %v64 = vld [vmem:[%s0 + $0x158] sm:$0xff]
  %v65 = vld [vmem:[%s0 + $0x160] sm:$0xff]
  %v66 = vld [vmem:[%s0 + $0x168] sm:$0xff]
  %v67 = vld [vmem:[%s0 + $0x170] sm:$0xff]
  %v68 = vld [vmem:[%s0 + $0x178] sm:$0xff]
  %v69 = vld [vmem:[%s0 + $0x180] sm:$0xff]
  %v70 = vld [vmem:[%s0 + $0x188] sm:$0xff]
  %v71 = vld [vmem:[%s0 + $0x190] sm:$0xff]
  %v72 = vld [vmem:[%s0 + $0x198] sm:$0xff]
  %v73 = vld [vmem:[%s0 + $0x1a0] sm:$0xff]
  %v74 = vld [vmem:[%s0 + $0x1a8] sm:$0xff]
  %v75 = vld [vmem:[%s0 + $0x1b0] sm:$0xff]
  %v76 = vld [vmem:[%s0 + $0x1b8] sm:$0xff]
  %v77 = vld [vmem:[%s0 + $0x1c0] sm:$0xff]
  %v78 = vld [vmem:[%s0 + $0x1c8] sm:$0xff]
  %v79 = vld [vmem:[%s0 + $0x1d0] sm:$0xff]
  %v80 = vld [vmem:[%s0 + $0x1d8] sm:$0xff]
  %v81 = vld [vmem:[%s0 + $0x1e0] sm:$0xff]
  %v82 = vld [vmem:[%s0 + $0x1e8] sm:$0xff]
  %v83 = vld [vmem:[%s0 + $0x1f0] sm:$0xff]
  %v84 = vld [vmem:[%s0 + $0x1f8] sm:$0xff]
  %v85 = vld [vmem:[%s1] sm:$0xf]
  %v86 = vld [vmem:[%s1 + $0x4] sm:$0xf]
  %v87 = vld [vmem:[%s1 + $0x8] sm:$0xf]
  %v88 = vld [vmem:[%s1 + $0xc] sm:$0xf]
  %v89 = vld [vmem:[%s1 + $0x10] sm:$0xf]
  %v90 = vld [vmem:[%s1 + $0x14] sm:$0xf]
  %v91 = vld [vmem:[%s1 + $0x18] sm:$0xf]
  %v92 = vld [vmem:[%s1 + $0x1c] sm:$0xf]
  %v93 = vld [vmem:[%s1 + $0x20] sm:$0xf]
  %v94 = vld [vmem:[%s1 + $0x24] sm:$0xf]
  %v95 = vld [vmem:[%s1 + $0x28] sm:$0xf]
  %v96 = vld [vmem:[%s1 + $0x2c] sm:$0xf]
  %v97 = vld [vmem:[%s1 + $0x30] sm:$0xf]
  %v98 = vld [vmem:[%s1 + $0x34] sm:$0xf]
  %v99 = vld [vmem:[%s1 + $0x38] sm:$0xf]
  %v100 = vld [vmem:[%s1 + $0x3c] sm:$0xf]
  %v101 = vld [vmem:[%s1 + $0x40] sm:$0xf]
  %v102 = vld [vmem:[%s1 + $0x44] sm:$0xf]
  %v103 = vld [vmem:[%s1 + $0x48] sm:$0xf]
  %v104 = vld [vmem:[%s1 + $0x4c] sm:$0xf]
  %v105 = vld [vmem:[%s1 + $0x50] sm:$0xf]
  %v106 = vld [vmem:[%s1 + $0x54] sm:$0xf]
  %v107 = vld [vmem:[%s1 + $0x58] sm:$0xf]
  %v108 = vld [vmem:[%s1 + $0x5c] sm:$0xf]
  %v109 = vld [vmem:[%s1 + $0x60] sm:$0xf]
  %v110 = vld [vmem:[%s1 + $0x64] sm:$0xf]
  %v111 = vld [vmem:[%s1 + $0x68] sm:$0xf]
  %v112 = vld [vmem:[%s1 + $0x6c] sm:$0xf]
  %v113 = vld [vmem:[%s1 + $0x70] sm:$0xf]
  %v114 = vld [vmem:[%s1 + $0x74] sm:$0xf]
  %v115 = vld [vmem:[%s1 + $0x78] sm:$0xf]
  %v116 = vld [vmem:[%s1 + $0x7c] sm:$0xf]
  %v117 = vld [vmem:[%s1 + $0x80] sm:$0xf]
  %v118 = vld [vmem:[%s1 + $0x84] sm:$0xf]
  %v119 = vld [vmem:[%s1 + $0x88] sm:$0xf]
  %v120 = vld [vmem:[%s1 + $0x8c] sm:$0xf]
  %v121 = vld [vmem:[%s1 + $0x90] sm:$0xf]
  %v122 = vld [vmem:[%s1 + $0x94] sm:$0xf]
  %v123 = vld [vmem:[%s1 + $0x98] sm:$0xf]
  %v124 = vld [vmem:[%s1 + $0x9c] sm:$0xf]
  %v125 = vld [vmem:[%s1 + $0xa0] sm:$0xf]
  %v126 = vld [vmem:[%s1 + $0xa4] sm:$0xf]
  %v127 = vld [vmem:[%s1 + $0xa8] sm:$0xf]
  %v128 = vld [vmem:[%s1 + $0xac] sm:$0xf]
  %v129 = vld [vmem:[%s1 + $0xb0] sm:$0xf]
  %v130 = vld [vmem:[%s1 + $0xb4] sm:$0xf]
  %v131 = vld [vmem:[%s1 + $0xb8] sm:$0xf]
  %v132 = vld [vmem:[%s1 + $0xbc] sm:$0xf]
  %v133 = vld [vmem:[%s1 + $0xc0] sm:$0xf]
  %v134 = vld [vmem:[%s1 + $0xc4] sm:$0xf]
  %v135 = vld [vmem:[%s1 + $0xc8] sm:$0xf]
  %v136 = vld [vmem:[%s1 + $0xcc] sm:$0xf]
  %v137 = vld [vmem:[%s1 + $0xd0] sm:$0xf]
  %v138 = vld [vmem:[%s1 + $0xd4] sm:$0xf]
  %v139 = vld [vmem:[%s1 + $0xd8] sm:$0xf]
  %v140 = vld [vmem:[%s1 + $0xdc] sm:$0xf]
  %v141 = vld [vmem:[%s1 + $0xe0] sm:$0xf]
  %v142 = vld [vmem:[%s1 + $0xe4] sm:$0xf]
  %v143 = vld [vmem:[%s1 + $0xe8] sm:$0xf]
  %v144 = vld [vmem:[%s1 + $0xec] sm:$0xf]
  %v145 = vld [vmem:[%s1 + $0xf0] sm:$0xf]
  %v146 = vld [vmem:[%s1 + $0xf4] sm:$0xf]
  %v147 = vld [vmem:[%s1 + $0xf8] sm:$0xf]
  %v148 = vld [vmem:[%s1 + $0xfc] sm:$0xf]
  %v149 = vld [vmem:[%s1 + $0x100] sm:$0xf]
  %v150 = vld [vmem:[%s1 + $0x104] sm:$0xf]
  %v151 = vld [vmem:[%s1 + $0x108] sm:$0xf]
  %v152 = vld [vmem:[%s1 + $0x10c] sm:$0xf]
  %v153 = vld [vmem:[%s1 + $0x110] sm:$0xf]
  %v154 = vld [vmem:[%s1 + $0x114] sm:$0xf]
  %v155 = vld [vmem:[%s1 + $0x118] sm:$0xf]
  %v156 = vld [vmem:[%s1 + $0x11c] sm:$0xf]
  %v157 = vld [vmem:[%s1 + $0x120] sm:$0xf]
  %v158 = vld [vmem:[%s1 + $0x124] sm:$0xf]
  %v159 = vld [vmem:[%s1 + $0x128] sm:$0xf]
  %v160 = vld [vmem:[%s1 + $0x12c] sm:$0xf]
  %v161 = vld [vmem:[%s1 + $0x130] sm:$0xf]
  %v162 = vld [vmem:[%s1 + $0x134] sm:$0xf]
  %v163 = vld [vmem:[%s1 + $0x138] sm:$0xf]
  %v164 = vld [vmem:[%s1 + $0x13c] sm:$0xf]
  %v165 = vld [vmem:[%s1 + $0x140] sm:$0xf]
  %v166 = vld [vmem:[%s1 + $0x144] sm:$0xf]
  %v167 = vld [vmem:[%s1 + $0x148] sm:$0xf]
  %v168 = vld [vmem:[%s1 + $0x14c] sm:$0xf]
  %v169 = vld [vmem:[%s1 + $0x150] sm:$0xf]
  %v170 = vld [vmem:[%s1 + $0x154] sm:$0xf]
  %v171 = vld [vmem:[%s1 + $0x158] sm:$0xf]
  %v172 = vld [vmem:[%s1 + $0x15c] sm:$0xf]
  %v173 = vld [vmem:[%s1 + $0x160] sm:$0xf]
  %v174 = vld [vmem:[%s1 + $0x164] sm:$0xf]
  %v175 = vld [vmem:[%s1 + $0x168] sm:$0xf]
  %v176 = vld [vmem:[%s1 + $0x16c] sm:$0xf]
  %v177 = vld [vmem:[%s1 + $0x170] sm:$0xf]
  %v178 = vld [vmem:[%s1 + $0x174] sm:$0xf]
  %v179 = vld [vmem:[%s1 + $0x178] sm:$0xf]
  %v180 = vld [vmem:[%s1 + $0x17c] sm:$0xf]
  %v181 = vld [vmem:[%s1 + $0x180] sm:$0xf]
  %v182 = vld [vmem:[%s1 + $0x184] sm:$0xf]
  %v183 = vld [vmem:[%s1 + $0x188] sm:$0xf]
  %v184 = vld [vmem:[%s1 + $0x18c] sm:$0xf]
  %v185 = vld [vmem:[%s1 + $0x190] sm:$0xf]
  %v186 = vld [vmem:[%s1 + $0x194] sm:$0xf]
  %v187 = vld [vmem:[%s1 + $0x198] sm:$0xf]
  %v188 = vld [vmem:[%s1 + $0x19c] sm:$0xf]
  %v189 = vld [vmem:[%s1 + $0x1a0] sm:$0xf]
  %v190 = vld [vmem:[%s1 + $0x1a4] sm:$0xf]
  %v191 = vld [vmem:[%s1 + $0x1a8] sm:$0xf]
  %v192 = vld [vmem:[%s1 + $0x1ac] sm:$0xf]
  %v193 = vld [vmem:[%s1 + $0x1b0] sm:$0xf]
  %v194 = vld [vmem:[%s1 + $0x1b4] sm:$0xf]
  %v195 = vld [vmem:[%s1 + $0x1b8] sm:$0xf]
  %v196 = vld [vmem:[%s1 + $0x1bc] sm:$0xf]
  %v197 = vld [vmem:[%s1 + $0x1c0] sm:$0xf]
  %v198 = vld [vmem:[%s1 + $0x1c4] sm:$0xf]
  %v199 = vld [vmem:[%s1 + $0x1c8] sm:$0xf]
  %v200 = vld [vmem:[%s1 + $0x1cc] sm:$0xf]
  %v201 = vld [vmem:[%s1 + $0x1d0] sm:$0xf]
  %v202 = vld [vmem:[%s1 + $0x1d4] sm:$0xf]
  %v203 = vld [vmem:[%s1 + $0x1d8] sm:$0xf]
  %v204 = vld [vmem:[%s1 + $0x1dc] sm:$0xf]
  %v205 = vld [vmem:[%s1 + $0x1e0] sm:$0xf]
  %v206 = vld [vmem:[%s1 + $0x1e4] sm:$0xf]
  %v207 = vld [vmem:[%s1 + $0x1e8] sm:$0xf]
  %v208 = vld [vmem:[%s1 + $0x1ec] sm:$0xf]
  %v209 = vld [vmem:[%s1 + $0x1f0] sm:$0xf]
  %v210 = vld [vmem:[%s1 + $0x1f4] sm:$0xf]
  %v211 = vld [vmem:[%s1 + $0x1f8] sm:$0xf]
  %v212 = vld [vmem:[%s1 + $0x1fc] sm:$0xf]
  %v277 = vunpack.c.l.b16 %v21
  %v278 = vunpack.c.h.b16 %v21
  %v279 = vunpack.c.l.b16 %v22
  %v280 = vunpack.c.h.b16 %v22
  %v281 = vunpack.c.l.b16 %v23
  %v282 = vunpack.c.h.b16 %v23
  %v283 = vunpack.c.l.b16 %v24
  %v284 = vunpack.c.h.b16 %v24
  %v285 = vunpack.c.l.b16 %v25
  %v286 = vunpack.c.h.b16 %v25
  %v287 = vunpack.c.l.b16 %v26
  %v288 = vunpack.c.h.b16 %v26
  %v289 = vunpack.c.l.b16 %v27
  %v290 = vunpack.c.h.b16 %v27
  %v291 = vunpack.c.l.b16 %v28
  %v292 = vunpack.c.h.b16 %v28
  %v293 = vunpack.c.l.b16 %v29
  %v294 = vunpack.c.h.b16 %v29
  %v295 = vunpack.c.l.b16 %v30
  %v296 = vunpack.c.h.b16 %v30
  %v297 = vunpack.c.l.b16 %v31
  %v298 = vunpack.c.h.b16 %v31
  %v299 = vunpack.c.l.b16 %v32
  %v300 = vunpack.c.h.b16 %v32
  %v301 = vunpack.c.l.b16 %v33
  %v302 = vunpack.c.h.b16 %v33
  %v303 = vunpack.c.l.b16 %v34
  %v304 = vunpack.c.h.b16 %v34
  %v305 = vunpack.c.l.b16 %v35
  %v306 = vunpack.c.h.b16 %v35
  %v307 = vunpack.c.l.b16 %v36
  %v308 = vunpack.c.h.b16 %v36
  %v309 = vunpack.c.l.b16 %v37
  %v310 = vunpack.c.h.b16 %v37
  %v311 = vunpack.c.l.b16 %v38
  %v312 = vunpack.c.h.b16 %v38
  %v313 = vunpack.c.l.b16 %v39
  %v314 = vunpack.c.h.b16 %v39
  %v315 = vunpack.c.l.b16 %v40
  %v316 = vunpack.c.h.b16 %v40
  %v317 = vunpack.c.l.b16 %v41
  %v318 = vunpack.c.h.b16 %v41
  %v319 = vunpack.c.l.b16 %v42
  %v320 = vunpack.c.h.b16 %v42
  %v321 = vunpack.c.l.b16 %v43
  %v322 = vunpack.c.h.b16 %v43
  %v323 = vunpack.c.l.b16 %v44
  %v324 = vunpack.c.h.b16 %v44
  %v325 = vunpack.c.l.b16 %v45
  %v326 = vunpack.c.h.b16 %v45
  %v327 = vunpack.c.l.b16 %v46
  %v328 = vunpack.c.h.b16 %v46
  %v329 = vunpack.c.l.b16 %v47
  %v330 = vunpack.c.h.b16 %v47
  %v331 = vunpack.c.l.b16 %v48
  %v332 = vunpack.c.h.b16 %v48
  %v333 = vunpack.c.l.b16 %v49
  %v334 = vunpack.c.h.b16 %v49
  %v335 = vunpack.c.l.b16 %v50
  %v336 = vunpack.c.h.b16 %v50
  %v337 = vunpack.c.l.b16 %v51
  %v338 = vunpack.c.h.b16 %v51
  %v339 = vunpack.c.l.b16 %v52
  %v340 = vunpack.c.h.b16 %v52
  %v341 = vunpack.c.l.b16 %v53
  %v342 = vunpack.c.h.b16 %v53
  %v343 = vunpack.c.l.b16 %v54
  %v344 = vunpack.c.h.b16 %v54
  %v345 = vunpack.c.l.b16 %v55
  %v346 = vunpack.c.h.b16 %v55
  %v347 = vunpack.c.l.b16 %v56
  %v348 = vunpack.c.h.b16 %v56
  %v349 = vunpack.c.l.b16 %v57
  %v350 = vunpack.c.h.b16 %v57
  %v351 = vunpack.c.l.b16 %v58
  %v352 = vunpack.c.h.b16 %v58
  %v353 = vunpack.c.l.b16 %v59
  %v354 = vunpack.c.h.b16 %v59
  %v355 = vunpack.c.l.b16 %v60
  %v356 = vunpack.c.h.b16 %v60
  %v357 = vunpack.c.l.b16 %v61
  %v358 = vunpack.c.h.b16 %v61
  %v359 = vunpack.c.l.b16 %v62
  %v360 = vunpack.c.h.b16 %v62
  %v361 = vunpack.c.l.b16 %v63
  %v362 = vunpack.c.h.b16 %v63
  %v363 = vunpack.c.l.b16 %v64
  %v364 = vunpack.c.h.b16 %v64
  %v365 = vunpack.c.l.b16 %v65
  %v366 = vunpack.c.h.b16 %v65
  %v367 = vunpack.c.l.b16 %v66
  %v368 = vunpack.c.h.b16 %v66
  %v369 = vunpack.c.l.b16 %v67
  %v370 = vunpack.c.h.b16 %v67
  %v371 = vunpack.c.l.b16 %v68
  %v372 = vunpack.c.h.b16 %v68
  %v373 = vunpack.c.l.b16 %v69
  %v374 = vunpack.c.h.b16 %v69
  %v375 = vunpack.c.l.b16 %v70
  %v376 = vunpack.c.h.b16 %v70
  %v377 = vunpack.c.l.b16 %v71
  %v378 = vunpack.c.h.b16 %v71
  %v379 = vunpack.c.l.b16 %v72
  %v380 = vunpack.c.h.b16 %v72
  %v381 = vunpack.c.l.b16 %v73
  %v382 = vunpack.c.h.b16 %v73
  %v383 = vunpack.c.l.b16 %v74
  %v384 = vunpack.c.h.b16 %v74
  %v385 = vunpack.c.l.b16 %v75
  %v386 = vunpack.c.h.b16 %v75
  %v387 = vunpack.c.l.b16 %v76
  %v388 = vunpack.c.h.b16 %v76
  %v389 = vunpack.c.l.b16 %v77
  %v390 = vunpack.c.h.b16 %v77
  %v391 = vunpack.c.l.b16 %v78
  %v392 = vunpack.c.h.b16 %v78
  %v393 = vunpack.c.l.b16 %v79
  %v394 = vunpack.c.h.b16 %v79
  %v395 = vunpack.c.l.b16 %v80
  %v396 = vunpack.c.h.b16 %v80
  %v397 = vunpack.c.l.b16 %v81
  %v398 = vunpack.c.h.b16 %v81
  %v399 = vunpack.c.l.b16 %v82
  %v400 = vunpack.c.h.b16 %v82
  %v401 = vunpack.c.l.b16 %v83
  %v402 = vunpack.c.h.b16 %v83
  %v403 = vunpack.c.l.b16 %v84
  %v404 = vunpack.c.h.b16 %v84
  %v405 = vpack.c.b16 %v285, %v277
  %v406 = vpack.c.b16 %v286, %v278
  %v407 = vpack.c.b16 %v287, %v279
  %v408 = vpack.c.b16 %v288, %v280
  %v409 = vpack.c.b16 %v289, %v281
  %v410 = vpack.c.b16 %v290, %v282
  %v411 = vpack.c.b16 %v291, %v283
  %v412 = vpack.c.b16 %v292, %v284
  %v413 = vpack.c.b16 %v301, %v293
  %v414 = vpack.c.b16 %v302, %v294
  %v415 = vpack.c.b16 %v303, %v295
  %v416 = vpack.c.b16 %v304, %v296
  %v417 = vpack.c.b16 %v305, %v297
  %v418 = vpack.c.b16 %v306, %v298
  %v419 = vpack.c.b16 %v307, %v299
  %v420 = vpack.c.b16 %v308, %v300
  %v421 = vpack.c.b16 %v317, %v309
  %v422 = vpack.c.b16 %v318, %v310
  %v423 = vpack.c.b16 %v319, %v311
  %v424 = vpack.c.b16 %v320, %v312
  %v425 = vpack.c.b16 %v321, %v313
  %v426 = vpack.c.b16 %v322, %v314
  %v427 = vpack.c.b16 %v323, %v315
  %v428 = vpack.c.b16 %v324, %v316
  %v429 = vpack.c.b16 %v333, %v325
  %v430 = vpack.c.b16 %v334, %v326
  %v431 = vpack.c.b16 %v335, %v327
  %v432 = vpack.c.b16 %v336, %v328
  %v433 = vpack.c.b16 %v337, %v329
  %v434 = vpack.c.b16 %v338, %v330
  %v435 = vpack.c.b16 %v339, %v331
  %v436 = vpack.c.b16 %v340, %v332
  %v437 = vpack.c.b16 %v349, %v341
  %v438 = vpack.c.b16 %v350, %v342
  %v439 = vpack.c.b16 %v351, %v343
  %v440 = vpack.c.b16 %v352, %v344
  %v441 = vpack.c.b16 %v353, %v345
  %v442 = vpack.c.b16 %v354, %v346
  %v443 = vpack.c.b16 %v355, %v347
  %v444 = vpack.c.b16 %v356, %v348
  %v445 = vpack.c.b16 %v365, %v357
  %v446 = vpack.c.b16 %v366, %v358
  %v447 = vpack.c.b16 %v367, %v359
  %v448 = vpack.c.b16 %v368, %v360
  %v449 = vpack.c.b16 %v369, %v361
  %v450 = vpack.c.b16 %v370, %v362
  %v451 = vpack.c.b16 %v371, %v363
  %v452 = vpack.c.b16 %v372, %v364
  %v453 = vpack.c.b16 %v381, %v373
  %v454 = vpack.c.b16 %v382, %v374
  %v455 = vpack.c.b16 %v383, %v375
  %v456 = vpack.c.b16 %v384, %v376
  %v457 = vpack.c.b16 %v385, %v377
  %v458 = vpack.c.b16 %v386, %v378
  %v459 = vpack.c.b16 %v387, %v379
  %v460 = vpack.c.b16 %v388, %v380
  %v461 = vpack.c.b16 %v397, %v389
  %v462 = vpack.c.b16 %v398, %v390
  %v463 = vpack.c.b16 %v399, %v391
  %v464 = vpack.c.b16 %v400, %v392
  %v465 = vpack.c.b16 %v401, %v393
  %v466 = vpack.c.b16 %v402, %v394
  %v467 = vpack.c.b16 %v403, %v395
  %v468 = vpack.c.b16 %v404, %v396
  %v661 = vunpack.c.l.b16 %v85
  %v662 = vunpack.c.l.b16 %v86
  %v663 = vunpack.c.l.b16 %v87
  %v664 = vunpack.c.l.b16 %v88
  %v665 = vunpack.c.l.b16 %v89
  %v666 = vunpack.c.l.b16 %v90
  %v667 = vunpack.c.l.b16 %v91
  %v668 = vunpack.c.l.b16 %v92
  %v669 = vunpack.c.l.b16 %v93
  %v670 = vunpack.c.l.b16 %v94
  %v671 = vunpack.c.l.b16 %v95
  %v672 = vunpack.c.l.b16 %v96
  %v673 = vunpack.c.l.b16 %v97
  %v674 = vunpack.c.l.b16 %v98
  %v675 = vunpack.c.l.b16 %v99
  %v676 = vunpack.c.l.b16 %v100
  %v677 = vunpack.c.l.b16 %v101
  %v678 = vunpack.c.l.b16 %v102
  %v679 = vunpack.c.l.b16 %v103
  %v680 = vunpack.c.l.b16 %v104
  %v681 = vunpack.c.l.b16 %v105
  %v682 = vunpack.c.l.b16 %v106
  %v683 = vunpack.c.l.b16 %v107
  %v684 = vunpack.c.l.b16 %v108
  %v685 = vunpack.c.l.b16 %v109
  %v686 = vunpack.c.l.b16 %v110
  %v687 = vunpack.c.l.b16 %v111
  %v688 = vunpack.c.l.b16 %v112
  %v689 = vunpack.c.l.b16 %v113
  %v690 = vunpack.c.l.b16 %v114
  %v691 = vunpack.c.l.b16 %v115
  %v692 = vunpack.c.l.b16 %v116
  %v693 = vunpack.c.l.b16 %v117
  %v694 = vunpack.c.l.b16 %v118
  %v695 = vunpack.c.l.b16 %v119
  %v696 = vunpack.c.l.b16 %v120
  %v697 = vunpack.c.l.b16 %v121
  %v698 = vunpack.c.l.b16 %v122
  %v699 = vunpack.c.l.b16 %v123
  %v700 = vunpack.c.l.b16 %v124
  %v701 = vunpack.c.l.b16 %v125
  %v702 = vunpack.c.l.b16 %v126
  %v703 = vunpack.c.l.b16 %v127
  %v704 = vunpack.c.l.b16 %v128
  %v705 = vunpack.c.l.b16 %v129
  %v706 = vunpack.c.l.b16 %v130
  %v707 = vunpack.c.l.b16 %v131
  %v708 = vunpack.c.l.b16 %v132
  %v709 = vunpack.c.l.b16 %v133
  %v710 = vunpack.c.l.b16 %v134
  %v711 = vunpack.c.l.b16 %v135
  %v712 = vunpack.c.l.b16 %v136
  %v713 = vunpack.c.l.b16 %v137
  %v714 = vunpack.c.l.b16 %v138
  %v715 = vunpack.c.l.b16 %v139
  %v716 = vunpack.c.l.b16 %v140
  %v717 = vunpack.c.l.b16 %v141
  %v718 = vunpack.c.l.b16 %v142
  %v719 = vunpack.c.l.b16 %v143
  %v720 = vunpack.c.l.b16 %v144
  %v721 = vunpack.c.l.b16 %v145
  %v722 = vunpack.c.l.b16 %v146
  %v723 = vunpack.c.l.b16 %v147
  %v724 = vunpack.c.l.b16 %v148
  %v725 = vunpack.c.l.b16 %v149
  %v726 = vunpack.c.l.b16 %v150
  %v727 = vunpack.c.l.b16 %v151
  %v728 = vunpack.c.l.b16 %v152
  %v729 = vunpack.c.l.b16 %v153
  %v730 = vunpack.c.l.b16 %v154
  %v731 = vunpack.c.l.b16 %v155
  %v732 = vunpack.c.l.b16 %v156
  %v733 = vunpack.c.l.b16 %v157
  %v734 = vunpack.c.l.b16 %v158
  %v735 = vunpack.c.l.b16 %v159
  %v736 = vunpack.c.l.b16 %v160
  %v737 = vunpack.c.l.b16 %v161
  %v738 = vunpack.c.l.b16 %v162
  %v739 = vunpack.c.l.b16 %v163
  %v740 = vunpack.c.l.b16 %v164
  %v741 = vunpack.c.l.b16 %v165
  %v742 = vunpack.c.l.b16 %v166
  %v743 = vunpack.c.l.b16 %v167
  %v744 = vunpack.c.l.b16 %v168
  %v745 = vunpack.c.l.b16 %v169
  %v746 = vunpack.c.l.b16 %v170
  %v747 = vunpack.c.l.b16 %v171
  %v748 = vunpack.c.l.b16 %v172
  %v749 = vunpack.c.l.b16 %v173
  %v750 = vunpack.c.l.b16 %v174
  %v751 = vunpack.c.l.b16 %v175
  %v752 = vunpack.c.l.b16 %v176
  %v753 = vunpack.c.l.b16 %v177
  %v754 = vunpack.c.l.b16 %v178
  %v755 = vunpack.c.l.b16 %v179
  %v756 = vunpack.c.l.b16 %v180
  %v757 = vunpack.c.l.b16 %v181
  %v758 = vunpack.c.l.b16 %v182
  %v759 = vunpack.c.l.b16 %v183
  %v760 = vunpack.c.l.b16 %v184
  %v761 = vunpack.c.l.b16 %v185
  %v762 = vunpack.c.l.b16 %v186
  %v763 = vunpack.c.l.b16 %v187
  %v764 = vunpack.c.l.b16 %v188
  %v765 = vunpack.c.l.b16 %v189
  %v766 = vunpack.c.l.b16 %v190
  %v767 = vunpack.c.l.b16 %v191
  %v768 = vunpack.c.l.b16 %v192
  %v769 = vunpack.c.l.b16 %v193
  %v770 = vunpack.c.l.b16 %v194
  %v771 = vunpack.c.l.b16 %v195
  %v772 = vunpack.c.l.b16 %v196
  %v773 = vunpack.c.l.b16 %v197
  %v774 = vunpack.c.l.b16 %v198
  %v775 = vunpack.c.l.b16 %v199
  %v776 = vunpack.c.l.b16 %v200
  %v777 = vunpack.c.l.b16 %v201
  %v778 = vunpack.c.l.b16 %v202
  %v779 = vunpack.c.l.b16 %v203
  %v780 = vunpack.c.l.b16 %v204
  %v781 = vunpack.c.l.b16 %v205
  %v782 = vunpack.c.l.b16 %v206
  %v783 = vunpack.c.l.b16 %v207
  %v784 = vunpack.c.l.b16 %v208
  %v785 = vunpack.c.l.b16 %v209
  %v786 = vunpack.c.l.b16 %v210
  %v787 = vunpack.c.l.b16 %v211
  %v788 = vunpack.c.l.b16 %v212
  %v789 = vpack.c.b16 %v662, %v661
  %v790 = vpack.c.b16 %v664, %v663
  %v791 = vpack.c.b16 %v666, %v665
  %v792 = vpack.c.b16 %v668, %v667
  %v793 = vpack.c.b16 %v670, %v669
  %v794 = vpack.c.b16 %v672, %v671
  %v795 = vpack.c.b16 %v674, %v673
  %v796 = vpack.c.b16 %v676, %v675
  %v797 = vpack.c.b16 %v678, %v677
  %v798 = vpack.c.b16 %v680, %v679
  %v799 = vpack.c.b16 %v682, %v681
  %v800 = vpack.c.b16 %v684, %v683
  %v801 = vpack.c.b16 %v686, %v685
  %v802 = vpack.c.b16 %v688, %v687
  %v803 = vpack.c.b16 %v690, %v689
  %v804 = vpack.c.b16 %v692, %v691
  %v805 = vpack.c.b16 %v694, %v693
  %v806 = vpack.c.b16 %v696, %v695
  %v807 = vpack.c.b16 %v698, %v697
  %v808 = vpack.c.b16 %v700, %v699
  %v809 = vpack.c.b16 %v702, %v701
  %v810 = vpack.c.b16 %v704, %v703
  %v811 = vpack.c.b16 %v706, %v705
  %v812 = vpack.c.b16 %v708, %v707
  %v813 = vpack.c.b16 %v710, %v709
  %v814 = vpack.c.b16 %v712, %v711
  %v815 = vpack.c.b16 %v714, %v713
  %v816 = vpack.c.b16 %v716, %v715
  %v817 = vpack.c.b16 %v718, %v717
  %v818 = vpack.c.b16 %v720, %v719
  %v819 = vpack.c.b16 %v722, %v721
  %v820 = vpack.c.b16 %v724, %v723
  %v821 = vpack.c.b16 %v726, %v725
  %v822 = vpack.c.b16 %v728, %v727
  %v823 = vpack.c.b16 %v730, %v729
  %v824 = vpack.c.b16 %v732, %v731
  %v825 = vpack.c.b16 %v734, %v733
  %v826 = vpack.c.b16 %v736, %v735
  %v827 = vpack.c.b16 %v738, %v737
  %v828 = vpack.c.b16 %v740, %v739
  %v829 = vpack.c.b16 %v742, %v741
  %v830 = vpack.c.b16 %v744, %v743
  %v831 = vpack.c.b16 %v746, %v745
  %v832 = vpack.c.b16 %v748, %v747
  %v833 = vpack.c.b16 %v750, %v749
  %v834 = vpack.c.b16 %v752, %v751
  %v835 = vpack.c.b16 %v754, %v753
  %v836 = vpack.c.b16 %v756, %v755
  %v837 = vpack.c.b16 %v758, %v757
  %v838 = vpack.c.b16 %v760, %v759
  %v839 = vpack.c.b16 %v762, %v761
  %v840 = vpack.c.b16 %v764, %v763
  %v841 = vpack.c.b16 %v766, %v765
  %v842 = vpack.c.b16 %v768, %v767
  %v843 = vpack.c.b16 %v770, %v769
  %v844 = vpack.c.b16 %v772, %v771
  %v845 = vpack.c.b16 %v774, %v773
  %v846 = vpack.c.b16 %v776, %v775
  %v847 = vpack.c.b16 %v778, %v777
  %v848 = vpack.c.b16 %v780, %v779
  %v849 = vpack.c.b16 %v782, %v781
  %v850 = vpack.c.b16 %v784, %v783
  %v851 = vpack.c.b16 %v786, %v785
  %v852 = vpack.c.b16 %v788, %v787
  %917 = vmatprep.subr.bf16.mxu0 0
  %918 = vmatpush1.bf16.msra.mxu0 %v796
  %919 = vmatprep.subr.bf16.mxu0 0
  %920 = vmatpush1.bf16.msra.mxu0 %v795
  %921 = vmatprep.subr.bf16.mxu0 0
  %922 = vmatpush1.bf16.msra.mxu0 %v794
  %923 = vmatprep.subr.bf16.mxu0 0
  %924 = vmatpush1.bf16.msra.mxu0 %v793
  %925 = vmatprep.subr.bf16.mxu0 0
  %926 = vmatpush1.bf16.msra.mxu0 %v792
  %927 = vmatprep.subr.bf16.mxu0 0
  %928 = vmatpush1.bf16.msra.mxu0 %v791
  %929 = vmatprep.subr.bf16.mxu0 0
  %930 = vmatpush1.bf16.msra.mxu0 %v790
  %931 = vmatprep.subr.bf16.mxu0 0
  %932 = vmatpush1.bf16.msra.mxu0 %v789
  %933 = vmatprep.subr.bf16.mxu0 0
  %934 = vmatpush2.bf16.msra.mxu0 %v804
  %935 = vmatprep.subr.bf16.mxu0 0
  %936 = vmatpush2.bf16.msra.mxu0 %v803
  %937 = vmatprep.subr.bf16.mxu0 0
  %938 = vmatpush2.bf16.msra.mxu0 %v802
  %939 = vmatprep.subr.bf16.mxu0 0
  %940 = vmatpush2.bf16.msra.mxu0 %v801
  %941 = vmatprep.subr.bf16.mxu0 0
  %942 = vmatpush2.bf16.msra.mxu0 %v800
  %943 = vmatprep.subr.bf16.mxu0 0
  %944 = vmatpush2.bf16.msra.mxu0 %v799
  %945 = vmatprep.subr.bf16.mxu0 0
  %946 = vmatpush2.bf16.msra.mxu0 %v798
  %947 = vmatprep.subr.bf16.mxu0 0
  %948 = vmatpush2.bf16.msra.mxu0 %v797
  %949 = vmatprep.mubr.bf16.mxu0 %v406
  %950 = vmatmul.mubr.bf16.gmra.mxu0 %v405
  %v951 = vpop.f32.mrf.mxu0
  %v952 = vadd.f32 0.0, %v951
  %v953 = vpop.f32.mrf.mxu0
  %v954 = vpop.f32.mrf.mxu0
  %v955 = vadd.f32 0.0, %v954
  %v956 = vpop.f32.mrf.mxu0
  %957 = vmatprep.mubr.bf16.mxu0 %v414
  %958 = vmatmul.mubr.bf16.gmra.mxu0 %v413
  %v959 = vpop.f32.mrf.mxu0
  %v960 = vadd.f32 0.0, %v959
  %v961 = vpop.f32.mrf.mxu0
  %v962 = vpop.f32.mrf.mxu0
  %v963 = vadd.f32 0.0, %v962
  %v964 = vpop.f32.mrf.mxu0
  %965 = vmatprep.mubr.bf16.mxu0 %v422
  %966 = vmatmul.mubr.bf16.gmra.mxu0 %v421
  %v967 = vpop.f32.mrf.mxu0
  %v968 = vadd.f32 0.0, %v967
  %v969 = vpop.f32.mrf.mxu0
  %v970 = vpop.f32.mrf.mxu0
  %v971 = vadd.f32 0.0, %v970
  %v972 = vpop.f32.mrf.mxu0
  %973 = vmatprep.mubr.bf16.mxu0 %v430
  %974 = vmatmul.mubr.bf16.gmra.mxu0 %v429
  %v975 = vpop.f32.mrf.mxu0
  %v976 = vadd.f32 0.0, %v975
  %v977 = vpop.f32.mrf.mxu0
  %v978 = vpop.f32.mrf.mxu0
  %v979 = vadd.f32 0.0, %v978
  %v980 = vpop.f32.mrf.mxu0
  %981 = vmatprep.mubr.bf16.mxu0 %v438
  %982 = vmatmul.mubr.bf16.gmra.mxu0 %v437
  %v983 = vpop.f32.mrf.mxu0
  %v984 = vadd.f32 0.0, %v983
  %v985 = vpop.f32.mrf.mxu0
  %v986 = vpop.f32.mrf.mxu0
  %v987 = vadd.f32 0.0, %v986
  %v988 = vpop.f32.mrf.mxu0
  %989 = vmatprep.mubr.bf16.mxu0 %v446
  %990 = vmatmul.mubr.bf16.gmra.mxu0 %v445
  %v991 = vpop.f32.mrf.mxu0
  %v992 = vadd.f32 0.0, %v991
  %v993 = vpop.f32.mrf.mxu0
  %v994 = vpop.f32.mrf.mxu0
  %v995 = vadd.f32 0.0, %v994
  %v996 = vpop.f32.mrf.mxu0
  %997 = vmatprep.mubr.bf16.mxu0 %v454
  %998 = vmatmul.mubr.bf16.gmra.mxu0 %v453
  %v999 = vpop.f32.mrf.mxu0
  %v1000 = vadd.f32 0.0, %v999
  %v1001 = vpop.f32.mrf.mxu0
  %v1002 = vpop.f32.mrf.mxu0
  %v1003 = vadd.f32 0.0, %v1002
  %v1004 = vpop.f32.mrf.mxu0
  %1005 = vmatprep.mubr.bf16.mxu0 %v462
  %1006 = vmatmul.mubr.bf16.gmra.mxu0 %v461
  %v1007 = vpop.f32.mrf.mxu0
  %v1008 = vadd.f32 0.0, %v1007
  %v1009 = vpop.f32.mrf.mxu0
  %v1010 = vpop.f32.mrf.mxu0
  %v1011 = vadd.f32 0.0, %v1010
  %v1012 = vpop.f32.mrf.mxu0
  %1013 = vdwg.mxu0
  %1014 = vmatprep.subr.bf16.mxu0 0
  %1015 = vmatpush1.bf16.msra.mxu0 %v812
  %1016 = vmatprep.subr.bf16.mxu0 0
  %1017 = vmatpush1.bf16.msra.mxu0 %v811
  %1018 = vmatprep.subr.bf16.mxu0 0
  %1019 = vmatpush1.bf16.msra.mxu0 %v810
  %1020 = vmatprep.subr.bf16.mxu0 0
  %1021 = vmatpush1.bf16.msra.mxu0 %v809
  %1022 = vmatprep.subr.bf16.mxu0 0
  %1023 = vmatpush1.bf16.msra.mxu0 %v808
  %1024 = vmatprep.subr.bf16.mxu0 0
  %1025 = vmatpush1.bf16.msra.mxu0 %v807
  %1026 = vmatprep.subr.bf16.mxu0 0
  %1027 = vmatpush1.bf16.msra.mxu0 %v806
  %1028 = vmatprep.subr.bf16.mxu0 0
  %1029 = vmatpush1.bf16.msra.mxu0 %v805
  %1030 = vmatprep.subr.bf16.mxu0 0
  %1031 = vmatpush2.bf16.msra.mxu0 %v820
  %1032 = vmatprep.subr.bf16.mxu0 0
  %1033 = vmatpush2.bf16.msra.mxu0 %v819
  %1034 = vmatprep.subr.bf16.mxu0 0
  %1035 = vmatpush2.bf16.msra.mxu0 %v818
  %1036 = vmatprep.subr.bf16.mxu0 0
  %1037 = vmatpush2.bf16.msra.mxu0 %v817
  %1038 = vmatprep.subr.bf16.mxu0 0
  %1039 = vmatpush2.bf16.msra.mxu0 %v816
  %1040 = vmatprep.subr.bf16.mxu0 0
  %1041 = vmatpush2.bf16.msra.mxu0 %v815
  %1042 = vmatprep.subr.bf16.mxu0 0
  %1043 = vmatpush2.bf16.msra.mxu0 %v814
  %1044 = vmatprep.subr.bf16.mxu0 0
  %1045 = vmatpush2.bf16.msra.mxu0 %v813
  %1046 = vmatprep.mubr.bf16.mxu0 %v408
  %1047 = vmatmul.mubr.bf16.gmra.mxu0 %v407
  %v1048 = vpop.f32.mrf.mxu0
  %v1049 = vadd.f32 %v952, %v1048
  %v1050 = vpop.f32.mrf.mxu0
  %v1051 = vpop.f32.mrf.mxu0
  %v1052 = vadd.f32 %v955, %v1051
  %v1053 = vpop.f32.mrf.mxu0
  %1054 = vmatprep.mubr.bf16.mxu0 %v416
  %1055 = vmatmul.mubr.bf16.gmra.mxu0 %v415
  %v1056 = vpop.f32.mrf.mxu0
  %v1057 = vadd.f32 %v960, %v1056
  %v1058 = vpop.f32.mrf.mxu0
  %v1059 = vpop.f32.mrf.mxu0
  %v1060 = vadd.f32 %v963, %v1059
  %v1061 = vpop.f32.mrf.mxu0
  %1062 = vmatprep.mubr.bf16.mxu0 %v424
  %1063 = vmatmul.mubr.bf16.gmra.mxu0 %v423
  %v1064 = vpop.f32.mrf.mxu0
  %v1065 = vadd.f32 %v968, %v1064
  %v1066 = vpop.f32.mrf.mxu0
  %v1067 = vpop.f32.mrf.mxu0
  %v1068 = vadd.f32 %v971, %v1067
  %v1069 = vpop.f32.mrf.mxu0
  %1070 = vmatprep.mubr.bf16.mxu0 %v432
  %1071 = vmatmul.mubr.bf16.gmra.mxu0 %v431
  %v1072 = vpop.f32.mrf.mxu0
  %v1073 = vadd.f32 %v976, %v1072
  %v1074 = vpop.f32.mrf.mxu0
  %v1075 = vpop.f32.mrf.mxu0
  %v1076 = vadd.f32 %v979, %v1075
  %v1077 = vpop.f32.mrf.mxu0
  %1078 = vmatprep.mubr.bf16.mxu0 %v440
  %1079 = vmatmul.mubr.bf16.gmra.mxu0 %v439
  %v1080 = vpop.f32.mrf.mxu0
  %v1081 = vadd.f32 %v984, %v1080
  %v1082 = vpop.f32.mrf.mxu0
  %v1083 = vpop.f32.mrf.mxu0
  %v1084 = vadd.f32 %v987, %v1083
  %v1085 = vpop.f32.mrf.mxu0
  %1086 = vmatprep.mubr.bf16.mxu0 %v448
  %1087 = vmatmul.mubr.bf16.gmra.mxu0 %v447
  %v1088 = vpop.f32.mrf.mxu0
  %v1089 = vadd.f32 %v992, %v1088
  %v1090 = vpop.f32.mrf.mxu0
  %v1091 = vpop.f32.mrf.mxu0
  %v1092 = vadd.f32 %v995, %v1091
  %v1093 = vpop.f32.mrf.mxu0
  %1094 = vmatprep.mubr.bf16.mxu0 %v456
  %1095 = vmatmul.mubr.bf16.gmra.mxu0 %v455
  %v1096 = vpop.f32.mrf.mxu0
  %v1097 = vadd.f32 %v1000, %v1096
  %v1098 = vpop.f32.mrf.mxu0
  %v1099 = vpop.f32.mrf.mxu0
  %v1100 = vadd.f32 %v1003, %v1099
  %v1101 = vpop.f32.mrf.mxu0
  %1102 = vmatprep.mubr.bf16.mxu0 %v464
  %1103 = vmatmul.mubr.bf16.gmra.mxu0 %v463
  %v1104 = vpop.f32.mrf.mxu0
  %v1105 = vadd.f32 %v1008, %v1104
  %v1106 = vpop.f32.mrf.mxu0
  %v1107 = vpop.f32.mrf.mxu0
  %v1108 = vadd.f32 %v1011, %v1107
  %v1109 = vpop.f32.mrf.mxu0
  %1110 = vdwg.mxu0
  %1111 = vmatprep.subr.bf16.mxu0 0
  %1112 = vmatpush1.bf16.msra.mxu0 %v828
  %1113 = vmatprep.subr.bf16.mxu0 0
  %1114 = vmatpush1.bf16.msra.mxu0 %v827
  %1115 = vmatprep.subr.bf16.mxu0 0
  %1116 = vmatpush1.bf16.msra.mxu0 %v826
  %1117 = vmatprep.subr.bf16.mxu0 0
  %1118 = vmatpush1.bf16.msra.mxu0 %v825
  %1119 = vmatprep.subr.bf16.mxu0 0
  %1120 = vmatpush1.bf16.msra.mxu0 %v824
  %1121 = vmatprep.subr.bf16.mxu0 0
  %1122 = vmatpush1.bf16.msra.mxu0 %v823
  %1123 = vmatprep.subr.bf16.mxu0 0
  %1124 = vmatpush1.bf16.msra.mxu0 %v822
  %1125 = vmatprep.subr.bf16.mxu0 0
  %1126 = vmatpush1.bf16.msra.mxu0 %v821
  %1127 = vmatprep.subr.bf16.mxu0 0
  %1128 = vmatpush2.bf16.msra.mxu0 %v836
  %1129 = vmatprep.subr.bf16.mxu0 0
  %1130 = vmatpush2.bf16.msra.mxu0 %v835
  %1131 = vmatprep.subr.bf16.mxu0 0
  %1132 = vmatpush2.bf16.msra.mxu0 %v834
  %1133 = vmatprep.subr.bf16.mxu0 0
  %1134 = vmatpush2.bf16.msra.mxu0 %v833
  %1135 = vmatprep.subr.bf16.mxu0 0
  %1136 = vmatpush2.bf16.msra.mxu0 %v832
  %1137 = vmatprep.subr.bf16.mxu0 0
  %1138 = vmatpush2.bf16.msra.mxu0 %v831
  %1139 = vmatprep.subr.bf16.mxu0 0
  %1140 = vmatpush2.bf16.msra.mxu0 %v830
  %1141 = vmatprep.subr.bf16.mxu0 0
  %1142 = vmatpush2.bf16.msra.mxu0 %v829
  %1143 = vmatprep.mubr.bf16.mxu0 %v410
  %1144 = vmatmul.mubr.bf16.gmra.mxu0 %v409
  %v1145 = vpop.f32.mrf.mxu0
  %v1146 = vadd.f32 %v1049, %v1145
  %v1147 = vpop.f32.mrf.mxu0
  %v1148 = vpop.f32.mrf.mxu0
  %v1149 = vadd.f32 %v1052, %v1148
  %v1150 = vpop.f32.mrf.mxu0
  %1151 = vmatprep.mubr.bf16.mxu0 %v418
  %1152 = vmatmul.mubr.bf16.gmra.mxu0 %v417
  %v1153 = vpop.f32.mrf.mxu0
  %v1154 = vadd.f32 %v1057, %v1153
  %v1155 = vpop.f32.mrf.mxu0
  %v1156 = vpop.f32.mrf.mxu0
  %v1157 = vadd.f32 %v1060, %v1156
  %v1158 = vpop.f32.mrf.mxu0
  %1159 = vmatprep.mubr.bf16.mxu0 %v426
  %1160 = vmatmul.mubr.bf16.gmra.mxu0 %v425
  %v1161 = vpop.f32.mrf.mxu0
  %v1162 = vadd.f32 %v1065, %v1161
  %v1163 = vpop.f32.mrf.mxu0
  %v1164 = vpop.f32.mrf.mxu0
  %v1165 = vadd.f32 %v1068, %v1164
  %v1166 = vpop.f32.mrf.mxu0
  %1167 = vmatprep.mubr.bf16.mxu0 %v434
  %1168 = vmatmul.mubr.bf16.gmra.mxu0 %v433
  %v1169 = vpop.f32.mrf.mxu0
  %v1170 = vadd.f32 %v1073, %v1169
  %v1171 = vpop.f32.mrf.mxu0
  %v1172 = vpop.f32.mrf.mxu0
  %v1173 = vadd.f32 %v1076, %v1172
  %v1174 = vpop.f32.mrf.mxu0
  %1175 = vmatprep.mubr.bf16.mxu0 %v442
  %1176 = vmatmul.mubr.bf16.gmra.mxu0 %v441
  %v1177 = vpop.f32.mrf.mxu0
  %v1178 = vadd.f32 %v1081, %v1177
  %v1179 = vpop.f32.mrf.mxu0
  %v1180 = vpop.f32.mrf.mxu0
  %v1181 = vadd.f32 %v1084, %v1180
  %v1182 = vpop.f32.mrf.mxu0
  %1183 = vmatprep.mubr.bf16.mxu0 %v450
  %1184 = vmatmul.mubr.bf16.gmra.mxu0 %v449
  %v1185 = vpop.f32.mrf.mxu0
  %v1186 = vadd.f32 %v1089, %v1185
  %v1187 = vpop.f32.mrf.mxu0
  %v1188 = vpop.f32.mrf.mxu0
  %v1189 = vadd.f32 %v1092, %v1188
  %v1190 = vpop.f32.mrf.mxu0
  %1191 = vmatprep.mubr.bf16.mxu0 %v458
  %1192 = vmatmul.mubr.bf16.gmra.mxu0 %v457
  %v1193 = vpop.f32.mrf.mxu0
  %v1194 = vadd.f32 %v1097, %v1193
  %v1195 = vpop.f32.mrf.mxu0
  %v1196 = vpop.f32.mrf.mxu0
  %v1197 = vadd.f32 %v1100, %v1196
  %v1198 = vpop.f32.mrf.mxu0
  %1199 = vmatprep.mubr.bf16.mxu0 %v466
  %1200 = vmatmul.mubr.bf16.gmra.mxu0 %v465
  %v1201 = vpop.f32.mrf.mxu0
  %v1202 = vadd.f32 %v1105, %v1201
  %v1203 = vpop.f32.mrf.mxu0
  %v1204 = vpop.f32.mrf.mxu0
  %v1205 = vadd.f32 %v1108, %v1204
  %v1206 = vpop.f32.mrf.mxu0
  %1207 = vdwg.mxu0
  %1208 = vmatprep.subr.bf16.mxu0 0
  %1209 = vmatpush1.bf16.msra.mxu0 %v844
  %1210 = vmatprep.subr.bf16.mxu0 0
  %1211 = vmatpush1.bf16.msra.mxu0 %v843
  %1212 = vmatprep.subr.bf16.mxu0 0
  %1213 = vmatpush1.bf16.msra.mxu0 %v842
  %1214 = vmatprep.subr.bf16.mxu0 0
  %1215 = vmatpush1.bf16.msra.mxu0 %v841
  %1216 = vmatprep.subr.bf16.mxu0 0
  %1217 = vmatpush1.bf16.msra.mxu0 %v840
  %1218 = vmatprep.subr.bf16.mxu0 0
  %1219 = vmatpush1.bf16.msra.mxu0 %v839
  %1220 = vmatprep.subr.bf16.mxu0 0
  %1221 = vmatpush1.bf16.msra.mxu0 %v838
  %1222 = vmatprep.subr.bf16.mxu0 0
  %1223 = vmatpush1.bf16.msra.mxu0 %v837
  %1224 = vmatprep.subr.bf16.mxu0 0
  %1225 = vmatpush2.bf16.msra.mxu0 %v852
  %1226 = vmatprep.subr.bf16.mxu0 0
  %1227 = vmatpush2.bf16.msra.mxu0 %v851
  %1228 = vmatprep.subr.bf16.mxu0 0
  %1229 = vmatpush2.bf16.msra.mxu0 %v850
  %1230 = vmatprep.subr.bf16.mxu0 0
  %1231 = vmatpush2.bf16.msra.mxu0 %v849
  %1232 = vmatprep.subr.bf16.mxu0 0
  %1233 = vmatpush2.bf16.msra.mxu0 %v848
  %1234 = vmatprep.subr.bf16.mxu0 0
  %1235 = vmatpush2.bf16.msra.mxu0 %v847
  %1236 = vmatprep.subr.bf16.mxu0 0
  %1237 = vmatpush2.bf16.msra.mxu0 %v846
  %1238 = vmatprep.subr.bf16.mxu0 0
  %1239 = vmatpush2.bf16.msra.mxu0 %v845
  %1240 = vmatprep.mubr.bf16.mxu0 %v412
  %1241 = vmatmul.mubr.bf16.gmra.mxu0 %v411
  %v1242 = vpop.f32.mrf.mxu0
  %v1243 = vadd.f32 %v1146, %v1242
  %v1244 = vpop.f32.mrf.mxu0
  %v1245 = vpop.f32.mrf.mxu0
  %v1246 = vadd.f32 %v1149, %v1245
  %v1247 = vpop.f32.mrf.mxu0
  %1248 = vmatprep.mubr.bf16.mxu0 %v420
  %1249 = vmatmul.mubr.bf16.gmra.mxu0 %v419
  %v1250 = vpop.f32.mrf.mxu0
  %v1251 = vadd.f32 %v1154, %v1250
  %v1252 = vpop.f32.mrf.mxu0
  %v1253 = vpop.f32.mrf.mxu0
  %v1254 = vadd.f32 %v1157, %v1253
  %v1255 = vpop.f32.mrf.mxu0
  %1256 = vmatprep.mubr.bf16.mxu0 %v428
  %1257 = vmatmul.mubr.bf16.gmra.mxu0 %v427
  %v1258 = vpop.f32.mrf.mxu0
  %v1259 = vadd.f32 %v1162, %v1258
  %v1260 = vpop.f32.mrf.mxu0
  %v1261 = vpop.f32.mrf.mxu0
  %v1262 = vadd.f32 %v1165, %v1261
  %v1263 = vpop.f32.mrf.mxu0
  %1264 = vmatprep.mubr.bf16.mxu0 %v436
  %1265 = vmatmul.mubr.bf16.gmra.mxu0 %v435
  %v1266 = vpop.f32.mrf.mxu0
  %v1267 = vadd.f32 %v1170, %v1266
  %v1268 = vpop.f32.mrf.mxu0
  %v1269 = vpop.f32.mrf.mxu0
  %v1270 = vadd.f32 %v1173, %v1269
  %v1271 = vpop.f32.mrf.mxu0
  %1272 = vmatprep.mubr.bf16.mxu0 %v444
  %1273 = vmatmul.mubr.bf16.gmra.mxu0 %v443
  %v1274 = vpop.f32.mrf.mxu0
  %v1275 = vadd.f32 %v1178, %v1274
  %v1276 = vpop.f32.mrf.mxu0
  %v1277 = vpop.f32.mrf.mxu0
  %v1278 = vadd.f32 %v1181, %v1277
  %v1279 = vpop.f32.mrf.mxu0
  %1280 = vmatprep.mubr.bf16.mxu0 %v452
  %1281 = vmatmul.mubr.bf16.gmra.mxu0 %v451
  %v1282 = vpop.f32.mrf.mxu0
  %v1283 = vadd.f32 %v1186, %v1282
  %v1284 = vpop.f32.mrf.mxu0
  %v1285 = vpop.f32.mrf.mxu0
  %v1286 = vadd.f32 %v1189, %v1285
  %v1287 = vpop.f32.mrf.mxu0
  %1288 = vmatprep.mubr.bf16.mxu0 %v460
  %1289 = vmatmul.mubr.bf16.gmra.mxu0 %v459
  %v1290 = vpop.f32.mrf.mxu0
  %v1291 = vadd.f32 %v1194, %v1290
  %v1292 = vpop.f32.mrf.mxu0
  %v1293 = vpop.f32.mrf.mxu0
  %v1294 = vadd.f32 %v1197, %v1293
  %v1295 = vpop.f32.mrf.mxu0
  %1296 = vmatprep.mubr.bf16.mxu0 %v468
  %1297 = vmatmul.mubr.bf16.gmra.mxu0 %v467
  %v1298 = vpop.f32.mrf.mxu0
  %v1299 = vadd.f32 %v1202, %v1298
  %v1300 = vpop.f32.mrf.mxu0
  %v1301 = vpop.f32.mrf.mxu0
  %v1302 = vadd.f32 %v1205, %v1301
  %v1303 = vpop.f32.mrf.mxu0
  %1304 = vdwg.mxu0
  %v1305 = vmax.f32 %v1243, %v1259
  %v1306 = vmax.f32 %v1246, %v1262
  %v1307 = vmax.f32 %v1251, %v1267
  %v1308 = vmax.f32 %v1254, %v1270
  %v1309 = vmax.f32 %v1275, %v1291
  %v1310 = vmax.f32 %v1278, %v1294
  %v1311 = vmax.f32 %v1283, %v1299
  %v1312 = vmax.f32 %v1286, %v1302
  %v1313 = vmax.f32 %v1305, %v1309
  %v1314 = vmax.f32 %v1306, %v1310
  %v1315 = vmax.f32 %v1307, %v1311
  %v1316 = vmax.f32 %v1308, %v1312
  %v1317 = vld [vmem:[%s2] sm:$0x1]
  %v1319 = vlaneseq
  %v1320 = vshrl.u32 %v1319, 7
  %v1321 = vsub.s32 0, %v1320
  %v1322 = vrot.slane %v1317, %v1321
  %v1324 = vadd.f32 %v1313, %v1322
  %v1325 = vadd.f32 %v1314, %v1322
  %v1326 = vadd.f32 %v1315, %v1322
  %v1327 = vadd.f32 %v1316, %v1322
  %v1328 = vmax.f32 %v1324, 0.0
  %v1329 = vmax.f32 %v1325, 0.0
  %v1330 = vmax.f32 %v1326, 0.0
  %v1331 = vmax.f32 %v1327, 0.0
  %v1332 = vld [vmem:[%s3] sm:$0x1]
  %v1334 = vlaneseq
  %v1335 = vshrl.u32 %v1334, 7
  %v1336 = vsub.s32 0, %v1335
  %v1337 = vrot.slane %v1332, %v1336
  %v1339 = vmul.f32 %v1328, %v1337
  %v1340 = vmul.f32 %v1329, %v1337
  %v1341 = vmul.f32 %v1330, %v1337
  %v1342 = vmul.f32 %v1331, %v1337
  %v1343 = vld [vmem:[%s4] sm:$0x1]
  %v1345 = vlaneseq
  %v1346 = vshrl.u32 %v1345, 7
  %v1347 = vsub.s32 0, %v1346
  %v1348 = vrot.slane %v1343, %v1347
  %v1350 = vadd.f32 %v1339, %v1348
  %v1351 = vadd.f32 %v1340, %v1348
  %v1352 = vadd.f32 %v1341, %v1348
  %v1353 = vadd.f32 %v1342, %v1348
  %v1354 = vpack.c.bf16 %v1351, %v1350
  %v1355 = vpack.c.bf16 %v1353, %v1352
  %v1358 = vunpack.c.l.b16 %v1354
  %v1359 = vunpack.c.h.b16 %v1354
  %v1360 = vunpack.c.l.b16 %v1355
  %v1361 = vunpack.c.h.b16 %v1355
  %v1362 = vpack.c.b16 %v1358, %v1358
  %v1363 = vpack.c.b16 %v1359, %v1359
  %v1364 = vpack.c.b16 %v1360, %v1360
  %v1365 = vpack.c.b16 %v1361, %v1361
  %1370 = vst [vmem:[%s5] sm:$0xf] %v1362
  %1371 = vst [vmem:[%s5 + $0x4] sm:$0xf] %v1363
  %1372 = vst [vmem:[%s5 + $0x8] sm:$0xf] %v1364
  %1373 = vst [vmem:[%s5 + $0xc] sm:$0xf] %v1365
  // Predicated region
  $region22: #{m_csgnet_forward.8} parent=0 // pred_check
    _
  $region23: #{m_csgnet_forward.8} parent=0 // pred_check_branch
    %1375 = sbr.rel (0) target = $region25
  $region24: #{m_csgnet_forward.8} parent=0 // pred_region
    _
  $region25: #{m_csgnet_forward.8} parent=0 // pred_fallthru
    _
  // Predicated region
  $region26: #{m_csgnet_forward.8} parent=0 // pred_check
    _
  $region27: #{m_csgnet_forward.8} parent=0 // pred_check_branch
    %1377 = sbr.rel (0) target = $region29
  $region28: #{m_csgnet_forward.8} parent=0 // pred_region
    _
  $region29: #{m_csgnet_forward.8} parent=0 // pred_fallthru
    _

// kernel: m_csgnet_forward.9
$region0: #{m_csgnet_forward.9}
  #allocation0 [shape = 'u32[]', space=smem, size = 0x4, offset = 0x4, fixed_abs, tag = 'smem constant byte address 0x4 - core index']
  #allocation1 [shape = 'u32[144,128]{1,0:T(1,128)}', space=vmem, size = 0x12000, scoped, tag = 'internal scratch']
  %s0 = inlined_call_operand.vmem [shape: bf16[32,2048], index: 0, kind: input, shape index: {}]
  %s1 = inlined_call_operand.vmem [shape: bf16[2048,128], index: 1, kind: input, shape index: {}]
  %s2 = inlined_call_operand.vmem [shape: f32[1,128], index: 2, kind: input, shape index: {}]
  %s3 = inlined_call_operand.vmem [shape: f32[1,128], index: 3, kind: input, shape index: {}]
  %s4 = inlined_call_operand.vmem [shape: f32[1,128], index: 4, kind: input, shape index: {}]
  %s5 = inlined_call_operand.vmem [shape: bf16[8,128], index: 5, kind: output, shape index: {}]
  %s6 = sld [smem:[#allocation0]]
  $region30: #{m_csgnet_forward.9} parent=0
    _
  %s8 = ssub.s32 1, %s6
  %s9 = scalar_select 0, %s8, %s6
  // Predicated region
  $region2: #{m_csgnet_forward.9} parent=0 // pred_check
    _
  $region3: #{m_csgnet_forward.9} parent=0 // pred_check_branch
    %11 = sbr.rel (0) target = $region5
  $region4: #{m_csgnet_forward.9} parent=0 // pred_region
    _
  $region5: #{m_csgnet_forward.9} parent=0 // pred_fallthru
    _
  // Predicated region
  $region6: #{m_csgnet_forward.9} parent=0 // pred_check
    _
  $region7: #{m_csgnet_forward.9} parent=0 // pred_check_branch
    %13 = sbr.rel (0) target = $region9
  $region8: #{m_csgnet_forward.9} parent=0 // pred_region
    _
  $region9: #{m_csgnet_forward.9} parent=0 // pred_fallthru
    _
  // Predicated region
  $region10: #{m_csgnet_forward.9} parent=0 // pred_check
    _
  $region11: #{m_csgnet_forward.9} parent=0 // pred_check_branch
    %15 = sbr.rel (0) target = $region13
  $region12: #{m_csgnet_forward.9} parent=0 // pred_region
    _
  $region13: #{m_csgnet_forward.9} parent=0 // pred_fallthru
    _
  // Predicated region
  $region14: #{m_csgnet_forward.9} parent=0 // pred_check
    _
  $region15: #{m_csgnet_forward.9} parent=0 // pred_check_branch
    %17 = sbr.rel (0) target = $region17
  $region16: #{m_csgnet_forward.9} parent=0 // pred_region
    _
  $region17: #{m_csgnet_forward.9} parent=0 // pred_fallthru
    _
  // Predicated region
  $region18: #{m_csgnet_forward.9} parent=0 // pred_check
    _
  $region19: #{m_csgnet_forward.9} parent=0 // pred_check_branch
    %19 = sbr.rel (0) target = $region21
  $region20: #{m_csgnet_forward.9} parent=0 // pred_region
    _
  $region21: #{m_csgnet_forward.9} parent=0 // pred_fallthru
    _
  %v21 = vld [vmem:[%s0] sm:$0xff]
  %v22 = vld [vmem:[%s0 + $0x8] sm:$0xff]
  %v23 = vld [vmem:[%s0 + $0x10] sm:$0xff]
  %v24 = vld [vmem:[%s0 + $0x18] sm:$0xff]
  %v25 = vld [vmem:[%s0 + $0x20] sm:$0xff]
  %v26 = vld [vmem:[%s0 + $0x28] sm:$0xff]
  %v27 = vld [vmem:[%s0 + $0x30] sm:$0xff]
  %v28 = vld [vmem:[%s0 + $0x38] sm:$0xff]
  %v29 = vld [vmem:[%s0 + $0x40] sm:$0xff]
  %v30 = vld [vmem:[%s0 + $0x48] sm:$0xff]
  %v31 = vld [vmem:[%s0 + $0x50] sm:$0xff]
  %v32 = vld [vmem:[%s0 + $0x58] sm:$0xff]
  %v33 = vld [vmem:[%s0 + $0x60] sm:$0xff]
  %v34 = vld [vmem:[%s0 + $0x68] sm:$0xff]
  %v35 = vld [vmem:[%s0 + $0x70] sm:$0xff]
  %v36 = vld [vmem:[%s0 + $0x78] sm:$0xff]
  %v37 = vld [vmem:[%s0 + $0x80] sm:$0xff]
  %v38 = vld [vmem:[%s0 + $0x88] sm:$0xff]
  %v39 = vld [vmem:[%s0 + $0x90] sm:$0xff]
  %v40 = vld [vmem:[%s0 + $0x98] sm:$0xff]
  %v41 = vld [vmem:[%s0 + $0xa0] sm:$0xff]
  %v42 = vld [vmem:[%s0 + $0xa8] sm:$0xff]
  %v43 = vld [vmem:[%s0 + $0xb0] sm:$0xff]
  %v44 = vld [vmem:[%s0 + $0xb8] sm:$0xff]
  %v45 = vld [vmem:[%s0 + $0xc0] sm:$0xff]
  %v46 = vld [vmem:[%s0 + $0xc8] sm:$0xff]
  %v47 = vld [vmem:[%s0 + $0xd0] sm:$0xff]
  %v48 = vld [vmem:[%s0 + $0xd8] sm:$0xff]
  %v49 = vld [vmem:[%s0 + $0xe0] sm:$0xff]
  %v50 = vld [vmem:[%s0 + $0xe8] sm:$0xff]
  %v51 = vld [vmem:[%s0 + $0xf0] sm:$0xff]
  %v52 = vld [vmem:[%s0 + $0xf8] sm:$0xff]
  %v53 = vld [vmem:[%s1] sm:$0xf]
  %v54 = vld [vmem:[%s1 + $0x4] sm:$0xf]
  %v55 = vld [vmem:[%s1 + $0x8] sm:$0xf]
  %v56 = vld [vmem:[%s1 + $0xc] sm:$0xf]
  %v57 = vld [vmem:[%s1 + $0x10] sm:$0xf]
  %v58 = vld [vmem:[%s1 + $0x14] sm:$0xf]
  %v59 = vld [vmem:[%s1 + $0x18] sm:$0xf]
  %v60 = vld [vmem:[%s1 + $0x1c] sm:$0xf]
  %v61 = vld [vmem:[%s1 + $0x20] sm:$0xf]
  %v62 = vld [vmem:[%s1 + $0x24] sm:$0xf]
  %v63 = vld [vmem:[%s1 + $0x28] sm:$0xf]
  %v64 = vld [vmem:[%s1 + $0x2c] sm:$0xf]
  %v65 = vld [vmem:[%s1 + $0x30] sm:$0xf]
  %v66 = vld [vmem:[%s1 + $0x34] sm:$0xf]
  %v67 = vld [vmem:[%s1 + $0x38] sm:$0xf]
  %v68 = vld [vmem:[%s1 + $0x3c] sm:$0xf]
  %v69 = vld [vmem:[%s1 + $0x40] sm:$0xf]
  %v70 = vld [vmem:[%s1 + $0x44] sm:$0xf]
  %v71 = vld [vmem:[%s1 + $0x48] sm:$0xf]
  %v72 = vld [vmem:[%s1 + $0x4c] sm:$0xf]
  %v73 = vld [vmem:[%s1 + $0x50] sm:$0xf]
  %v74 = vld [vmem:[%s1 + $0x54] sm:$0xf]
  %v75 = vld [vmem:[%s1 + $0x58] sm:$0xf]
  %v76 = vld [vmem:[%s1 + $0x5c] sm:$0xf]
  %v77 = vld [vmem:[%s1 + $0x60] sm:$0xf]
  %v78 = vld [vmem:[%s1 + $0x64] sm:$0xf]
  %v79 = vld [vmem:[%s1 + $0x68] sm:$0xf]
  %v80 = vld [vmem:[%s1 + $0x6c] sm:$0xf]
  %v81 = vld [vmem:[%s1 + $0x70] sm:$0xf]
  %v82 = vld [vmem:[%s1 + $0x74] sm:$0xf]
  %v83 = vld [vmem:[%s1 + $0x78] sm:$0xf]
  %v84 = vld [vmem:[%s1 + $0x7c] sm:$0xf]
  %v85 = vld [vmem:[%s1 + $0x80] sm:$0xf]
  %v86 = vld [vmem:[%s1 + $0x84] sm:$0xf]
  %v87 = vld [vmem:[%s1 + $0x88] sm:$0xf]
  %v88 = vld [vmem:[%s1 + $0x8c] sm:$0xf]
  %v89 = vld [vmem:[%s1 + $0x90] sm:$0xf]
  %v90 = vld [vmem:[%s1 + $0x94] sm:$0xf]
  %v91 = vld [vmem:[%s1 + $0x98] sm:$0xf]
  %v92 = vld [vmem:[%s1 + $0x9c] sm:$0xf]
  %v93 = vld [vmem:[%s1 + $0xa0] sm:$0xf]
  %v94 = vld [vmem:[%s1 + $0xa4] sm:$0xf]
  %v95 = vld [vmem:[%s1 + $0xa8] sm:$0xf]
  %v96 = vld [vmem:[%s1 + $0xac] sm:$0xf]
  %v97 = vld [vmem:[%s1 + $0xb0] sm:$0xf]
  %v98 = vld [vmem:[%s1 + $0xb4] sm:$0xf]
  %v99 = vld [vmem:[%s1 + $0xb8] sm:$0xf]
  %v100 = vld [vmem:[%s1 + $0xbc] sm:$0xf]
  %v101 = vld [vmem:[%s1 + $0xc0] sm:$0xf]
  %v102 = vld [vmem:[%s1 + $0xc4] sm:$0xf]
  %v103 = vld [vmem:[%s1 + $0xc8] sm:$0xf]
  %v104 = vld [vmem:[%s1 + $0xcc] sm:$0xf]
  %v105 = vld [vmem:[%s1 + $0xd0] sm:$0xf]
  %v106 = vld [vmem:[%s1 + $0xd4] sm:$0xf]
  %v107 = vld [vmem:[%s1 + $0xd8] sm:$0xf]
  %v108 = vld [vmem:[%s1 + $0xdc] sm:$0xf]
  %v109 = vld [vmem:[%s1 + $0xe0] sm:$0xf]
  %v110 = vld [vmem:[%s1 + $0xe4] sm:$0xf]
  %v111 = vld [vmem:[%s1 + $0xe8] sm:$0xf]
  %v112 = vld [vmem:[%s1 + $0xec] sm:$0xf]
  %v113 = vld [vmem:[%s1 + $0xf0] sm:$0xf]
  %v114 = vld [vmem:[%s1 + $0xf4] sm:$0xf]
  %v115 = vld [vmem:[%s1 + $0xf8] sm:$0xf]
  %v116 = vld [vmem:[%s1 + $0xfc] sm:$0xf]
  %v117 = vld [vmem:[%s1 + $0x100] sm:$0xf]
  %v118 = vld [vmem:[%s1 + $0x104] sm:$0xf]
  %v119 = vld [vmem:[%s1 + $0x108] sm:$0xf]
  %v120 = vld [vmem:[%s1 + $0x10c] sm:$0xf]
  %v121 = vld [vmem:[%s1 + $0x110] sm:$0xf]
  %v122 = vld [vmem:[%s1 + $0x114] sm:$0xf]
  %v123 = vld [vmem:[%s1 + $0x118] sm:$0xf]
  %v124 = vld [vmem:[%s1 + $0x11c] sm:$0xf]
  %v125 = vld [vmem:[%s1 + $0x120] sm:$0xf]
  %v126 = vld [vmem:[%s1 + $0x124] sm:$0xf]
  %v127 = vld [vmem:[%s1 + $0x128] sm:$0xf]
  %v128 = vld [vmem:[%s1 + $0x12c] sm:$0xf]
  %v129 = vld [vmem:[%s1 + $0x130] sm:$0xf]
  %v130 = vld [vmem:[%s1 + $0x134] sm:$0xf]
  %v131 = vld [vmem:[%s1 + $0x138] sm:$0xf]
  %v132 = vld [vmem:[%s1 + $0x13c] sm:$0xf]
  %v133 = vld [vmem:[%s1 + $0x140] sm:$0xf]
  %v134 = vld [vmem:[%s1 + $0x144] sm:$0xf]
  %v135 = vld [vmem:[%s1 + $0x148] sm:$0xf]
  %v136 = vld [vmem:[%s1 + $0x14c] sm:$0xf]
  %v137 = vld [vmem:[%s1 + $0x150] sm:$0xf]
  %v138 = vld [vmem:[%s1 + $0x154] sm:$0xf]
  %v139 = vld [vmem:[%s1 + $0x158] sm:$0xf]
  %v140 = vld [vmem:[%s1 + $0x15c] sm:$0xf]
  %v141 = vld [vmem:[%s1 + $0x160] sm:$0xf]
  %v142 = vld [vmem:[%s1 + $0x164] sm:$0xf]
  %v143 = vld [vmem:[%s1 + $0x168] sm:$0xf]
  %v144 = vld [vmem:[%s1 + $0x16c] sm:$0xf]
  %v145 = vld [vmem:[%s1 + $0x170] sm:$0xf]
  %v146 = vld [vmem:[%s1 + $0x174] sm:$0xf]
  %v147 = vld [vmem:[%s1 + $0x178] sm:$0xf]
  %v148 = vld [vmem:[%s1 + $0x17c] sm:$0xf]
  %v149 = vld [vmem:[%s1 + $0x180] sm:$0xf]
  %v150 = vld [vmem:[%s1 + $0x184] sm:$0xf]
  %v151 = vld [vmem:[%s1 + $0x188] sm:$0xf]
  %v152 = vld [vmem:[%s1 + $0x18c] sm:$0xf]
  %v153 = vld [vmem:[%s1 + $0x190] sm:$0xf]
  %v154 = vld [vmem:[%s1 + $0x194] sm:$0xf]
  %v155 = vld [vmem:[%s1 + $0x198] sm:$0xf]
  %v156 = vld [vmem:[%s1 + $0x19c] sm:$0xf]
  %v157 = vld [vmem:[%s1 + $0x1a0] sm:$0xf]
  %v158 = vld [vmem:[%s1 + $0x1a4] sm:$0xf]
  %v159 = vld [vmem:[%s1 + $0x1a8] sm:$0xf]
  %v160 = vld [vmem:[%s1 + $0x1ac] sm:$0xf]
  %v161 = vld [vmem:[%s1 + $0x1b0] sm:$0xf]
  %v162 = vld [vmem:[%s1 + $0x1b4] sm:$0xf]
  %v163 = vld [vmem:[%s1 + $0x1b8] sm:$0xf]
  %v164 = vld [vmem:[%s1 + $0x1bc] sm:$0xf]
  %v165 = vld [vmem:[%s1 + $0x1c0] sm:$0xf]
  %v166 = vld [vmem:[%s1 + $0x1c4] sm:$0xf]
  %v167 = vld [vmem:[%s1 + $0x1c8] sm:$0xf]
  %v168 = vld [vmem:[%s1 + $0x1cc] sm:$0xf]
  %v169 = vld [vmem:[%s1 + $0x1d0] sm:$0xf]
  %v170 = vld [vmem:[%s1 + $0x1d4] sm:$0xf]
  %v171 = vld [vmem:[%s1 + $0x1d8] sm:$0xf]
  %v172 = vld [vmem:[%s1 + $0x1dc] sm:$0xf]
  %v173 = vld [vmem:[%s1 + $0x1e0] sm:$0xf]
  %v174 = vld [vmem:[%s1 + $0x1e4] sm:$0xf]
  %v175 = vld [vmem:[%s1 + $0x1e8] sm:$0xf]
  %v176 = vld [vmem:[%s1 + $0x1ec] sm:$0xf]
  %v177 = vld [vmem:[%s1 + $0x1f0] sm:$0xf]
  %v178 = vld [vmem:[%s1 + $0x1f4] sm:$0xf]
  %v179 = vld [vmem:[%s1 + $0x1f8] sm:$0xf]
  %v180 = vld [vmem:[%s1 + $0x1fc] sm:$0xf]
  %v181 = vld [vmem:[%s1 + $0x200] sm:$0xf]
  %v182 = vld [vmem:[%s1 + $0x204] sm:$0xf]
  %v183 = vld [vmem:[%s1 + $0x208] sm:$0xf]
  %v184 = vld [vmem:[%s1 + $0x20c] sm:$0xf]
  %v185 = vld [vmem:[%s1 + $0x210] sm:$0xf]
  %v186 = vld [vmem:[%s1 + $0x214] sm:$0xf]
  %v187 = vld [vmem:[%s1 + $0x218] sm:$0xf]
  %v188 = vld [vmem:[%s1 + $0x21c] sm:$0xf]
  %v189 = vld [vmem:[%s1 + $0x220] sm:$0xf]
  %v190 = vld [vmem:[%s1 + $0x224] sm:$0xf]
  %v191 = vld [vmem:[%s1 + $0x228] sm:$0xf]
  %v192 = vld [vmem:[%s1 + $0x22c] sm:$0xf]
  %v193 = vld [vmem:[%s1 + $0x230] sm:$0xf]
  %v194 = vld [vmem:[%s1 + $0x234] sm:$0xf]
  %v195 = vld [vmem:[%s1 + $0x238] sm:$0xf]
  %v196 = vld [vmem:[%s1 + $0x23c] sm:$0xf]
  %v197 = vld [vmem:[%s1 + $0x240] sm:$0xf]
  %v198 = vld [vmem:[%s1 + $0x244] sm:$0xf]
  %v199 = vld [vmem:[%s1 + $0x248] sm:$0xf]
  %v200 = vld [vmem:[%s1 + $0x24c] sm:$0xf]
  %v201 = vld [vmem:[%s1 + $0x250] sm:$0xf]
  %v202 = vld [vmem:[%s1 + $0x254] sm:$0xf]
  %v203 = vld [vmem:[%s1 + $0x258] sm:$0xf]
  %v204 = vld [vmem:[%s1 + $0x25c] sm:$0xf]
  %v205 = vld [vmem:[%s1 + $0x260] sm:$0xf]
  %v206 = vld [vmem:[%s1 + $0x264] sm:$0xf]
  %v207 = vld [vmem:[%s1 + $0x268] sm:$0xf]
  %v208 = vld [vmem:[%s1 + $0x26c] sm:$0xf]
  %v209 = vld [vmem:[%s1 + $0x270] sm:$0xf]
  %v210 = vld [vmem:[%s1 + $0x274] sm:$0xf]
  %v211 = vld [vmem:[%s1 + $0x278] sm:$0xf]
  %v212 = vld [vmem:[%s1 + $0x27c] sm:$0xf]
  %v213 = vld [vmem:[%s1 + $0x280] sm:$0xf]
  %v214 = vld [vmem:[%s1 + $0x284] sm:$0xf]
  %v215 = vld [vmem:[%s1 + $0x288] sm:$0xf]
  %v216 = vld [vmem:[%s1 + $0x28c] sm:$0xf]
  %v217 = vld [vmem:[%s1 + $0x290] sm:$0xf]
  %v218 = vld [vmem:[%s1 + $0x294] sm:$0xf]
  %v219 = vld [vmem:[%s1 + $0x298] sm:$0xf]
  %v220 = vld [vmem:[%s1 + $0x29c] sm:$0xf]
  %v221 = vld [vmem:[%s1 + $0x2a0] sm:$0xf]
  %v222 = vld [vmem:[%s1 + $0x2a4] sm:$0xf]
  %v223 = vld [vmem:[%s1 + $0x2a8] sm:$0xf]
  %v224 = vld [vmem:[%s1 + $0x2ac] sm:$0xf]
  %v225 = vld [vmem:[%s1 + $0x2b0] sm:$0xf]
  %v226 = vld [vmem:[%s1 + $0x2b4] sm:$0xf]
  %v227 = vld [vmem:[%s1 + $0x2b8] sm:$0xf]
  %v228 = vld [vmem:[%s1 + $0x2bc] sm:$0xf]
  %v229 = vld [vmem:[%s1 + $0x2c0] sm:$0xf]
  %v230 = vld [vmem:[%s1 + $0x2c4] sm:$0xf]
  %v231 = vld [vmem:[%s1 + $0x2c8] sm:$0xf]
  %v232 = vld [vmem:[%s1 + $0x2cc] sm:$0xf]
  %v233 = vld [vmem:[%s1 + $0x2d0] sm:$0xf]
  %v234 = vld [vmem:[%s1 + $0x2d4] sm:$0xf]
  %v235 = vld [vmem:[%s1 + $0x2d8] sm:$0xf]
  %v236 = vld [vmem:[%s1 + $0x2dc] sm:$0xf]
  %v237 = vld [vmem:[%s1 + $0x2e0] sm:$0xf]
  %v238 = vld [vmem:[%s1 + $0x2e4] sm:$0xf]
  %v239 = vld [vmem:[%s1 + $0x2e8] sm:$0xf]
  %v240 = vld [vmem:[%s1 + $0x2ec] sm:$0xf]
  %v241 = vld [vmem:[%s1 + $0x2f0] sm:$0xf]
  %v242 = vld [vmem:[%s1 + $0x2f4] sm:$0xf]
  %v243 = vld [vmem:[%s1 + $0x2f8] sm:$0xf]
  %v244 = vld [vmem:[%s1 + $0x2fc] sm:$0xf]
  %v245 = vld [vmem:[%s1 + $0x300] sm:$0xf]
  %v246 = vld [vmem:[%s1 + $0x304] sm:$0xf]
  %v247 = vld [vmem:[%s1 + $0x308] sm:$0xf]
  %v248 = vld [vmem:[%s1 + $0x30c] sm:$0xf]
  %v249 = vld [vmem:[%s1 + $0x310] sm:$0xf]
  %v250 = vld [vmem:[%s1 + $0x314] sm:$0xf]
  %v251 = vld [vmem:[%s1 + $0x318] sm:$0xf]
  %v252 = vld [vmem:[%s1 + $0x31c] sm:$0xf]
  %v253 = vld [vmem:[%s1 + $0x320] sm:$0xf]
  %v254 = vld [vmem:[%s1 + $0x324] sm:$0xf]
  %v255 = vld [vmem:[%s1 + $0x328] sm:$0xf]
  %v256 = vld [vmem:[%s1 + $0x32c] sm:$0xf]
  %v257 = vld [vmem:[%s1 + $0x330] sm:$0xf]
  %v258 = vld [vmem:[%s1 + $0x334] sm:$0xf]
  %v259 = vld [vmem:[%s1 + $0x338] sm:$0xf]
  %v260 = vld [vmem:[%s1 + $0x33c] sm:$0xf]
  %v261 = vld [vmem:[%s1 + $0x340] sm:$0xf]
  %v262 = vld [vmem:[%s1 + $0x344] sm:$0xf]
  %v263 = vld [vmem:[%s1 + $0x348] sm:$0xf]
  %v264 = vld [vmem:[%s1 + $0x34c] sm:$0xf]
  %v265 = vld [vmem:[%s1 + $0x350] sm:$0xf]
  %v266 = vld [vmem:[%s1 + $0x354] sm:$0xf]
  %v267 = vld [vmem:[%s1 + $0x358] sm:$0xf]
  %v268 = vld [vmem:[%s1 + $0x35c] sm:$0xf]
  %v269 = vld [vmem:[%s1 + $0x360] sm:$0xf]
  %v270 = vld [vmem:[%s1 + $0x364] sm:$0xf]
  %v271 = vld [vmem:[%s1 + $0x368] sm:$0xf]
  %v272 = vld [vmem:[%s1 + $0x36c] sm:$0xf]
  %v273 = vld [vmem:[%s1 + $0x370] sm:$0xf]
  %v274 = vld [vmem:[%s1 + $0x374] sm:$0xf]
  %v275 = vld [vmem:[%s1 + $0x378] sm:$0xf]
  %v276 = vld [vmem:[%s1 + $0x37c] sm:$0xf]
  %v277 = vld [vmem:[%s1 + $0x380] sm:$0xf]
  %v278 = vld [vmem:[%s1 + $0x384] sm:$0xf]
  %v279 = vld [vmem:[%s1 + $0x388] sm:$0xf]
  %v280 = vld [vmem:[%s1 + $0x38c] sm:$0xf]
  %v281 = vld [vmem:[%s1 + $0x390] sm:$0xf]
  %v282 = vld [vmem:[%s1 + $0x394] sm:$0xf]
  %v283 = vld [vmem:[%s1 + $0x398] sm:$0xf]
  %v284 = vld [vmem:[%s1 + $0x39c] sm:$0xf]
  %v285 = vld [vmem:[%s1 + $0x3a0] sm:$0xf]
  %v286 = vld [vmem:[%s1 + $0x3a4] sm:$0xf]
  %v287 = vld [vmem:[%s1 + $0x3a8] sm:$0xf]
  %v288 = vld [vmem:[%s1 + $0x3ac] sm:$0xf]
  %v289 = vld [vmem:[%s1 + $0x3b0] sm:$0xf]
  %v290 = vld [vmem:[%s1 + $0x3b4] sm:$0xf]
  %v291 = vld [vmem:[%s1 + $0x3b8] sm:$0xf]
  %v292 = vld [vmem:[%s1 + $0x3bc] sm:$0xf]
  %v293 = vld [vmem:[%s1 + $0x3c0] sm:$0xf]
  %v294 = vld [vmem:[%s1 + $0x3c4] sm:$0xf]
  %v295 = vld [vmem:[%s1 + $0x3c8] sm:$0xf]
  %v296 = vld [vmem:[%s1 + $0x3cc] sm:$0xf]
  %v297 = vld [vmem:[%s1 + $0x3d0] sm:$0xf]
  %v298 = vld [vmem:[%s1 + $0x3d4] sm:$0xf]
  %v299 = vld [vmem:[%s1 + $0x3d8] sm:$0xf]
  %v300 = vld [vmem:[%s1 + $0x3dc] sm:$0xf]
  %v301 = vld [vmem:[%s1 + $0x3e0] sm:$0xf]
  %v302 = vld [vmem:[%s1 + $0x3e4] sm:$0xf]
  %v303 = vld [vmem:[%s1 + $0x3e8] sm:$0xf]
  %v304 = vld [vmem:[%s1 + $0x3ec] sm:$0xf]
  %v305 = vld [vmem:[%s1 + $0x3f0] sm:$0xf]
  %v306 = vld [vmem:[%s1 + $0x3f4] sm:$0xf]
  %v307 = vld [vmem:[%s1 + $0x3f8] sm:$0xf]
  %v308 = vld [vmem:[%s1 + $0x3fc] sm:$0xf]
  %v341 = vunpack.c.l.b16 %v21
  %v342 = vunpack.c.h.b16 %v21
  %v343 = vunpack.c.l.b16 %v22
  %v344 = vunpack.c.h.b16 %v22
  %v345 = vunpack.c.l.b16 %v23
  %v346 = vunpack.c.h.b16 %v23
  %v347 = vunpack.c.l.b16 %v24
  %v348 = vunpack.c.h.b16 %v24
  %v349 = vunpack.c.l.b16 %v25
  %v350 = vunpack.c.h.b16 %v25
  %v351 = vunpack.c.l.b16 %v26
  %v352 = vunpack.c.h.b16 %v26
  %v353 = vunpack.c.l.b16 %v27
  %v354 = vunpack.c.h.b16 %v27
  %v355 = vunpack.c.l.b16 %v28
  %v356 = vunpack.c.h.b16 %v28
  %v357 = vunpack.c.l.b16 %v29
  %v358 = vunpack.c.h.b16 %v29
  %v359 = vunpack.c.l.b16 %v30
  %v360 = vunpack.c.h.b16 %v30
  %v361 = vunpack.c.l.b16 %v31
  %v362 = vunpack.c.h.b16 %v31
  %v363 = vunpack.c.l.b16 %v32
  %v364 = vunpack.c.h.b16 %v32
  %v365 = vunpack.c.l.b16 %v33
  %v366 = vunpack.c.h.b16 %v33
  %v367 = vunpack.c.l.b16 %v34
  %v368 = vunpack.c.h.b16 %v34
  %v369 = vunpack.c.l.b16 %v35
  %v370 = vunpack.c.h.b16 %v35
  %v371 = vunpack.c.l.b16 %v36
  %v372 = vunpack.c.h.b16 %v36
  %v373 = vunpack.c.l.b16 %v37
  %v374 = vunpack.c.h.b16 %v37
  %v375 = vunpack.c.l.b16 %v38
  %v376 = vunpack.c.h.b16 %v38
  %v377 = vunpack.c.l.b16 %v39
  %v378 = vunpack.c.h.b16 %v39
  %v379 = vunpack.c.l.b16 %v40
  %v380 = vunpack.c.h.b16 %v40
  %v381 = vunpack.c.l.b16 %v41
  %v382 = vunpack.c.h.b16 %v41
  %v383 = vunpack.c.l.b16 %v42
  %v384 = vunpack.c.h.b16 %v42
  %v385 = vunpack.c.l.b16 %v43
  %v386 = vunpack.c.h.b16 %v43
  %v387 = vunpack.c.l.b16 %v44
  %v388 = vunpack.c.h.b16 %v44
  %v389 = vunpack.c.l.b16 %v45
  %v390 = vunpack.c.h.b16 %v45
  %v391 = vunpack.c.l.b16 %v46
  %v392 = vunpack.c.h.b16 %v46
  %v393 = vunpack.c.l.b16 %v47
  %v394 = vunpack.c.h.b16 %v47
  %v395 = vunpack.c.l.b16 %v48
  %v396 = vunpack.c.h.b16 %v48
  %v397 = vunpack.c.l.b16 %v49
  %v398 = vunpack.c.h.b16 %v49
  %v399 = vunpack.c.l.b16 %v50
  %v400 = vunpack.c.h.b16 %v50
  %v401 = vunpack.c.l.b16 %v51
  %v402 = vunpack.c.h.b16 %v51
  %v403 = vunpack.c.l.b16 %v52
  %v404 = vunpack.c.h.b16 %v52
  %v405 = vpack.c.b16 %v357, %v341
  %v406 = vpack.c.b16 %v358, %v342
  %v407 = vpack.c.b16 %v359, %v343
  %v408 = vpack.c.b16 %v360, %v344
  %v409 = vpack.c.b16 %v361, %v345
  %v410 = vpack.c.b16 %v362, %v346
  %v411 = vpack.c.b16 %v363, %v347
  %v412 = vpack.c.b16 %v364, %v348
  %v413 = vpack.c.b16 %v365, %v349
  %v414 = vpack.c.b16 %v366, %v350
  %v415 = vpack.c.b16 %v367, %v351
  %v416 = vpack.c.b16 %v368, %v352
  %v417 = vpack.c.b16 %v369, %v353
  %v418 = vpack.c.b16 %v370, %v354
  %v419 = vpack.c.b16 %v371, %v355
  %v420 = vpack.c.b16 %v372, %v356
  %v421 = vpack.c.b16 %v389, %v373
  %v422 = vpack.c.b16 %v390, %v374
  %v423 = vpack.c.b16 %v391, %v375
  %v424 = vpack.c.b16 %v392, %v376
  %v425 = vpack.c.b16 %v393, %v377
  %v426 = vpack.c.b16 %v394, %v378
  %v427 = vpack.c.b16 %v395, %v379
  %v428 = vpack.c.b16 %v396, %v380
  %v429 = vpack.c.b16 %v397, %v381
  %v430 = vpack.c.b16 %v398, %v382
  %v431 = vpack.c.b16 %v399, %v383
  %v432 = vpack.c.b16 %v400, %v384
  %v433 = vpack.c.b16 %v401, %v385
  %v434 = vpack.c.b16 %v402, %v386
  %v435 = vpack.c.b16 %v403, %v387
  %v436 = vpack.c.b16 %v404, %v388
  %v725 = vunpack.c.l.b16 %v53
  %v726 = vunpack.c.l.b16 %v54
  %v727 = vunpack.c.l.b16 %v55
  %v728 = vunpack.c.l.b16 %v56
  %v729 = vunpack.c.l.b16 %v57
  %v730 = vunpack.c.l.b16 %v58
  %v731 = vunpack.c.l.b16 %v59
  %v732 = vunpack.c.l.b16 %v60
  %v733 = vunpack.c.l.b16 %v61
  %v734 = vunpack.c.l.b16 %v62
  %v735 = vunpack.c.l.b16 %v63
  %v736 = vunpack.c.l.b16 %v64
  %v737 = vunpack.c.l.b16 %v65
  %v738 = vunpack.c.l.b16 %v66
  %v739 = vunpack.c.l.b16 %v67
  %v740 = vunpack.c.l.b16 %v68
  %v741 = vunpack.c.l.b16 %v69
  %v742 = vunpack.c.l.b16 %v70
  %v743 = vunpack.c.l.b16 %v71
  %v744 = vunpack.c.l.b16 %v72
  %v745 = vunpack.c.l.b16 %v73
  %v746 = vunpack.c.l.b16 %v74
  %v747 = vunpack.c.l.b16 %v75
  %v748 = vunpack.c.l.b16 %v76
  %v749 = vunpack.c.l.b16 %v77
  %v750 = vunpack.c.l.b16 %v78
  %v751 = vunpack.c.l.b16 %v79
  %v752 = vunpack.c.l.b16 %v80
  %v753 = vunpack.c.l.b16 %v81
  %v754 = vunpack.c.l.b16 %v82
  %v755 = vunpack.c.l.b16 %v83
  %v756 = vunpack.c.l.b16 %v84
  %v757 = vunpack.c.l.b16 %v85
  %v758 = vunpack.c.l.b16 %v86
  %v759 = vunpack.c.l.b16 %v87
  %v760 = vunpack.c.l.b16 %v88
  %v761 = vunpack.c.l.b16 %v89
  %v762 = vunpack.c.l.b16 %v90
  %v763 = vunpack.c.l.b16 %v91
  %v764 = vunpack.c.l.b16 %v92
  %v765 = vunpack.c.l.b16 %v93
  %v766 = vunpack.c.l.b16 %v94
  %v767 = vunpack.c.l.b16 %v95
  %v768 = vunpack.c.l.b16 %v96
  %v769 = vunpack.c.l.b16 %v97
  %v770 = vunpack.c.l.b16 %v98
  %v771 = vunpack.c.l.b16 %v99
  %v772 = vunpack.c.l.b16 %v100
  %v773 = vunpack.c.l.b16 %v101
  %v774 = vunpack.c.l.b16 %v102
  %v775 = vunpack.c.l.b16 %v103
  %v776 = vunpack.c.l.b16 %v104
  %v777 = vunpack.c.l.b16 %v105
  %v778 = vunpack.c.l.b16 %v106
  %v779 = vunpack.c.l.b16 %v107
  %v780 = vunpack.c.l.b16 %v108
  %v781 = vunpack.c.l.b16 %v109
  %v782 = vunpack.c.l.b16 %v110
  %v783 = vunpack.c.l.b16 %v111
  %v784 = vunpack.c.l.b16 %v112
  %v785 = vunpack.c.l.b16 %v113
  %v786 = vunpack.c.l.b16 %v114
  %v787 = vunpack.c.l.b16 %v115
  %v788 = vunpack.c.l.b16 %v116
  %v789 = vunpack.c.l.b16 %v117
  %v790 = vunpack.c.l.b16 %v118
  %v791 = vunpack.c.l.b16 %v119
  %v792 = vunpack.c.l.b16 %v120
  %v793 = vunpack.c.l.b16 %v121
  %v794 = vunpack.c.l.b16 %v122
  %v795 = vunpack.c.l.b16 %v123
  %v796 = vunpack.c.l.b16 %v124
  %v797 = vunpack.c.l.b16 %v125
  %v798 = vunpack.c.l.b16 %v126
  %v799 = vunpack.c.l.b16 %v127
  %v800 = vunpack.c.l.b16 %v128
  %v801 = vunpack.c.l.b16 %v129
  %v802 = vunpack.c.l.b16 %v130
  %v803 = vunpack.c.l.b16 %v131
  %v804 = vunpack.c.l.b16 %v132
  %v805 = vunpack.c.l.b16 %v133
  %v806 = vunpack.c.l.b16 %v134
  %v807 = vunpack.c.l.b16 %v135
  %v808 = vunpack.c.l.b16 %v136
  %v809 = vunpack.c.l.b16 %v137
  %v810 = vunpack.c.l.b16 %v138
  %v811 = vunpack.c.l.b16 %v139
  %v812 = vunpack.c.l.b16 %v140
  %v813 = vunpack.c.l.b16 %v141
  %v814 = vunpack.c.l.b16 %v142
  %v815 = vunpack.c.l.b16 %v143
  %v816 = vunpack.c.l.b16 %v144
  %v817 = vunpack.c.l.b16 %v145
  %v818 = vunpack.c.l.b16 %v146
  %v819 = vunpack.c.l.b16 %v147
  %v820 = vunpack.c.l.b16 %v148
  %v821 = vunpack.c.l.b16 %v149
  %v822 = vunpack.c.l.b16 %v150
  %v823 = vunpack.c.l.b16 %v151
  %v824 = vunpack.c.l.b16 %v152
  %v825 = vunpack.c.l.b16 %v153
  %v826 = vunpack.c.l.b16 %v154
  %v827 = vunpack.c.l.b16 %v155
  %v828 = vunpack.c.l.b16 %v156
  %v829 = vunpack.c.l.b16 %v157
  %v830 = vunpack.c.l.b16 %v158
  %v831 = vunpack.c.l.b16 %v159
  %v832 = vunpack.c.l.b16 %v160
  %v833 = vunpack.c.l.b16 %v161
  %v834 = vunpack.c.l.b16 %v162
  %v835 = vunpack.c.l.b16 %v163
  %v836 = vunpack.c.l.b16 %v164
  %v837 = vunpack.c.l.b16 %v165
  %v838 = vunpack.c.l.b16 %v166
  %v839 = vunpack.c.l.b16 %v167
  %v840 = vunpack.c.l.b16 %v168
  %v841 = vunpack.c.l.b16 %v169
  %v842 = vunpack.c.l.b16 %v170
  %v843 = vunpack.c.l.b16 %v171
  %v844 = vunpack.c.l.b16 %v172
  %v845 = vunpack.c.l.b16 %v173
  %v846 = vunpack.c.l.b16 %v174
  %v847 = vunpack.c.l.b16 %v175
  %v848 = vunpack.c.l.b16 %v176
  %v849 = vunpack.c.l.b16 %v177
  %v850 = vunpack.c.l.b16 %v178
  %v851 = vunpack.c.l.b16 %v179
  %v852 = vunpack.c.l.b16 %v180
  %v853 = vunpack.c.l.b16 %v181
  %v854 = vunpack.c.l.b16 %v182
  %v855 = vunpack.c.l.b16 %v183
  %v856 = vunpack.c.l.b16 %v184
  %v857 = vunpack.c.l.b16 %v185
  %v858 = vunpack.c.l.b16 %v186
  %v859 = vunpack.c.l.b16 %v187
  %v860 = vunpack.c.l.b16 %v188
  %v861 = vunpack.c.l.b16 %v189
  %v862 = vunpack.c.l.b16 %v190
  %v863 = vunpack.c.l.b16 %v191
  %v864 = vunpack.c.l.b16 %v192
  %v865 = vunpack.c.l.b16 %v193
  %v866 = vunpack.c.l.b16 %v194
  %v867 = vunpack.c.l.b16 %v195
  %v868 = vunpack.c.l.b16 %v196
  %v869 = vunpack.c.l.b16 %v197
  %v870 = vunpack.c.l.b16 %v198
  %v871 = vunpack.c.l.b16 %v199
  %v872 = vunpack.c.l.b16 %v200
  %v873 = vunpack.c.l.b16 %v201
  %v874 = vunpack.c.l.b16 %v202
  %v875 = vunpack.c.l.b16 %v203
  %v876 = vunpack.c.l.b16 %v204
  %v877 = vunpack.c.l.b16 %v205
  %v878 = vunpack.c.l.b16 %v206
  %v879 = vunpack.c.l.b16 %v207
  %v880 = vunpack.c.l.b16 %v208
  %v881 = vunpack.c.l.b16 %v209
  %v882 = vunpack.c.l.b16 %v210
  %v883 = vunpack.c.l.b16 %v211
  %v884 = vunpack.c.l.b16 %v212
  %v885 = vunpack.c.l.b16 %v213
  %v886 = vunpack.c.l.b16 %v214
  %v887 = vunpack.c.l.b16 %v215
  %v888 = vunpack.c.l.b16 %v216
  %v889 = vunpack.c.l.b16 %v217
  %v890 = vunpack.c.l.b16 %v218
  %v891 = vunpack.c.l.b16 %v219
  %v892 = vunpack.c.l.b16 %v220
  %v893 = vunpack.c.l.b16 %v221
  %v894 = vunpack.c.l.b16 %v222
  %v895 = vunpack.c.l.b16 %v223
  %v896 = vunpack.c.l.b16 %v224
  %v897 = vunpack.c.l.b16 %v225
  %v898 = vunpack.c.l.b16 %v226
  %v899 = vunpack.c.l.b16 %v227
  %v900 = vunpack.c.l.b16 %v228
  %v901 = vunpack.c.l.b16 %v229
  %v902 = vunpack.c.l.b16 %v230
  %v903 = vunpack.c.l.b16 %v231
  %v904 = vunpack.c.l.b16 %v232
  %v905 = vunpack.c.l.b16 %v233
  %v906 = vunpack.c.l.b16 %v234
  %v907 = vunpack.c.l.b16 %v235
  %v908 = vunpack.c.l.b16 %v236
  %v909 = vunpack.c.l.b16 %v237
  %v910 = vunpack.c.l.b16 %v238
  %v911 = vunpack.c.l.b16 %v239
  %v912 = vunpack.c.l.b16 %v240
  %v913 = vunpack.c.l.b16 %v241
  %v914 = vunpack.c.l.b16 %v242
  %v915 = vunpack.c.l.b16 %v243
  %v916 = vunpack.c.l.b16 %v244
  %v917 = vunpack.c.l.b16 %v245
  %v918 = vunpack.c.l.b16 %v246
  %v919 = vunpack.c.l.b16 %v247
  %v920 = vunpack.c.l.b16 %v248
  %v921 = vunpack.c.l.b16 %v249
  %v922 = vunpack.c.l.b16 %v250
  %v923 = vunpack.c.l.b16 %v251
  %v924 = vunpack.c.l.b16 %v252
  %v925 = vunpack.c.l.b16 %v253
  %v926 = vunpack.c.l.b16 %v254
  %v927 = vunpack.c.l.b16 %v255
  %v928 = vunpack.c.l.b16 %v256
  %v929 = vunpack.c.l.b16 %v257
  %v930 = vunpack.c.l.b16 %v258
  %v931 = vunpack.c.l.b16 %v259
  %v932 = vunpack.c.l.b16 %v260
  %v933 = vunpack.c.l.b16 %v261
  %v934 = vunpack.c.l.b16 %v262
  %v935 = vunpack.c.l.b16 %v263
  %v936 = vunpack.c.l.b16 %v264
  %v937 = vunpack.c.l.b16 %v265
  %v938 = vunpack.c.l.b16 %v266
  %v939 = vunpack.c.l.b16 %v267
  %v940 = vunpack.c.l.b16 %v268
  %v941 = vunpack.c.l.b16 %v269
  %v942 = vunpack.c.l.b16 %v270
  %v943 = vunpack.c.l.b16 %v271
  %v944 = vunpack.c.l.b16 %v272
  %v945 = vunpack.c.l.b16 %v273
  %v946 = vunpack.c.l.b16 %v274
  %v947 = vunpack.c.l.b16 %v275
  %v948 = vunpack.c.l.b16 %v276
  %v949 = vunpack.c.l.b16 %v277
  %v950 = vunpack.c.l.b16 %v278
  %v951 = vunpack.c.l.b16 %v279
  %v952 = vunpack.c.l.b16 %v280
  %v953 = vunpack.c.l.b16 %v281
  %v954 = vunpack.c.l.b16 %v282
  %v955 = vunpack.c.l.b16 %v283
  %v956 = vunpack.c.l.b16 %v284
  %v957 = vunpack.c.l.b16 %v285
  %v958 = vunpack.c.l.b16 %v286
  %v959 = vunpack.c.l.b16 %v287
  %v960 = vunpack.c.l.b16 %v288
  %v961 = vunpack.c.l.b16 %v289
  %v962 = vunpack.c.l.b16 %v290
  %v963 = vunpack.c.l.b16 %v291
  %v964 = vunpack.c.l.b16 %v292
  %v965 = vunpack.c.l.b16 %v293
  %v966 = vunpack.c.l.b16 %v294
  %v967 = vunpack.c.l.b16 %v295
  %v968 = vunpack.c.l.b16 %v296
  %v969 = vunpack.c.l.b16 %v297
  %v970 = vunpack.c.l.b16 %v298
  %v971 = vunpack.c.l.b16 %v299
  %v972 = vunpack.c.l.b16 %v300
  %v973 = vunpack.c.l.b16 %v301
  %v974 = vunpack.c.l.b16 %v302
  %v975 = vunpack.c.l.b16 %v303
  %v976 = vunpack.c.l.b16 %v304
  %v977 = vunpack.c.l.b16 %v305
  %v978 = vunpack.c.l.b16 %v306
  %v979 = vunpack.c.l.b16 %v307
  %v980 = vunpack.c.l.b16 %v308
  %v981 = vpack.c.b16 %v726, %v725
  %v982 = vpack.c.b16 %v728, %v727
  %v983 = vpack.c.b16 %v730, %v729
  %v984 = vpack.c.b16 %v732, %v731
  %v985 = vpack.c.b16 %v734, %v733
  %v986 = vpack.c.b16 %v736, %v735
  %v987 = vpack.c.b16 %v738, %v737
  %v988 = vpack.c.b16 %v740, %v739
  %v989 = vpack.c.b16 %v742, %v741
  %v990 = vpack.c.b16 %v744, %v743
  %v991 = vpack.c.b16 %v746, %v745
  %v992 = vpack.c.b16 %v748, %v747
  %v993 = vpack.c.b16 %v750, %v749
  %v994 = vpack.c.b16 %v752, %v751
  %v995 = vpack.c.b16 %v754, %v753
  %v996 = vpack.c.b16 %v756, %v755
  %v997 = vpack.c.b16 %v758, %v757
  %v998 = vpack.c.b16 %v760, %v759
  %v999 = vpack.c.b16 %v762, %v761
  %v1000 = vpack.c.b16 %v764, %v763
  %v1001 = vpack.c.b16 %v766, %v765
  %v1002 = vpack.c.b16 %v768, %v767
  %v1003 = vpack.c.b16 %v770, %v769
  %v1004 = vpack.c.b16 %v772, %v771
  %v1005 = vpack.c.b16 %v774, %v773
  %v1006 = vpack.c.b16 %v776, %v775
  %v1007 = vpack.c.b16 %v778, %v777
  %v1008 = vpack.c.b16 %v780, %v779
  %v1009 = vpack.c.b16 %v782, %v781
  %v1010 = vpack.c.b16 %v784, %v783
  %v1011 = vpack.c.b16 %v786, %v785
  %v1012 = vpack.c.b16 %v788, %v787
  %v1013 = vpack.c.b16 %v790, %v789
  %v1014 = vpack.c.b16 %v792, %v791
  %v1015 = vpack.c.b16 %v794, %v793
  %v1016 = vpack.c.b16 %v796, %v795
  %v1017 = vpack.c.b16 %v798, %v797
  %v1018 = vpack.c.b16 %v800, %v799
  %v1019 = vpack.c.b16 %v802, %v801
  %v1020 = vpack.c.b16 %v804, %v803
  %v1021 = vpack.c.b16 %v806, %v805
  %v1022 = vpack.c.b16 %v808, %v807
  %v1023 = vpack.c.b16 %v810, %v809
  %v1024 = vpack.c.b16 %v812, %v811
  %v1025 = vpack.c.b16 %v814, %v813
  %v1026 = vpack.c.b16 %v816, %v815
  %v1027 = vpack.c.b16 %v818, %v817
  %v1028 = vpack.c.b16 %v820, %v819
  %v1029 = vpack.c.b16 %v822, %v821
  %v1030 = vpack.c.b16 %v824, %v823
  %v1031 = vpack.c.b16 %v826, %v825
  %v1032 = vpack.c.b16 %v828, %v827
  %v1033 = vpack.c.b16 %v830, %v829
  %v1034 = vpack.c.b16 %v832, %v831
  %v1035 = vpack.c.b16 %v834, %v833
  %v1036 = vpack.c.b16 %v836, %v835
  %v1037 = vpack.c.b16 %v838, %v837
  %v1038 = vpack.c.b16 %v840, %v839
  %v1039 = vpack.c.b16 %v842, %v841
  %v1040 = vpack.c.b16 %v844, %v843
  %v1041 = vpack.c.b16 %v846, %v845
  %v1042 = vpack.c.b16 %v848, %v847
  %v1043 = vpack.c.b16 %v850, %v849
  %v1044 = vpack.c.b16 %v852, %v851
  %v1045 = vpack.c.b16 %v854, %v853
  %v1046 = vpack.c.b16 %v856, %v855
  %v1047 = vpack.c.b16 %v858, %v857
  %v1048 = vpack.c.b16 %v860, %v859
  %v1049 = vpack.c.b16 %v862, %v861
  %v1050 = vpack.c.b16 %v864, %v863
  %v1051 = vpack.c.b16 %v866, %v865
  %v1052 = vpack.c.b16 %v868, %v867
  %v1053 = vpack.c.b16 %v870, %v869
  %v1054 = vpack.c.b16 %v872, %v871
  %v1055 = vpack.c.b16 %v874, %v873
  %v1056 = vpack.c.b16 %v876, %v875
  %v1057 = vpack.c.b16 %v878, %v877
  %v1058 = vpack.c.b16 %v880, %v879
  %v1059 = vpack.c.b16 %v882, %v881
  %v1060 = vpack.c.b16 %v884, %v883
  %v1061 = vpack.c.b16 %v886, %v885
  %v1062 = vpack.c.b16 %v888, %v887
  %v1063 = vpack.c.b16 %v890, %v889
  %v1064 = vpack.c.b16 %v892, %v891
  %v1065 = vpack.c.b16 %v894, %v893
  %v1066 = vpack.c.b16 %v896, %v895
  %v1067 = vpack.c.b16 %v898, %v897
  %v1068 = vpack.c.b16 %v900, %v899
  %v1069 = vpack.c.b16 %v902, %v901
  %v1070 = vpack.c.b16 %v904, %v903
  %v1071 = vpack.c.b16 %v906, %v905
  %v1072 = vpack.c.b16 %v908, %v907
  %v1073 = vpack.c.b16 %v910, %v909
  %v1074 = vpack.c.b16 %v912, %v911
  %v1075 = vpack.c.b16 %v914, %v913
  %v1076 = vpack.c.b16 %v916, %v915
  %v1077 = vpack.c.b16 %v918, %v917
  %v1078 = vpack.c.b16 %v920, %v919
  %v1079 = vpack.c.b16 %v922, %v921
  %v1080 = vpack.c.b16 %v924, %v923
  %v1081 = vpack.c.b16 %v926, %v925
  %v1082 = vpack.c.b16 %v928, %v927
  %v1083 = vpack.c.b16 %v930, %v929
  %v1084 = vpack.c.b16 %v932, %v931
  %v1085 = vpack.c.b16 %v934, %v933
  %v1086 = vpack.c.b16 %v936, %v935
  %v1087 = vpack.c.b16 %v938, %v937
  %v1088 = vpack.c.b16 %v940, %v939
  %v1089 = vpack.c.b16 %v942, %v941
  %v1090 = vpack.c.b16 %v944, %v943
  %v1091 = vpack.c.b16 %v946, %v945
  %v1092 = vpack.c.b16 %v948, %v947
  %v1093 = vpack.c.b16 %v950, %v949
  %v1094 = vpack.c.b16 %v952, %v951
  %v1095 = vpack.c.b16 %v954, %v953
  %v1096 = vpack.c.b16 %v956, %v955
  %v1097 = vpack.c.b16 %v958, %v957
  %v1098 = vpack.c.b16 %v960, %v959
  %v1099 = vpack.c.b16 %v962, %v961
  %v1100 = vpack.c.b16 %v964, %v963
  %v1101 = vpack.c.b16 %v966, %v965
  %v1102 = vpack.c.b16 %v968, %v967
  %v1103 = vpack.c.b16 %v970, %v969
  %v1104 = vpack.c.b16 %v972, %v971
  %v1105 = vpack.c.b16 %v974, %v973
  %v1106 = vpack.c.b16 %v976, %v975
  %v1107 = vpack.c.b16 %v978, %v977
  %v1108 = vpack.c.b16 %v980, %v979
  %1237 = vmatprep.subr.bf16.mxu0 0
  %1238 = vmatpush1.bf16.msra.mxu0 %v988
  %1239 = vmatprep.subr.bf16.mxu0 0
  %1240 = vmatpush1.bf16.msra.mxu0 %v987
  %1241 = vmatprep.subr.bf16.mxu0 0
  %1242 = vmatpush1.bf16.msra.mxu0 %v986
  %1243 = vmatprep.subr.bf16.mxu0 0
  %1244 = vmatpush1.bf16.msra.mxu0 %v985
  %1245 = vmatprep.subr.bf16.mxu0 0
  %1246 = vmatpush1.bf16.msra.mxu0 %v984
  %1247 = vmatprep.subr.bf16.mxu0 0
  %1248 = vmatpush1.bf16.msra.mxu0 %v983
  %1249 = vmatprep.subr.bf16.mxu0 0
  %1250 = vmatpush1.bf16.msra.mxu0 %v982
  %1251 = vmatprep.subr.bf16.mxu0 0
  %1252 = vmatpush1.bf16.msra.mxu0 %v981
  %1253 = vmatprep.subr.bf16.mxu0 0
  %1254 = vmatpush2.bf16.msra.mxu0 %v996
  %1255 = vmatprep.subr.bf16.mxu0 0
  %1256 = vmatpush2.bf16.msra.mxu0 %v995
  %1257 = vmatprep.subr.bf16.mxu0 0
  %1258 = vmatpush2.bf16.msra.mxu0 %v994
  %1259 = vmatprep.subr.bf16.mxu0 0
  %1260 = vmatpush2.bf16.msra.mxu0 %v993
  %1261 = vmatprep.subr.bf16.mxu0 0
  %1262 = vmatpush2.bf16.msra.mxu0 %v992
  %1263 = vmatprep.subr.bf16.mxu0 0
  %1264 = vmatpush2.bf16.msra.mxu0 %v991
  %1265 = vmatprep.subr.bf16.mxu0 0
  %1266 = vmatpush2.bf16.msra.mxu0 %v990
  %1267 = vmatprep.subr.bf16.mxu0 0
  %1268 = vmatpush2.bf16.msra.mxu0 %v989
  %1269 = vmatprep.mubr.bf16.mxu0 %v406
  %1270 = vmatmul.mubr.bf16.gmra.mxu0 %v405
  %v1271 = vpop.f32.mrf.mxu0
  %v1272 = vadd.f32 0.0, %v1271
  %v1273 = vpop.f32.mrf.mxu0
  %v1274 = vpop.f32.mrf.mxu0
  %v1275 = vadd.f32 0.0, %v1274
  %v1276 = vpop.f32.mrf.mxu0
  %1277 = vmatprep.mubr.bf16.mxu0 %v422
  %1278 = vmatmul.mubr.bf16.gmra.mxu0 %v421
  %v1279 = vpop.f32.mrf.mxu0
  %v1280 = vadd.f32 0.0, %v1279
  %v1281 = vpop.f32.mrf.mxu0
  %v1282 = vpop.f32.mrf.mxu0
  %v1283 = vadd.f32 0.0, %v1282
  %v1284 = vpop.f32.mrf.mxu0
  %1285 = vdwg.mxu0
  %1286 = vmatprep.subr.bf16.mxu0 0
  %1287 = vmatpush1.bf16.msra.mxu0 %v1004
  %1288 = vmatprep.subr.bf16.mxu0 0
  %1289 = vmatpush1.bf16.msra.mxu0 %v1003
  %1290 = vmatprep.subr.bf16.mxu0 0
  %1291 = vmatpush1.bf16.msra.mxu0 %v1002
  %1292 = vmatprep.subr.bf16.mxu0 0
  %1293 = vmatpush1.bf16.msra.mxu0 %v1001
  %1294 = vmatprep.subr.bf16.mxu0 0
  %1295 = vmatpush1.bf16.msra.mxu0 %v1000
  %1296 = vmatprep.subr.bf16.mxu0 0
  %1297 = vmatpush1.bf16.msra.mxu0 %v999
  %1298 = vmatprep.subr.bf16.mxu0 0
  %1299 = vmatpush1.bf16.msra.mxu0 %v998
  %1300 = vmatprep.subr.bf16.mxu0 0
  %1301 = vmatpush1.bf16.msra.mxu0 %v997
  %1302 = vmatprep.subr.bf16.mxu0 0
  %1303 = vmatpush2.bf16.msra.mxu0 %v1012
  %1304 = vmatprep.subr.bf16.mxu0 0
  %1305 = vmatpush2.bf16.msra.mxu0 %v1011
  %1306 = vmatprep.subr.bf16.mxu0 0
  %1307 = vmatpush2.bf16.msra.mxu0 %v1010
  %1308 = vmatprep.subr.bf16.mxu0 0
  %1309 = vmatpush2.bf16.msra.mxu0 %v1009
  %1310 = vmatprep.subr.bf16.mxu0 0
  %1311 = vmatpush2.bf16.msra.mxu0 %v1008
  %1312 = vmatprep.subr.bf16.mxu0 0
  %1313 = vmatpush2.bf16.msra.mxu0 %v1007
  %1314 = vmatprep.subr.bf16.mxu0 0
  %1315 = vmatpush2.bf16.msra.mxu0 %v1006
  %1316 = vmatprep.subr.bf16.mxu0 0
  %1317 = vmatpush2.bf16.msra.mxu0 %v1005
  %1318 = vmatprep.mubr.bf16.mxu0 %v408
  %1319 = vmatmul.mubr.bf16.gmra.mxu0 %v407
  %v1320 = vpop.f32.mrf.mxu0
  %v1321 = vadd.f32 %v1272, %v1320
  %v1322 = vpop.f32.mrf.mxu0
  %v1323 = vpop.f32.mrf.mxu0
  %v1324 = vadd.f32 %v1275, %v1323
  %v1325 = vpop.f32.mrf.mxu0
  %1326 = vmatprep.mubr.bf16.mxu0 %v424
  %1327 = vmatmul.mubr.bf16.gmra.mxu0 %v423
  %v1328 = vpop.f32.mrf.mxu0
  %v1329 = vadd.f32 %v1280, %v1328
  %v1330 = vpop.f32.mrf.mxu0
  %v1331 = vpop.f32.mrf.mxu0
  %v1332 = vadd.f32 %v1283, %v1331
  %v1333 = vpop.f32.mrf.mxu0
  %1334 = vdwg.mxu0
  %1335 = vmatprep.subr.bf16.mxu0 0
  %1336 = vmatpush1.bf16.msra.mxu0 %v1020
  %1337 = vmatprep.subr.bf16.mxu0 0
  %1338 = vmatpush1.bf16.msra.mxu0 %v1019
  %1339 = vmatprep.subr.bf16.mxu0 0
  %1340 = vmatpush1.bf16.msra.mxu0 %v1018
  %1341 = vmatprep.subr.bf16.mxu0 0
  %1342 = vmatpush1.bf16.msra.mxu0 %v1017
  %1343 = vmatprep.subr.bf16.mxu0 0
  %1344 = vmatpush1.bf16.msra.mxu0 %v1016
  %1345 = vmatprep.subr.bf16.mxu0 0
  %1346 = vmatpush1.bf16.msra.mxu0 %v1015
  %1347 = vmatprep.subr.bf16.mxu0 0
  %1348 = vmatpush1.bf16.msra.mxu0 %v1014
  %1349 = vmatprep.subr.bf16.mxu0 0
  %1350 = vmatpush1.bf16.msra.mxu0 %v1013
  %1351 = vmatprep.subr.bf16.mxu0 0
  %1352 = vmatpush2.bf16.msra.mxu0 %v1028
  %1353 = vmatprep.subr.bf16.mxu0 0
  %1354 = vmatpush2.bf16.msra.mxu0 %v1027
  %1355 = vmatprep.subr.bf16.mxu0 0
  %1356 = vmatpush2.bf16.msra.mxu0 %v1026
  %1357 = vmatprep.subr.bf16.mxu0 0
  %1358 = vmatpush2.bf16.msra.mxu0 %v1025
  %1359 = vmatprep.subr.bf16.mxu0 0
  %1360 = vmatpush2.bf16.msra.mxu0 %v1024
  %1361 = vmatprep.subr.bf16.mxu0 0
  %1362 = vmatpush2.bf16.msra.mxu0 %v1023
  %1363 = vmatprep.subr.bf16.mxu0 0
  %1364 = vmatpush2.bf16.msra.mxu0 %v1022
  %1365 = vmatprep.subr.bf16.mxu0 0
  %1366 = vmatpush2.bf16.msra.mxu0 %v1021
  %1367 = vmatprep.mubr.bf16.mxu0 %v410
  %1368 = vmatmul.mubr.bf16.gmra.mxu0 %v409
  %v1369 = vpop.f32.mrf.mxu0
  %v1370 = vadd.f32 %v1321, %v1369
  %v1371 = vpop.f32.mrf.mxu0
  %v1372 = vpop.f32.mrf.mxu0
  %v1373 = vadd.f32 %v1324, %v1372
  %v1374 = vpop.f32.mrf.mxu0
  %1375 = vmatprep.mubr.bf16.mxu0 %v426
  %1376 = vmatmul.mubr.bf16.gmra.mxu0 %v425
  %v1377 = vpop.f32.mrf.mxu0
  %v1378 = vadd.f32 %v1329, %v1377
  %v1379 = vpop.f32.mrf.mxu0
  %v1380 = vpop.f32.mrf.mxu0
  %v1381 = vadd.f32 %v1332, %v1380
  %v1382 = vpop.f32.mrf.mxu0
  %1383 = vdwg.mxu0
  %1384 = vmatprep.subr.bf16.mxu0 0
  %1385 = vmatpush1.bf16.msra.mxu0 %v1036
  %1386 = vmatprep.subr.bf16.mxu0 0
  %1387 = vmatpush1.bf16.msra.mxu0 %v1035
  %1388 = vmatprep.subr.bf16.mxu0 0
  %1389 = vmatpush1.bf16.msra.mxu0 %v1034
  %1390 = vmatprep.subr.bf16.mxu0 0
  %1391 = vmatpush1.bf16.msra.mxu0 %v1033
  %1392 = vmatprep.subr.bf16.mxu0 0
  %1393 = vmatpush1.bf16.msra.mxu0 %v1032
  %1394 = vmatprep.subr.bf16.mxu0 0
  %1395 = vmatpush1.bf16.msra.mxu0 %v1031
  %1396 = vmatprep.subr.bf16.mxu0 0
  %1397 = vmatpush1.bf16.msra.mxu0 %v1030
  %1398 = vmatprep.subr.bf16.mxu0 0
  %1399 = vmatpush1.bf16.msra.mxu0 %v1029
  %1400 = vmatprep.subr.bf16.mxu0 0
  %1401 = vmatpush2.bf16.msra.mxu0 %v1044
  %1402 = vmatprep.subr.bf16.mxu0 0
  %1403 = vmatpush2.bf16.msra.mxu0 %v1043
  %1404 = vmatprep.subr.bf16.mxu0 0
  %1405 = vmatpush2.bf16.msra.mxu0 %v1042
  %1406 = vmatprep.subr.bf16.mxu0 0
  %1407 = vmatpush2.bf16.msra.mxu0 %v1041
  %1408 = vmatprep.subr.bf16.mxu0 0
  %1409 = vmatpush2.bf16.msra.mxu0 %v1040
  %1410 = vmatprep.subr.bf16.mxu0 0
  %1411 = vmatpush2.bf16.msra.mxu0 %v1039
  %1412 = vmatprep.subr.bf16.mxu0 0
  %1413 = vmatpush2.bf16.msra.mxu0 %v1038
  %1414 = vmatprep.subr.bf16.mxu0 0
  %1415 = vmatpush2.bf16.msra.mxu0 %v1037
  %1416 = vmatprep.mubr.bf16.mxu0 %v412
  %1417 = vmatmul.mubr.bf16.gmra.mxu0 %v411
  %v1418 = vpop.f32.mrf.mxu0
  %v1419 = vadd.f32 %v1370, %v1418
  %v1420 = vpop.f32.mrf.mxu0
  %v1421 = vpop.f32.mrf.mxu0
  %v1422 = vadd.f32 %v1373, %v1421
  %v1423 = vpop.f32.mrf.mxu0
  %1424 = vmatprep.mubr.bf16.mxu0 %v428
  %1425 = vmatmul.mubr.bf16.gmra.mxu0 %v427
  %v1426 = vpop.f32.mrf.mxu0
  %v1427 = vadd.f32 %v1378, %v1426
  %v1428 = vpop.f32.mrf.mxu0
  %v1429 = vpop.f32.mrf.mxu0
  %v1430 = vadd.f32 %v1381, %v1429
  %v1431 = vpop.f32.mrf.mxu0
  %1432 = vdwg.mxu0
  %1433 = vmatprep.subr.bf16.mxu0 0
  %1434 = vmatpush1.bf16.msra.mxu0 %v1052
  %1435 = vmatprep.subr.bf16.mxu0 0
  %1436 = vmatpush1.bf16.msra.mxu0 %v1051
  %1437 = vmatprep.subr.bf16.mxu0 0
  %1438 = vmatpush1.bf16.msra.mxu0 %v1050
  %1439 = vmatprep.subr.bf16.mxu0 0
  %1440 = vmatpush1.bf16.msra.mxu0 %v1049
  %1441 = vmatprep.subr.bf16.mxu0 0
  %1442 = vmatpush1.bf16.msra.mxu0 %v1048
  %1443 = vmatprep.subr.bf16.mxu0 0
  %1444 = vmatpush1.bf16.msra.mxu0 %v1047
  %1445 = vmatprep.subr.bf16.mxu0 0
  %1446 = vmatpush1.bf16.msra.mxu0 %v1046
  %1447 = vmatprep.subr.bf16.mxu0 0
  %1448 = vmatpush1.bf16.msra.mxu0 %v1045
  %1449 = vmatprep.subr.bf16.mxu0 0
  %1450 = vmatpush2.bf16.msra.mxu0 %v1060
  %1451 = vmatprep.subr.bf16.mxu0 0
  %1452 = vmatpush2.bf16.msra.mxu0 %v1059
  %1453 = vmatprep.subr.bf16.mxu0 0
  %1454 = vmatpush2.bf16.msra.mxu0 %v1058
  %1455 = vmatprep.subr.bf16.mxu0 0
  %1456 = vmatpush2.bf16.msra.mxu0 %v1057
  %1457 = vmatprep.subr.bf16.mxu0 0
  %1458 = vmatpush2.bf16.msra.mxu0 %v1056
  %1459 = vmatprep.subr.bf16.mxu0 0
  %1460 = vmatpush2.bf16.msra.mxu0 %v1055
  %1461 = vmatprep.subr.bf16.mxu0 0
  %1462 = vmatpush2.bf16.msra.mxu0 %v1054
  %1463 = vmatprep.subr.bf16.mxu0 0
  %1464 = vmatpush2.bf16.msra.mxu0 %v1053
  %1465 = vmatprep.mubr.bf16.mxu0 %v414
  %1466 = vmatmul.mubr.bf16.gmra.mxu0 %v413
  %v1467 = vpop.f32.mrf.mxu0
  %v1468 = vadd.f32 %v1419, %v1467
  %v1469 = vpop.f32.mrf.mxu0
  %v1470 = vpop.f32.mrf.mxu0
  %v1471 = vadd.f32 %v1422, %v1470
  %v1472 = vpop.f32.mrf.mxu0
  %1473 = vmatprep.mubr.bf16.mxu0 %v430
  %1474 = vmatmul.mubr.bf16.gmra.mxu0 %v429
  %v1475 = vpop.f32.mrf.mxu0
  %v1476 = vadd.f32 %v1427, %v1475
  %v1477 = vpop.f32.mrf.mxu0
  %v1478 = vpop.f32.mrf.mxu0
  %v1479 = vadd.f32 %v1430, %v1478
  %v1480 = vpop.f32.mrf.mxu0
  %1481 = vdwg.mxu0
  %1482 = vmatprep.subr.bf16.mxu0 0
  %1483 = vmatpush1.bf16.msra.mxu0 %v1068
  %1484 = vmatprep.subr.bf16.mxu0 0
  %1485 = vmatpush1.bf16.msra.mxu0 %v1067
  %1486 = vmatprep.subr.bf16.mxu0 0
  %1487 = vmatpush1.bf16.msra.mxu0 %v1066
  %1488 = vmatprep.subr.bf16.mxu0 0
  %1489 = vmatpush1.bf16.msra.mxu0 %v1065
  %1490 = vmatprep.subr.bf16.mxu0 0
  %1491 = vmatpush1.bf16.msra.mxu0 %v1064
  %1492 = vmatprep.subr.bf16.mxu0 0
  %1493 = vmatpush1.bf16.msra.mxu0 %v1063
  %1494 = vmatprep.subr.bf16.mxu0 0
  %1495 = vmatpush1.bf16.msra.mxu0 %v1062
  %1496 = vmatprep.subr.bf16.mxu0 0
  %1497 = vmatpush1.bf16.msra.mxu0 %v1061
  %1498 = vmatprep.subr.bf16.mxu0 0
  %1499 = vmatpush2.bf16.msra.mxu0 %v1076
  %1500 = vmatprep.subr.bf16.mxu0 0
  %1501 = vmatpush2.bf16.msra.mxu0 %v1075
  %1502 = vmatprep.subr.bf16.mxu0 0
  %1503 = vmatpush2.bf16.msra.mxu0 %v1074
  %1504 = vmatprep.subr.bf16.mxu0 0
  %1505 = vmatpush2.bf16.msra.mxu0 %v1073
  %1506 = vmatprep.subr.bf16.mxu0 0
  %1507 = vmatpush2.bf16.msra.mxu0 %v1072
  %1508 = vmatprep.subr.bf16.mxu0 0
  %1509 = vmatpush2.bf16.msra.mxu0 %v1071
  %1510 = vmatprep.subr.bf16.mxu0 0
  %1511 = vmatpush2.bf16.msra.mxu0 %v1070
  %1512 = vmatprep.subr.bf16.mxu0 0
  %1513 = vmatpush2.bf16.msra.mxu0 %v1069
  %1514 = vmatprep.mubr.bf16.mxu0 %v416
  %1515 = vmatmul.mubr.bf16.gmra.mxu0 %v415
  %v1516 = vpop.f32.mrf.mxu0
  %v1517 = vadd.f32 %v1468, %v1516
  %v1518 = vpop.f32.mrf.mxu0
  %v1519 = vpop.f32.mrf.mxu0
  %v1520 = vadd.f32 %v1471, %v1519
  %v1521 = vpop.f32.mrf.mxu0
  %1522 = vmatprep.mubr.bf16.mxu0 %v432
  %1523 = vmatmul.mubr.bf16.gmra.mxu0 %v431
  %v1524 = vpop.f32.mrf.mxu0
  %v1525 = vadd.f32 %v1476, %v1524
  %v1526 = vpop.f32.mrf.mxu0
  %v1527 = vpop.f32.mrf.mxu0
  %v1528 = vadd.f32 %v1479, %v1527
  %v1529 = vpop.f32.mrf.mxu0
  %1530 = vdwg.mxu0
  %1531 = vmatprep.subr.bf16.mxu0 0
  %1532 = vmatpush1.bf16.msra.mxu0 %v1084
  %1533 = vmatprep.subr.bf16.mxu0 0
  %1534 = vmatpush1.bf16.msra.mxu0 %v1083
  %1535 = vmatprep.subr.bf16.mxu0 0
  %1536 = vmatpush1.bf16.msra.mxu0 %v1082
  %1537 = vmatprep.subr.bf16.mxu0 0
  %1538 = vmatpush1.bf16.msra.mxu0 %v1081
  %1539 = vmatprep.subr.bf16.mxu0 0
  %1540 = vmatpush1.bf16.msra.mxu0 %v1080
  %1541 = vmatprep.subr.bf16.mxu0 0
  %1542 = vmatpush1.bf16.msra.mxu0 %v1079
  %1543 = vmatprep.subr.bf16.mxu0 0
  %1544 = vmatpush1.bf16.msra.mxu0 %v1078
  %1545 = vmatprep.subr.bf16.mxu0 0
  %1546 = vmatpush1.bf16.msra.mxu0 %v1077
  %1547 = vmatprep.subr.bf16.mxu0 0
  %1548 = vmatpush2.bf16.msra.mxu0 %v1092
  %1549 = vmatprep.subr.bf16.mxu0 0
  %1550 = vmatpush2.bf16.msra.mxu0 %v1091
  %1551 = vmatprep.subr.bf16.mxu0 0
  %1552 = vmatpush2.bf16.msra.mxu0 %v1090
  %1553 = vmatprep.subr.bf16.mxu0 0
  %1554 = vmatpush2.bf16.msra.mxu0 %v1089
  %1555 = vmatprep.subr.bf16.mxu0 0
  %1556 = vmatpush2.bf16.msra.mxu0 %v1088
  %1557 = vmatprep.subr.bf16.mxu0 0
  %1558 = vmatpush2.bf16.msra.mxu0 %v1087
  %1559 = vmatprep.subr.bf16.mxu0 0
  %1560 = vmatpush2.bf16.msra.mxu0 %v1086
  %1561 = vmatprep.subr.bf16.mxu0 0
  %1562 = vmatpush2.bf16.msra.mxu0 %v1085
  %1563 = vmatprep.mubr.bf16.mxu0 %v418
  %1564 = vmatmul.mubr.bf16.gmra.mxu0 %v417
  %v1565 = vpop.f32.mrf.mxu0
  %v1566 = vadd.f32 %v1517, %v1565
  %v1567 = vpop.f32.mrf.mxu0
  %v1568 = vpop.f32.mrf.mxu0
  %v1569 = vadd.f32 %v1520, %v1568
  %v1570 = vpop.f32.mrf.mxu0
  %1571 = vmatprep.mubr.bf16.mxu0 %v434
  %1572 = vmatmul.mubr.bf16.gmra.mxu0 %v433
  %v1573 = vpop.f32.mrf.mxu0
  %v1574 = vadd.f32 %v1525, %v1573
  %v1575 = vpop.f32.mrf.mxu0
  %v1576 = vpop.f32.mrf.mxu0
  %v1577 = vadd.f32 %v1528, %v1576
  %v1578 = vpop.f32.mrf.mxu0
  %1579 = vdwg.mxu0
  %1580 = vmatprep.subr.bf16.mxu0 0
  %1581 = vmatpush1.bf16.msra.mxu0 %v1100
  %1582 = vmatprep.subr.bf16.mxu0 0
  %1583 = vmatpush1.bf16.msra.mxu0 %v1099
  %1584 = vmatprep.subr.bf16.mxu0 0
  %1585 = vmatpush1.bf16.msra.mxu0 %v1098
  %1586 = vmatprep.subr.bf16.mxu0 0
  %1587 = vmatpush1.bf16.msra.mxu0 %v1097
  %1588 = vmatprep.subr.bf16.mxu0 0
  %1589 = vmatpush1.bf16.msra.mxu0 %v1096
  %1590 = vmatprep.subr.bf16.mxu0 0
  %1591 = vmatpush1.bf16.msra.mxu0 %v1095
  %1592 = vmatprep.subr.bf16.mxu0 0
  %1593 = vmatpush1.bf16.msra.mxu0 %v1094
  %1594 = vmatprep.subr.bf16.mxu0 0
  %1595 = vmatpush1.bf16.msra.mxu0 %v1093
  %1596 = vmatprep.subr.bf16.mxu0 0
  %1597 = vmatpush2.bf16.msra.mxu0 %v1108
  %1598 = vmatprep.subr.bf16.mxu0 0
  %1599 = vmatpush2.bf16.msra.mxu0 %v1107
  %1600 = vmatprep.subr.bf16.mxu0 0
  %1601 = vmatpush2.bf16.msra.mxu0 %v1106
  %1602 = vmatprep.subr.bf16.mxu0 0
  %1603 = vmatpush2.bf16.msra.mxu0 %v1105
  %1604 = vmatprep.subr.bf16.mxu0 0
  %1605 = vmatpush2.bf16.msra.mxu0 %v1104
  %1606 = vmatprep.subr.bf16.mxu0 0
  %1607 = vmatpush2.bf16.msra.mxu0 %v1103
  %1608 = vmatprep.subr.bf16.mxu0 0
  %1609 = vmatpush2.bf16.msra.mxu0 %v1102
  %1610 = vmatprep.subr.bf16.mxu0 0
  %1611 = vmatpush2.bf16.msra.mxu0 %v1101
  %1612 = vmatprep.mubr.bf16.mxu0 %v420
  %1613 = vmatmul.mubr.bf16.gmra.mxu0 %v419
  %v1614 = vpop.f32.mrf.mxu0
  %v1615 = vadd.f32 %v1566, %v1614
  %v1616 = vpop.f32.mrf.mxu0
  %v1617 = vpop.f32.mrf.mxu0
  %v1618 = vadd.f32 %v1569, %v1617
  %v1619 = vpop.f32.mrf.mxu0
  %1620 = vmatprep.mubr.bf16.mxu0 %v436
  %1621 = vmatmul.mubr.bf16.gmra.mxu0 %v435
  %v1622 = vpop.f32.mrf.mxu0
  %v1623 = vadd.f32 %v1574, %v1622
  %v1624 = vpop.f32.mrf.mxu0
  %v1625 = vpop.f32.mrf.mxu0
  %v1626 = vadd.f32 %v1577, %v1625
  %v1627 = vpop.f32.mrf.mxu0
  %1628 = vdwg.mxu0
  %v1629 = vmax.f32 %v1615, %v1618
  %v1630 = vmax.f32 %v1623, %v1626
  %v1631 = vmax.f32 %v1629, %v1630
  %v1632 = vld [vmem:[%s2] sm:$0x1]
  %v1634 = vlaneseq
  %v1635 = vshrl.u32 %v1634, 7
  %v1636 = vsub.s32 0, %v1635
  %v1637 = vrot.slane %v1632, %v1636
  %v1639 = vadd.f32 %v1631, %v1637
  %v1640 = vmax.f32 %v1639, 0.0
  %v1641 = vld [vmem:[%s3] sm:$0x1]
  %v1643 = vlaneseq
  %v1644 = vshrl.u32 %v1643, 7
  %v1645 = vsub.s32 0, %v1644
  %v1646 = vrot.slane %v1641, %v1645
  %v1648 = vmul.f32 %v1640, %v1646
  %v1649 = vld [vmem:[%s4] sm:$0x1]
  %v1651 = vlaneseq
  %v1652 = vshrl.u32 %v1651, 7
  %v1653 = vsub.s32 0, %v1652
  %v1654 = vrot.slane %v1649, %v1653
  %v1656 = vadd.f32 %v1648, %v1654
  %v1657 = vpack.c.bf16 %v1656, %v1656
  %1658 = vst [vmem:[%s5] sm:$0xf] %v1657
  // Predicated region
  $region22: #{m_csgnet_forward.9} parent=0 // pred_check
    _
  $region23: #{m_csgnet_forward.9} parent=0 // pred_check_branch
    %1660 = sbr.rel (0) target = $region25
  $region24: #{m_csgnet_forward.9} parent=0 // pred_region
    _
  $region25: #{m_csgnet_forward.9} parent=0 // pred_fallthru
    _
  // Predicated region
  $region26: #{m_csgnet_forward.9} parent=0 // pred_check
    _
  $region27: #{m_csgnet_forward.9} parent=0 // pred_check_branch
    %1662 = sbr.rel (0) target = $region29
  $region28: #{m_csgnet_forward.9} parent=0 // pred_region
    _
  $region29: #{m_csgnet_forward.9} parent=0 // pred_fallthru
    _

// kernel: m_csgnet_forward.11
$region0: #{m_csgnet_forward.11}
  #allocation0 [shape = 'u32[]', space=smem, size = 0x4, offset = 0x4, fixed_abs, tag = 'smem constant byte address 0x4 - core index']
  #allocation1 [shape = 'u32[144,128]{1,0:T(1,128)}', space=vmem, size = 0x12000, scoped, tag = 'internal scratch']
  #allocation2 [shape = 'f32[2,128]{1,0:T(2,128)}', space=vmem, size = 0x400, scoped, tag = 'scratch operand']
  %s0 = inlined_call_operand.vmem [shape: f32[4,2,65], index: 0, kind: input, shape index: {}]
  %s1 = inlined_call_operand.vmem [shape: f32[2,128], index: 1, kind: input, shape index: {}]
  %s2 = inlined_call_operand.vmem [shape: f32[65,128], index: 2, kind: input, shape index: {}]
  %s3 = inlined_call_operand.vmem [shape: f32[1,128], index: 3, kind: input, shape index: {}]
  %s4 = inlined_call_operand.vmem [shape: f32[256,384], index: 4, kind: input, shape index: {}]
  %s5 = inlined_call_operand.vmem [shape: f32[128,384], index: 5, kind: input, shape index: {}]
  %s6 = inlined_call_operand.vmem [shape: f32[1,384], index: 6, kind: input, shape index: {}]
  %s7 = inlined_call_operand.vmem [shape: f32[1,384], index: 7, kind: input, shape index: {}]
  %s8 = inlined_call_operand.vmem [shape: f32[128,128], index: 8, kind: input, shape index: {}]
  %s9 = inlined_call_operand.vmem [shape: f32[1,128], index: 9, kind: input, shape index: {}]
  %s10 = inlined_call_operand.vmem [shape: f32[128,64], index: 10, kind: input, shape index: {}]
  %s11 = inlined_call_operand.vmem [shape: f32[1,64], index: 11, kind: input, shape index: {}]
  %s12 = inlined_call_operand.hbm [shape: f32[4,2,64], index: 12, kind: output, shape index: {}]
  %s13 = sld [smem:[#allocation0]]
  $region85: #{m_csgnet_forward.11} parent=0
    _
  %s15 = ssub.s32 1, %s13
  %s16 = scalar_select 0, %s15, %s13
  $region1: #{m_csgnet_forward.11} parent=0
    #allocation3 [shape = 'u8[2048]{0}', space=vmem, size = 0x800, scoped, tag = 'output window, operand 0']
    #allocation4 [shape = 's32[2]{0}', space=sflag, size = 0x8, scoped, tag = 'scoped memory for m_csgnet_forward.11']
    %17 = vsyncpa [#allocation4], 0
    %s18 = scalar_lea.sflag [#allocation4], 1
    %19 = vsyncpa %s18, 0
    loop: start=0, step=1, limit=6
    $region2: #{m_csgnet_forward.11} parent=1 // loop_pre_header
      _
    $region3: #{m_csgnet_forward.11} parent=1 // loop_header
      %s21 = sphi 0, %s25
      %p22 = scmp.ge.s32.totalorder %s21, 6
      %s31 = sphi 0, %s33
      %s34 = sphi 0, %s31
      %s35 = sphi 0, %s34
      %s51 = sphi 0, %s35
      %s55 = sphi 0, %s55
      %s57 = sphi 0, %s55
      %s58 = sphi 0, %s57
      %s72 = sphi 0, %s58
      %s76 = sphi 0, %s76
      %s78 = sphi 0, %s76
      %s79 = sphi 0, %s78
      %s93 = sphi 0, %s79
      %s97 = sphi 0, %s97
      %s99 = sphi 0, %s97
      %s100 = sphi 0, %s99
      %s114 = sphi 0, %s100
      %s118 = sphi 0, %s118
      %s120 = sphi 0, %s118
      %s121 = sphi 0, %s120
      %s135 = sphi 0, %s121
      %s139 = sphi 0, %s139
      %s141 = sphi 0, %s139
      %s142 = sphi 0, %s141
      %s156 = sphi 0, %s142
      %s160 = sphi 0, %s160
      %s162 = sphi 0, %s160
      %s163 = sphi 0, %s162
      %s177 = sphi 0, %s163
      %s181 = sphi 0, %s181
      %s183 = sphi 0, %s181
      %s184 = sphi 0, %s183
      %s198 = sphi 0, %s184
      %s202 = sphi 0, %s202
      %s204 = sphi 0, %s202
      %s205 = sphi 0, %s204
      %s219 = sphi 0, %s205
      %s223 = sphi 0, %s223
      %s225 = sphi 0, %s223
      %s226 = sphi 0, %s225
      %s240 = sphi 0, %s226
      %s244 = sphi 0, %s244
      %s246 = sphi 0, %s244
      %s247 = sphi 0, %s246
      %s261 = sphi 0, %s247
      %s265 = sphi 0, %s265
      %s267 = sphi 0, %s265
      %s268 = sphi 0, %s267
      %s282 = sphi 0, %s268
      %s288 = sphi 0, %s290
      %s291 = sphi 0, %s288
      %s292 = sphi 0, %s291
      %s308 = sphi 0, %s292
    $region4: #{m_csgnet_forward.11} parent=1 // loop_header_branch
      %24 = sbr.rel (%p22) target = $region8
    $region5: #{m_csgnet_forward.11} parent=1 // loop_body
      %s26 = ssub.s32 %s21, 1
      %s27 = ssub.s32 %s21, 2
      %s28 = sadd.s32 %s21, 1
      %s29 = ssub.s32 %s21, %s28
      %p30 = scmp.eq.s32.totalorder %s29, 0
      %s32 = sadd.s32 %s31, 1
      %s33 = scalar_select %p30, %s31, %s32
      %p36 = pneg %p30
      %p37 = scmp.eq.s32.totalorder %s21, 3
      %p38 = por %p36, %p37
      %p39 = scmp.ne.s32.totalorder %s31, %s34
      %p40 = scmp.eq.s32.totalorder %s21, 0
      %p41 = por %p39, %p40
      %p42 = scmp.ne.s32.totalorder %s31, %s34
      %p43 = scmp.eq.s32.totalorder %s26, 3
      %p44 = por %p42, %p43
      %p45 = scmp.ne.s32.totalorder %s34, %s35
      %p46 = scmp.eq.s32.totalorder %s26, 0
      %p47 = por %p45, %p46
      %p48 = scmp.ne.s32.totalorder %s34, %s35
      %p49 = scmp.eq.s32.totalorder %s27, 3
      %p50 = por %p48, %p49
      %p52 = scmp.ne.s32.totalorder %s35, %s51
      %p53 = scmp.eq.s32.totalorder %s27, 0
      %p54 = por %p52, %p53
      %s56 = sadd.s32 %s55, 1
      %p59 = scmp.eq.s32.totalorder %s21, 3
      %p60 = scmp.ne.s32.totalorder %s55, %s57
      %p61 = scmp.eq.s32.totalorder %s21, 0
      %p62 = por %p60, %p61
      %p63 = scmp.ne.s32.totalorder %s55, %s57
      %p64 = scmp.eq.s32.totalorder %s26, 3
      %p65 = por %p63, %p64
      %p66 = scmp.ne.s32.totalorder %s57, %s58
      %p67 = scmp.eq.s32.totalorder %s26, 0
      %p68 = por %p66, %p67
      %p69 = scmp.ne.s32.totalorder %s57, %s58
      %p70 = scmp.eq.s32.totalorder %s27, 3
      %p71 = por %p69, %p70
      %p73 = scmp.ne.s32.totalorder %s58, %s72
      %p74 = scmp.eq.s32.totalorder %s27, 0
      %p75 = por %p73, %p74
      %s77 = sadd.s32 %s76, 1
      %p80 = scmp.eq.s32.totalorder %s21, 3
      %p81 = scmp.ne.s32.totalorder %s76, %s78
      %p82 = scmp.eq.s32.totalorder %s21, 0
      %p83 = por %p81, %p82
      %p84 = scmp.ne.s32.totalorder %s76, %s78
      %p85 = scmp.eq.s32.totalorder %s26, 3
      %p86 = por %p84, %p85
      %p87 = scmp.ne.s32.totalorder %s78, %s79
      %p88 = scmp.eq.s32.totalorder %s26, 0
      %p89 = por %p87, %p88
      %p90 = scmp.ne.s32.totalorder %s78, %s79
      %p91 = scmp.eq.s32.totalorder %s27, 3
      %p92 = por %p90, %p91
      %p94 = scmp.ne.s32.totalorder %s79, %s93
      %p95 = scmp.eq.s32.totalorder %s27, 0
      %p96 = por %p94, %p95
      %s98 = sadd.s32 %s97, 1
      %p101 = scmp.eq.s32.totalorder %s21, 3
      %p102 = scmp.ne.s32.totalorder %s97, %s99
      %p103 = scmp.eq.s32.totalorder %s21, 0
      %p104 = por %p102, %p103
      %p105 = scmp.ne.s32.totalorder %s97, %s99
      %p106 = scmp.eq.s32.totalorder %s26, 3
      %p107 = por %p105, %p106
      %p108 = scmp.ne.s32.totalorder %s99, %s100
      %p109 = scmp.eq.s32.totalorder %s26, 0
      %p110 = por %p108, %p109
      %p111 = scmp.ne.s32.totalorder %s99, %s100
      %p112 = scmp.eq.s32.totalorder %s27, 3
      %p113 = por %p111, %p112
      %p115 = scmp.ne.s32.totalorder %s100, %s114
      %p116 = scmp.eq.s32.totalorder %s27, 0
      %p117 = por %p115, %p116
      %s119 = sadd.s32 %s118, 1
      %p122 = scmp.eq.s32.totalorder %s21, 3
      %p123 = scmp.ne.s32.totalorder %s118, %s120
      %p124 = scmp.eq.s32.totalorder %s21, 0
      %p125 = por %p123, %p124
      %p126 = scmp.ne.s32.totalorder %s118, %s120
      %p127 = scmp.eq.s32.totalorder %s26, 3
      %p128 = por %p126, %p127
      %p129 = scmp.ne.s32.totalorder %s120, %s121
      %p130 = scmp.eq.s32.totalorder %s26, 0
      %p131 = por %p129, %p130
      %p132 = scmp.ne.s32.totalorder %s120, %s121
      %p133 = scmp.eq.s32.totalorder %s27, 3
      %p134 = por %p132, %p133
      %p136 = scmp.ne.s32.totalorder %s121, %s135
      %p137 = scmp.eq.s32.totalorder %s27, 0
      %p138 = por %p136, %p137
      %s140 = sadd.s32 %s139, 1
      %p143 = scmp.eq.s32.totalorder %s21, 3
      %p144 = scmp.ne.s32.totalorder %s139, %s141
      %p145 = scmp.eq.s32.totalorder %s21, 0
      %p146 = por %p144, %p145
      %p147 = scmp.ne.s32.totalorder %s139, %s141
      %p148 = scmp.eq.s32.totalorder %s26, 3
      %p149 = por %p147, %p148
      %p150 = scmp.ne.s32.totalorder %s141, %s142
      %p151 = scmp.eq.s32.totalorder %s26, 0
      %p152 = por %p150, %p151
      %p153 = scmp.ne.s32.totalorder %s141, %s142
      %p154 = scmp.eq.s32.totalorder %s27, 3
      %p155 = por %p153, %p154
      %p157 = scmp.ne.s32.totalorder %s142, %s156
      %p158 = scmp.eq.s32.totalorder %s27, 0
      %p159 = por %p157, %p158
      %s161 = sadd.s32 %s160, 1
      %p164 = scmp.eq.s32.totalorder %s21, 3
      %p165 = scmp.ne.s32.totalorder %s160, %s162
      %p166 = scmp.eq.s32.totalorder %s21, 0
      %p167 = por %p165, %p166
      %p168 = scmp.ne.s32.totalorder %s160, %s162
      %p169 = scmp.eq.s32.totalorder %s26, 3
      %p170 = por %p168, %p169
      %p171 = scmp.ne.s32.totalorder %s162, %s163
      %p172 = scmp.eq.s32.totalorder %s26, 0
      %p173 = por %p171, %p172
      %p174 = scmp.ne.s32.totalorder %s162, %s163
      %p175 = scmp.eq.s32.totalorder %s27, 3
      %p176 = por %p174, %p175
      %p178 = scmp.ne.s32.totalorder %s163, %s177
      %p179 = scmp.eq.s32.totalorder %s27, 0
      %p180 = por %p178, %p179
      %s182 = sadd.s32 %s181, 1
      %p185 = scmp.eq.s32.totalorder %s21, 3
      %p186 = scmp.ne.s32.totalorder %s181, %s183
      %p187 = scmp.eq.s32.totalorder %s21, 0
      %p188 = por %p186, %p187
      %p189 = scmp.ne.s32.totalorder %s181, %s183
      %p190 = scmp.eq.s32.totalorder %s26, 3
      %p191 = por %p189, %p190
      %p192 = scmp.ne.s32.totalorder %s183, %s184
      %p193 = scmp.eq.s32.totalorder %s26, 0
      %p194 = por %p192, %p193
      %p195 = scmp.ne.s32.totalorder %s183, %s184
      %p196 = scmp.eq.s32.totalorder %s27, 3
      %p197 = por %p195, %p196
      %p199 = scmp.ne.s32.totalorder %s184, %s198
      %p200 = scmp.eq.s32.totalorder %s27, 0
      %p201 = por %p199, %p200
      %s203 = sadd.s32 %s202, 1
      %p206 = scmp.eq.s32.totalorder %s21, 3
      %p207 = scmp.ne.s32.totalorder %s202, %s204
      %p208 = scmp.eq.s32.totalorder %s21, 0
      %p209 = por %p207, %p208
      %p210 = scmp.ne.s32.totalorder %s202, %s204
      %p211 = scmp.eq.s32.totalorder %s26, 3
      %p212 = por %p210, %p211
      %p213 = scmp.ne.s32.totalorder %s204, %s205
      %p214 = scmp.eq.s32.totalorder %s26, 0
      %p215 = por %p213, %p214
      %p216 = scmp.ne.s32.totalorder %s204, %s205
      %p217 = scmp.eq.s32.totalorder %s27, 3
      %p218 = por %p216, %p217
      %p220 = scmp.ne.s32.totalorder %s205, %s219
      %p221 = scmp.eq.s32.totalorder %s27, 0
      %p222 = por %p220, %p221
      %s224 = sadd.s32 %s223, 1
      %p227 = scmp.eq.s32.totalorder %s21, 3
      %p228 = scmp.ne.s32.totalorder %s223, %s225
      %p229 = scmp.eq.s32.totalorder %s21, 0
      %p230 = por %p228, %p229
      %p231 = scmp.ne.s32.totalorder %s223, %s225
      %p232 = scmp.eq.s32.totalorder %s26, 3
      %p233 = por %p231, %p232
      %p234 = scmp.ne.s32.totalorder %s225, %s226
      %p235 = scmp.eq.s32.totalorder %s26, 0
      %p236 = por %p234, %p235
      %p237 = scmp.ne.s32.totalorder %s225, %s226
      %p238 = scmp.eq.s32.totalorder %s27, 3
      %p239 = por %p237, %p238
      %p241 = scmp.ne.s32.totalorder %s226, %s240
      %p242 = scmp.eq.s32.totalorder %s27, 0
      %p243 = por %p241, %p242
      %s245 = sadd.s32 %s244, 1
      %p248 = scmp.eq.s32.totalorder %s21, 3
      %p249 = scmp.ne.s32.totalorder %s244, %s246
      %p250 = scmp.eq.s32.totalorder %s21, 0
      %p251 = por %p249, %p250
      %p252 = scmp.ne.s32.totalorder %s244, %s246
      %p253 = scmp.eq.s32.totalorder %s26, 3
      %p254 = por %p252, %p253
      %p255 = scmp.ne.s32.totalorder %s246, %s247
      %p256 = scmp.eq.s32.totalorder %s26, 0
      %p257 = por %p255, %p256
      %p258 = scmp.ne.s32.totalorder %s246, %s247
      %p259 = scmp.eq.s32.totalorder %s27, 3
      %p260 = por %p258, %p259
      %p262 = scmp.ne.s32.totalorder %s247, %s261
      %p263 = scmp.eq.s32.totalorder %s27, 0
      %p264 = por %p262, %p263
      %s266 = sadd.s32 %s265, 1
      %p269 = scmp.eq.s32.totalorder %s21, 3
      %p270 = scmp.ne.s32.totalorder %s265, %s267
      %p271 = scmp.eq.s32.totalorder %s21, 0
      %p272 = por %p270, %p271
      %p273 = scmp.ne.s32.totalorder %s265, %s267
      %p274 = scmp.eq.s32.totalorder %s26, 3
      %p275 = por %p273, %p274
      %p276 = scmp.ne.s32.totalorder %s267, %s268
      %p277 = scmp.eq.s32.totalorder %s26, 0
      %p278 = por %p276, %p277
      %p279 = scmp.ne.s32.totalorder %s267, %s268
      %p280 = scmp.eq.s32.totalorder %s27, 3
      %p281 = por %p279, %p280
      %p283 = scmp.ne.s32.totalorder %s268, %s282
      %p284 = scmp.eq.s32.totalorder %s27, 0
      %p285 = por %p283, %p284
      %s286 = ssub.s32 %s21, %s28
      %p287 = scmp.eq.s32.totalorder %s286, 0
      %s289 = sadd.s32 %s288, 1
      %s290 = scalar_select %p287, %s288, %s289
      %p293 = pneg %p287
      %p294 = scmp.eq.s32.totalorder %s21, 3
      %p295 = por %p293, %p294
      %p296 = scmp.ne.s32.totalorder %s288, %s291
      %p297 = scmp.eq.s32.totalorder %s21, 0
      %p298 = por %p296, %p297
      %p299 = scmp.ne.s32.totalorder %s288, %s291
      %p300 = scmp.eq.s32.totalorder %s26, 3
      %p301 = por %p299, %p300
      %p302 = scmp.ne.s32.totalorder %s291, %s292
      %p303 = scmp.eq.s32.totalorder %s26, 0
      %p304 = por %p302, %p303
      %p305 = scmp.ne.s32.totalorder %s291, %s292
      %p306 = scmp.eq.s32.totalorder %s27, 3
      %p307 = por %p305, %p306
      %p309 = scmp.ne.s32.totalorder %s292, %s308
      %p310 = scmp.eq.s32.totalorder %s27, 0
      %p311 = por %p309, %p310
      %p312 = scmp.le.s32.totalorder 1, %s21
      %p313 = scmp.lt.s32.totalorder %s21, 5
      %p314 = pnand %p312, %p313
      %p315 = pneg %p314
      // Predicated region
      $region9: #{m_csgnet_forward.11} parent=5 // pred_check
        _
      $region10: #{m_csgnet_forward.11} parent=5 // pred_check_branch
        %317 = sbr.rel (%p314) target = $region12
      $region11: #{m_csgnet_forward.11} parent=5 // pred_region
        %s318 = ssub.s32 %s21, 1
        // Predicated region
        $region13: #{m_csgnet_forward.11} parent=11 // pred_check
          %p319 = pneg %p68
        $region14: #{m_csgnet_forward.11} parent=11 // pred_check_branch
          %321 = sbr.rel (%p319) target = $region16
        $region15: #{m_csgnet_forward.11} parent=11 // pred_region
          _
        $region16: #{m_csgnet_forward.11} parent=11 // pred_fallthru
          _
        // Predicated region
        $region17: #{m_csgnet_forward.11} parent=11 // pred_check
          %p322 = pneg %p89
        $region18: #{m_csgnet_forward.11} parent=11 // pred_check_branch
          %324 = sbr.rel (%p322) target = $region20
        $region19: #{m_csgnet_forward.11} parent=11 // pred_region
          _
        $region20: #{m_csgnet_forward.11} parent=11 // pred_fallthru
          _
        // Predicated region
        $region21: #{m_csgnet_forward.11} parent=11 // pred_check
          %p325 = pneg %p110
        $region22: #{m_csgnet_forward.11} parent=11 // pred_check_branch
          %327 = sbr.rel (%p325) target = $region24
        $region23: #{m_csgnet_forward.11} parent=11 // pred_region
          _
        $region24: #{m_csgnet_forward.11} parent=11 // pred_fallthru
          _
        // Predicated region
        $region25: #{m_csgnet_forward.11} parent=11 // pred_check
          %p328 = pneg %p131
        $region26: #{m_csgnet_forward.11} parent=11 // pred_check_branch
          %330 = sbr.rel (%p328) target = $region28
        $region27: #{m_csgnet_forward.11} parent=11 // pred_region
          _
        $region28: #{m_csgnet_forward.11} parent=11 // pred_fallthru
          _
        // Predicated region
        $region29: #{m_csgnet_forward.11} parent=11 // pred_check
          %p331 = pneg %p152
        $region30: #{m_csgnet_forward.11} parent=11 // pred_check_branch
          %333 = sbr.rel (%p331) target = $region32
        $region31: #{m_csgnet_forward.11} parent=11 // pred_region
          _
        $region32: #{m_csgnet_forward.11} parent=11 // pred_fallthru
          _
        // Predicated region
        $region33: #{m_csgnet_forward.11} parent=11 // pred_check
          %p334 = pneg %p173
        $region34: #{m_csgnet_forward.11} parent=11 // pred_check_branch
          %336 = sbr.rel (%p334) target = $region36
        $region35: #{m_csgnet_forward.11} parent=11 // pred_region
          _
        $region36: #{m_csgnet_forward.11} parent=11 // pred_fallthru
          _
        // Predicated region
        $region37: #{m_csgnet_forward.11} parent=11 // pred_check
          %p337 = pneg %p194
        $region38: #{m_csgnet_forward.11} parent=11 // pred_check_branch
          %339 = sbr.rel (%p337) target = $region40
        $region39: #{m_csgnet_forward.11} parent=11 // pred_region
          _
        $region40: #{m_csgnet_forward.11} parent=11 // pred_fallthru
          _
        // Predicated region
        $region41: #{m_csgnet_forward.11} parent=11 // pred_check
          %p340 = pneg %p215
        $region42: #{m_csgnet_forward.11} parent=11 // pred_check_branch
          %342 = sbr.rel (%p340) target = $region44
        $region43: #{m_csgnet_forward.11} parent=11 // pred_region
          _
        $region44: #{m_csgnet_forward.11} parent=11 // pred_fallthru
          _
        // Predicated region
        $region45: #{m_csgnet_forward.11} parent=11 // pred_check
          %p343 = pneg %p236
        $region46: #{m_csgnet_forward.11} parent=11 // pred_check_branch
          %345 = sbr.rel (%p343) target = $region48
        $region47: #{m_csgnet_forward.11} parent=11 // pred_region
          _
        $region48: #{m_csgnet_forward.11} parent=11 // pred_fallthru
          _
        // Predicated region
        $region49: #{m_csgnet_forward.11} parent=11 // pred_check
          %p346 = pneg %p257
        $region50: #{m_csgnet_forward.11} parent=11 // pred_check_branch
          %348 = sbr.rel (%p346) target = $region52
        $region51: #{m_csgnet_forward.11} parent=11 // pred_region
          _
        $region52: #{m_csgnet_forward.11} parent=11 // pred_fallthru
          _
        // Predicated region
        $region53: #{m_csgnet_forward.11} parent=11 // pred_check
          %p349 = pneg %p278
        $region54: #{m_csgnet_forward.11} parent=11 // pred_check_branch
          %351 = sbr.rel (%p349) target = $region56
        $region55: #{m_csgnet_forward.11} parent=11 // pred_region
          _
        $region56: #{m_csgnet_forward.11} parent=11 // pred_fallthru
          _
      $region12: #{m_csgnet_forward.11} parent=5 // pred_fallthru
        _
      %p352 = scmp.lt.s32.totalorder %s21, 4
      // Predicated region
      $region57: #{m_csgnet_forward.11} parent=5 // pred_check
        %p353 = pneg %p352
      $region58: #{m_csgnet_forward.11} parent=5 // pred_check_branch
        %355 = sbr.rel (%p353) target = $region60
      $region59: #{m_csgnet_forward.11} parent=5 // pred_region
        // Predicated region
        $region61: #{m_csgnet_forward.11} parent=59 // pred_check
          %p356 = pneg %p41
        $region62: #{m_csgnet_forward.11} parent=59 // pred_check_branch
          %358 = sbr.rel (%p356) target = $region64
        $region63: #{m_csgnet_forward.11} parent=59 // pred_region
          %p359 = scmp.lt.s32.totalorder %s21, 3
          %s360 = scalar_select %p359, %s21, 3
          %s361 = smul.addr %s360, 2
          %s362 = scalar_lea.vmem %s0, %s361
        $region64: #{m_csgnet_forward.11} parent=59 // pred_fallthru
          _
      $region60: #{m_csgnet_forward.11} parent=5 // pred_fallthru
        _
      %p363 = scmp.le.s32.totalorder 1, %s21
      %p364 = scmp.lt.s32.totalorder %s21, 5
      %p365 = pnand %p363, %p364
      %p366 = pneg %p365
      // Predicated region
      $region65: #{m_csgnet_forward.11} parent=5 // pred_check
        _
      $region66: #{m_csgnet_forward.11} parent=5 // pred_check_branch
        %368 = sbr.rel (%p365) target = $region68
      $region67: #{m_csgnet_forward.11} parent=5 // pred_region
        %s369 = ssub.s32 %s21, 1
        %p370 = scmp.lt.s32.totalorder %s26, 3
        %s371 = scalar_select %p370, %s26, 3
        %s372 = smul.addr %s371, 2
        %s373 = scalar_lea.vmem %s0, %s372
        %p374 = pneg %p47
        %p375 = pneg %p44
        %p376 = pneg %p68
        %p377 = pneg %p65
        %p378 = pneg %p89
        %p379 = pneg %p86
        %p380 = pneg %p110
        %p381 = pneg %p107
        %p382 = pneg %p131
        %p383 = pneg %p128
        %p384 = pneg %p152
        %p385 = pneg %p149
        %p386 = pneg %p173
        %p387 = pneg %p170
        %p388 = pneg %p194
        %p389 = pneg %p191
        %p390 = pneg %p215
        %p391 = pneg %p212
        %p392 = pneg %p236
        %p393 = pneg %p233
        %p394 = pneg %p257
        %p395 = pneg %p254
        %p396 = pneg %p278
        %p397 = pneg %p275
        %p398 = pneg %p304
        %p399 = pneg %p301
        %s400 = sand.u32 %s291, 1
        %s401 = scalar_lea.sflag [#allocation4], %s400
        %s402 = sand.u32 %s291, 1
        %s403 = smul.addr %s402, 2
        %s404 = scalar_lea.vmem [#allocation3], %s403
        %p405 = scmp.lt.s32.totalorder %s26, 3
        %s406 = scalar_select %p405, %s26, 3
        %s407 = smul.addr %s406, 2
        %s408 = scalar_lea.vmem %s0, %s407
        %p409 = scmp.eq.s32.totalorder %s26, 0
        // Predicated region
        $region69: #{m_csgnet_forward.11} parent=67 // pred_check
          %p410 = pneg %p409
        $region70: #{m_csgnet_forward.11} parent=67 // pred_check_branch
          %412 = sbr.rel (%p410) target = $region72
        $region71: #{m_csgnet_forward.11} parent=67 // pred_region
          %413 = vst [vmem:[#allocation2] sm:$0x3] 0.0
        $region72: #{m_csgnet_forward.11} parent=67 // pred_fallthru
          _
        %v414 = vld [vmem:[%s408] sm:$0x3]
        %v415 = vld [vmem:[%s2] sm:$0xff]
        %v416 = vld [vmem:[%s2 + $0x8] sm:$0xff]
        %v417 = vld [vmem:[%s2 + $0x10] sm:$0xff]
        %v418 = vld [vmem:[%s2 + $0x18] sm:$0xff]
        %v419 = vld [vmem:[%s2 + $0x20] sm:$0xff]
        %v420 = vld [vmem:[%s2 + $0x28] sm:$0xff]
        %v421 = vld [vmem:[%s2 + $0x30] sm:$0xff]
        %v422 = vld [vmem:[%s2 + $0x38] sm:$0xff]
        %v423 = vld [vmem:[%s2 + $0x40] sm:$0x1]
        %v424 = vld [vmem:[%s3] sm:$0x1]
        %v426 = vlaneseq
        %v427 = vshrl.u32 %v426, 7
        %v428 = vsub.s32 0, %v427
        %v429 = vrot.slane %v424, %v428
        %vm431 = vcmask 531456
        %v433 = vsel %vm431, %v414, 0
        %vm435 = vcmask 1040384
        %v437 = vsel %vm435, %v423, 0
        %439 = vmatprep.subr.mxu0 0.0
        %440 = vmatpush1.msra.mxu0 0.0
        %441 = vmatprep.subr.mxu0 0.0
        %442 = vmatpush1.msra.mxu0 0.0
        %443 = vmatprep.subr.mxu0 0.0
        %444 = vmatpush1.msra.mxu0 0.0
        %445 = vmatprep.subr.mxu0 0.0
        %446 = vmatpush1.msra.mxu0 0.0
        %447 = vmatprep.subr.mxu0 0.0
        %448 = vmatpush1.msra.mxu0 0.0
        %449 = vmatprep.subr.mxu0 0.0
        %450 = vmatpush1.msra.mxu0 0.0
        %451 = vmatprep.subr.mxu0 0.0
        %452 = vmatpush1.msra.mxu0 0.0
        %453 = vmatprep.subr.mxu0 0.0
        %454 = vmatpush1.msra.mxu0 %v437
        %455 = vmatprep.subr.mxu0 0.0
        %456 = vmatpush1.msra.mxu0 %v422
        %457 = vmatprep.subr.mxu0 0.0
        %458 = vmatpush1.msra.mxu0 %v421
        %459 = vmatprep.subr.mxu0 0.0
        %460 = vmatpush1.msra.mxu0 %v420
        %461 = vmatprep.subr.mxu0 0.0
        %462 = vmatpush1.msra.mxu0 %v419
        %463 = vmatprep.subr.mxu0 0.0
        %464 = vmatpush1.msra.mxu0 %v418
        %465 = vmatprep.subr.mxu0 0.0
        %466 = vmatpush1.msra.mxu0 %v417
        %467 = vmatprep.subr.mxu0 0.0
        %468 = vmatpush1.msra.mxu0 %v416
        %469 = vmatprep.subr.mxu0 0.0
        %470 = vmatpush1.msra.mxu0 %v415
        %471 = vmatprep.subr.mxu0 0.0
        %472 = vmatpush2.msra.mxu0 0.0
        %473 = vmatprep.subr.mxu0 0.0
        %474 = vmatpush2.msra.mxu0 0.0
        %475 = vmatprep.subr.mxu0 0.0
        %476 = vmatpush2.msra.mxu0 0.0
        %477 = vmatprep.subr.mxu0 0.0
        %478 = vmatpush2.msra.mxu0 0.0
        %479 = vmatprep.subr.mxu0 0.0
        %480 = vmatpush2.msra.mxu0 0.0
        %481 = vmatprep.subr.mxu0 0.0
        %482 = vmatpush2.msra.mxu0 0.0
        %483 = vmatprep.subr.mxu0 0.0
        %484 = vmatpush2.msra.mxu0 0.0
        %485 = vmatprep.subr.mxu0 0.0
        %486 = vmatpush2.msra.mxu0 0.0
        %487 = vmatprep.subr.mxu0 0.0
        %488 = vmatpush2.msra.mxu0 0.0
        %489 = vmatprep.subr.mxu0 0.0
        %490 = vmatpush2.msra.mxu0 0.0
        %491 = vmatprep.subr.mxu0 0.0
        %492 = vmatpush2.msra.mxu0 0.0
        %493 = vmatprep.subr.mxu0 0.0
        %494 = vmatpush2.msra.mxu0 0.0
        %495 = vmatprep.subr.mxu0 0.0
        %496 = vmatpush2.msra.mxu0 0.0
        %497 = vmatprep.subr.mxu0 0.0
        %498 = vmatpush2.msra.mxu0 0.0
        %499 = vmatprep.subr.mxu0 0.0
        %500 = vmatpush2.msra.mxu0 0.0
        %501 = vmatprep.subr.mxu0 0.0
        %502 = vmatpush2.msra.mxu0 0.0
        %503 = vmatprep.mubr.f32.mxu0 0.0
        %504 = vmatmul.mubr.f32.gmra.mxu0 %v433
        %v505 = vpop.f32.mrf.mxu0
        %v506 = vadd.f32 %v429, %v505
        %v507 = vpop.f32.mrf.mxu0
        %508 = vdwg.mxu0
        %v509 = vmax.f32 %v506, 0.0
        %v510 = vld [vmem:[%s1] sm:$0x3]
        %v511 = vld [vmem:[#allocation2] sm:$0x3]
        %v512 = vld [vmem:[%s4] sm:$0xff]
        %v513 = vld [vmem:[%s4 + $0x8] sm:$0xff]
        %v514 = vld [vmem:[%s4 + $0x10] sm:$0xff]
        %v515 = vld [vmem:[%s4 + $0x18] sm:$0xff]
        %v516 = vld [vmem:[%s4 + $0x20] sm:$0xff]
        %v517 = vld [vmem:[%s4 + $0x28] sm:$0xff]
        %v518 = vld [vmem:[%s4 + $0x30] sm:$0xff]
        %v519 = vld [vmem:[%s4 + $0x38] sm:$0xff]
        %v520 = vld [vmem:[%s4 + $0x40] sm:$0xff]
        %v521 = vld [vmem:[%s4 + $0x48] sm:$0xff]
        %v522 = vld [vmem:[%s4 + $0x50] sm:$0xff]
        %v523 = vld [vmem:[%s4 + $0x58] sm:$0xff]
        %v524 = vld [vmem:[%s4 + $0x60] sm:$0xff]
        %v525 = vld [vmem:[%s4 + $0x68] sm:$0xff]
        %v526 = vld [vmem:[%s4 + $0x70] sm:$0xff]
        %v527 = vld [vmem:[%s4 + $0x78] sm:$0xff]
        %v528 = vld [vmem:[%s4 + $0x80] sm:$0xff]
        %v529 = vld [vmem:[%s4 + $0x88] sm:$0xff]
        %v530 = vld [vmem:[%s4 + $0x90] sm:$0xff]
        %v531 = vld [vmem:[%s4 + $0x98] sm:$0xff]
        %v532 = vld [vmem:[%s4 + $0xa0] sm:$0xff]
        %v533 = vld [vmem:[%s4 + $0xa8] sm:$0xff]
        %v534 = vld [vmem:[%s4 + $0xb0] sm:$0xff]
        %v535 = vld [vmem:[%s4 + $0xb8] sm:$0xff]
        %v536 = vld [vmem:[%s4 + $0xc0] sm:$0xff]
        %v537 = vld [vmem:[%s4 + $0xc8] sm:$0xff]
        %v538 = vld [vmem:[%s4 + $0xd0] sm:$0xff]
        %v539 = vld [vmem:[%s4 + $0xd8] sm:$0xff]
        %v540 = vld [vmem:[%s4 + $0xe0] sm:$0xff]
        %v541 = vld [vmem:[%s4 + $0xe8] sm:$0xff]
        %v542 = vld [vmem:[%s4 + $0xf0] sm:$0xff]
        %v543 = vld [vmem:[%s4 + $0xf8] sm:$0xff]
        %v544 = vld [vmem:[%s4 + $0x100] sm:$0xff]
        %v545 = vld [vmem:[%s4 + $0x108] sm:$0xff]
        %v546 = vld [vmem:[%s4 + $0x110] sm:$0xff]
        %v547 = vld [vmem:[%s4 + $0x118] sm:$0xff]
        %v548 = vld [vmem:[%s4 + $0x120] sm:$0xff]
        %v549 = vld [vmem:[%s4 + $0x128] sm:$0xff]
        %v550 = vld [vmem:[%s4 + $0x130] sm:$0xff]
        %v551 = vld [vmem:[%s4 + $0x138] sm:$0xff]
        %v552 = vld [vmem:[%s4 + $0x140] sm:$0xff]
        %v553 = vld [vmem:[%s4 + $0x148] sm:$0xff]
        %v554 = vld [vmem:[%s4 + $0x150] sm:$0xff]
        %v555 = vld [vmem:[%s4 + $0x158] sm:$0xff]
        %v556 = vld [vmem:[%s4 + $0x160] sm:$0xff]
        %v557 = vld [vmem:[%s4 + $0x168] sm:$0xff]
        %v558 = vld [vmem:[%s4 + $0x170] sm:$0xff]
        %v559 = vld [vmem:[%s4 + $0x178] sm:$0xff]
        %v560 = vld [vmem:[%s4 + $0x180] sm:$0xff]
        %v561 = vld [vmem:[%s4 + $0x188] sm:$0xff]
        %v562 = vld [vmem:[%s4 + $0x190] sm:$0xff]
        %v563 = vld [vmem:[%s4 + $0x198] sm:$0xff]
        %v564 = vld [vmem:[%s4 + $0x1a0] sm:$0xff]
        %v565 = vld [vmem:[%s4 + $0x1a8] sm:$0xff]
        %v566 = vld [vmem:[%s4 + $0x1b0] sm:$0xff]
        %v567 = vld [vmem:[%s4 + $0x1b8] sm:$0xff]
        %v568 = vld [vmem:[%s4 + $0x1c0] sm:$0xff]
        %v569 = vld [vmem:[%s4 + $0x1c8] sm:$0xff]
        %v570 = vld [vmem:[%s4 + $0x1d0] sm:$0xff]
        %v571 = vld [vmem:[%s4 + $0x1d8] sm:$0xff]
        %v572 = vld [vmem:[%s4 + $0x1e0] sm:$0xff]
        %v573 = vld [vmem:[%s4 + $0x1e8] sm:$0xff]
        %v574 = vld [vmem:[%s4 + $0x1f0] sm:$0xff]
        %v575 = vld [vmem:[%s4 + $0x1f8] sm:$0xff]
        %v576 = vld [vmem:[%s4 + $0x200] sm:$0xff]
        %v577 = vld [vmem:[%s4 + $0x208] sm:$0xff]
        %v578 = vld [vmem:[%s4 + $0x210] sm:$0xff]
        %v579 = vld [vmem:[%s4 + $0x218] sm:$0xff]
        %v580 = vld [vmem:[%s4 + $0x220] sm:$0xff]
        %v581 = vld [vmem:[%s4 + $0x228] sm:$0xff]
        %v582 = vld [vmem:[%s4 + $0x230] sm:$0xff]
        %v583 = vld [vmem:[%s4 + $0x238] sm:$0xff]
        %v584 = vld [vmem:[%s4 + $0x240] sm:$0xff]
        %v585 = vld [vmem:[%s4 + $0x248] sm:$0xff]
        %v586 = vld [vmem:[%s4 + $0x250] sm:$0xff]
        %v587 = vld [vmem:[%s4 + $0x258] sm:$0xff]
        %v588 = vld [vmem:[%s4 + $0x260] sm:$0xff]
        %v589 = vld [vmem:[%s4 + $0x268] sm:$0xff]
        %v590 = vld [vmem:[%s4 + $0x270] sm:$0xff]
        %v591 = vld [vmem:[%s4 + $0x278] sm:$0xff]
        %v592 = vld [vmem:[%s4 + $0x280] sm:$0xff]
        %v593 = vld [vmem:[%s4 + $0x288] sm:$0xff]
        %v594 = vld [vmem:[%s4 + $0x290] sm:$0xff]
        %v595 = vld [vmem:[%s4 + $0x298] sm:$0xff]
        %v596 = vld [vmem:[%s4 + $0x2a0] sm:$0xff]
        %v597 = vld [vmem:[%s4 + $0x2a8] sm:$0xff]
        %v598 = vld [vmem:[%s4 + $0x2b0] sm:$0xff]
        %v599 = vld [vmem:[%s4 + $0x2b8] sm:$0xff]
        %v600 = vld [vmem:[%s4 + $0x2c0] sm:$0xff]
        %v601 = vld [vmem:[%s4 + $0x2c8] sm:$0xff]
        %v602 = vld [vmem:[%s4 + $0x2d0] sm:$0xff]
        %v603 = vld [vmem:[%s4 + $0x2d8] sm:$0xff]
        %v604 = vld [vmem:[%s4 + $0x2e0] sm:$0xff]
        %v605 = vld [vmem:[%s4 + $0x2e8] sm:$0xff]
        %v606 = vld [vmem:[%s4 + $0x2f0] sm:$0xff]
        %v607 = vld [vmem:[%s4 + $0x2f8] sm:$0xff]
        %608 = vmatprep.subr.mxu0 %v606
        %609 = vmatpush1.msra.mxu0 %v605
        %610 = vmatprep.subr.mxu0 %v603
        %611 = vmatpush1.msra.mxu0 %v602
        %612 = vmatprep.subr.mxu0 %v600
        %613 = vmatpush1.msra.mxu0 %v599
        %614 = vmatprep.subr.mxu0 %v597
        %615 = vmatpush1.msra.mxu0 %v596
        %616 = vmatprep.subr.mxu0 %v594
        %617 = vmatpush1.msra.mxu0 %v593
        %618 = vmatprep.subr.mxu0 %v591
        %619 = vmatpush1.msra.mxu0 %v590
        %620 = vmatprep.subr.mxu0 %v588
        %621 = vmatpush1.msra.mxu0 %v587
        %622 = vmatprep.subr.mxu0 %v585
        %623 = vmatpush1.msra.mxu0 %v584
        %624 = vmatprep.subr.mxu0 %v582
        %625 = vmatpush1.msra.mxu0 %v581
        %626 = vmatprep.subr.mxu0 %v579
        %627 = vmatpush1.msra.mxu0 %v578
        %628 = vmatprep.subr.mxu0 %v576
        %629 = vmatpush1.msra.mxu0 %v575
        %630 = vmatprep.subr.mxu0 %v573
        %631 = vmatpush1.msra.mxu0 %v572
        %632 = vmatprep.subr.mxu0 %v570
        %633 = vmatpush1.msra.mxu0 %v569
        %634 = vmatprep.subr.mxu0 %v567
        %635 = vmatpush1.msra.mxu0 %v566
        %636 = vmatprep.subr.mxu0 %v564
        %637 = vmatpush1.msra.mxu0 %v563
        %638 = vmatprep.subr.mxu0 %v561
        %639 = vmatpush1.msra.mxu0 %v560
        %640 = vmatprep.subr.mxu0 0.0
        %641 = vmatpush2.msra.mxu0 0.0
        %642 = vmatprep.subr.mxu0 0.0
        %643 = vmatpush2.msra.mxu0 0.0
        %644 = vmatprep.subr.mxu0 0.0
        %645 = vmatpush2.msra.mxu0 0.0
        %646 = vmatprep.subr.mxu0 0.0
        %647 = vmatpush2.msra.mxu0 0.0
        %648 = vmatprep.subr.mxu0 0.0
        %649 = vmatpush2.msra.mxu0 0.0
        %650 = vmatprep.subr.mxu0 0.0
        %651 = vmatpush2.msra.mxu0 0.0
        %652 = vmatprep.subr.mxu0 0.0
        %653 = vmatpush2.msra.mxu0 0.0
        %654 = vmatprep.subr.mxu0 0.0
        %655 = vmatpush2.msra.mxu0 0.0
        %656 = vmatprep.subr.mxu0 0.0
        %657 = vmatpush2.msra.mxu0 0.0
        %658 = vmatprep.subr.mxu0 0.0
        %659 = vmatpush2.msra.mxu0 0.0
        %660 = vmatprep.subr.mxu0 0.0
        %661 = vmatpush2.msra.mxu0 0.0
        %662 = vmatprep.subr.mxu0 0.0
        %663 = vmatpush2.msra.mxu0 0.0
        %664 = vmatprep.subr.mxu0 0.0
        %665 = vmatpush2.msra.mxu0 0.0
        %666 = vmatprep.subr.mxu0 0.0
        %667 = vmatpush2.msra.mxu0 0.0
        %668 = vmatprep.subr.mxu0 0.0
        %669 = vmatpush2.msra.mxu0 0.0
        %670 = vmatprep.subr.mxu0 0.0
        %671 = vmatpush2.msra.mxu0 0.0
        %672 = vmatprep.mubr.f32.mxu0 0.0
        %673 = vmatmul.mubr.f32.gmra.mxu0 %v509
        %v674 = vpop.f32.mrf.mxu0
        %v675 = vadd.f32 0.0, %v674
        %v676 = vpop.f32.mrf.mxu0
        %v677 = vadd.f32 0.0, %v676
        %678 = vdwg.mxu0
        %679 = vmatprep.subr.mxu0 0.0
        %680 = vmatpush1.msra.mxu0 %v607
        %681 = vmatprep.subr.mxu0 0.0
        %682 = vmatpush1.msra.mxu0 %v604
        %683 = vmatprep.subr.mxu0 0.0
        %684 = vmatpush1.msra.mxu0 %v601
        %685 = vmatprep.subr.mxu0 0.0
        %686 = vmatpush1.msra.mxu0 %v598
        %687 = vmatprep.subr.mxu0 0.0
        %688 = vmatpush1.msra.mxu0 %v595
        %689 = vmatprep.subr.mxu0 0.0
        %690 = vmatpush1.msra.mxu0 %v592
        %691 = vmatprep.subr.mxu0 0.0
        %692 = vmatpush1.msra.mxu0 %v589
        %693 = vmatprep.subr.mxu0 0.0
        %694 = vmatpush1.msra.mxu0 %v586
        %695 = vmatprep.subr.mxu0 0.0
        %696 = vmatpush1.msra.mxu0 %v583
        %697 = vmatprep.subr.mxu0 0.0
        %698 = vmatpush1.msra.mxu0 %v580
        %699 = vmatprep.subr.mxu0 0.0
        %700 = vmatpush1.msra.mxu0 %v577
        %701 = vmatprep.subr.mxu0 0.0
        %702 = vmatpush1.msra.mxu0 %v574
        %703 = vmatprep.subr.mxu0 0.0
        %704 = vmatpush1.msra.mxu0 %v571
        %705 = vmatprep.subr.mxu0 0.0
        %706 = vmatpush1.msra.mxu0 %v568
        %707 = vmatprep.subr.mxu0 0.0
        %708 = vmatpush1.msra.mxu0 %v565
        %709 = vmatprep.subr.mxu0 0.0
        %710 = vmatpush1.msra.mxu0 %v562
        %711 = vmatprep.subr.mxu0 0.0
        %712 = vmatpush2.msra.mxu0 0.0
        %713 = vmatprep.subr.mxu0 0.0
        %714 = vmatpush2.msra.mxu0 0.0
        %715 = vmatprep.subr.mxu0 0.0
        %716 = vmatpush2.msra.mxu0 0.0
        %717 = vmatprep.subr.mxu0 0.0
        %718 = vmatpush2.msra.mxu0 0.0
        %719 = vmatprep.subr.mxu0 0.0
        %720 = vmatpush2.msra.mxu0 0.0
        %721 = vmatprep.subr.mxu0 0.0
        %722 = vmatpush2.msra.mxu0 0.0
        %723 = vmatprep.subr.mxu0 0.0
        %724 = vmatpush2.msra.mxu0 0.0
        %725 = vmatprep.subr.mxu0 0.0
        %726 = vmatpush2.msra.mxu0 0.0
        %727 = vmatprep.subr.mxu0 0.0
        %728 = vmatpush2.msra.mxu0 0.0
        %729 = vmatprep.subr.mxu0 0.0
        %730 = vmatpush2.msra.mxu0 0.0
        %731 = vmatprep.subr.mxu0 0.0
        %732 = vmatpush2.msra.mxu0 0.0
        %733 = vmatprep.subr.mxu0 0.0
        %734 = vmatpush2.msra.mxu0 0.0
        %735 = vmatprep.subr.mxu0 0.0
        %736 = vmatpush2.msra.mxu0 0.0
        %737 = vmatprep.subr.mxu0 0.0
        %738 = vmatpush2.msra.mxu0 0.0
        %739 = vmatprep.subr.mxu0 0.0
        %740 = vmatpush2.msra.mxu0 0.0
        %741 = vmatprep.subr.mxu0 0.0
        %742 = vmatpush2.msra.mxu0 0.0
        %743 = vmatprep.mubr.f32.mxu0 0.0
        %744 = vmatmul.mubr.f32.gmra.mxu0 %v509
        %v745 = vpop.f32.mrf.mxu0
        %v746 = vadd.f32 0.0, %v745
        %v747 = vpop.f32.mrf.mxu0
        %748 = vdwg.mxu0
        %749 = vmatprep.subr.mxu0 %v558
        %750 = vmatpush1.msra.mxu0 %v557
        %751 = vmatprep.subr.mxu0 %v555
        %752 = vmatpush1.msra.mxu0 %v554
        %753 = vmatprep.subr.mxu0 %v552
        %754 = vmatpush1.msra.mxu0 %v551
        %755 = vmatprep.subr.mxu0 %v549
        %756 = vmatpush1.msra.mxu0 %v548
        %757 = vmatprep.subr.mxu0 %v546
        %758 = vmatpush1.msra.mxu0 %v545
        %759 = vmatprep.subr.mxu0 %v543
        %760 = vmatpush1.msra.mxu0 %v542
        %761 = vmatprep.subr.mxu0 %v540
        %762 = vmatpush1.msra.mxu0 %v539
        %763 = vmatprep.subr.mxu0 %v537
        %764 = vmatpush1.msra.mxu0 %v536
        %765 = vmatprep.subr.mxu0 %v534
        %766 = vmatpush1.msra.mxu0 %v533
        %767 = vmatprep.subr.mxu0 %v531
        %768 = vmatpush1.msra.mxu0 %v530
        %769 = vmatprep.subr.mxu0 %v528
        %770 = vmatpush1.msra.mxu0 %v527
        %771 = vmatprep.subr.mxu0 %v525
        %772 = vmatpush1.msra.mxu0 %v524
        %773 = vmatprep.subr.mxu0 %v522
        %774 = vmatpush1.msra.mxu0 %v521
        %775 = vmatprep.subr.mxu0 %v519
        %776 = vmatpush1.msra.mxu0 %v518
        %777 = vmatprep.subr.mxu0 %v516
        %778 = vmatpush1.msra.mxu0 %v515
        %779 = vmatprep.subr.mxu0 %v513
        %780 = vmatpush1.msra.mxu0 %v512
        %781 = vmatprep.subr.mxu0 0.0
        %782 = vmatpush2.msra.mxu0 0.0
        %783 = vmatprep.subr.mxu0 0.0
        %784 = vmatpush2.msra.mxu0 0.0
        %785 = vmatprep.subr.mxu0 0.0
        %786 = vmatpush2.msra.mxu0 0.0
        %787 = vmatprep.subr.mxu0 0.0
        %788 = vmatpush2.msra.mxu0 0.0
        %789 = vmatprep.subr.mxu0 0.0
        %790 = vmatpush2.msra.mxu0 0.0
        %791 = vmatprep.subr.mxu0 0.0
        %792 = vmatpush2.msra.mxu0 0.0
        %793 = vmatprep.subr.mxu0 0.0
        %794 = vmatpush2.msra.mxu0 0.0
        %795 = vmatprep.subr.mxu0 0.0
        %796 = vmatpush2.msra.mxu0 0.0
        %797 = vmatprep.subr.mxu0 0.0
        %798 = vmatpush2.msra.mxu0 0.0
        %799 = vmatprep.subr.mxu0 0.0
        %800 = vmatpush2.msra.mxu0 0.0
        %801 = vmatprep.subr.mxu0 0.0
        %802 = vmatpush2.msra.mxu0 0.0
        %803 = vmatprep.subr.mxu0 0.0
        %804 = vmatpush2.msra.mxu0 0.0
        %805 = vmatprep.subr.mxu0 0.0
        %806 = vmatpush2.msra.mxu0 0.0
        %807 = vmatprep.subr.mxu0 0.0
        %808 = vmatpush2.msra.mxu0 0.0
        %809 = vmatprep.subr.mxu0 0.0
        %810 = vmatpush2.msra.mxu0 0.0
        %811 = vmatprep.subr.mxu0 0.0
        %812 = vmatpush2.msra.mxu0 0.0
        %813 = vmatprep.mubr.f32.mxu0 0.0
        %814 = vmatmul.mubr.f32.gmra.mxu0 %v510
        %v815 = vpop.f32.mrf.mxu0
        %v816 = vadd.f32 %v675, %v815
        %v817 = vpop.f32.mrf.mxu0
        %v818 = vadd.f32 %v677, %v817
        %819 = vdwg.mxu0
        %820 = vmatprep.subr.mxu0 0.0
        %821 = vmatpush1.msra.mxu0 %v559
        %822 = vmatprep.subr.mxu0 0.0
        %823 = vmatpush1.msra.mxu0 %v556
        %824 = vmatprep.subr.mxu0 0.0
        %825 = vmatpush1.msra.mxu0 %v553
        %826 = vmatprep.subr.mxu0 0.0
        %827 = vmatpush1.msra.mxu0 %v550
        %828 = vmatprep.subr.mxu0 0.0
        %829 = vmatpush1.msra.mxu0 %v547
        %830 = vmatprep.subr.mxu0 0.0
        %831 = vmatpush1.msra.mxu0 %v544
        %832 = vmatprep.subr.mxu0 0.0
        %833 = vmatpush1.msra.mxu0 %v541
        %834 = vmatprep.subr.mxu0 0.0
        %835 = vmatpush1.msra.mxu0 %v538
        %836 = vmatprep.subr.mxu0 0.0
        %837 = vmatpush1.msra.mxu0 %v535
        %838 = vmatprep.subr.mxu0 0.0
        %839 = vmatpush1.msra.mxu0 %v532
        %840 = vmatprep.subr.mxu0 0.0
        %841 = vmatpush1.msra.mxu0 %v529
        %842 = vmatprep.subr.mxu0 0.0
        %843 = vmatpush1.msra.mxu0 %v526
        %844 = vmatprep.subr.mxu0 0.0
        %845 = vmatpush1.msra.mxu0 %v523
        %846 = vmatprep.subr.mxu0 0.0
        %847 = vmatpush1.msra.mxu0 %v520
        %848 = vmatprep.subr.mxu0 0.0
        %849 = vmatpush1.msra.mxu0 %v517
        %850 = vmatprep.subr.mxu0 0.0
        %851 = vmatpush1.msra.mxu0 %v514
        %852 = vmatprep.subr.mxu0 0.0
        %853 = vmatpush2.msra.mxu0 0.0
        %854 = vmatprep.subr.mxu0 0.0
        %855 = vmatpush2.msra.mxu0 0.0
        %856 = vmatprep.subr.mxu0 0.0
        %857 = vmatpush2.msra.mxu0 0.0
        %858 = vmatprep.subr.mxu0 0.0
        %859 = vmatpush2.msra.mxu0 0.0
        %860 = vmatprep.subr.mxu0 0.0
        %861 = vmatpush2.msra.mxu0 0.0
        %862 = vmatprep.subr.mxu0 0.0
        %863 = vmatpush2.msra.mxu0 0.0
        %864 = vmatprep.subr.mxu0 0.0
        %865 = vmatpush2.msra.mxu0 0.0
        %866 = vmatprep.subr.mxu0 0.0
        %867 = vmatpush2.msra.mxu0 0.0
        %868 = vmatprep.subr.mxu0 0.0
        %869 = vmatpush2.msra.mxu0 0.0
        %870 = vmatprep.subr.mxu0 0.0
        %871 = vmatpush2.msra.mxu0 0.0
        %872 = vmatprep.subr.mxu0 0.0
        %873 = vmatpush2.msra.mxu0 0.0
        %874 = vmatprep.subr.mxu0 0.0
        %875 = vmatpush2.msra.mxu0 0.0
        %876 = vmatprep.subr.mxu0 0.0
        %877 = vmatpush2.msra.mxu0 0.0
        %878 = vmatprep.subr.mxu0 0.0
        %879 = vmatpush2.msra.mxu0 0.0
        %880 = vmatprep.subr.mxu0 0.0
        %881 = vmatpush2.msra.mxu0 0.0
        %882 = vmatprep.subr.mxu0 0.0
        %883 = vmatpush2.msra.mxu0 0.0
        %884 = vmatprep.mubr.f32.mxu0 0.0
        %885 = vmatmul.mubr.f32.gmra.mxu0 %v510
        %v886 = vpop.f32.mrf.mxu0
        %v887 = vadd.f32 %v746, %v886
        %v888 = vpop.f32.mrf.mxu0
        %889 = vdwg.mxu0
        %v890 = vld [vmem:[%s6] sm:$0x7]
        %v892 = vlaneseq
        %v893 = vshrl.u32 %v892, 7
        %v894 = vsub.s32 0, %v893
        %v895 = vrot.slane %v890, %v894
        %v896 = vlaneseq
        %v897 = vshrl.u32 %v896, 7
        %v898 = vsub.s32 1, %v897
        %v899 = vrot.slane %v890, %v898
        %v900 = vlaneseq
        %v901 = vshrl.u32 %v900, 7
        %v902 = vsub.s32 2, %v901
        %v903 = vrot.slane %v890, %v902
        %v907 = vadd.f32 %v816, %v895
        %v908 = vadd.f32 %v818, %v899
        %v909 = vadd.f32 %v887, %v903
        %v910 = vld [vmem:[%s5] sm:$0xff]
        %v911 = vld [vmem:[%s5 + $0x8] sm:$0xff]
        %v912 = vld [vmem:[%s5 + $0x10] sm:$0xff]
        %v913 = vld [vmem:[%s5 + $0x18] sm:$0xff]
        %v914 = vld [vmem:[%s5 + $0x20] sm:$0xff]
        %v915 = vld [vmem:[%s5 + $0x28] sm:$0xff]
        %v916 = vld [vmem:[%s5 + $0x30] sm:$0xff]
        %v917 = vld [vmem:[%s5 + $0x38] sm:$0xff]
        %v918 = vld [vmem:[%s5 + $0x40] sm:$0xff]
        %v919 = vld [vmem:[%s5 + $0x48] sm:$0xff]
        %v920 = vld [vmem:[%s5 + $0x50] sm:$0xff]
        %v921 = vld [vmem:[%s5 + $0x58] sm:$0xff]
        %v922 = vld [vmem:[%s5 + $0x60] sm:$0xff]
        %v923 = vld [vmem:[%s5 + $0x68] sm:$0xff]
        %v924 = vld [vmem:[%s5 + $0x70] sm:$0xff]
        %v925 = vld [vmem:[%s5 + $0x78] sm:$0xff]
        %v926 = vld [vmem:[%s5 + $0x80] sm:$0xff]
        %v927 = vld [vmem:[%s5 + $0x88] sm:$0xff]
        %v928 = vld [vmem:[%s5 + $0x90] sm:$0xff]
        %v929 = vld [vmem:[%s5 + $0x98] sm:$0xff]
        %v930 = vld [vmem:[%s5 + $0xa0] sm:$0xff]
        %v931 = vld [vmem:[%s5 + $0xa8] sm:$0xff]
        %v932 = vld [vmem:[%s5 + $0xb0] sm:$0xff]
        %v933 = vld [vmem:[%s5 + $0xb8] sm:$0xff]
        %v934 = vld [vmem:[%s5 + $0xc0] sm:$0xff]
        %v935 = vld [vmem:[%s5 + $0xc8] sm:$0xff]
        %v936 = vld [vmem:[%s5 + $0xd0] sm:$0xff]
        %v937 = vld [vmem:[%s5 + $0xd8] sm:$0xff]
        %v938 = vld [vmem:[%s5 + $0xe0] sm:$0xff]
        %v939 = vld [vmem:[%s5 + $0xe8] sm:$0xff]
        %v940 = vld [vmem:[%s5 + $0xf0] sm:$0xff]
        %v941 = vld [vmem:[%s5 + $0xf8] sm:$0xff]
        %v942 = vld [vmem:[%s5 + $0x100] sm:$0xff]
        %v943 = vld [vmem:[%s5 + $0x108] sm:$0xff]
        %v944 = vld [vmem:[%s5 + $0x110] sm:$0xff]
        %v945 = vld [vmem:[%s5 + $0x118] sm:$0xff]
        %v946 = vld [vmem:[%s5 + $0x120] sm:$0xff]
        %v947 = vld [vmem:[%s5 + $0x128] sm:$0xff]
        %v948 = vld [vmem:[%s5 + $0x130] sm:$0xff]
        %v949 = vld [vmem:[%s5 + $0x138] sm:$0xff]
        %v950 = vld [vmem:[%s5 + $0x140] sm:$0xff]
        %v951 = vld [vmem:[%s5 + $0x148] sm:$0xff]
        %v952 = vld [vmem:[%s5 + $0x150] sm:$0xff]
        %v953 = vld [vmem:[%s5 + $0x158] sm:$0xff]
        %v954 = vld [vmem:[%s5 + $0x160] sm:$0xff]
        %v955 = vld [vmem:[%s5 + $0x168] sm:$0xff]
        %v956 = vld [vmem:[%s5 + $0x170] sm:$0xff]
        %v957 = vld [vmem:[%s5 + $0x178] sm:$0xff]
        %v958 = vld [vmem:[%s7] sm:$0x7]
        %v960 = vlaneseq
        %v961 = vshrl.u32 %v960, 7
        %v962 = vsub.s32 0, %v961
        %v963 = vrot.slane %v958, %v962
        %v964 = vlaneseq
        %v965 = vshrl.u32 %v964, 7
        %v966 = vsub.s32 1, %v965
        %v967 = vrot.slane %v958, %v966
        %v968 = vlaneseq
        %v969 = vshrl.u32 %v968, 7
        %v970 = vsub.s32 2, %v969
        %v971 = vrot.slane %v958, %v970
        %975 = vmatprep.subr.mxu0 %v956
        %976 = vmatpush1.msra.mxu0 %v955
        %977 = vmatprep.subr.mxu0 %v953
        %978 = vmatpush1.msra.mxu0 %v952
        %979 = vmatprep.subr.mxu0 %v950
        %980 = vmatpush1.msra.mxu0 %v949
        %981 = vmatprep.subr.mxu0 %v947
        %982 = vmatpush1.msra.mxu0 %v946
        %983 = vmatprep.subr.mxu0 %v944
        %984 = vmatpush1.msra.mxu0 %v943
        %985 = vmatprep.subr.mxu0 %v941
        %986 = vmatpush1.msra.mxu0 %v940
        %987 = vmatprep.subr.mxu0 %v938
        %988 = vmatpush1.msra.mxu0 %v937
        %989 = vmatprep.subr.mxu0 %v935
        %990 = vmatpush1.msra.mxu0 %v934
        %991 = vmatprep.subr.mxu0 %v932
        %992 = vmatpush1.msra.mxu0 %v931
        %993 = vmatprep.subr.mxu0 %v929
        %994 = vmatpush1.msra.mxu0 %v928
        %995 = vmatprep.subr.mxu0 %v926
        %996 = vmatpush1.msra.mxu0 %v925
        %997 = vmatprep.subr.mxu0 %v923
        %998 = vmatpush1.msra.mxu0 %v922
        %999 = vmatprep.subr.mxu0 %v920
        %1000 = vmatpush1.msra.mxu0 %v919
        %1001 = vmatprep.subr.mxu0 %v917
        %1002 = vmatpush1.msra.mxu0 %v916
        %1003 = vmatprep.subr.mxu0 %v914
        %1004 = vmatpush1.msra.mxu0 %v913
        %1005 = vmatprep.subr.mxu0 %v911
        %1006 = vmatpush1.msra.mxu0 %v910
        %1007 = vmatprep.subr.mxu0 0.0
        %1008 = vmatpush2.msra.mxu0 0.0
        %1009 = vmatprep.subr.mxu0 0.0
        %1010 = vmatpush2.msra.mxu0 0.0
        %1011 = vmatprep.subr.mxu0 0.0
        %1012 = vmatpush2.msra.mxu0 0.0
        %1013 = vmatprep.subr.mxu0 0.0
        %1014 = vmatpush2.msra.mxu0 0.0
        %1015 = vmatprep.subr.mxu0 0.0
        %1016 = vmatpush2.msra.mxu0 0.0
        %1017 = vmatprep.subr.mxu0 0.0
        %1018 = vmatpush2.msra.mxu0 0.0
        %1019 = vmatprep.subr.mxu0 0.0
        %1020 = vmatpush2.msra.mxu0 0.0
        %1021 = vmatprep.subr.mxu0 0.0
        %1022 = vmatpush2.msra.mxu0 0.0
        %1023 = vmatprep.subr.mxu0 0.0
        %1024 = vmatpush2.msra.mxu0 0.0
        %1025 = vmatprep.subr.mxu0 0.0
        %1026 = vmatpush2.msra.mxu0 0.0
        %1027 = vmatprep.subr.mxu0 0.0
        %1028 = vmatpush2.msra.mxu0 0.0
        %1029 = vmatprep.subr.mxu0 0.0
        %1030 = vmatpush2.msra.mxu0 0.0
        %1031 = vmatprep.subr.mxu0 0.0
        %1032 = vmatpush2.msra.mxu0 0.0
        %1033 = vmatprep.subr.mxu0 0.0
        %1034 = vmatpush2.msra.mxu0 0.0
        %1035 = vmatprep.subr.mxu0 0.0
        %1036 = vmatpush2.msra.mxu0 0.0
        %1037 = vmatprep.subr.mxu0 0.0
        %1038 = vmatpush2.msra.mxu0 0.0
        %1039 = vmatprep.mubr.f32.mxu0 0.0
        %1040 = vmatmul.mubr.f32.gmra.mxu0 %v511
        %v1041 = vpop.f32.mrf.mxu0
        %v1042 = vadd.f32 %v963, %v1041
        %v1043 = vpop.f32.mrf.mxu0
        %v1044 = vadd.f32 %v967, %v1043
        %1045 = vdwg.mxu0
        %1046 = vmatprep.subr.mxu0 0.0
        %1047 = vmatpush1.msra.mxu0 %v957
        %1048 = vmatprep.subr.mxu0 0.0
        %1049 = vmatpush1.msra.mxu0 %v954
        %1050 = vmatprep.subr.mxu0 0.0
        %1051 = vmatpush1.msra.mxu0 %v951
        %1052 = vmatprep.subr.mxu0 0.0
        %1053 = vmatpush1.msra.mxu0 %v948
        %1054 = vmatprep.subr.mxu0 0.0
        %1055 = vmatpush1.msra.mxu0 %v945
        %1056 = vmatprep.subr.mxu0 0.0
        %1057 = vmatpush1.msra.mxu0 %v942
        %1058 = vmatprep.subr.mxu0 0.0
        %1059 = vmatpush1.msra.mxu0 %v939
        %1060 = vmatprep.subr.mxu0 0.0
        %1061 = vmatpush1.msra.mxu0 %v936
        %1062 = vmatprep.subr.mxu0 0.0
        %1063 = vmatpush1.msra.mxu0 %v933
        %1064 = vmatprep.subr.mxu0 0.0
        %1065 = vmatpush1.msra.mxu0 %v930
        %1066 = vmatprep.subr.mxu0 0.0
        %1067 = vmatpush1.msra.mxu0 %v927
        %1068 = vmatprep.subr.mxu0 0.0
        %1069 = vmatpush1.msra.mxu0 %v924
        %1070 = vmatprep.subr.mxu0 0.0
        %1071 = vmatpush1.msra.mxu0 %v921
        %1072 = vmatprep.subr.mxu0 0.0
        %1073 = vmatpush1.msra.mxu0 %v918
        %1074 = vmatprep.subr.mxu0 0.0
        %1075 = vmatpush1.msra.mxu0 %v915
        %1076 = vmatprep.subr.mxu0 0.0
        %1077 = vmatpush1.msra.mxu0 %v912
        %1078 = vmatprep.subr.mxu0 0.0
        %1079 = vmatpush2.msra.mxu0 0.0
        %1080 = vmatprep.subr.mxu0 0.0
        %1081 = vmatpush2.msra.mxu0 0.0
        %1082 = vmatprep.subr.mxu0 0.0
        %1083 = vmatpush2.msra.mxu0 0.0
        %1084 = vmatprep.subr.mxu0 0.0
        %1085 = vmatpush2.msra.mxu0 0.0
        %1086 = vmatprep.subr.mxu0 0.0
        %1087 = vmatpush2.msra.mxu0 0.0
        %1088 = vmatprep.subr.mxu0 0.0
        %1089 = vmatpush2.msra.mxu0 0.0
        %1090 = vmatprep.subr.mxu0 0.0
        %1091 = vmatpush2.msra.mxu0 0.0
        %1092 = vmatprep.subr.mxu0 0.0
        %1093 = vmatpush2.msra.mxu0 0.0
        %1094 = vmatprep.subr.mxu0 0.0
        %1095 = vmatpush2.msra.mxu0 0.0
        %1096 = vmatprep.subr.mxu0 0.0
        %1097 = vmatpush2.msra.mxu0 0.0
        %1098 = vmatprep.subr.mxu0 0.0
        %1099 = vmatpush2.msra.mxu0 0.0
        %1100 = vmatprep.subr.mxu0 0.0
        %1101 = vmatpush2.msra.mxu0 0.0
        %1102 = vmatprep.subr.mxu0 0.0
        %1103 = vmatpush2.msra.mxu0 0.0
        %1104 = vmatprep.subr.mxu0 0.0
        %1105 = vmatpush2.msra.mxu0 0.0
        %1106 = vmatprep.subr.mxu0 0.0
        %1107 = vmatpush2.msra.mxu0 0.0
        %1108 = vmatprep.subr.mxu0 0.0
        %1109 = vmatpush2.msra.mxu0 0.0
        %1110 = vmatprep.mubr.f32.mxu0 0.0
        %1111 = vmatmul.mubr.f32.gmra.mxu0 %v511
        %v1112 = vpop.f32.mrf.mxu0
        %v1113 = vadd.f32 %v971, %v1112
        %v1114 = vpop.f32.mrf.mxu0
        %1115 = vdwg.mxu0
        %v1116 = vadd.f32 %v907, %v1042
        %v1117 = vxor.u32 %v1116, 2147483648
        %v1118 = vmul.f32 %v1117, 1.442695
        %v1119 = vpow.pop %v1118
        %v1120 = vadd.f32 %v1119, 1.0
        %v1121 = vrcp.pop %v1120
        %v1122 = vmul.f32 1.0, %v1121
        %v1123 = vadd.f32 %v908, %v1044
        %v1124 = vxor.u32 %v1123, 2147483648
        %v1125 = vmul.f32 %v1124, 1.442695
        %v1126 = vpow.pop %v1125
        %v1127 = vadd.f32 %v1126, 1.0
        %v1128 = vrcp.pop %v1127
        %v1129 = vmul.f32 1.0, %v1128
        %v1130 = vmul.f32 %v1122, %v1113
        %v1131 = vadd.f32 %v909, %v1130
        %v1132 = vtanh.pop %v1131
        %v1133 = vsub.f32 1.0, %v1129
        %v1134 = vmul.f32 %v1133, %v1132
        %v1135 = vmul.f32 %v1129, %v511
        %v1136 = vadd.f32 %v1134, %v1135
        %1137 = vst [vmem:[#allocation2] sm:$0x3] %v1136
        %v1138 = vld [vmem:[%s8] sm:$0xff]
        %v1139 = vld [vmem:[%s8 + $0x8] sm:$0xff]
        %v1140 = vld [vmem:[%s8 + $0x10] sm:$0xff]
        %v1141 = vld [vmem:[%s8 + $0x18] sm:$0xff]
        %v1142 = vld [vmem:[%s8 + $0x20] sm:$0xff]
        %v1143 = vld [vmem:[%s8 + $0x28] sm:$0xff]
        %v1144 = vld [vmem:[%s8 + $0x30] sm:$0xff]
        %v1145 = vld [vmem:[%s8 + $0x38] sm:$0xff]
        %v1146 = vld [vmem:[%s8 + $0x40] sm:$0xff]
        %v1147 = vld [vmem:[%s8 + $0x48] sm:$0xff]
        %v1148 = vld [vmem:[%s8 + $0x50] sm:$0xff]
        %v1149 = vld [vmem:[%s8 + $0x58] sm:$0xff]
        %v1150 = vld [vmem:[%s8 + $0x60] sm:$0xff]
        %v1151 = vld [vmem:[%s8 + $0x68] sm:$0xff]
        %v1152 = vld [vmem:[%s8 + $0x70] sm:$0xff]
        %v1153 = vld [vmem:[%s8 + $0x78] sm:$0xff]
        %v1154 = vld [vmem:[%s9] sm:$0x1]
        %v1156 = vlaneseq
        %v1157 = vshrl.u32 %v1156, 7
        %v1158 = vsub.s32 0, %v1157
        %v1159 = vrot.slane %v1154, %v1158
        %1161 = vmatprep.subr.mxu0 0.0
        %1162 = vmatpush1.msra.mxu0 %v1153
        %1163 = vmatprep.subr.mxu0 0.0
        %1164 = vmatpush1.msra.mxu0 %v1152
        %1165 = vmatprep.subr.mxu0 0.0
        %1166 = vmatpush1.msra.mxu0 %v1151
        %1167 = vmatprep.subr.mxu0 0.0
        %1168 = vmatpush1.msra.mxu0 %v1150
        %1169 = vmatprep.subr.mxu0 0.0
        %1170 = vmatpush1.msra.mxu0 %v1149
        %1171 = vmatprep.subr.mxu0 0.0
        %1172 = vmatpush1.msra.mxu0 %v1148
        %1173 = vmatprep.subr.mxu0 0.0
        %1174 = vmatpush1.msra.mxu0 %v1147
        %1175 = vmatprep.subr.mxu0 0.0
        %1176 = vmatpush1.msra.mxu0 %v1146
        %1177 = vmatprep.subr.mxu0 0.0
        %1178 = vmatpush1.msra.mxu0 %v1145
        %1179 = vmatprep.subr.mxu0 0.0
        %1180 = vmatpush1.msra.mxu0 %v1144
        %1181 = vmatprep.subr.mxu0 0.0
        %1182 = vmatpush1.msra.mxu0 %v1143
        %1183 = vmatprep.subr.mxu0 0.0
        %1184 = vmatpush1.msra.mxu0 %v1142
        %1185 = vmatprep.subr.mxu0 0.0
        %1186 = vmatpush1.msra.mxu0 %v1141
        %1187 = vmatprep.subr.mxu0 0.0
        %1188 = vmatpush1.msra.mxu0 %v1140
        %1189 = vmatprep.subr.mxu0 0.0
        %1190 = vmatpush1.msra.mxu0 %v1139
        %1191 = vmatprep.subr.mxu0 0.0
        %1192 = vmatpush1.msra.mxu0 %v1138
        %1193 = vmatprep.subr.mxu0 0.0
        %1194 = vmatpush2.msra.mxu0 0.0
        %1195 = vmatprep.subr.mxu0 0.0
        %1196 = vmatpush2.msra.mxu0 0.0
        %1197 = vmatprep.subr.mxu0 0.0
        %1198 = vmatpush2.msra.mxu0 0.0
        %1199 = vmatprep.subr.mxu0 0.0
        %1200 = vmatpush2.msra.mxu0 0.0
        %1201 = vmatprep.subr.mxu0 0.0
        %1202 = vmatpush2.msra.mxu0 0.0
        %1203 = vmatprep.subr.mxu0 0.0
        %1204 = vmatpush2.msra.mxu0 0.0
        %1205 = vmatprep.subr.mxu0 0.0
        %1206 = vmatpush2.msra.mxu0 0.0
        %1207 = vmatprep.subr.mxu0 0.0
        %1208 = vmatpush2.msra.mxu0 0.0
        %1209 = vmatprep.subr.mxu0 0.0
        %1210 = vmatpush2.msra.mxu0 0.0
        %1211 = vmatprep.subr.mxu0 0.0
        %1212 = vmatpush2.msra.mxu0 0.0
        %1213 = vmatprep.subr.mxu0 0.0
        %1214 = vmatpush2.msra.mxu0 0.0
        %1215 = vmatprep.subr.mxu0 0.0
        %1216 = vmatpush2.msra.mxu0 0.0
        %1217 = vmatprep.subr.mxu0 0.0
        %1218 = vmatpush2.msra.mxu0 0.0
        %1219 = vmatprep.subr.mxu0 0.0
        %1220 = vmatpush2.msra.mxu0 0.0
        %1221 = vmatprep.subr.mxu0 0.0
        %1222 = vmatpush2.msra.mxu0 0.0
        %1223 = vmatprep.subr.mxu0 0.0
        %1224 = vmatpush2.msra.mxu0 0.0
        %1225 = vmatprep.mubr.f32.mxu0 0.0
        %1226 = vmatmul.mubr.f32.gmra.mxu0 %v1136
        %v1227 = vpop.f32.mrf.mxu0
        %v1228 = vadd.f32 %v1159, %v1227
        %v1229 = vpop.f32.mrf.mxu0
        %1230 = vdwg.mxu0
        %v1231 = vmax.f32 %v1228, 0.0
        %v1232 = vld [vmem:[%s10] sm:$0xff]
        %v1233 = vld [vmem:[%s10 + $0x8] sm:$0xff]
        %v1234 = vld [vmem:[%s10 + $0x10] sm:$0xff]
        %v1235 = vld [vmem:[%s10 + $0x18] sm:$0xff]
        %v1236 = vld [vmem:[%s10 + $0x20] sm:$0xff]
        %v1237 = vld [vmem:[%s10 + $0x28] sm:$0xff]
        %v1238 = vld [vmem:[%s10 + $0x30] sm:$0xff]
        %v1239 = vld [vmem:[%s10 + $0x38] sm:$0xff]
        %v1240 = vld [vmem:[%s10 + $0x40] sm:$0xff]
        %v1241 = vld [vmem:[%s10 + $0x48] sm:$0xff]
        %v1242 = vld [vmem:[%s10 + $0x50] sm:$0xff]
        %v1243 = vld [vmem:[%s10 + $0x58] sm:$0xff]
        %v1244 = vld [vmem:[%s10 + $0x60] sm:$0xff]
        %v1245 = vld [vmem:[%s10 + $0x68] sm:$0xff]
        %v1246 = vld [vmem:[%s10 + $0x70] sm:$0xff]
        %v1247 = vld [vmem:[%s10 + $0x78] sm:$0xff]
        %v1248 = vld [vmem:[%s11] sm:$0x1]
        %v1250 = vlaneseq
        %v1251 = vshrl.u32 %v1250, 7
        %v1252 = vsub.s32 0, %v1251
        %v1253 = vrot.slane %v1248, %v1252
        %1255 = vmatprep.subr.mxu0 0.0
        %1256 = vmatpush1.msra.mxu0 %v1247
        %1257 = vmatprep.subr.mxu0 0.0
        %1258 = vmatpush1.msra.mxu0 %v1246
        %1259 = vmatprep.subr.mxu0 0.0
        %1260 = vmatpush1.msra.mxu0 %v1245
        %1261 = vmatprep.subr.mxu0 0.0
        %1262 = vmatpush1.msra.mxu0 %v1244
        %1263 = vmatprep.subr.mxu0 0.0
        %1264 = vmatpush1.msra.mxu0 %v1243
        %1265 = vmatprep.subr.mxu0 0.0
        %1266 = vmatpush1.msra.mxu0 %v1242
        %1267 = vmatprep.subr.mxu0 0.0
        %1268 = vmatpush1.msra.mxu0 %v1241
        %1269 = vmatprep.subr.mxu0 0.0
        %1270 = vmatpush1.msra.mxu0 %v1240
        %1271 = vmatprep.subr.mxu0 0.0
        %1272 = vmatpush1.msra.mxu0 %v1239
        %1273 = vmatprep.subr.mxu0 0.0
        %1274 = vmatpush1.msra.mxu0 %v1238
        %1275 = vmatprep.subr.mxu0 0.0
        %1276 = vmatpush1.msra.mxu0 %v1237
        %1277 = vmatprep.subr.mxu0 0.0
        %1278 = vmatpush1.msra.mxu0 %v1236
        %1279 = vmatprep.subr.mxu0 0.0
        %1280 = vmatpush1.msra.mxu0 %v1235
        %1281 = vmatprep.subr.mxu0 0.0
        %1282 = vmatpush1.msra.mxu0 %v1234
        %1283 = vmatprep.subr.mxu0 0.0
        %1284 = vmatpush1.msra.mxu0 %v1233
        %1285 = vmatprep.subr.mxu0 0.0
        %1286 = vmatpush1.msra.mxu0 %v1232
        %1287 = vmatprep.subr.mxu0 0.0
        %1288 = vmatpush2.msra.mxu0 0.0
        %1289 = vmatprep.subr.mxu0 0.0
        %1290 = vmatpush2.msra.mxu0 0.0
        %1291 = vmatprep.subr.mxu0 0.0
        %1292 = vmatpush2.msra.mxu0 0.0
        %1293 = vmatprep.subr.mxu0 0.0
        %1294 = vmatpush2.msra.mxu0 0.0
        %1295 = vmatprep.subr.mxu0 0.0
        %1296 = vmatpush2.msra.mxu0 0.0
        %1297 = vmatprep.subr.mxu0 0.0
        %1298 = vmatpush2.msra.mxu0 0.0
        %1299 = vmatprep.subr.mxu0 0.0
        %1300 = vmatpush2.msra.mxu0 0.0
        %1301 = vmatprep.subr.mxu0 0.0
        %1302 = vmatpush2.msra.mxu0 0.0
        %1303 = vmatprep.subr.mxu0 0.0
        %1304 = vmatpush2.msra.mxu0 0.0
        %1305 = vmatprep.subr.mxu0 0.0
        %1306 = vmatpush2.msra.mxu0 0.0
        %1307 = vmatprep.subr.mxu0 0.0
        %1308 = vmatpush2.msra.mxu0 0.0
        %1309 = vmatprep.subr.mxu0 0.0
        %1310 = vmatpush2.msra.mxu0 0.0
        %1311 = vmatprep.subr.mxu0 0.0
        %1312 = vmatpush2.msra.mxu0 0.0
        %1313 = vmatprep.subr.mxu0 0.0
        %1314 = vmatpush2.msra.mxu0 0.0
        %1315 = vmatprep.subr.mxu0 0.0
        %1316 = vmatpush2.msra.mxu0 0.0
        %1317 = vmatprep.subr.mxu0 0.0
        %1318 = vmatpush2.msra.mxu0 0.0
        %1319 = vmatprep.mubr.f32.mxu0 0.0
        %1320 = vmatmul.mubr.f32.gmra.mxu0 %v1231
        %v1321 = vpop.f32.mrf.mxu0
        %v1322 = vadd.f32 %v1253, %v1321
        %v1323 = vpop.f32.mrf.mxu0
        %1324 = vdwg.mxu0
        %vm1325 = vcmask 517120
        %v1326 = vsel %vm1325, %v1322, -inf
        %1327 = vmax.xlane.f32.xlu0 %v1326
        %v1328 = vpop.xlane.xlu0 %1327
        %v1329 = vsub.f32 %v1322, %v1328
        %v1330 = vmul.f32 %v1329, 1.442695
        %v1331 = vpow.pop %v1330
        %v1332 = vsel %vm1325, %v1331, 0.0
        %1333 = vadd.xlane.f32.xlu0 %v1332
        %v1334 = vpop.xlane.xlu0 %1333
        %v1335 = vlog2.pop %v1334
        %v1336 = vmul.f32 %v1335, 0.6931472
        %v1337 = vsub.f32 %v1329, %v1336
        %1338 = vst.msk [vmem:[%s404] sm:$0x3] %vm1325, %v1337
        %s1339 = sand.u32 %s291, 1
        %s1340 = scalar_lea.sflag [#allocation4], %s1339
        %s1341 = sand.u32 %s291, 1
        %s1342 = smul.addr %s1341, 2
        %s1343 = scalar_lea.vmem [#allocation3], %s1342
        // Predicated region
        $region73: #{m_csgnet_forward.11} parent=67 // pred_check
          %p1344 = pneg %p301
        $region74: #{m_csgnet_forward.11} parent=67 // pred_check_branch
          %1346 = sbr.rel (%p1344) target = $region76
        $region75: #{m_csgnet_forward.11} parent=67 // pred_region
          %s1348 = ssub.s32 32, 32
          %1349 = vsyncadd %s1340, %s1348
          %s1350 = smul.addr %s26, 32
          %s1351 = scalar_lea.hbm %s12, %s1350
          %s1353 = sshll.u32 %s1343, 4
          %s1354 = int_to_ptr.vmem [resolvable:$true] %s1353
          %1356 = dma.vmem_to_hbm [thread:$0]  %s1354, 32, %s1351, %s1340
        $region76: #{m_csgnet_forward.11} parent=67 // pred_fallthru
          _
      $region68: #{m_csgnet_forward.11} parent=5 // pred_fallthru
        _
      %p1357 = scmp.le.s32.totalorder 2, %s21
      // Predicated region
      $region77: #{m_csgnet_forward.11} parent=5 // pred_check
        %p1358 = pneg %p1357
      $region78: #{m_csgnet_forward.11} parent=5 // pred_check_branch
        %1360 = sbr.rel (%p1358) target = $region80
      $region79: #{m_csgnet_forward.11} parent=5 // pred_region
        %s1361 = ssub.s32 %s21, 2
        // Predicated region
        $region81: #{m_csgnet_forward.11} parent=79 // pred_check
          %p1362 = pneg %p307
        $region82: #{m_csgnet_forward.11} parent=79 // pred_check_branch
          %1364 = sbr.rel (%p1362) target = $region84
        $region83: #{m_csgnet_forward.11} parent=79 // pred_region
          %s1365 = sand.u32 %s292, 1
          %s1366 = scalar_lea.sflag [#allocation4], %s1365
          %s1367 = sand.u32 %s292, 1
          %s1368 = smul.addr %s1367, 2
          %s1369 = scalar_lea.vmem [#allocation3], %s1368
          %1370 = dma.done %s1366, 32
        $region84: #{m_csgnet_forward.11} parent=79 // pred_fallthru
          _
      $region80: #{m_csgnet_forward.11} parent=5 // pred_fallthru
        _
    $region6: #{m_csgnet_forward.11} parent=1 // loop_footer
      %s25 = sadd.s32 1, %s21
    $region7: #{m_csgnet_forward.11} parent=1 // loop_footer_branch
      %20 = sbr.rel target = $region3
    $region8: #{m_csgnet_forward.11} parent=1 // loop_exit
      _
    %1371 = vsyncpa [#allocation4], 1
    %s1372 = scalar_lea.sflag [#allocation4], 1
    %1373 = vsyncpa %s1372, 1

</llo_original>
